<compile_context>
chip_gen: v7x
topology: tpu7x:2x2x1
jax: 0.10.0
libtpu: 0.0.40
codegen_flags: <defaults>
</compile_context>

<pallas_src>
import numpy as np
import jax
import jax.numpy as jnp
from jax.experimental import pallas as pl
from jax.experimental.pallas import tpu as pltpu

_LANE = 128
_C1, _C2 = 4, 8            # conv out_channels (fixed by the module)


def _ceil_to(x, m):
    return ((x + m - 1) // m) * m


def _dims(batch, map_size, time_steps):
    """Static shape bookkeeping shared by packing and the forward wrapper."""
    N, CIN, DIN, HIN, WIN = batch, time_steps, time_steps, map_size, map_size
    D1 = (DIN - 1) // 2 + 1            # conv1 output depth   (stride 2, k=1)
    H1 = (HIN - 3) // 2 + 1            # conv1 output height  (stride 2, k=3)
    W1 = (WIN - 3) // 2 + 1            # conv1 output width
    D2, H2, W2 = D1, H1 - 1, W1 - 1    # conv2 output (stride 1, k=(1,2,2))
    NPOS1 = D1 * H1 * W1               # conv1 spatial positions (98)
    R1P = _ceil_to(NPOS1, 8)           # sublane-padded rows of the patch mat
    KREAL = N * CIN * 9 + 1            # patch columns + 1 bias(ones) column
    KP = _ceil_to(KREAL, _LANE)        # lane-padded patch width
    F2 = _C2 * D2 * H2 * W2            # flatten size (576)
    return dict(N=N, CIN=CIN, DIN=DIN, HIN=HIN, WIN=WIN,
                D1=D1, H1=H1, W1=W1, D2=D2, H2=H2, W2=W2,
                NPOS1=NPOS1, R1P=R1P, KREAL=KREAL, KP=KP, F2=F2)


# ----------------------------------------------------------------------------
# Fused kernel (single invocation, no grid): conv1 -> conv2(+flatten) ->
# dense1 -> dense2 for BOTH networks; everything stays in VMEM / vregs.
# ----------------------------------------------------------------------------
def _rnd_fused_kernel(p1_ref, w1_ref, w2c_ref, wd1_ref, wd2_ref, bias_ref,
                      out_ref):
    f32, bf16 = jnp.float32, jnp.bfloat16
    n_slots = w1_ref.shape[1] // _LANE          # 2 nets * 4 conv1 channels = 8
    c1 = n_slots // 2                           # conv1 channels per net (4)
    f2 = w2c_ref.shape[0] // n_slots            # flatten size (576)
    mid = wd1_ref.shape[0] // 2                 # 64
    outf = wd2_ref.shape[0] // 2                # 32
    bstride = bias_ref.shape[0] // 2            # per-net bias slab rows

    # conv1 for BOTH nets in one bf16 matmul; bias folded via the ones column.
    # y1 lanes are channel-major: lane = net*512 + c1*128 + n  (n = batch).
    y1 = jnp.dot(p1_ref[...], w1_ref[...], preferred_element_type=f32)
    y1 = jnp.maximum(y1, 0.0)                   # (R1P, 1024) f32

    for t in range(2):                          # t=0 target, t=1 predictor
        b0 = t * bstride
        b2 = bias_ref[b0:b0 + f2, :]                          # (576, 1) f32
        bd1 = bias_ref[b0 + f2:b0 + f2 + mid, :]              # (64, 1)
        bd2 = bias_ref[b0 + f2 + mid:b0 + f2 + mid + outf, :]  # (32, 1)

        # conv2 + flatten: the layout permutation is folded into w2c at pack
        # time, so it is just 4 matmuls against static 128-lane slices of y1.
        acc = None
        for c in range(c1):
            slot = t * c1 + c
            y1s = y1[:, slot * _LANE:(slot + 1) * _LANE].astype(bf16)
            part = jnp.dot(w2c_ref[slot * f2:(slot + 1) * f2, :], y1s,
                           preferred_element_type=f32)
            acc = part if acc is None else acc + part
        y2 = jnp.maximum(acc + b2, 0.0)                       # (576, 128) f32

        # dense1 / dense2 in transposed form: out.T = W @ x.T + b[:, None]
        d1 = jnp.dot(wd1_ref[t * mid:(t + 1) * mid, :], y2.astype(bf16),
                     preferred_element_type=f32) + bd1
        d1 = jnp.maximum(d1, 0.0)                             # (64, 128)
        d2 = jnp.dot(wd2_ref[t * outf:(t + 1) * outf, :], d1.astype(bf16),
                     preferred_element_type=f32) + bd2
        d2 = jnp.maximum(d2, 0.0)                             # (32, 128)

        out_ref[t * outf:(t + 1) * outf, :] = d2   # lane-dense; lanes<N valid


# ----------------------------------------------------------------------------
# Parameter construction (PyTorch layouts) + one-time packing into the
# bf16 / f32 slabs the kernel consumes.
# ----------------------------------------------------------------------------
def init_inputspace_params(key, map_size, time_steps):
    """Deterministic parameters for one Inputspace, PyTorch layouts/shapes."""
    ks = jax.random.split(key, 8)
    d1 = (time_steps - 1) // 2 + 1
    h1 = (map_size - 3) // 2 + 1
    d2, h2 = d1, h1 - 1
    flat = _C2 * d2 * h2 * h2

    def rnd(k, shape, scale):
        return jax.random.normal(k, shape, dtype=jnp.float32) * scale

    return {
        "conv1_w": rnd(ks[0], (_C1, time_steps, 1, 3, 3), 0.1),
        "conv1_b": rnd(ks[1], (_C1,), 0.01),
        "conv2_w": rnd(ks[2], (_C2, _C1, 1, 2, 2), 0.1),
        "conv2_b": rnd(ks[3], (_C2,), 0.01),
        "dense1_w": rnd(ks[4], (64, flat), 0.05),   # (out, in) like nn.Linear
        "dense1_b": rnd(ks[5], (64,), 0.01),
        "dense2_w": rnd(ks[6], (32, 64), 0.05),
        "dense2_b": rnd(ks[7], (32,), 0.01),
    }


def pack_rnd_params(target_params, predictor_params, batch, map_size,
                    time_steps):
    """Pack both networks' weights once at init.

    Lane budget: each conv1 channel owns a fixed 128-lane slot with batch in
    the low lanes, so memory scales O(batch) (not O(batch^2)); batch > 128
    would need batch tiling over an extra grid axis.
    """
    d = _dims(batch, map_size, time_steps)
    N, CIN = d["N"], d["CIN"]
    D1, H1, W1 = d["D1"], d["H1"], d["W1"]
    D2, H2, W2 = d["D2"], d["H2"], d["W2"]
    R1P, KP, F2 = d["R1P"], d["KP"], d["F2"]
    assert N <= _LANE, "batch must fit in the 128-lane dimension"
    MID = int(target_params["dense1_w"].shape[0])
    OUT = int(target_params["dense2_w"].shape[0])
    BSTRIDE = F2 + MID + OUT
    nets = [target_params, predictor_params]

    w1b = np.zeros((KP, 2 * _C1 * _LANE), np.float32)
    w2c = np.zeros((2 * _C1 * F2, R1P), np.float32)
    wd1 = np.zeros((2 * MID, F2), np.float32)
    wd2 = np.zeros((2 * OUT, MID), np.float32)
    bias = np.zeros((2 * BSTRIDE, 1), np.float32)

    for t, p in enumerate(nets):
        cw1 = np.asarray(p["conv1_w"], np.float32)
        cb1 = np.asarray(p["conv1_b"], np.float32)
        cw2 = np.asarray(p["conv2_w"], np.float32)
        cb2 = np.asarray(p["conv2_b"], np.float32)

        # conv1: channel-major lane packing; bias on the ones-column row.
        for c in range(_C1):
            for n in range(N):
                lane = (t * _C1 + c) * _LANE + n
                for ci in range(CIN):
                    for ky in range(3):
                        for kx in range(3):
                            row = ((n * CIN + ci) * 3 + ky) * 3 + kx
                            w1b[row, lane] = cw1[c, ci, 0, ky, kx]
                w1b[N * CIN * 9, lane] = cb1[c]

        # conv2 with the flatten/permutation folded in: one (F2 x R1P) block
        # per conv1 input channel (== the old "w2big @ a4[c]", built directly).
        for c2 in range(_C2):
            for dd in range(D2):
                for oy in range(H2):
                    for ox in range(W2):
                        f = ((c2 * D2 + dd) * H2 + oy) * W2 + ox
                        for c in range(_C1):
                            slot = t * _C1 + c
                            for ky in range(2):
                                for kx in range(2):
                                    pos = (dd * H1 + oy + ky) * W1 + (ox + kx)
                                    w2c[slot * F2 + f, pos] = cw2[c2, c, 0, ky, kx]

        wd1[t * MID:(t + 1) * MID, :] = np.asarray(p["dense1_w"], np.float32)
        wd2[t * OUT:(t + 1) * OUT, :] = np.asarray(p["dense2_w"], np.float32)
        b0 = t * BSTRIDE
        bias[b0:b0 + F2, 0] = np.repeat(cb2, D2 * H2 * W2)
        bias[b0 + F2:b0 + F2 + MID, 0] = np.asarray(p["dense1_b"], np.float32)
        bias[b0 + F2 + MID:b0 + BSTRIDE, 0] = np.asarray(p["dense2_b"], np.float32)

    return {
        "w1b": jnp.asarray(w1b, jnp.bfloat16),
        "w2c": jnp.asarray(w2c, jnp.bfloat16),
        "wd1": jnp.asarray(wd1, jnp.bfloat16),
        "wd2": jnp.asarray(wd2, jnp.bfloat16),
        "bias": jnp.asarray(bias, jnp.float32),
    }


# ----------------------------------------------------------------------------
# RNDModel.forward: (target_features, predictor_features), each (batch, 32).
# ----------------------------------------------------------------------------
@jax.jit
def rnd_forward(packed, states):
    N, CIN = states.shape[0], states.shape[1]
    HIN = states.shape[3]
    d = _dims(N, HIN, CIN)
    D1, H1, W1 = d["D1"], d["H1"], d["W1"]
    NPOS1, R1P, KREAL, KP = d["NPOS1"], d["R1P"], d["KREAL"], d["KP"]

    # conv1 im2col via static strided slices (no gather op): rows = spatial
    # positions (d,ho,wo); cols = (n, ci, ky, kx) + one constant-1 bias column.
    x = states.astype(jnp.float32)
    x = x[:, :, 0:2 * D1 - 1:2]                       # depth stride 2
    cols = []
    for ky in range(3):
        for kx in range(3):
            cols.append(x[:, :, :, ky:ky + 2 * H1 - 1:2, kx:kx + 2 * W1 - 1:2])
    pat = jnp.stack(cols, axis=-1)                    # (N, CIN, D1, H1, W1, 9)
    pat = pat.transpose(2, 3, 4, 0, 1, 5).reshape(NPOS1, N * CIN * 9)
    pat = jnp.concatenate([pat, jnp.ones((NPOS1, 1), jnp.float32)], axis=1)
    p1 = jnp.pad(pat, ((0, R1P - NPOS1), (0, KP - KREAL))).astype(jnp.bfloat16)

    OUT = packed["wd2"].shape[0] // 2
    out = pl.pallas_call(
        _rnd_fused_kernel,
        out_shape=jax.ShapeDtypeStruct((2 * OUT, _LANE), jnp.float32),
        compiler_params=pltpu.CompilerParams(vmem_limit_bytes=32 * 1024 * 1024),
    )(p1, packed["w1b"], packed["w2c"], packed["wd1"], packed["wd2"],
      packed["bias"])

    target_features = out[:OUT, :N].T        # (N, 32)
    predictor_features = out[OUT:2 * OUT, :N].T
    return target_features, predictor_features


# ----------------------------------------------------------------------------
# Plain-XLA reference (independent path) used to validate the fused kernel.
# ----------------------------------------------------------------------------
def inputspace_reference(p, states):
    prec = jax.lax.Precision.HIGHEST
    dn = ("NCDHW", "OIDHW", "NCDHW")
    x = states.astype(jnp.float32)
    y = jax.lax.conv_general_dilated(x, p["conv1_w"], window_strides=(2, 2, 2),
                                     padding="VALID", dimension_numbers=dn,
                                     precision=prec)
    y = jax.nn.relu(y + p["conv1_b"].reshape(1, -1, 1, 1, 1))
    y = jax.lax.conv_general_dilated(y, p["conv2_w"], window_strides=(1, 1, 1),
                                     padding="VALID", dimension_numbers=dn,
                                     precision=prec)
    y = jax.nn.relu(y + p["conv2_b"].reshape(1, -1, 1, 1, 1))
    y = y.reshape(y.shape[0], -1)
    y = jax.nn.relu(jnp.dot(y, p["dense1_w"].T, precision=prec) + p["dense1_b"])
    y = jax.nn.relu(jnp.dot(y, p["dense2_w"].T, precision=prec) + p["dense2_b"])
    return y


if __name__ == "__main__":
    batch, time_steps, map_size = 2, 4, 16
    key = jax.random.PRNGKey(0)
    k_x, k_t, k_p = jax.random.split(key, 3)

    # states: (N, C=time_steps, D=time_steps, H=map_size, W=map_size)
    states = jax.random.normal(
        k_x, (batch, time_steps, time_steps, map_size, map_size), jnp.float32)

    params_target = init_inputspace_params(k_t, map_size, time_steps)
    params_predictor = init_inputspace_params(k_p, map_size, time_steps)
    packed = pack_rnd_params(params_target, params_predictor,
                             batch, map_size, time_steps)

    tgt, pred = rnd_forward(packed, states)
    jax.block_until_ready((tgt, pred))
    assert tgt.shape == (batch, 32) and pred.shape == (batch, 32)

    # Validate against the plain-XLA reference (bf16 MXU operands, f32 acc).
    ref_t = inputspace_reference(params_target, states)
    ref_p = inputspace_reference(params_predictor, states)
    ok = (np.allclose(np.asarray(tgt), np.asarray(ref_t), rtol=1e-2, atol=1e-2)
          and np.allclose(np.asarray(pred), np.asarray(ref_p), rtol=1e-2, atol=1e-2))
    if not ok:
        raise AssertionError("Pallas RNDModel forward mismatch vs reference")

    print("KERNEL_OK")
</pallas_src>

<mosaic_0001>
module attributes {stable_mosaic.version = 11 : i64} {
  func.func @_rnd_fused_kernel(%arg0: memref<104x128xbf16, #tpu.memory_space<vmem>>, %arg1: memref<128x1024xbf16, #tpu.memory_space<vmem>>, %arg2: memref<4608x104xbf16, #tpu.memory_space<vmem>>, %arg3: memref<128x576xbf16, #tpu.memory_space<vmem>>, %arg4: memref<64x64xbf16, #tpu.memory_space<vmem>>, %arg5: memref<1344x1xf32, #tpu.memory_space<vmem>>, %arg6: memref<64x128xf32, #tpu.memory_space<vmem>>) attributes {dimension_semantics = [], scalar_prefetch = 0 : i64, scratch_operands = 0 : i64, tpu.core_type = #tpu.core_type<tc>} {
    %c0 = arith.constant 0 : index
    %c0_0 = arith.constant 0 : index
    %0 = vector.load %arg0[%c0, %c0_0] : memref<104x128xbf16, #tpu.memory_space<vmem>>, vector<104x128xbf16>
    %c0_1 = arith.constant 0 : index
    %c0_2 = arith.constant 0 : index
    %1 = vector.load %arg1[%c0_1, %c0_2] : memref<128x1024xbf16, #tpu.memory_space<vmem>>, vector<128x1024xbf16>
    %cst = arith.constant dense<0.000000e+00> : vector<104x1024xf32>
    %2 = tpu.matmul %0, %1, %cst {dimension_numbers = #tpu.dot_dimension_numbers<[1], [0], [0], [1], [0, 0, 1, 1], [], []>} : vector<104x128xbf16>, vector<128x1024xbf16>, vector<104x1024xf32> -> vector<104x1024xf32>
    %cst_3 = arith.constant 0.000000e+00 : f32
    %3 = vector.broadcast %cst_3 : f32 to vector<104x1024xf32>
    %4 = arith.maximumf %2, %3 : vector<104x1024xf32>
    %c0_4 = arith.constant 0 : index
    %c0_5 = arith.constant 0 : index
    %5 = vector.load %arg5[%c0_4, %c0_5] : memref<1344x1xf32, #tpu.memory_space<vmem>>, vector<576x1xf32>
    %c576 = arith.constant 576 : index
    %c0_6 = arith.constant 0 : index
    %6 = vector.load %arg5[%c576, %c0_6] : memref<1344x1xf32, #tpu.memory_space<vmem>>, vector<64x1xf32>
    %c640 = arith.constant 640 : index
    %c0_7 = arith.constant 0 : index
    %7 = vector.load %arg5[%c640, %c0_7] : memref<1344x1xf32, #tpu.memory_space<vmem>>, vector<32x1xf32>
    %8 = vector.extract_strided_slice %4 {offsets = [0, 0], sizes = [104, 128], strides = [1, 1]} : vector<104x1024xf32> to vector<104x128xf32>
    %9 = arith.truncf %8 : vector<104x128xf32> to vector<104x128xbf16>
    %c0_8 = arith.constant 0 : index
    %c0_9 = arith.constant 0 : index
    %10 = vector.load %arg2[%c0_8, %c0_9] : memref<4608x104xbf16, #tpu.memory_space<vmem>>, vector<576x104xbf16>
    %cst_10 = arith.constant dense<0.000000e+00> : vector<576x128xf32>
    %11 = tpu.matmul %10, %9, %cst_10 {dimension_numbers = #tpu.dot_dimension_numbers<[1], [0], [0], [1], [0, 0, 1, 1], [], []>} : vector<576x104xbf16>, vector<104x128xbf16>, vector<576x128xf32> -> vector<576x128xf32>
    %12 = vector.extract_strided_slice %4 {offsets = [0, 128], sizes = [104, 128], strides = [1, 1]} : vector<104x1024xf32> to vector<104x128xf32>
    %13 = arith.truncf %12 : vector<104x128xf32> to vector<104x128xbf16>
    %c576_11 = arith.constant 576 : index
    %c0_12 = arith.constant 0 : index
    %14 = vector.load %arg2[%c576_11, %c0_12] : memref<4608x104xbf16, #tpu.memory_space<vmem>>, vector<576x104xbf16>
    %cst_13 = arith.constant dense<0.000000e+00> : vector<576x128xf32>
    %15 = tpu.matmul %14, %13, %cst_13 {dimension_numbers = #tpu.dot_dimension_numbers<[1], [0], [0], [1], [0, 0, 1, 1], [], []>} : vector<576x104xbf16>, vector<104x128xbf16>, vector<576x128xf32> -> vector<576x128xf32>
    %16 = arith.addf %11, %15 : vector<576x128xf32>
    %17 = vector.extract_strided_slice %4 {offsets = [0, 256], sizes = [104, 128], strides = [1, 1]} : vector<104x1024xf32> to vector<104x128xf32>
    %18 = arith.truncf %17 : vector<104x128xf32> to vector<104x128xbf16>
    %c1152 = arith.constant 1152 : index
    %c0_14 = arith.constant 0 : index
    %19 = vector.load %arg2[%c1152, %c0_14] : memref<4608x104xbf16, #tpu.memory_space<vmem>>, vector<576x104xbf16>
    %cst_15 = arith.constant dense<0.000000e+00> : vector<576x128xf32>
    %20 = tpu.matmul %19, %18, %cst_15 {dimension_numbers = #tpu.dot_dimension_numbers<[1], [0], [0], [1], [0, 0, 1, 1], [], []>} : vector<576x104xbf16>, vector<104x128xbf16>, vector<576x128xf32> -> vector<576x128xf32>
    %21 = arith.addf %16, %20 : vector<576x128xf32>
    %22 = vector.extract_strided_slice %4 {offsets = [0, 384], sizes = [104, 128], strides = [1, 1]} : vector<104x1024xf32> to vector<104x128xf32>
    %23 = arith.truncf %22 : vector<104x128xf32> to vector<104x128xbf16>
    %c1728 = arith.constant 1728 : index
    %c0_16 = arith.constant 0 : index
    %24 = vector.load %arg2[%c1728, %c0_16] : memref<4608x104xbf16, #tpu.memory_space<vmem>>, vector<576x104xbf16>
    %cst_17 = arith.constant dense<0.000000e+00> : vector<576x128xf32>
    %25 = tpu.matmul %24, %23, %cst_17 {dimension_numbers = #tpu.dot_dimension_numbers<[1], [0], [0], [1], [0, 0, 1, 1], [], []>} : vector<576x104xbf16>, vector<104x128xbf16>, vector<576x128xf32> -> vector<576x128xf32>
    %26 = arith.addf %21, %25 : vector<576x128xf32>
    %27 = vector.broadcast %5 : vector<576x1xf32> to vector<576x128xf32>
    %28 = arith.addf %26, %27 : vector<576x128xf32>
    %cst_18 = arith.constant 0.000000e+00 : f32
    %29 = vector.broadcast %cst_18 : f32 to vector<576x128xf32>
    %30 = arith.maximumf %28, %29 : vector<576x128xf32>
    %c0_19 = arith.constant 0 : index
    %c0_20 = arith.constant 0 : index
    %31 = vector.load %arg3[%c0_19, %c0_20] : memref<128x576xbf16, #tpu.memory_space<vmem>>, vector<64x576xbf16>
    %32 = arith.truncf %30 : vector<576x128xf32> to vector<576x128xbf16>
    %cst_21 = arith.constant dense<0.000000e+00> : vector<64x128xf32>
    %33 = tpu.matmul %31, %32, %cst_21 {dimension_numbers = #tpu.dot_dimension_numbers<[1], [0], [0], [1], [0, 0, 1, 1], [], []>} : vector<64x576xbf16>, vector<576x128xbf16>, vector<64x128xf32> -> vector<64x128xf32>
    %34 = vector.broadcast %6 : vector<64x1xf32> to vector<64x128xf32>
    %35 = arith.addf %33, %34 : vector<64x128xf32>
    %cst_22 = arith.constant 0.000000e+00 : f32
    %36 = vector.broadcast %cst_22 : f32 to vector<64x128xf32>
    %37 = arith.maximumf %35, %36 : vector<64x128xf32>
    %c0_23 = arith.constant 0 : index
    %c0_24 = arith.constant 0 : index
    %38 = vector.load %arg4[%c0_23, %c0_24] : memref<64x64xbf16, #tpu.memory_space<vmem>>, vector<32x64xbf16>
    %39 = arith.truncf %37 : vector<64x128xf32> to vector<64x128xbf16>
    %cst_25 = arith.constant dense<0.000000e+00> : vector<32x128xf32>
    %40 = tpu.matmul %38, %39, %cst_25 {dimension_numbers = #tpu.dot_dimension_numbers<[1], [0], [0], [1], [0, 0, 1, 1], [], []>} : vector<32x64xbf16>, vector<64x128xbf16>, vector<32x128xf32> -> vector<32x128xf32>
    %41 = vector.broadcast %7 : vector<32x1xf32> to vector<32x128xf32>
    %42 = arith.addf %40, %41 : vector<32x128xf32>
    %cst_26 = arith.constant 0.000000e+00 : f32
    %43 = vector.broadcast %cst_26 : f32 to vector<32x128xf32>
    %44 = arith.maximumf %42, %43 : vector<32x128xf32>
    %c0_27 = arith.constant 0 : index
    %c0_28 = arith.constant 0 : index
    %45 = vector.load %arg6[%c0_27, %c0_28] : memref<64x128xf32, #tpu.memory_space<vmem>>, vector<32x128xf32>
    tpu.vector_store %arg6[%c0_27, %c0_28], %44 {strides = array<i32>} : memref<64x128xf32, #tpu.memory_space<vmem>>, vector<32x128xf32>,
    %c672 = arith.constant 672 : index
    %c0_29 = arith.constant 0 : index
    %46 = vector.load %arg5[%c672, %c0_29] : memref<1344x1xf32, #tpu.memory_space<vmem>>, vector<576x1xf32>
    %c1248 = arith.constant 1248 : index
    %c0_30 = arith.constant 0 : index
    %47 = vector.load %arg5[%c1248, %c0_30] : memref<1344x1xf32, #tpu.memory_space<vmem>>, vector<64x1xf32>
    %c1312 = arith.constant 1312 : index
    %c0_31 = arith.constant 0 : index
    %48 = vector.load %arg5[%c1312, %c0_31] : memref<1344x1xf32, #tpu.memory_space<vmem>>, vector<32x1xf32>
    %49 = vector.extract_strided_slice %4 {offsets = [0, 512], sizes = [104, 128], strides = [1, 1]} : vector<104x1024xf32> to vector<104x128xf32>
    %50 = arith.truncf %49 : vector<104x128xf32> to vector<104x128xbf16>
    %c2304 = arith.constant 2304 : index
    %c0_32 = arith.constant 0 : index
    %51 = vector.load %arg2[%c2304, %c0_32] : memref<4608x104xbf16, #tpu.memory_space<vmem>>, vector<576x104xbf16>
    %cst_33 = arith.constant dense<0.000000e+00> : vector<576x128xf32>
    %52 = tpu.matmul %51, %50, %cst_33 {dimension_numbers = #tpu.dot_dimension_numbers<[1], [0], [0], [1], [0, 0, 1, 1], [], []>} : vector<576x104xbf16>, vector<104x128xbf16>, vector<576x128xf32> -> vector<576x128xf32>
    %53 = vector.extract_strided_slice %4 {offsets = [0, 640], sizes = [104, 128], strides = [1, 1]} : vector<104x1024xf32> to vector<104x128xf32>
    %54 = arith.truncf %53 : vector<104x128xf32> to vector<104x128xbf16>
    %c2880 = arith.constant 2880 : index
    %c0_34 = arith.constant 0 : index
    %55 = vector.load %arg2[%c2880, %c0_34] : memref<4608x104xbf16, #tpu.memory_space<vmem>>, vector<576x104xbf16>
    %cst_35 = arith.constant dense<0.000000e+00> : vector<576x128xf32>
    %56 = tpu.matmul %55, %54, %cst_35 {dimension_numbers = #tpu.dot_dimension_numbers<[1], [0], [0], [1], [0, 0, 1, 1], [], []>} : vector<576x104xbf16>, vector<104x128xbf16>, vector<576x128xf32> -> vector<576x128xf32>
    %57 = arith.addf %52, %56 : vector<576x128xf32>
    %58 = vector.extract_strided_slice %4 {offsets = [0, 768], sizes = [104, 128], strides = [1, 1]} : vector<104x1024xf32> to vector<104x128xf32>
    %59 = arith.truncf %58 : vector<104x128xf32> to vector<104x128xbf16>
    %c3456 = arith.constant 3456 : index
    %c0_36 = arith.constant 0 : index
    %60 = vector.load %arg2[%c3456, %c0_36] : memref<4608x104xbf16, #tpu.memory_space<vmem>>, vector<576x104xbf16>
    %cst_37 = arith.constant dense<0.000000e+00> : vector<576x128xf32>
    %61 = tpu.matmul %60, %59, %cst_37 {dimension_numbers = #tpu.dot_dimension_numbers<[1], [0], [0], [1], [0, 0, 1, 1], [], []>} : vector<576x104xbf16>, vector<104x128xbf16>, vector<576x128xf32> -> vector<576x128xf32>
    %62 = arith.addf %57, %61 : vector<576x128xf32>
    %63 = vector.extract_strided_slice %4 {offsets = [0, 896], sizes = [104, 128], strides = [1, 1]} : vector<104x1024xf32> to vector<104x128xf32>
    %64 = arith.truncf %63 : vector<104x128xf32> to vector<104x128xbf16>
    %c4032 = arith.constant 4032 : index
    %c0_38 = arith.constant 0 : index
    %65 = vector.load %arg2[%c4032, %c0_38] : memref<4608x104xbf16, #tpu.memory_space<vmem>>, vector<576x104xbf16>
    %cst_39 = arith.constant dense<0.000000e+00> : vector<576x128xf32>
    %66 = tpu.matmul %65, %64, %cst_39 {dimension_numbers = #tpu.dot_dimension_numbers<[1], [0], [0], [1], [0, 0, 1, 1], [], []>} : vector<576x104xbf16>, vector<104x128xbf16>, vector<576x128xf32> -> vector<576x128xf32>
    %67 = arith.addf %62, %66 : vector<576x128xf32>
    %68 = vector.broadcast %46 : vector<576x1xf32> to vector<576x128xf32>
    %69 = arith.addf %67, %68 : vector<576x128xf32>
    %cst_40 = arith.constant 0.000000e+00 : f32
    %70 = vector.broadcast %cst_40 : f32 to vector<576x128xf32>
    %71 = arith.maximumf %69, %70 : vector<576x128xf32>
    %c64 = arith.constant 64 : index
    %c0_41 = arith.constant 0 : index
    %72 = vector.load %arg3[%c64, %c0_41] : memref<128x576xbf16, #tpu.memory_space<vmem>>, vector<64x576xbf16>
    %73 = arith.truncf %71 : vector<576x128xf32> to vector<576x128xbf16>
    %cst_42 = arith.constant dense<0.000000e+00> : vector<64x128xf32>
    %74 = tpu.matmul %72, %73, %cst_42 {dimension_numbers = #tpu.dot_dimension_numbers<[1], [0], [0], [1], [0, 0, 1, 1], [], []>} : vector<64x576xbf16>, vector<576x128xbf16>, vector<64x128xf32> -> vector<64x128xf32>
    %75 = vector.broadcast %47 : vector<64x1xf32> to vector<64x128xf32>
    %76 = arith.addf %74, %75 : vector<64x128xf32>
    %cst_43 = arith.constant 0.000000e+00 : f32
    %77 = vector.broadcast %cst_43 : f32 to vector<64x128xf32>
    %78 = arith.maximumf %76, %77 : vector<64x128xf32>
    %c32 = arith.constant 32 : index
    %c0_44 = arith.constant 0 : index
    %79 = vector.load %arg4[%c32, %c0_44] : memref<64x64xbf16, #tpu.memory_space<vmem>>, vector<32x64xbf16>
    %80 = arith.truncf %78 : vector<64x128xf32> to vector<64x128xbf16>
    %cst_45 = arith.constant dense<0.000000e+00> : vector<32x128xf32>
    %81 = tpu.matmul %79, %80, %cst_45 {dimension_numbers = #tpu.dot_dimension_numbers<[1], [0], [0], [1], [0, 0, 1, 1], [], []>} : vector<32x64xbf16>, vector<64x128xbf16>, vector<32x128xf32> -> vector<32x128xf32>
    %82 = vector.broadcast %48 : vector<32x1xf32> to vector<32x128xf32>
    %83 = arith.addf %81, %82 : vector<32x128xf32>
    %cst_46 = arith.constant 0.000000e+00 : f32
    %84 = vector.broadcast %cst_46 : f32 to vector<32x128xf32>
    %85 = arith.maximumf %83, %84 : vector<32x128xf32>
    %c32_47 = arith.constant 32 : index
    %c0_48 = arith.constant 0 : index
    %86 = vector.load %arg6[%c32_47, %c0_48] : memref<64x128xf32, #tpu.memory_space<vmem>>, vector<32x128xf32>
    tpu.vector_store %arg6[%c32_47, %c0_48], %85 {strides = array<i32>} : memref<64x128xf32, #tpu.memory_space<vmem>>, vector<32x128xf32>,
    return
  }
}

</mosaic_0001>

<llo_original>
// kernel: rnd_forward.1
$region0: #{rnd_forward.1}
  #allocation0 [shape = 'u32[]', space=smem, size = 0x4, offset = 0x4, fixed_abs, tag = 'smem constant byte address 0x4 - core index']
  #allocation1 [shape = 'u32[144,128]{1,0:T(1,128)}', space=vmem, size = 0x12000, scoped, tag = 'internal scratch']
  %s0 = inlined_call_operand.vmem [shape: bf16[104,128], index: 0, kind: input, shape index: {}]
  %s1 = inlined_call_operand.vmem [shape: bf16[128,1024], index: 1, kind: input, shape index: {}]
  %s2 = inlined_call_operand.vmem [shape: bf16[4608,104], index: 2, kind: input, shape index: {}]
  %s3 = inlined_call_operand.vmem [shape: bf16[128,576], index: 3, kind: input, shape index: {}]
  %s4 = inlined_call_operand.vmem [shape: bf16[64,64], index: 4, kind: input, shape index: {}]
  %s5 = inlined_call_operand.vmem [shape: f32[1344,1], index: 5, kind: input, shape index: {}]
  %s6 = inlined_call_operand.vmem [shape: f32[64,128], index: 6, kind: output, shape index: {}]
  %s7 = sld [smem:[#allocation0]]
  $region34: #{rnd_forward.1} parent=0
    _
  %s9 = ssub.s32 1, %s7
  %s10 = scalar_select 0, %s9, %s7
  // Predicated region
  $region2: #{rnd_forward.1} parent=0 // pred_check
    _
  $region3: #{rnd_forward.1} parent=0 // pred_check_branch
    %12 = sbr.rel (0) target = $region5
  $region4: #{rnd_forward.1} parent=0 // pred_region
    _
  $region5: #{rnd_forward.1} parent=0 // pred_fallthru
    _
  // Predicated region
  $region6: #{rnd_forward.1} parent=0 // pred_check
    _
  $region7: #{rnd_forward.1} parent=0 // pred_check_branch
    %14 = sbr.rel (0) target = $region9
  $region8: #{rnd_forward.1} parent=0 // pred_region
    _
  $region9: #{rnd_forward.1} parent=0 // pred_fallthru
    _
  // Predicated region
  $region10: #{rnd_forward.1} parent=0 // pred_check
    _
  $region11: #{rnd_forward.1} parent=0 // pred_check_branch
    %16 = sbr.rel (0) target = $region13
  $region12: #{rnd_forward.1} parent=0 // pred_region
    _
  $region13: #{rnd_forward.1} parent=0 // pred_fallthru
    _
  // Predicated region
  $region14: #{rnd_forward.1} parent=0 // pred_check
    _
  $region15: #{rnd_forward.1} parent=0 // pred_check_branch
    %18 = sbr.rel (0) target = $region17
  $region16: #{rnd_forward.1} parent=0 // pred_region
    _
  $region17: #{rnd_forward.1} parent=0 // pred_fallthru
    _
  // Predicated region
  $region18: #{rnd_forward.1} parent=0 // pred_check
    _
  $region19: #{rnd_forward.1} parent=0 // pred_check_branch
    %20 = sbr.rel (0) target = $region21
  $region20: #{rnd_forward.1} parent=0 // pred_region
    _
  $region21: #{rnd_forward.1} parent=0 // pred_fallthru
    _
  // Predicated region
  $region22: #{rnd_forward.1} parent=0 // pred_check
    _
  $region23: #{rnd_forward.1} parent=0 // pred_check_branch
    %22 = sbr.rel (0) target = $region25
  $region24: #{rnd_forward.1} parent=0 // pred_region
    _
  $region25: #{rnd_forward.1} parent=0 // pred_fallthru
    _
  %v24 = vld [vmem:[%s0] sm:$0xf]
  %v25 = vld [vmem:[%s0 + $0x4] sm:$0xf]
  %v26 = vld [vmem:[%s0 + $0x8] sm:$0xf]
  %v27 = vld [vmem:[%s0 + $0xc] sm:$0xf]
  %v28 = vld [vmem:[%s0 + $0x10] sm:$0xf]
  %v29 = vld [vmem:[%s0 + $0x14] sm:$0xf]
  %v30 = vld [vmem:[%s0 + $0x18] sm:$0xf]
  %v31 = vld [vmem:[%s0 + $0x1c] sm:$0xf]
  %v32 = vld [vmem:[%s0 + $0x20] sm:$0xf]
  %v33 = vld [vmem:[%s0 + $0x24] sm:$0xf]
  %v34 = vld [vmem:[%s0 + $0x28] sm:$0xf]
  %v35 = vld [vmem:[%s0 + $0x2c] sm:$0xf]
  %v36 = vld [vmem:[%s0 + $0x30] sm:$0xf]
  %v37 = vld [vmem:[%s1] sm:$0xff]
  %v38 = vld [vmem:[%s1 + $0x8] sm:$0xff]
  %v39 = vld [vmem:[%s1 + $0x10] sm:$0xff]
  %v40 = vld [vmem:[%s1 + $0x18] sm:$0xff]
  %v41 = vld [vmem:[%s1 + $0x20] sm:$0xff]
  %v42 = vld [vmem:[%s1 + $0x28] sm:$0xff]
  %v43 = vld [vmem:[%s1 + $0x30] sm:$0xff]
  %v44 = vld [vmem:[%s1 + $0x38] sm:$0xff]
  %v45 = vld [vmem:[%s1 + $0x40] sm:$0xff]
  %v46 = vld [vmem:[%s1 + $0x48] sm:$0xff]
  %v47 = vld [vmem:[%s1 + $0x50] sm:$0xff]
  %v48 = vld [vmem:[%s1 + $0x58] sm:$0xff]
  %v49 = vld [vmem:[%s1 + $0x60] sm:$0xff]
  %v50 = vld [vmem:[%s1 + $0x68] sm:$0xff]
  %v51 = vld [vmem:[%s1 + $0x70] sm:$0xff]
  %v52 = vld [vmem:[%s1 + $0x78] sm:$0xff]
  %v53 = vld [vmem:[%s1 + $0x80] sm:$0xff]
  %v54 = vld [vmem:[%s1 + $0x88] sm:$0xff]
  %v55 = vld [vmem:[%s1 + $0x90] sm:$0xff]
  %v56 = vld [vmem:[%s1 + $0x98] sm:$0xff]
  %v57 = vld [vmem:[%s1 + $0xa0] sm:$0xff]
  %v58 = vld [vmem:[%s1 + $0xa8] sm:$0xff]
  %v59 = vld [vmem:[%s1 + $0xb0] sm:$0xff]
  %v60 = vld [vmem:[%s1 + $0xb8] sm:$0xff]
  %v61 = vld [vmem:[%s1 + $0xc0] sm:$0xff]
  %v62 = vld [vmem:[%s1 + $0xc8] sm:$0xff]
  %v63 = vld [vmem:[%s1 + $0xd0] sm:$0xff]
  %v64 = vld [vmem:[%s1 + $0xd8] sm:$0xff]
  %v65 = vld [vmem:[%s1 + $0xe0] sm:$0xff]
  %v66 = vld [vmem:[%s1 + $0xe8] sm:$0xff]
  %v67 = vld [vmem:[%s1 + $0xf0] sm:$0xff]
  %v68 = vld [vmem:[%s1 + $0xf8] sm:$0xff]
  %v69 = vld [vmem:[%s1 + $0x100] sm:$0xff]
  %v70 = vld [vmem:[%s1 + $0x108] sm:$0xff]
  %v71 = vld [vmem:[%s1 + $0x110] sm:$0xff]
  %v72 = vld [vmem:[%s1 + $0x118] sm:$0xff]
  %v73 = vld [vmem:[%s1 + $0x120] sm:$0xff]
  %v74 = vld [vmem:[%s1 + $0x128] sm:$0xff]
  %v75 = vld [vmem:[%s1 + $0x130] sm:$0xff]
  %v76 = vld [vmem:[%s1 + $0x138] sm:$0xff]
  %v77 = vld [vmem:[%s1 + $0x140] sm:$0xff]
  %v78 = vld [vmem:[%s1 + $0x148] sm:$0xff]
  %v79 = vld [vmem:[%s1 + $0x150] sm:$0xff]
  %v80 = vld [vmem:[%s1 + $0x158] sm:$0xff]
  %v81 = vld [vmem:[%s1 + $0x160] sm:$0xff]
  %v82 = vld [vmem:[%s1 + $0x168] sm:$0xff]
  %v83 = vld [vmem:[%s1 + $0x170] sm:$0xff]
  %v84 = vld [vmem:[%s1 + $0x178] sm:$0xff]
  %v85 = vld [vmem:[%s1 + $0x180] sm:$0xff]
  %v86 = vld [vmem:[%s1 + $0x188] sm:$0xff]
  %v87 = vld [vmem:[%s1 + $0x190] sm:$0xff]
  %v88 = vld [vmem:[%s1 + $0x198] sm:$0xff]
  %v89 = vld [vmem:[%s1 + $0x1a0] sm:$0xff]
  %v90 = vld [vmem:[%s1 + $0x1a8] sm:$0xff]
  %v91 = vld [vmem:[%s1 + $0x1b0] sm:$0xff]
  %v92 = vld [vmem:[%s1 + $0x1b8] sm:$0xff]
  %v93 = vld [vmem:[%s1 + $0x1c0] sm:$0xff]
  %v94 = vld [vmem:[%s1 + $0x1c8] sm:$0xff]
  %v95 = vld [vmem:[%s1 + $0x1d0] sm:$0xff]
  %v96 = vld [vmem:[%s1 + $0x1d8] sm:$0xff]
  %v97 = vld [vmem:[%s1 + $0x1e0] sm:$0xff]
  %v98 = vld [vmem:[%s1 + $0x1e8] sm:$0xff]
  %v99 = vld [vmem:[%s1 + $0x1f0] sm:$0xff]
  %v100 = vld [vmem:[%s1 + $0x1f8] sm:$0xff]
  %v114 = vunpack.c.l.b16 %v24
  %v115 = vunpack.c.l.b16 %v25
  %v116 = vunpack.c.l.b16 %v26
  %v117 = vunpack.c.l.b16 %v27
  %v118 = vunpack.c.l.b16 %v28
  %v119 = vunpack.c.l.b16 %v29
  %v120 = vunpack.c.l.b16 %v30
  %v121 = vunpack.c.l.b16 %v31
  %v122 = vunpack.c.l.b16 %v32
  %v123 = vunpack.c.l.b16 %v33
  %v124 = vunpack.c.l.b16 %v34
  %v125 = vunpack.c.l.b16 %v35
  %v126 = vunpack.c.l.b16 %v36
  %v127 = vpack.c.b16 %v115, %v114
  %v128 = vpack.c.b16 %v117, %v116
  %v129 = vpack.c.b16 %v119, %v118
  %v130 = vpack.c.b16 %v121, %v120
  %v131 = vpack.c.b16 %v123, %v122
  %v132 = vpack.c.b16 %v125, %v124
  %v133 = vpack.c.b16 %v126, %v126
  %v205 = vunpack.c.l.b16 %v37
  %v206 = vunpack.c.h.b16 %v37
  %v207 = vunpack.c.l.b16 %v38
  %v208 = vunpack.c.h.b16 %v38
  %v209 = vunpack.c.l.b16 %v39
  %v210 = vunpack.c.h.b16 %v39
  %v211 = vunpack.c.l.b16 %v40
  %v212 = vunpack.c.h.b16 %v40
  %v213 = vunpack.c.l.b16 %v41
  %v214 = vunpack.c.h.b16 %v41
  %v215 = vunpack.c.l.b16 %v42
  %v216 = vunpack.c.h.b16 %v42
  %v217 = vunpack.c.l.b16 %v43
  %v218 = vunpack.c.h.b16 %v43
  %v219 = vunpack.c.l.b16 %v44
  %v220 = vunpack.c.h.b16 %v44
  %v221 = vunpack.c.l.b16 %v45
  %v222 = vunpack.c.h.b16 %v45
  %v223 = vunpack.c.l.b16 %v46
  %v224 = vunpack.c.h.b16 %v46
  %v225 = vunpack.c.l.b16 %v47
  %v226 = vunpack.c.h.b16 %v47
  %v227 = vunpack.c.l.b16 %v48
  %v228 = vunpack.c.h.b16 %v48
  %v229 = vunpack.c.l.b16 %v49
  %v230 = vunpack.c.h.b16 %v49
  %v231 = vunpack.c.l.b16 %v50
  %v232 = vunpack.c.h.b16 %v50
  %v233 = vunpack.c.l.b16 %v51
  %v234 = vunpack.c.h.b16 %v51
  %v235 = vunpack.c.l.b16 %v52
  %v236 = vunpack.c.h.b16 %v52
  %v237 = vunpack.c.l.b16 %v53
  %v238 = vunpack.c.h.b16 %v53
  %v239 = vunpack.c.l.b16 %v54
  %v240 = vunpack.c.h.b16 %v54
  %v241 = vunpack.c.l.b16 %v55
  %v242 = vunpack.c.h.b16 %v55
  %v243 = vunpack.c.l.b16 %v56
  %v244 = vunpack.c.h.b16 %v56
  %v245 = vunpack.c.l.b16 %v57
  %v246 = vunpack.c.h.b16 %v57
  %v247 = vunpack.c.l.b16 %v58
  %v248 = vunpack.c.h.b16 %v58
  %v249 = vunpack.c.l.b16 %v59
  %v250 = vunpack.c.h.b16 %v59
  %v251 = vunpack.c.l.b16 %v60
  %v252 = vunpack.c.h.b16 %v60
  %v253 = vunpack.c.l.b16 %v61
  %v254 = vunpack.c.h.b16 %v61
  %v255 = vunpack.c.l.b16 %v62
  %v256 = vunpack.c.h.b16 %v62
  %v257 = vunpack.c.l.b16 %v63
  %v258 = vunpack.c.h.b16 %v63
  %v259 = vunpack.c.l.b16 %v64
  %v260 = vunpack.c.h.b16 %v64
  %v261 = vunpack.c.l.b16 %v65
  %v262 = vunpack.c.h.b16 %v65
  %v263 = vunpack.c.l.b16 %v66
  %v264 = vunpack.c.h.b16 %v66
  %v265 = vunpack.c.l.b16 %v67
  %v266 = vunpack.c.h.b16 %v67
  %v267 = vunpack.c.l.b16 %v68
  %v268 = vunpack.c.h.b16 %v68
  %v269 = vunpack.c.l.b16 %v69
  %v270 = vunpack.c.h.b16 %v69
  %v271 = vunpack.c.l.b16 %v70
  %v272 = vunpack.c.h.b16 %v70
  %v273 = vunpack.c.l.b16 %v71
  %v274 = vunpack.c.h.b16 %v71
  %v275 = vunpack.c.l.b16 %v72
  %v276 = vunpack.c.h.b16 %v72
  %v277 = vunpack.c.l.b16 %v73
  %v278 = vunpack.c.h.b16 %v73
  %v279 = vunpack.c.l.b16 %v74
  %v280 = vunpack.c.h.b16 %v74
  %v281 = vunpack.c.l.b16 %v75
  %v282 = vunpack.c.h.b16 %v75
  %v283 = vunpack.c.l.b16 %v76
  %v284 = vunpack.c.h.b16 %v76
  %v285 = vunpack.c.l.b16 %v77
  %v286 = vunpack.c.h.b16 %v77
  %v287 = vunpack.c.l.b16 %v78
  %v288 = vunpack.c.h.b16 %v78
  %v289 = vunpack.c.l.b16 %v79
  %v290 = vunpack.c.h.b16 %v79
  %v291 = vunpack.c.l.b16 %v80
  %v292 = vunpack.c.h.b16 %v80
  %v293 = vunpack.c.l.b16 %v81
  %v294 = vunpack.c.h.b16 %v81
  %v295 = vunpack.c.l.b16 %v82
  %v296 = vunpack.c.h.b16 %v82
  %v297 = vunpack.c.l.b16 %v83
  %v298 = vunpack.c.h.b16 %v83
  %v299 = vunpack.c.l.b16 %v84
  %v300 = vunpack.c.h.b16 %v84
  %v301 = vunpack.c.l.b16 %v85
  %v302 = vunpack.c.h.b16 %v85
  %v303 = vunpack.c.l.b16 %v86
  %v304 = vunpack.c.h.b16 %v86
  %v305 = vunpack.c.l.b16 %v87
  %v306 = vunpack.c.h.b16 %v87
  %v307 = vunpack.c.l.b16 %v88
  %v308 = vunpack.c.h.b16 %v88
  %v309 = vunpack.c.l.b16 %v89
  %v310 = vunpack.c.h.b16 %v89
  %v311 = vunpack.c.l.b16 %v90
  %v312 = vunpack.c.h.b16 %v90
  %v313 = vunpack.c.l.b16 %v91
  %v314 = vunpack.c.h.b16 %v91
  %v315 = vunpack.c.l.b16 %v92
  %v316 = vunpack.c.h.b16 %v92
  %v317 = vunpack.c.l.b16 %v93
  %v318 = vunpack.c.h.b16 %v93
  %v319 = vunpack.c.l.b16 %v94
  %v320 = vunpack.c.h.b16 %v94
  %v321 = vunpack.c.l.b16 %v95
  %v322 = vunpack.c.h.b16 %v95
  %v323 = vunpack.c.l.b16 %v96
  %v324 = vunpack.c.h.b16 %v96
  %v325 = vunpack.c.l.b16 %v97
  %v326 = vunpack.c.h.b16 %v97
  %v327 = vunpack.c.l.b16 %v98
  %v328 = vunpack.c.h.b16 %v98
  %v329 = vunpack.c.l.b16 %v99
  %v330 = vunpack.c.h.b16 %v99
  %v331 = vunpack.c.l.b16 %v100
  %v332 = vunpack.c.h.b16 %v100
  %v333 = vpack.c.b16 %v213, %v205
  %v334 = vpack.c.b16 %v214, %v206
  %v335 = vpack.c.b16 %v215, %v207
  %v336 = vpack.c.b16 %v216, %v208
  %v337 = vpack.c.b16 %v217, %v209
  %v338 = vpack.c.b16 %v218, %v210
  %v339 = vpack.c.b16 %v219, %v211
  %v340 = vpack.c.b16 %v220, %v212
  %v341 = vpack.c.b16 %v229, %v221
  %v342 = vpack.c.b16 %v230, %v222
  %v343 = vpack.c.b16 %v231, %v223
  %v344 = vpack.c.b16 %v232, %v224
  %v345 = vpack.c.b16 %v233, %v225
  %v346 = vpack.c.b16 %v234, %v226
  %v347 = vpack.c.b16 %v235, %v227
  %v348 = vpack.c.b16 %v236, %v228
  %v349 = vpack.c.b16 %v245, %v237
  %v350 = vpack.c.b16 %v246, %v238
  %v351 = vpack.c.b16 %v247, %v239
  %v352 = vpack.c.b16 %v248, %v240
  %v353 = vpack.c.b16 %v249, %v241
  %v354 = vpack.c.b16 %v250, %v242
  %v355 = vpack.c.b16 %v251, %v243
  %v356 = vpack.c.b16 %v252, %v244
  %v357 = vpack.c.b16 %v261, %v253
  %v358 = vpack.c.b16 %v262, %v254
  %v359 = vpack.c.b16 %v263, %v255
  %v360 = vpack.c.b16 %v264, %v256
  %v361 = vpack.c.b16 %v265, %v257
  %v362 = vpack.c.b16 %v266, %v258
  %v363 = vpack.c.b16 %v267, %v259
  %v364 = vpack.c.b16 %v268, %v260
  %v365 = vpack.c.b16 %v277, %v269
  %v366 = vpack.c.b16 %v278, %v270
  %v367 = vpack.c.b16 %v279, %v271
  %v368 = vpack.c.b16 %v280, %v272
  %v369 = vpack.c.b16 %v281, %v273
  %v370 = vpack.c.b16 %v282, %v274
  %v371 = vpack.c.b16 %v283, %v275
  %v372 = vpack.c.b16 %v284, %v276
  %v373 = vpack.c.b16 %v293, %v285
  %v374 = vpack.c.b16 %v294, %v286
  %v375 = vpack.c.b16 %v295, %v287
  %v376 = vpack.c.b16 %v296, %v288
  %v377 = vpack.c.b16 %v297, %v289
  %v378 = vpack.c.b16 %v298, %v290
  %v379 = vpack.c.b16 %v299, %v291
  %v380 = vpack.c.b16 %v300, %v292
  %v381 = vpack.c.b16 %v309, %v301
  %v382 = vpack.c.b16 %v310, %v302
  %v383 = vpack.c.b16 %v311, %v303
  %v384 = vpack.c.b16 %v312, %v304
  %v385 = vpack.c.b16 %v313, %v305
  %v386 = vpack.c.b16 %v314, %v306
  %v387 = vpack.c.b16 %v315, %v307
  %v388 = vpack.c.b16 %v316, %v308
  %v389 = vpack.c.b16 %v325, %v317
  %v390 = vpack.c.b16 %v326, %v318
  %v391 = vpack.c.b16 %v327, %v319
  %v392 = vpack.c.b16 %v328, %v320
  %v393 = vpack.c.b16 %v329, %v321
  %v394 = vpack.c.b16 %v330, %v322
  %v395 = vpack.c.b16 %v331, %v323
  %v396 = vpack.c.b16 %v332, %v324
  %461 = vmatprep.subr.bf16.mxu0 %v334
  %462 = vmatpush1.bf16.msra.mxu0 %v333
  %463 = vmatprep.subr.bf16.mxu0 %v342
  %464 = vmatpush1.bf16.msra.mxu0 %v341
  %465 = vmatprep.subr.bf16.mxu0 %v350
  %466 = vmatpush1.bf16.msra.mxu0 %v349
  %467 = vmatprep.subr.bf16.mxu0 %v358
  %468 = vmatpush1.bf16.msra.mxu0 %v357
  %469 = vmatprep.subr.bf16.mxu0 %v366
  %470 = vmatpush1.bf16.msra.mxu0 %v365
  %471 = vmatprep.subr.bf16.mxu0 %v374
  %472 = vmatpush1.bf16.msra.mxu0 %v373
  %473 = vmatprep.subr.bf16.mxu0 %v382
  %474 = vmatpush1.bf16.msra.mxu0 %v381
  %475 = vmatprep.subr.bf16.mxu0 %v390
  %476 = vmatpush1.bf16.msra.mxu0 %v389
  %477 = vmatprep.subr.bf16.mxu0 0
  %478 = vmatpush1.bf16.msra.mxu0 0
  %479 = vmatprep.subr.bf16.mxu0 0
  %480 = vmatpush1.bf16.msra.mxu0 0
  %481 = vmatprep.subr.bf16.mxu0 0
  %482 = vmatpush1.bf16.msra.mxu0 0
  %483 = vmatprep.subr.bf16.mxu0 0
  %484 = vmatpush1.bf16.msra.mxu0 0
  %485 = vmatprep.subr.bf16.mxu0 0
  %486 = vmatpush1.bf16.msra.mxu0 0
  %487 = vmatprep.subr.bf16.mxu0 0
  %488 = vmatpush1.bf16.msra.mxu0 0
  %489 = vmatprep.subr.bf16.mxu0 0
  %490 = vmatpush1.bf16.msra.mxu0 0
  %491 = vmatprep.subr.bf16.mxu0 0
  %492 = vmatpush1.bf16.msra.mxu0 0
  %493 = vmatprep.mubr.bf16.mxu0 0
  %494 = vmatmul.mubr.bf16.gmra.mrb[0].mxu0 %v127
  %v495 = vpop.f32.mrb[0].mxu0
  %v496 = vadd.f32 0.0, %v495
  %v497 = vpop.f32.mrb[0].mxu0
  %v498 = vadd.f32 0.0, %v497
  %v499 = vpop.f32.mrb[0].mxu0
  %v500 = vadd.f32 0.0, %v499
  %v501 = vpop.f32.mrb[0].mxu0
  %v502 = vadd.f32 0.0, %v501
  %503 = vmatprep.mubr.bf16.mxu0 0
  %504 = vmatmul.mubr.bf16.gmra.mrb[0].mxu0 %v128
  %v505 = vpop.f32.mrb[0].mxu0
  %v506 = vadd.f32 0.0, %v505
  %v507 = vpop.f32.mrb[0].mxu0
  %v508 = vadd.f32 0.0, %v507
  %v509 = vpop.f32.mrb[0].mxu0
  %v510 = vadd.f32 0.0, %v509
  %v511 = vpop.f32.mrb[0].mxu0
  %v512 = vadd.f32 0.0, %v511
  %513 = vmatprep.mubr.bf16.mxu0 0
  %514 = vmatmul.mubr.bf16.gmra.mrb[0].mxu0 %v129
  %v515 = vpop.f32.mrb[0].mxu0
  %v516 = vadd.f32 0.0, %v515
  %v517 = vpop.f32.mrb[0].mxu0
  %v518 = vadd.f32 0.0, %v517
  %v519 = vpop.f32.mrb[0].mxu0
  %v520 = vadd.f32 0.0, %v519
  %v521 = vpop.f32.mrb[0].mxu0
  %v522 = vadd.f32 0.0, %v521
  %523 = vmatprep.mubr.bf16.mxu0 0
  %524 = vmatmul.mubr.bf16.gmra.mrb[0].mxu0 %v130
  %v525 = vpop.f32.mrb[0].mxu0
  %v526 = vadd.f32 0.0, %v525
  %v527 = vpop.f32.mrb[0].mxu0
  %v528 = vadd.f32 0.0, %v527
  %v529 = vpop.f32.mrb[0].mxu0
  %v530 = vadd.f32 0.0, %v529
  %v531 = vpop.f32.mrb[0].mxu0
  %v532 = vadd.f32 0.0, %v531
  %533 = vmatprep.mubr.bf16.mxu0 0
  %534 = vmatmul.mubr.bf16.gmra.mrb[0].mxu0 %v131
  %v535 = vpop.f32.mrb[0].mxu0
  %v536 = vadd.f32 0.0, %v535
  %v537 = vpop.f32.mrb[0].mxu0
  %v538 = vadd.f32 0.0, %v537
  %v539 = vpop.f32.mrb[0].mxu0
  %v540 = vadd.f32 0.0, %v539
  %v541 = vpop.f32.mrb[0].mxu0
  %v542 = vadd.f32 0.0, %v541
  %543 = vmatprep.mubr.bf16.mxu0 0
  %544 = vmatmul.mubr.bf16.gmra.mrb[0].mxu0 %v132
  %v545 = vpop.f32.mrb[0].mxu0
  %v546 = vadd.f32 0.0, %v545
  %v547 = vpop.f32.mrb[0].mxu0
  %v548 = vadd.f32 0.0, %v547
  %v549 = vpop.f32.mrb[0].mxu0
  %v550 = vadd.f32 0.0, %v549
  %v551 = vpop.f32.mrb[0].mxu0
  %v552 = vadd.f32 0.0, %v551
  %553 = vmatprep.mubr.bf16.mxu0 0
  %554 = vmatmul.mubr.bf16.gmra.mrb[0].mxu0 %v133
  %v555 = vpop.f32.mrb[0].mxu0
  %v556 = vadd.f32 0.0, %v555
  %v557 = vpop.f32.mrb[0].mxu0
  %v558 = vadd.f32 0.0, %v557
  %v559 = vpop.f32.mrb[0].mxu0
  %v560 = vpop.f32.mrb[0].mxu0
  %561 = vdwg.mxu0
  %562 = vmatprep.subr.bf16.mxu0 %v336
  %563 = vmatpush1.bf16.msra.mxu0 %v335
  %564 = vmatprep.subr.bf16.mxu0 %v344
  %565 = vmatpush1.bf16.msra.mxu0 %v343
  %566 = vmatprep.subr.bf16.mxu0 %v352
  %567 = vmatpush1.bf16.msra.mxu0 %v351
  %568 = vmatprep.subr.bf16.mxu0 %v360
  %569 = vmatpush1.bf16.msra.mxu0 %v359
  %570 = vmatprep.subr.bf16.mxu0 %v368
  %571 = vmatpush1.bf16.msra.mxu0 %v367
  %572 = vmatprep.subr.bf16.mxu0 %v376
  %573 = vmatpush1.bf16.msra.mxu0 %v375
  %574 = vmatprep.subr.bf16.mxu0 %v384
  %575 = vmatpush1.bf16.msra.mxu0 %v383
  %576 = vmatprep.subr.bf16.mxu0 %v392
  %577 = vmatpush1.bf16.msra.mxu0 %v391
  %578 = vmatprep.subr.bf16.mxu0 0
  %579 = vmatpush1.bf16.msra.mxu0 0
  %580 = vmatprep.subr.bf16.mxu0 0
  %581 = vmatpush1.bf16.msra.mxu0 0
  %582 = vmatprep.subr.bf16.mxu0 0
  %583 = vmatpush1.bf16.msra.mxu0 0
  %584 = vmatprep.subr.bf16.mxu0 0
  %585 = vmatpush1.bf16.msra.mxu0 0
  %586 = vmatprep.subr.bf16.mxu0 0
  %587 = vmatpush1.bf16.msra.mxu0 0
  %588 = vmatprep.subr.bf16.mxu0 0
  %589 = vmatpush1.bf16.msra.mxu0 0
  %590 = vmatprep.subr.bf16.mxu0 0
  %591 = vmatpush1.bf16.msra.mxu0 0
  %592 = vmatprep.subr.bf16.mxu0 0
  %593 = vmatpush1.bf16.msra.mxu0 0
  %594 = vmatprep.mubr.bf16.mxu0 0
  %595 = vmatmul.mubr.bf16.gmra.mrb[0].mxu0 %v127
  %v596 = vpop.f32.mrb[0].mxu0
  %v597 = vadd.f32 0.0, %v596
  %v598 = vpop.f32.mrb[0].mxu0
  %v599 = vadd.f32 0.0, %v598
  %v600 = vpop.f32.mrb[0].mxu0
  %v601 = vadd.f32 0.0, %v600
  %v602 = vpop.f32.mrb[0].mxu0
  %v603 = vadd.f32 0.0, %v602
  %604 = vmatprep.mubr.bf16.mxu0 0
  %605 = vmatmul.mubr.bf16.gmra.mrb[0].mxu0 %v128
  %v606 = vpop.f32.mrb[0].mxu0
  %v607 = vadd.f32 0.0, %v606
  %v608 = vpop.f32.mrb[0].mxu0
  %v609 = vadd.f32 0.0, %v608
  %v610 = vpop.f32.mrb[0].mxu0
  %v611 = vadd.f32 0.0, %v610
  %v612 = vpop.f32.mrb[0].mxu0
  %v613 = vadd.f32 0.0, %v612
  %614 = vmatprep.mubr.bf16.mxu0 0
  %615 = vmatmul.mubr.bf16.gmra.mrb[0].mxu0 %v129
  %v616 = vpop.f32.mrb[0].mxu0
  %v617 = vadd.f32 0.0, %v616
  %v618 = vpop.f32.mrb[0].mxu0
  %v619 = vadd.f32 0.0, %v618
  %v620 = vpop.f32.mrb[0].mxu0
  %v621 = vadd.f32 0.0, %v620
  %v622 = vpop.f32.mrb[0].mxu0
  %v623 = vadd.f32 0.0, %v622
  %624 = vmatprep.mubr.bf16.mxu0 0
  %625 = vmatmul.mubr.bf16.gmra.mrb[0].mxu0 %v130
  %v626 = vpop.f32.mrb[0].mxu0
  %v627 = vadd.f32 0.0, %v626
  %v628 = vpop.f32.mrb[0].mxu0
  %v629 = vadd.f32 0.0, %v628
  %v630 = vpop.f32.mrb[0].mxu0
  %v631 = vadd.f32 0.0, %v630
  %v632 = vpop.f32.mrb[0].mxu0
  %v633 = vadd.f32 0.0, %v632
  %634 = vmatprep.mubr.bf16.mxu0 0
  %635 = vmatmul.mubr.bf16.gmra.mrb[0].mxu0 %v131
  %v636 = vpop.f32.mrb[0].mxu0
  %v637 = vadd.f32 0.0, %v636
  %v638 = vpop.f32.mrb[0].mxu0
  %v639 = vadd.f32 0.0, %v638
  %v640 = vpop.f32.mrb[0].mxu0
  %v641 = vadd.f32 0.0, %v640
  %v642 = vpop.f32.mrb[0].mxu0
  %v643 = vadd.f32 0.0, %v642
  %644 = vmatprep.mubr.bf16.mxu0 0
  %645 = vmatmul.mubr.bf16.gmra.mrb[0].mxu0 %v132
  %v646 = vpop.f32.mrb[0].mxu0
  %v647 = vadd.f32 0.0, %v646
  %v648 = vpop.f32.mrb[0].mxu0
  %v649 = vadd.f32 0.0, %v648
  %v650 = vpop.f32.mrb[0].mxu0
  %v651 = vadd.f32 0.0, %v650
  %v652 = vpop.f32.mrb[0].mxu0
  %v653 = vadd.f32 0.0, %v652
  %654 = vmatprep.mubr.bf16.mxu0 0
  %655 = vmatmul.mubr.bf16.gmra.mrb[0].mxu0 %v133
  %v656 = vpop.f32.mrb[0].mxu0
  %v657 = vadd.f32 0.0, %v656
  %v658 = vpop.f32.mrb[0].mxu0
  %v659 = vadd.f32 0.0, %v658
  %v660 = vpop.f32.mrb[0].mxu0
  %v661 = vpop.f32.mrb[0].mxu0
  %662 = vdwg.mxu0
  %663 = vmatprep.subr.bf16.mxu0 %v338
  %664 = vmatpush1.bf16.msra.mxu0 %v337
  %665 = vmatprep.subr.bf16.mxu0 %v346
  %666 = vmatpush1.bf16.msra.mxu0 %v345
  %667 = vmatprep.subr.bf16.mxu0 %v354
  %668 = vmatpush1.bf16.msra.mxu0 %v353
  %669 = vmatprep.subr.bf16.mxu0 %v362
  %670 = vmatpush1.bf16.msra.mxu0 %v361
  %671 = vmatprep.subr.bf16.mxu0 %v370
  %672 = vmatpush1.bf16.msra.mxu0 %v369
  %673 = vmatprep.subr.bf16.mxu0 %v378
  %674 = vmatpush1.bf16.msra.mxu0 %v377
  %675 = vmatprep.subr.bf16.mxu0 %v386
  %676 = vmatpush1.bf16.msra.mxu0 %v385
  %677 = vmatprep.subr.bf16.mxu0 %v394
  %678 = vmatpush1.bf16.msra.mxu0 %v393
  %679 = vmatprep.subr.bf16.mxu0 0
  %680 = vmatpush1.bf16.msra.mxu0 0
  %681 = vmatprep.subr.bf16.mxu0 0
  %682 = vmatpush1.bf16.msra.mxu0 0
  %683 = vmatprep.subr.bf16.mxu0 0
  %684 = vmatpush1.bf16.msra.mxu0 0
  %685 = vmatprep.subr.bf16.mxu0 0
  %686 = vmatpush1.bf16.msra.mxu0 0
  %687 = vmatprep.subr.bf16.mxu0 0
  %688 = vmatpush1.bf16.msra.mxu0 0
  %689 = vmatprep.subr.bf16.mxu0 0
  %690 = vmatpush1.bf16.msra.mxu0 0
  %691 = vmatprep.subr.bf16.mxu0 0
  %692 = vmatpush1.bf16.msra.mxu0 0
  %693 = vmatprep.subr.bf16.mxu0 0
  %694 = vmatpush1.bf16.msra.mxu0 0
  %695 = vmatprep.mubr.bf16.mxu0 0
  %696 = vmatmul.mubr.bf16.gmra.mrb[0].mxu0 %v127
  %v697 = vpop.f32.mrb[0].mxu0
  %v698 = vadd.f32 0.0, %v697
  %v699 = vpop.f32.mrb[0].mxu0
  %v700 = vadd.f32 0.0, %v699
  %v701 = vpop.f32.mrb[0].mxu0
  %v702 = vadd.f32 0.0, %v701
  %v703 = vpop.f32.mrb[0].mxu0
  %v704 = vadd.f32 0.0, %v703
  %705 = vmatprep.mubr.bf16.mxu0 0
  %706 = vmatmul.mubr.bf16.gmra.mrb[0].mxu0 %v128
  %v707 = vpop.f32.mrb[0].mxu0
  %v708 = vadd.f32 0.0, %v707
  %v709 = vpop.f32.mrb[0].mxu0
  %v710 = vadd.f32 0.0, %v709
  %v711 = vpop.f32.mrb[0].mxu0
  %v712 = vadd.f32 0.0, %v711
  %v713 = vpop.f32.mrb[0].mxu0
  %v714 = vadd.f32 0.0, %v713
  %715 = vmatprep.mubr.bf16.mxu0 0
  %716 = vmatmul.mubr.bf16.gmra.mrb[0].mxu0 %v129
  %v717 = vpop.f32.mrb[0].mxu0
  %v718 = vadd.f32 0.0, %v717
  %v719 = vpop.f32.mrb[0].mxu0
  %v720 = vadd.f32 0.0, %v719
  %v721 = vpop.f32.mrb[0].mxu0
  %v722 = vadd.f32 0.0, %v721
  %v723 = vpop.f32.mrb[0].mxu0
  %v724 = vadd.f32 0.0, %v723
  %725 = vmatprep.mubr.bf16.mxu0 0
  %726 = vmatmul.mubr.bf16.gmra.mrb[0].mxu0 %v130
  %v727 = vpop.f32.mrb[0].mxu0
  %v728 = vadd.f32 0.0, %v727
  %v729 = vpop.f32.mrb[0].mxu0
  %v730 = vadd.f32 0.0, %v729
  %v731 = vpop.f32.mrb[0].mxu0
  %v732 = vadd.f32 0.0, %v731
  %v733 = vpop.f32.mrb[0].mxu0
  %v734 = vadd.f32 0.0, %v733
  %735 = vmatprep.mubr.bf16.mxu0 0
  %736 = vmatmul.mubr.bf16.gmra.mrb[0].mxu0 %v131
  %v737 = vpop.f32.mrb[0].mxu0
  %v738 = vadd.f32 0.0, %v737
  %v739 = vpop.f32.mrb[0].mxu0
  %v740 = vadd.f32 0.0, %v739
  %v741 = vpop.f32.mrb[0].mxu0
  %v742 = vadd.f32 0.0, %v741
  %v743 = vpop.f32.mrb[0].mxu0
  %v744 = vadd.f32 0.0, %v743
  %745 = vmatprep.mubr.bf16.mxu0 0
  %746 = vmatmul.mubr.bf16.gmra.mrb[0].mxu0 %v132
  %v747 = vpop.f32.mrb[0].mxu0
  %v748 = vadd.f32 0.0, %v747
  %v749 = vpop.f32.mrb[0].mxu0
  %v750 = vadd.f32 0.0, %v749
  %v751 = vpop.f32.mrb[0].mxu0
  %v752 = vadd.f32 0.0, %v751
  %v753 = vpop.f32.mrb[0].mxu0
  %v754 = vadd.f32 0.0, %v753
  %755 = vmatprep.mubr.bf16.mxu0 0
  %756 = vmatmul.mubr.bf16.gmra.mrb[0].mxu0 %v133
  %v757 = vpop.f32.mrb[0].mxu0
  %v758 = vadd.f32 0.0, %v757
  %v759 = vpop.f32.mrb[0].mxu0
  %v760 = vadd.f32 0.0, %v759
  %v761 = vpop.f32.mrb[0].mxu0
  %v762 = vpop.f32.mrb[0].mxu0
  %763 = vdwg.mxu0
  %764 = vmatprep.subr.bf16.mxu0 %v340
  %765 = vmatpush1.bf16.msra.mxu0 %v339
  %766 = vmatprep.subr.bf16.mxu0 %v348
  %767 = vmatpush1.bf16.msra.mxu0 %v347
  %768 = vmatprep.subr.bf16.mxu0 %v356
  %769 = vmatpush1.bf16.msra.mxu0 %v355
  %770 = vmatprep.subr.bf16.mxu0 %v364
  %771 = vmatpush1.bf16.msra.mxu0 %v363
  %772 = vmatprep.subr.bf16.mxu0 %v372
  %773 = vmatpush1.bf16.msra.mxu0 %v371
  %774 = vmatprep.subr.bf16.mxu0 %v380
  %775 = vmatpush1.bf16.msra.mxu0 %v379
  %776 = vmatprep.subr.bf16.mxu0 %v388
  %777 = vmatpush1.bf16.msra.mxu0 %v387
  %778 = vmatprep.subr.bf16.mxu0 %v396
  %779 = vmatpush1.bf16.msra.mxu0 %v395
  %780 = vmatprep.subr.bf16.mxu0 0
  %781 = vmatpush1.bf16.msra.mxu0 0
  %782 = vmatprep.subr.bf16.mxu0 0
  %783 = vmatpush1.bf16.msra.mxu0 0
  %784 = vmatprep.subr.bf16.mxu0 0
  %785 = vmatpush1.bf16.msra.mxu0 0
  %786 = vmatprep.subr.bf16.mxu0 0
  %787 = vmatpush1.bf16.msra.mxu0 0
  %788 = vmatprep.subr.bf16.mxu0 0
  %789 = vmatpush1.bf16.msra.mxu0 0
  %790 = vmatprep.subr.bf16.mxu0 0
  %791 = vmatpush1.bf16.msra.mxu0 0
  %792 = vmatprep.subr.bf16.mxu0 0
  %793 = vmatpush1.bf16.msra.mxu0 0
  %794 = vmatprep.subr.bf16.mxu0 0
  %795 = vmatpush1.bf16.msra.mxu0 0
  %796 = vmatprep.mubr.bf16.mxu0 0
  %797 = vmatmul.mubr.bf16.gmra.mrb[0].mxu0 %v127
  %v798 = vpop.f32.mrb[0].mxu0
  %v799 = vadd.f32 0.0, %v798
  %v800 = vpop.f32.mrb[0].mxu0
  %v801 = vadd.f32 0.0, %v800
  %v802 = vpop.f32.mrb[0].mxu0
  %v803 = vadd.f32 0.0, %v802
  %v804 = vpop.f32.mrb[0].mxu0
  %v805 = vadd.f32 0.0, %v804
  %806 = vmatprep.mubr.bf16.mxu0 0
  %807 = vmatmul.mubr.bf16.gmra.mrb[0].mxu0 %v128
  %v808 = vpop.f32.mrb[0].mxu0
  %v809 = vadd.f32 0.0, %v808
  %v810 = vpop.f32.mrb[0].mxu0
  %v811 = vadd.f32 0.0, %v810
  %v812 = vpop.f32.mrb[0].mxu0
  %v813 = vadd.f32 0.0, %v812
  %v814 = vpop.f32.mrb[0].mxu0
  %v815 = vadd.f32 0.0, %v814
  %816 = vmatprep.mubr.bf16.mxu0 0
  %817 = vmatmul.mubr.bf16.gmra.mrb[0].mxu0 %v129
  %v818 = vpop.f32.mrb[0].mxu0
  %v819 = vadd.f32 0.0, %v818
  %v820 = vpop.f32.mrb[0].mxu0
  %v821 = vadd.f32 0.0, %v820
  %v822 = vpop.f32.mrb[0].mxu0
  %v823 = vadd.f32 0.0, %v822
  %v824 = vpop.f32.mrb[0].mxu0
  %v825 = vadd.f32 0.0, %v824
  %826 = vmatprep.mubr.bf16.mxu0 0
  %827 = vmatmul.mubr.bf16.gmra.mrb[0].mxu0 %v130
  %v828 = vpop.f32.mrb[0].mxu0
  %v829 = vadd.f32 0.0, %v828
  %v830 = vpop.f32.mrb[0].mxu0
  %v831 = vadd.f32 0.0, %v830
  %v832 = vpop.f32.mrb[0].mxu0
  %v833 = vadd.f32 0.0, %v832
  %v834 = vpop.f32.mrb[0].mxu0
  %v835 = vadd.f32 0.0, %v834
  %836 = vmatprep.mubr.bf16.mxu0 0
  %837 = vmatmul.mubr.bf16.gmra.mrb[0].mxu0 %v131
  %v838 = vpop.f32.mrb[0].mxu0
  %v839 = vadd.f32 0.0, %v838
  %v840 = vpop.f32.mrb[0].mxu0
  %v841 = vadd.f32 0.0, %v840
  %v842 = vpop.f32.mrb[0].mxu0
  %v843 = vadd.f32 0.0, %v842
  %v844 = vpop.f32.mrb[0].mxu0
  %v845 = vadd.f32 0.0, %v844
  %846 = vmatprep.mubr.bf16.mxu0 0
  %847 = vmatmul.mubr.bf16.gmra.mrb[0].mxu0 %v132
  %v848 = vpop.f32.mrb[0].mxu0
  %v849 = vadd.f32 0.0, %v848
  %v850 = vpop.f32.mrb[0].mxu0
  %v851 = vadd.f32 0.0, %v850
  %v852 = vpop.f32.mrb[0].mxu0
  %v853 = vadd.f32 0.0, %v852
  %v854 = vpop.f32.mrb[0].mxu0
  %v855 = vadd.f32 0.0, %v854
  %856 = vmatprep.mubr.bf16.mxu0 0
  %857 = vmatmul.mubr.bf16.gmra.mrb[0].mxu0 %v133
  %v858 = vpop.f32.mrb[0].mxu0
  %v859 = vadd.f32 0.0, %v858
  %v860 = vpop.f32.mrb[0].mxu0
  %v861 = vadd.f32 0.0, %v860
  %v862 = vpop.f32.mrb[0].mxu0
  %v863 = vpop.f32.mrb[0].mxu0
  %864 = vdwg.mxu0
  %v865 = vmax.f32 %v496, 0.0
  %v866 = vmax.f32 %v498, 0.0
  %v867 = vmax.f32 %v597, 0.0
  %v868 = vmax.f32 %v599, 0.0
  %v869 = vmax.f32 %v698, 0.0
  %v870 = vmax.f32 %v700, 0.0
  %v871 = vmax.f32 %v799, 0.0
  %v872 = vmax.f32 %v801, 0.0
  %v873 = vmax.f32 %v500, 0.0
  %v874 = vmax.f32 %v502, 0.0
  %v875 = vmax.f32 %v601, 0.0
  %v876 = vmax.f32 %v603, 0.0
  %v877 = vmax.f32 %v702, 0.0
  %v878 = vmax.f32 %v704, 0.0
  %v879 = vmax.f32 %v803, 0.0
  %v880 = vmax.f32 %v805, 0.0
  %v881 = vmax.f32 %v506, 0.0
  %v882 = vmax.f32 %v508, 0.0
  %v883 = vmax.f32 %v607, 0.0
  %v884 = vmax.f32 %v609, 0.0
  %v885 = vmax.f32 %v708, 0.0
  %v886 = vmax.f32 %v710, 0.0
  %v887 = vmax.f32 %v809, 0.0
  %v888 = vmax.f32 %v811, 0.0
  %v889 = vmax.f32 %v510, 0.0
  %v890 = vmax.f32 %v512, 0.0
  %v891 = vmax.f32 %v611, 0.0
  %v892 = vmax.f32 %v613, 0.0
  %v893 = vmax.f32 %v712, 0.0
  %v894 = vmax.f32 %v714, 0.0
  %v895 = vmax.f32 %v813, 0.0
  %v896 = vmax.f32 %v815, 0.0
  %v897 = vmax.f32 %v516, 0.0
  %v898 = vmax.f32 %v518, 0.0
  %v899 = vmax.f32 %v617, 0.0
  %v900 = vmax.f32 %v619, 0.0
  %v901 = vmax.f32 %v718, 0.0
  %v902 = vmax.f32 %v720, 0.0
  %v903 = vmax.f32 %v819, 0.0
  %v904 = vmax.f32 %v821, 0.0
  %v905 = vmax.f32 %v520, 0.0
  %v906 = vmax.f32 %v522, 0.0
  %v907 = vmax.f32 %v621, 0.0
  %v908 = vmax.f32 %v623, 0.0
  %v909 = vmax.f32 %v722, 0.0
  %v910 = vmax.f32 %v724, 0.0
  %v911 = vmax.f32 %v823, 0.0
  %v912 = vmax.f32 %v825, 0.0
  %v913 = vmax.f32 %v526, 0.0
  %v914 = vmax.f32 %v528, 0.0
  %v915 = vmax.f32 %v627, 0.0
  %v916 = vmax.f32 %v629, 0.0
  %v917 = vmax.f32 %v728, 0.0
  %v918 = vmax.f32 %v730, 0.0
  %v919 = vmax.f32 %v829, 0.0
  %v920 = vmax.f32 %v831, 0.0
  %v921 = vmax.f32 %v530, 0.0
  %v922 = vmax.f32 %v532, 0.0
  %v923 = vmax.f32 %v631, 0.0
  %v924 = vmax.f32 %v633, 0.0
  %v925 = vmax.f32 %v732, 0.0
  %v926 = vmax.f32 %v734, 0.0
  %v927 = vmax.f32 %v833, 0.0
  %v928 = vmax.f32 %v835, 0.0
  %v929 = vmax.f32 %v536, 0.0
  %v930 = vmax.f32 %v538, 0.0
  %v931 = vmax.f32 %v637, 0.0
  %v932 = vmax.f32 %v639, 0.0
  %v933 = vmax.f32 %v738, 0.0
  %v934 = vmax.f32 %v740, 0.0
  %v935 = vmax.f32 %v839, 0.0
  %v936 = vmax.f32 %v841, 0.0
  %v937 = vmax.f32 %v540, 0.0
  %v938 = vmax.f32 %v542, 0.0
  %v939 = vmax.f32 %v641, 0.0
  %v940 = vmax.f32 %v643, 0.0
  %v941 = vmax.f32 %v742, 0.0
  %v942 = vmax.f32 %v744, 0.0
  %v943 = vmax.f32 %v843, 0.0
  %v944 = vmax.f32 %v845, 0.0
  %v945 = vmax.f32 %v546, 0.0
  %v946 = vmax.f32 %v548, 0.0
  %v947 = vmax.f32 %v647, 0.0
  %v948 = vmax.f32 %v649, 0.0
  %v949 = vmax.f32 %v748, 0.0
  %v950 = vmax.f32 %v750, 0.0
  %v951 = vmax.f32 %v849, 0.0
  %v952 = vmax.f32 %v851, 0.0
  %v953 = vmax.f32 %v550, 0.0
  %v954 = vmax.f32 %v552, 0.0
  %v955 = vmax.f32 %v651, 0.0
  %v956 = vmax.f32 %v653, 0.0
  %v957 = vmax.f32 %v752, 0.0
  %v958 = vmax.f32 %v754, 0.0
  %v959 = vmax.f32 %v853, 0.0
  %v960 = vmax.f32 %v855, 0.0
  %v961 = vmax.f32 %v556, 0.0
  %v962 = vmax.f32 %v558, 0.0
  %v963 = vmax.f32 %v657, 0.0
  %v964 = vmax.f32 %v659, 0.0
  %v965 = vmax.f32 %v758, 0.0
  %v966 = vmax.f32 %v760, 0.0
  %v967 = vmax.f32 %v859, 0.0
  %v968 = vmax.f32 %v861, 0.0
  %v969 = vld [vmem:[%s5] sm:$0xff]
  %v970 = vld [vmem:[%s5 + $0x8] sm:$0xff]
  %v971 = vld [vmem:[%s5 + $0x10] sm:$0xff]
  %v972 = vld [vmem:[%s5 + $0x18] sm:$0xff]
  %v973 = vld [vmem:[%s5 + $0x20] sm:$0xff]
  %v974 = vld [vmem:[%s5 + $0x28] sm:$0xff]
  %v975 = vld [vmem:[%s5 + $0x30] sm:$0xff]
  %v976 = vld [vmem:[%s5 + $0x38] sm:$0xff]
  %v977 = vld [vmem:[%s5 + $0x40] sm:$0xff]
  %v978 = vld [vmem:[%s5 + $0x48] sm:$0xff]
  %v979 = vld [vmem:[%s5 + $0x50] sm:$0xff]
  %v980 = vld [vmem:[%s5 + $0x58] sm:$0xff]
  %v981 = vld [vmem:[%s5 + $0x60] sm:$0xff]
  %v982 = vld [vmem:[%s5 + $0x68] sm:$0xff]
  %v983 = vld [vmem:[%s5 + $0x70] sm:$0xff]
  %v984 = vld [vmem:[%s5 + $0x78] sm:$0xff]
  %v985 = vld [vmem:[%s5 + $0x80] sm:$0xff]
  %v986 = vld [vmem:[%s5 + $0x88] sm:$0xff]
  %v987 = vld [vmem:[%s5 + $0x90] sm:$0xff]
  %v988 = vld [vmem:[%s5 + $0x98] sm:$0xff]
  %v989 = vld [vmem:[%s5 + $0xa0] sm:$0xff]
  %v990 = vld [vmem:[%s5 + $0xa8] sm:$0xff]
  %v991 = vld [vmem:[%s5 + $0xb0] sm:$0xff]
  %v992 = vld [vmem:[%s5 + $0xb8] sm:$0xff]
  %v993 = vld [vmem:[%s5 + $0xc0] sm:$0xff]
  %v994 = vld [vmem:[%s5 + $0xc8] sm:$0xff]
  %v995 = vld [vmem:[%s5 + $0xd0] sm:$0xff]
  %v996 = vld [vmem:[%s5 + $0xd8] sm:$0xff]
  %v997 = vld [vmem:[%s5 + $0xe0] sm:$0xff]
  %v998 = vld [vmem:[%s5 + $0xe8] sm:$0xff]
  %v999 = vld [vmem:[%s5 + $0xf0] sm:$0xff]
  %v1000 = vld [vmem:[%s5 + $0xf8] sm:$0xff]
  %v1001 = vld [vmem:[%s5 + $0x100] sm:$0xff]
  %v1002 = vld [vmem:[%s5 + $0x108] sm:$0xff]
  %v1003 = vld [vmem:[%s5 + $0x110] sm:$0xff]
  %v1004 = vld [vmem:[%s5 + $0x118] sm:$0xff]
  %v1005 = vld [vmem:[%s5 + $0x120] sm:$0xff]
  %v1006 = vld [vmem:[%s5 + $0x128] sm:$0xff]
  %v1007 = vld [vmem:[%s5 + $0x130] sm:$0xff]
  %v1008 = vld [vmem:[%s5 + $0x138] sm:$0xff]
  %v1009 = vld [vmem:[%s5 + $0x140] sm:$0xff]
  %v1010 = vld [vmem:[%s5 + $0x148] sm:$0xff]
  %v1011 = vld [vmem:[%s5 + $0x150] sm:$0xff]
  %v1012 = vld [vmem:[%s5 + $0x158] sm:$0xff]
  %v1013 = vld [vmem:[%s5 + $0x160] sm:$0xff]
  %v1014 = vld [vmem:[%s5 + $0x168] sm:$0xff]
  %v1015 = vld [vmem:[%s5 + $0x170] sm:$0xff]
  %v1016 = vld [vmem:[%s5 + $0x178] sm:$0xff]
  %v1017 = vld [vmem:[%s5 + $0x180] sm:$0xff]
  %v1018 = vld [vmem:[%s5 + $0x188] sm:$0xff]
  %v1019 = vld [vmem:[%s5 + $0x190] sm:$0xff]
  %v1020 = vld [vmem:[%s5 + $0x198] sm:$0xff]
  %v1021 = vld [vmem:[%s5 + $0x1a0] sm:$0xff]
  %v1022 = vld [vmem:[%s5 + $0x1a8] sm:$0xff]
  %v1023 = vld [vmem:[%s5 + $0x1b0] sm:$0xff]
  %v1024 = vld [vmem:[%s5 + $0x1b8] sm:$0xff]
  %v1025 = vld [vmem:[%s5 + $0x1c0] sm:$0xff]
  %v1026 = vld [vmem:[%s5 + $0x1c8] sm:$0xff]
  %v1027 = vld [vmem:[%s5 + $0x1d0] sm:$0xff]
  %v1028 = vld [vmem:[%s5 + $0x1d8] sm:$0xff]
  %v1029 = vld [vmem:[%s5 + $0x1e0] sm:$0xff]
  %v1030 = vld [vmem:[%s5 + $0x1e8] sm:$0xff]
  %v1031 = vld [vmem:[%s5 + $0x1f0] sm:$0xff]
  %v1032 = vld [vmem:[%s5 + $0x1f8] sm:$0xff]
  %v1033 = vld [vmem:[%s5 + $0x200] sm:$0xff]
  %v1034 = vld [vmem:[%s5 + $0x208] sm:$0xff]
  %v1035 = vld [vmem:[%s5 + $0x210] sm:$0xff]
  %v1036 = vld [vmem:[%s5 + $0x218] sm:$0xff]
  %v1037 = vld [vmem:[%s5 + $0x220] sm:$0xff]
  %v1038 = vld [vmem:[%s5 + $0x228] sm:$0xff]
  %v1039 = vld [vmem:[%s5 + $0x230] sm:$0xff]
  %v1040 = vld [vmem:[%s5 + $0x238] sm:$0xff]
  %v1041 = vld [vmem:[%s5 + $0x240] sm:$0xff]
  %v1042 = vld [vmem:[%s5 + $0x248] sm:$0xff]
  %v1043 = vld [vmem:[%s5 + $0x250] sm:$0xff]
  %v1044 = vld [vmem:[%s5 + $0x258] sm:$0xff]
  %v1045 = vld [vmem:[%s5 + $0x260] sm:$0xff]
  %v1046 = vld [vmem:[%s5 + $0x268] sm:$0xff]
  %v1047 = vld [vmem:[%s5 + $0x270] sm:$0xff]
  %v1048 = vld [vmem:[%s5 + $0x278] sm:$0xff]
  %v1049 = vld [vmem:[%s5 + $0x280] sm:$0xff]
  %v1050 = vld [vmem:[%s5 + $0x288] sm:$0xff]
  %v1051 = vld [vmem:[%s5 + $0x290] sm:$0xff]
  %v1052 = vld [vmem:[%s5 + $0x298] sm:$0xff]
  %v1053 = vpack.c.bf16 %v873, %v865
  %v1054 = vpack.c.bf16 %v889, %v881
  %v1055 = vpack.c.bf16 %v905, %v897
  %v1056 = vpack.c.bf16 %v921, %v913
  %v1057 = vpack.c.bf16 %v937, %v929
  %v1058 = vpack.c.bf16 %v953, %v945
  %v1059 = vpack.c.bf16 %v961, %v961
  %v1060 = vld [vmem:[%s2] sm:$0xf]
  %v1061 = vld [vmem:[%s2 + $0x4] sm:$0xf]
  %v1062 = vld [vmem:[%s2 + $0x8] sm:$0xf]
  %v1063 = vld [vmem:[%s2 + $0xc] sm:$0xf]
  %v1064 = vld [vmem:[%s2 + $0x10] sm:$0xf]
  %v1065 = vld [vmem:[%s2 + $0x14] sm:$0xf]
  %v1066 = vld [vmem:[%s2 + $0x18] sm:$0xf]
  %v1067 = vld [vmem:[%s2 + $0x1c] sm:$0xf]
  %v1068 = vld [vmem:[%s2 + $0x20] sm:$0xf]
  %v1069 = vld [vmem:[%s2 + $0x24] sm:$0xf]
  %v1070 = vld [vmem:[%s2 + $0x28] sm:$0xf]
  %v1071 = vld [vmem:[%s2 + $0x2c] sm:$0xf]
  %v1072 = vld [vmem:[%s2 + $0x30] sm:$0xf]
  %v1073 = vld [vmem:[%s2 + $0x34] sm:$0xf]
  %v1074 = vld [vmem:[%s2 + $0x38] sm:$0xf]
  %v1075 = vld [vmem:[%s2 + $0x3c] sm:$0xf]
  %v1076 = vld [vmem:[%s2 + $0x40] sm:$0xf]
  %v1077 = vld [vmem:[%s2 + $0x44] sm:$0xf]
  %v1078 = vld [vmem:[%s2 + $0x48] sm:$0xf]
  %v1079 = vld [vmem:[%s2 + $0x4c] sm:$0xf]
  %v1080 = vld [vmem:[%s2 + $0x50] sm:$0xf]
  %v1081 = vld [vmem:[%s2 + $0x54] sm:$0xf]
  %v1082 = vld [vmem:[%s2 + $0x58] sm:$0xf]
  %v1083 = vld [vmem:[%s2 + $0x5c] sm:$0xf]
  %v1084 = vld [vmem:[%s2 + $0x60] sm:$0xf]
  %v1085 = vld [vmem:[%s2 + $0x64] sm:$0xf]
  %v1086 = vld [vmem:[%s2 + $0x68] sm:$0xf]
  %v1087 = vld [vmem:[%s2 + $0x6c] sm:$0xf]
  %v1088 = vld [vmem:[%s2 + $0x70] sm:$0xf]
  %v1089 = vld [vmem:[%s2 + $0x74] sm:$0xf]
  %v1090 = vld [vmem:[%s2 + $0x78] sm:$0xf]
  %v1091 = vld [vmem:[%s2 + $0x7c] sm:$0xf]
  %v1092 = vld [vmem:[%s2 + $0x80] sm:$0xf]
  %v1093 = vld [vmem:[%s2 + $0x84] sm:$0xf]
  %v1094 = vld [vmem:[%s2 + $0x88] sm:$0xf]
  %v1095 = vld [vmem:[%s2 + $0x8c] sm:$0xf]
  %v1096 = vld [vmem:[%s2 + $0x90] sm:$0xf]
  %v1097 = vld [vmem:[%s2 + $0x94] sm:$0xf]
  %v1098 = vld [vmem:[%s2 + $0x98] sm:$0xf]
  %v1099 = vld [vmem:[%s2 + $0x9c] sm:$0xf]
  %v1100 = vld [vmem:[%s2 + $0xa0] sm:$0xf]
  %v1101 = vld [vmem:[%s2 + $0xa4] sm:$0xf]
  %v1102 = vld [vmem:[%s2 + $0xa8] sm:$0xf]
  %v1103 = vld [vmem:[%s2 + $0xac] sm:$0xf]
  %v1104 = vld [vmem:[%s2 + $0xb0] sm:$0xf]
  %v1105 = vld [vmem:[%s2 + $0xb4] sm:$0xf]
  %v1106 = vld [vmem:[%s2 + $0xb8] sm:$0xf]
  %v1107 = vld [vmem:[%s2 + $0xbc] sm:$0xf]
  %v1108 = vld [vmem:[%s2 + $0xc0] sm:$0xf]
  %v1109 = vld [vmem:[%s2 + $0xc4] sm:$0xf]
  %v1110 = vld [vmem:[%s2 + $0xc8] sm:$0xf]
  %v1111 = vld [vmem:[%s2 + $0xcc] sm:$0xf]
  %v1112 = vld [vmem:[%s2 + $0xd0] sm:$0xf]
  %v1113 = vld [vmem:[%s2 + $0xd4] sm:$0xf]
  %v1114 = vld [vmem:[%s2 + $0xd8] sm:$0xf]
  %v1115 = vld [vmem:[%s2 + $0xdc] sm:$0xf]
  %v1116 = vld [vmem:[%s2 + $0xe0] sm:$0xf]
  %v1117 = vld [vmem:[%s2 + $0xe4] sm:$0xf]
  %v1118 = vld [vmem:[%s2 + $0xe8] sm:$0xf]
  %v1119 = vld [vmem:[%s2 + $0xec] sm:$0xf]
  %v1120 = vld [vmem:[%s2 + $0xf0] sm:$0xf]
  %v1121 = vld [vmem:[%s2 + $0xf4] sm:$0xf]
  %v1122 = vld [vmem:[%s2 + $0xf8] sm:$0xf]
  %v1123 = vld [vmem:[%s2 + $0xfc] sm:$0xf]
  %v1124 = vld [vmem:[%s2 + $0x100] sm:$0xf]
  %v1125 = vld [vmem:[%s2 + $0x104] sm:$0xf]
  %v1126 = vld [vmem:[%s2 + $0x108] sm:$0xf]
  %v1127 = vld [vmem:[%s2 + $0x10c] sm:$0xf]
  %v1128 = vld [vmem:[%s2 + $0x110] sm:$0xf]
  %v1129 = vld [vmem:[%s2 + $0x114] sm:$0xf]
  %v1130 = vld [vmem:[%s2 + $0x118] sm:$0xf]
  %v1131 = vld [vmem:[%s2 + $0x11c] sm:$0xf]
  %v1132 = vpack.c.bf16 %v874, %v866
  %v1133 = vpack.c.bf16 %v890, %v882
  %v1134 = vpack.c.bf16 %v906, %v898
  %v1135 = vpack.c.bf16 %v922, %v914
  %v1136 = vpack.c.bf16 %v938, %v930
  %v1137 = vpack.c.bf16 %v954, %v946
  %v1138 = vpack.c.bf16 %v962, %v962
  %v1139 = vld [vmem:[%s2 + $0x120] sm:$0xf]
  %v1140 = vld [vmem:[%s2 + $0x124] sm:$0xf]
  %v1141 = vld [vmem:[%s2 + $0x128] sm:$0xf]
  %v1142 = vld [vmem:[%s2 + $0x12c] sm:$0xf]
  %v1143 = vld [vmem:[%s2 + $0x130] sm:$0xf]
  %v1144 = vld [vmem:[%s2 + $0x134] sm:$0xf]
  %v1145 = vld [vmem:[%s2 + $0x138] sm:$0xf]
  %v1146 = vld [vmem:[%s2 + $0x13c] sm:$0xf]
  %v1147 = vld [vmem:[%s2 + $0x140] sm:$0xf]
  %v1148 = vld [vmem:[%s2 + $0x144] sm:$0xf]
  %v1149 = vld [vmem:[%s2 + $0x148] sm:$0xf]
  %v1150 = vld [vmem:[%s2 + $0x14c] sm:$0xf]
  %v1151 = vld [vmem:[%s2 + $0x150] sm:$0xf]
  %v1152 = vld [vmem:[%s2 + $0x154] sm:$0xf]
  %v1153 = vld [vmem:[%s2 + $0x158] sm:$0xf]
  %v1154 = vld [vmem:[%s2 + $0x15c] sm:$0xf]
  %v1155 = vld [vmem:[%s2 + $0x160] sm:$0xf]
  %v1156 = vld [vmem:[%s2 + $0x164] sm:$0xf]
  %v1157 = vld [vmem:[%s2 + $0x168] sm:$0xf]
  %v1158 = vld [vmem:[%s2 + $0x16c] sm:$0xf]
  %v1159 = vld [vmem:[%s2 + $0x170] sm:$0xf]
  %v1160 = vld [vmem:[%s2 + $0x174] sm:$0xf]
  %v1161 = vld [vmem:[%s2 + $0x178] sm:$0xf]
  %v1162 = vld [vmem:[%s2 + $0x17c] sm:$0xf]
  %v1163 = vld [vmem:[%s2 + $0x180] sm:$0xf]
  %v1164 = vld [vmem:[%s2 + $0x184] sm:$0xf]
  %v1165 = vld [vmem:[%s2 + $0x188] sm:$0xf]
  %v1166 = vld [vmem:[%s2 + $0x18c] sm:$0xf]
  %v1167 = vld [vmem:[%s2 + $0x190] sm:$0xf]
  %v1168 = vld [vmem:[%s2 + $0x194] sm:$0xf]
  %v1169 = vld [vmem:[%s2 + $0x198] sm:$0xf]
  %v1170 = vld [vmem:[%s2 + $0x19c] sm:$0xf]
  %v1171 = vld [vmem:[%s2 + $0x1a0] sm:$0xf]
  %v1172 = vld [vmem:[%s2 + $0x1a4] sm:$0xf]
  %v1173 = vld [vmem:[%s2 + $0x1a8] sm:$0xf]
  %v1174 = vld [vmem:[%s2 + $0x1ac] sm:$0xf]
  %v1175 = vld [vmem:[%s2 + $0x1b0] sm:$0xf]
  %v1176 = vld [vmem:[%s2 + $0x1b4] sm:$0xf]
  %v1177 = vld [vmem:[%s2 + $0x1b8] sm:$0xf]
  %v1178 = vld [vmem:[%s2 + $0x1bc] sm:$0xf]
  %v1179 = vld [vmem:[%s2 + $0x1c0] sm:$0xf]
  %v1180 = vld [vmem:[%s2 + $0x1c4] sm:$0xf]
  %v1181 = vld [vmem:[%s2 + $0x1c8] sm:$0xf]
  %v1182 = vld [vmem:[%s2 + $0x1cc] sm:$0xf]
  %v1183 = vld [vmem:[%s2 + $0x1d0] sm:$0xf]
  %v1184 = vld [vmem:[%s2 + $0x1d4] sm:$0xf]
  %v1185 = vld [vmem:[%s2 + $0x1d8] sm:$0xf]
  %v1186 = vld [vmem:[%s2 + $0x1dc] sm:$0xf]
  %v1187 = vld [vmem:[%s2 + $0x1e0] sm:$0xf]
  %v1188 = vld [vmem:[%s2 + $0x1e4] sm:$0xf]
  %v1189 = vld [vmem:[%s2 + $0x1e8] sm:$0xf]
  %v1190 = vld [vmem:[%s2 + $0x1ec] sm:$0xf]
  %v1191 = vld [vmem:[%s2 + $0x1f0] sm:$0xf]
  %v1192 = vld [vmem:[%s2 + $0x1f4] sm:$0xf]
  %v1193 = vld [vmem:[%s2 + $0x1f8] sm:$0xf]
  %v1194 = vld [vmem:[%s2 + $0x1fc] sm:$0xf]
  %v1195 = vld [vmem:[%s2 + $0x200] sm:$0xf]
  %v1196 = vld [vmem:[%s2 + $0x204] sm:$0xf]
  %v1197 = vld [vmem:[%s2 + $0x208] sm:$0xf]
  %v1198 = vld [vmem:[%s2 + $0x20c] sm:$0xf]
  %v1199 = vld [vmem:[%s2 + $0x210] sm:$0xf]
  %v1200 = vld [vmem:[%s2 + $0x214] sm:$0xf]
  %v1201 = vld [vmem:[%s2 + $0x218] sm:$0xf]
  %v1202 = vld [vmem:[%s2 + $0x21c] sm:$0xf]
  %v1203 = vld [vmem:[%s2 + $0x220] sm:$0xf]
  %v1204 = vld [vmem:[%s2 + $0x224] sm:$0xf]
  %v1205 = vld [vmem:[%s2 + $0x228] sm:$0xf]
  %v1206 = vld [vmem:[%s2 + $0x22c] sm:$0xf]
  %v1207 = vld [vmem:[%s2 + $0x230] sm:$0xf]
  %v1208 = vld [vmem:[%s2 + $0x234] sm:$0xf]
  %v1209 = vld [vmem:[%s2 + $0x238] sm:$0xf]
  %v1210 = vld [vmem:[%s2 + $0x23c] sm:$0xf]
  %v1283 = vunpack.c.l.b16 %v1139
  %v1284 = vunpack.c.l.b16 %v1140
  %v1285 = vunpack.c.l.b16 %v1141
  %v1286 = vunpack.c.l.b16 %v1142
  %v1287 = vunpack.c.l.b16 %v1143
  %v1288 = vunpack.c.l.b16 %v1144
  %v1289 = vunpack.c.l.b16 %v1145
  %v1290 = vunpack.c.l.b16 %v1146
  %v1291 = vunpack.c.l.b16 %v1147
  %v1292 = vunpack.c.l.b16 %v1148
  %v1293 = vunpack.c.l.b16 %v1149
  %v1294 = vunpack.c.l.b16 %v1150
  %v1295 = vunpack.c.l.b16 %v1151
  %v1296 = vunpack.c.l.b16 %v1152
  %v1297 = vunpack.c.l.b16 %v1153
  %v1298 = vunpack.c.l.b16 %v1154
  %v1299 = vunpack.c.l.b16 %v1155
  %v1300 = vunpack.c.l.b16 %v1156
  %v1301 = vunpack.c.l.b16 %v1157
  %v1302 = vunpack.c.l.b16 %v1158
  %v1303 = vunpack.c.l.b16 %v1159
  %v1304 = vunpack.c.l.b16 %v1160
  %v1305 = vunpack.c.l.b16 %v1161
  %v1306 = vunpack.c.l.b16 %v1162
  %v1307 = vunpack.c.l.b16 %v1163
  %v1308 = vunpack.c.l.b16 %v1164
  %v1309 = vunpack.c.l.b16 %v1165
  %v1310 = vunpack.c.l.b16 %v1166
  %v1311 = vunpack.c.l.b16 %v1167
  %v1312 = vunpack.c.l.b16 %v1168
  %v1313 = vunpack.c.l.b16 %v1169
  %v1314 = vunpack.c.l.b16 %v1170
  %v1315 = vunpack.c.l.b16 %v1171
  %v1316 = vunpack.c.l.b16 %v1172
  %v1317 = vunpack.c.l.b16 %v1173
  %v1318 = vunpack.c.l.b16 %v1174
  %v1319 = vunpack.c.l.b16 %v1175
  %v1320 = vunpack.c.l.b16 %v1176
  %v1321 = vunpack.c.l.b16 %v1177
  %v1322 = vunpack.c.l.b16 %v1178
  %v1323 = vunpack.c.l.b16 %v1179
  %v1324 = vunpack.c.l.b16 %v1180
  %v1325 = vunpack.c.l.b16 %v1181
  %v1326 = vunpack.c.l.b16 %v1182
  %v1327 = vunpack.c.l.b16 %v1183
  %v1328 = vunpack.c.l.b16 %v1184
  %v1329 = vunpack.c.l.b16 %v1185
  %v1330 = vunpack.c.l.b16 %v1186
  %v1331 = vunpack.c.l.b16 %v1187
  %v1332 = vunpack.c.l.b16 %v1188
  %v1333 = vunpack.c.l.b16 %v1189
  %v1334 = vunpack.c.l.b16 %v1190
  %v1335 = vunpack.c.l.b16 %v1191
  %v1336 = vunpack.c.l.b16 %v1192
  %v1337 = vunpack.c.l.b16 %v1193
  %v1338 = vunpack.c.l.b16 %v1194
  %v1339 = vunpack.c.l.b16 %v1195
  %v1340 = vunpack.c.l.b16 %v1196
  %v1341 = vunpack.c.l.b16 %v1197
  %v1342 = vunpack.c.l.b16 %v1198
  %v1343 = vunpack.c.l.b16 %v1199
  %v1344 = vunpack.c.l.b16 %v1200
  %v1345 = vunpack.c.l.b16 %v1201
  %v1346 = vunpack.c.l.b16 %v1202
  %v1347 = vunpack.c.l.b16 %v1203
  %v1348 = vunpack.c.l.b16 %v1204
  %v1349 = vunpack.c.l.b16 %v1205
  %v1350 = vunpack.c.l.b16 %v1206
  %v1351 = vunpack.c.l.b16 %v1207
  %v1352 = vunpack.c.l.b16 %v1208
  %v1353 = vunpack.c.l.b16 %v1209
  %v1354 = vunpack.c.l.b16 %v1210
  %v1355 = vpack.c.b16 %v1284, %v1283
  %v1356 = vpack.c.b16 %v1286, %v1285
  %v1357 = vpack.c.b16 %v1288, %v1287
  %v1358 = vpack.c.b16 %v1290, %v1289
  %v1359 = vpack.c.b16 %v1292, %v1291
  %v1360 = vpack.c.b16 %v1294, %v1293
  %v1361 = vpack.c.b16 %v1296, %v1295
  %v1362 = vpack.c.b16 %v1298, %v1297
  %v1363 = vpack.c.b16 %v1300, %v1299
  %v1364 = vpack.c.b16 %v1302, %v1301
  %v1365 = vpack.c.b16 %v1304, %v1303
  %v1366 = vpack.c.b16 %v1306, %v1305
  %v1367 = vpack.c.b16 %v1308, %v1307
  %v1368 = vpack.c.b16 %v1310, %v1309
  %v1369 = vpack.c.b16 %v1312, %v1311
  %v1370 = vpack.c.b16 %v1314, %v1313
  %v1371 = vpack.c.b16 %v1316, %v1315
  %v1372 = vpack.c.b16 %v1318, %v1317
  %v1373 = vpack.c.b16 %v1320, %v1319
  %v1374 = vpack.c.b16 %v1322, %v1321
  %v1375 = vpack.c.b16 %v1324, %v1323
  %v1376 = vpack.c.b16 %v1326, %v1325
  %v1377 = vpack.c.b16 %v1328, %v1327
  %v1378 = vpack.c.b16 %v1330, %v1329
  %v1379 = vpack.c.b16 %v1332, %v1331
  %v1380 = vpack.c.b16 %v1334, %v1333
  %v1381 = vpack.c.b16 %v1336, %v1335
  %v1382 = vpack.c.b16 %v1338, %v1337
  %v1383 = vpack.c.b16 %v1340, %v1339
  %v1384 = vpack.c.b16 %v1342, %v1341
  %v1385 = vpack.c.b16 %v1344, %v1343
  %v1386 = vpack.c.b16 %v1346, %v1345
  %v1387 = vpack.c.b16 %v1348, %v1347
  %v1388 = vpack.c.b16 %v1350, %v1349
  %v1389 = vpack.c.b16 %v1352, %v1351
  %v1390 = vpack.c.b16 %v1354, %v1353
  %vm1391 = vcmask 850944
  %v1393 = vsel %vm1391, %v1355, 0
  %v1396 = vsel %vm1391, %v1356, 0
  %v1399 = vsel %vm1391, %v1357, 0
  %v1402 = vsel %vm1391, %v1358, 0
  %v1405 = vsel %vm1391, %v1359, 0
  %v1408 = vsel %vm1391, %v1360, 0
  %v1411 = vsel %vm1391, %v1361, 0
  %v1414 = vsel %vm1391, %v1362, 0
  %v1417 = vsel %vm1391, %v1363, 0
  %v1420 = vsel %vm1391, %v1364, 0
  %v1423 = vsel %vm1391, %v1365, 0
  %v1426 = vsel %vm1391, %v1366, 0
  %v1429 = vsel %vm1391, %v1367, 0
  %v1432 = vsel %vm1391, %v1368, 0
  %v1435 = vsel %vm1391, %v1369, 0
  %v1438 = vsel %vm1391, %v1370, 0
  %v1441 = vsel %vm1391, %v1371, 0
  %v1444 = vsel %vm1391, %v1372, 0
  %v1447 = vsel %vm1391, %v1373, 0
  %v1450 = vsel %vm1391, %v1374, 0
  %v1453 = vsel %vm1391, %v1375, 0
  %v1456 = vsel %vm1391, %v1376, 0
  %v1459 = vsel %vm1391, %v1377, 0
  %v1462 = vsel %vm1391, %v1378, 0
  %v1465 = vsel %vm1391, %v1379, 0
  %v1468 = vsel %vm1391, %v1380, 0
  %v1471 = vsel %vm1391, %v1381, 0
  %v1474 = vsel %vm1391, %v1382, 0
  %v1477 = vsel %vm1391, %v1383, 0
  %v1480 = vsel %vm1391, %v1384, 0
  %v1483 = vsel %vm1391, %v1385, 0
  %v1486 = vsel %vm1391, %v1386, 0
  %v1489 = vsel %vm1391, %v1387, 0
  %v1492 = vsel %vm1391, %v1388, 0
  %v1495 = vsel %vm1391, %v1389, 0
  %v1498 = vsel %vm1391, %v1390, 0
  %vm1500 = vcmask 1043456
  %v1502 = vsel %vm1500, %v1138, 0
  %1504 = vmatprep.subr.bf16.mxu0 0
  %1505 = vmatpush1.bf16.msra.mxu0 %v1132
  %1506 = vmatprep.subr.bf16.mxu0 0
  %1507 = vmatpush1.bf16.msra.mxu0 %v1133
  %1508 = vmatprep.subr.bf16.mxu0 0
  %1509 = vmatpush1.bf16.msra.mxu0 %v1134
  %1510 = vmatprep.subr.bf16.mxu0 0
  %1511 = vmatpush1.bf16.msra.mxu0 %v1135
  %1512 = vmatprep.subr.bf16.mxu0 0
  %1513 = vmatpush1.bf16.msra.mxu0 %v1136
  %1514 = vmatprep.subr.bf16.mxu0 0
  %1515 = vmatpush1.bf16.msra.mxu0 %v1137
  %1516 = vmatprep.subr.bf16.mxu0 0
  %1517 = vmatpush1.bf16.msra.mxu0 %v1502
  %1518 = vmatprep.subr.bf16.mxu0 0
  %1519 = vmatpush1.bf16.msra.mxu0 0
  %1520 = vmatprep.subr.bf16.mxu0 0
  %1521 = vmatpush1.bf16.msra.mxu0 0
  %1522 = vmatprep.subr.bf16.mxu0 0
  %1523 = vmatpush1.bf16.msra.mxu0 0
  %1524 = vmatprep.subr.bf16.mxu0 0
  %1525 = vmatpush1.bf16.msra.mxu0 0
  %1526 = vmatprep.subr.bf16.mxu0 0
  %1527 = vmatpush1.bf16.msra.mxu0 0
  %1528 = vmatprep.subr.bf16.mxu0 0
  %1529 = vmatpush1.bf16.msra.mxu0 0
  %1530 = vmatprep.subr.bf16.mxu0 0
  %1531 = vmatpush1.bf16.msra.mxu0 0
  %1532 = vmatprep.subr.bf16.mxu0 0
  %1533 = vmatpush1.bf16.msra.mxu0 0
  %1534 = vmatprep.subr.bf16.mxu0 0
  %1535 = vmatpush1.bf16.msra.mxu0 0
  %1536 = vmatprep.mubr.bf16.mxu0 0
  %1537 = vmatmul.mubr.bf16.gmra.mrb[0].mxu0 %v1393
  %v1538 = vpop.f32.mrb[0].mxu0
  %v1539 = vadd.f32 0.0, %v1538
  %v1540 = vpop.f32.mrb[0].mxu0
  %v1541 = vpop.f32.mrb[0].mxu0
  %v1542 = vadd.f32 0.0, %v1541
  %v1543 = vpop.f32.mrb[0].mxu0
  %1544 = vmatprep.mubr.bf16.mxu0 0
  %1545 = vmatmul.mubr.bf16.gmra.mrb[0].mxu0 %v1396
  %v1546 = vpop.f32.mrb[0].mxu0
  %v1547 = vadd.f32 0.0, %v1546
  %v1548 = vpop.f32.mrb[0].mxu0
  %v1549 = vpop.f32.mrb[0].mxu0
  %v1550 = vadd.f32 0.0, %v1549
  %v1551 = vpop.f32.mrb[0].mxu0
  %1552 = vmatprep.mubr.bf16.mxu0 0
  %1553 = vmatmul.mubr.bf16.gmra.mrb[0].mxu0 %v1399
  %v1554 = vpop.f32.mrb[0].mxu0
  %v1555 = vadd.f32 0.0, %v1554
  %v1556 = vpop.f32.mrb[0].mxu0
  %v1557 = vpop.f32.mrb[0].mxu0
  %v1558 = vadd.f32 0.0, %v1557
  %v1559 = vpop.f32.mrb[0].mxu0
  %1560 = vmatprep.mubr.bf16.mxu0 0
  %1561 = vmatmul.mubr.bf16.gmra.mrb[0].mxu0 %v1402
  %v1562 = vpop.f32.mrb[0].mxu0
  %v1563 = vadd.f32 0.0, %v1562
  %v1564 = vpop.f32.mrb[0].mxu0
  %v1565 = vpop.f32.mrb[0].mxu0
  %v1566 = vadd.f32 0.0, %v1565
  %v1567 = vpop.f32.mrb[0].mxu0
  %1568 = vmatprep.mubr.bf16.mxu0 0
  %1569 = vmatmul.mubr.bf16.gmra.mrb[0].mxu0 %v1405
  %v1570 = vpop.f32.mrb[0].mxu0
  %v1571 = vadd.f32 0.0, %v1570
  %v1572 = vpop.f32.mrb[0].mxu0
  %v1573 = vpop.f32.mrb[0].mxu0
  %v1574 = vadd.f32 0.0, %v1573
  %v1575 = vpop.f32.mrb[0].mxu0
  %1576 = vmatprep.mubr.bf16.mxu0 0
  %1577 = vmatmul.mubr.bf16.gmra.mrb[0].mxu0 %v1408
  %v1578 = vpop.f32.mrb[0].mxu0
  %v1579 = vadd.f32 0.0, %v1578
  %v1580 = vpop.f32.mrb[0].mxu0
  %v1581 = vpop.f32.mrb[0].mxu0
  %v1582 = vadd.f32 0.0, %v1581
  %v1583 = vpop.f32.mrb[0].mxu0
  %1584 = vmatprep.mubr.bf16.mxu0 0
  %1585 = vmatmul.mubr.bf16.gmra.mrb[0].mxu0 %v1411
  %v1586 = vpop.f32.mrb[0].mxu0
  %v1587 = vadd.f32 0.0, %v1586
  %v1588 = vpop.f32.mrb[0].mxu0
  %v1589 = vpop.f32.mrb[0].mxu0
  %v1590 = vadd.f32 0.0, %v1589
  %v1591 = vpop.f32.mrb[0].mxu0
  %1592 = vmatprep.mubr.bf16.mxu0 0
  %1593 = vmatmul.mubr.bf16.gmra.mrb[0].mxu0 %v1414
  %v1594 = vpop.f32.mrb[0].mxu0
  %v1595 = vadd.f32 0.0, %v1594
  %v1596 = vpop.f32.mrb[0].mxu0
  %v1597 = vpop.f32.mrb[0].mxu0
  %v1598 = vadd.f32 0.0, %v1597
  %v1599 = vpop.f32.mrb[0].mxu0
  %1600 = vmatprep.mubr.bf16.mxu0 0
  %1601 = vmatmul.mubr.bf16.gmra.mrb[0].mxu0 %v1417
  %v1602 = vpop.f32.mrb[0].mxu0
  %v1603 = vadd.f32 0.0, %v1602
  %v1604 = vpop.f32.mrb[0].mxu0
  %v1605 = vpop.f32.mrb[0].mxu0
  %v1606 = vadd.f32 0.0, %v1605
  %v1607 = vpop.f32.mrb[0].mxu0
  %1608 = vmatprep.mubr.bf16.mxu0 0
  %1609 = vmatmul.mubr.bf16.gmra.mrb[0].mxu0 %v1420
  %v1610 = vpop.f32.mrb[0].mxu0
  %v1611 = vadd.f32 0.0, %v1610
  %v1612 = vpop.f32.mrb[0].mxu0
  %v1613 = vpop.f32.mrb[0].mxu0
  %v1614 = vadd.f32 0.0, %v1613
  %v1615 = vpop.f32.mrb[0].mxu0
  %1616 = vmatprep.mubr.bf16.mxu0 0
  %1617 = vmatmul.mubr.bf16.gmra.mrb[0].mxu0 %v1423
  %v1618 = vpop.f32.mrb[0].mxu0
  %v1619 = vadd.f32 0.0, %v1618
  %v1620 = vpop.f32.mrb[0].mxu0
  %v1621 = vpop.f32.mrb[0].mxu0
  %v1622 = vadd.f32 0.0, %v1621
  %v1623 = vpop.f32.mrb[0].mxu0
  %1624 = vmatprep.mubr.bf16.mxu0 0
  %1625 = vmatmul.mubr.bf16.gmra.mrb[0].mxu0 %v1426
  %v1626 = vpop.f32.mrb[0].mxu0
  %v1627 = vadd.f32 0.0, %v1626
  %v1628 = vpop.f32.mrb[0].mxu0
  %v1629 = vpop.f32.mrb[0].mxu0
  %v1630 = vadd.f32 0.0, %v1629
  %v1631 = vpop.f32.mrb[0].mxu0
  %1632 = vmatprep.mubr.bf16.mxu0 0
  %1633 = vmatmul.mubr.bf16.gmra.mrb[0].mxu0 %v1429
  %v1634 = vpop.f32.mrb[0].mxu0
  %v1635 = vadd.f32 0.0, %v1634
  %v1636 = vpop.f32.mrb[0].mxu0
  %v1637 = vpop.f32.mrb[0].mxu0
  %v1638 = vadd.f32 0.0, %v1637
  %v1639 = vpop.f32.mrb[0].mxu0
  %1640 = vmatprep.mubr.bf16.mxu0 0
  %1641 = vmatmul.mubr.bf16.gmra.mrb[0].mxu0 %v1432
  %v1642 = vpop.f32.mrb[0].mxu0
  %v1643 = vadd.f32 0.0, %v1642
  %v1644 = vpop.f32.mrb[0].mxu0
  %v1645 = vpop.f32.mrb[0].mxu0
  %v1646 = vadd.f32 0.0, %v1645
  %v1647 = vpop.f32.mrb[0].mxu0
  %1648 = vmatprep.mubr.bf16.mxu0 0
  %1649 = vmatmul.mubr.bf16.gmra.mrb[0].mxu0 %v1435
  %v1650 = vpop.f32.mrb[0].mxu0
  %v1651 = vadd.f32 0.0, %v1650
  %v1652 = vpop.f32.mrb[0].mxu0
  %v1653 = vpop.f32.mrb[0].mxu0
  %v1654 = vadd.f32 0.0, %v1653
  %v1655 = vpop.f32.mrb[0].mxu0
  %1656 = vmatprep.mubr.bf16.mxu0 0
  %1657 = vmatmul.mubr.bf16.gmra.mrb[0].mxu0 %v1438
  %v1658 = vpop.f32.mrb[0].mxu0
  %v1659 = vadd.f32 0.0, %v1658
  %v1660 = vpop.f32.mrb[0].mxu0
  %v1661 = vpop.f32.mrb[0].mxu0
  %v1662 = vadd.f32 0.0, %v1661
  %v1663 = vpop.f32.mrb[0].mxu0
  %1664 = vmatprep.mubr.bf16.mxu0 0
  %1665 = vmatmul.mubr.bf16.gmra.mrb[0].mxu0 %v1441
  %v1666 = vpop.f32.mrb[0].mxu0
  %v1667 = vadd.f32 0.0, %v1666
  %v1668 = vpop.f32.mrb[0].mxu0
  %v1669 = vpop.f32.mrb[0].mxu0
  %v1670 = vadd.f32 0.0, %v1669
  %v1671 = vpop.f32.mrb[0].mxu0
  %1672 = vmatprep.mubr.bf16.mxu0 0
  %1673 = vmatmul.mubr.bf16.gmra.mrb[0].mxu0 %v1444
  %v1674 = vpop.f32.mrb[0].mxu0
  %v1675 = vadd.f32 0.0, %v1674
  %v1676 = vpop.f32.mrb[0].mxu0
  %v1677 = vpop.f32.mrb[0].mxu0
  %v1678 = vadd.f32 0.0, %v1677
  %v1679 = vpop.f32.mrb[0].mxu0
  %1680 = vmatprep.mubr.bf16.mxu0 0
  %1681 = vmatmul.mubr.bf16.gmra.mrb[0].mxu0 %v1447
  %v1682 = vpop.f32.mrb[0].mxu0
  %v1683 = vadd.f32 0.0, %v1682
  %v1684 = vpop.f32.mrb[0].mxu0
  %v1685 = vpop.f32.mrb[0].mxu0
  %v1686 = vadd.f32 0.0, %v1685
  %v1687 = vpop.f32.mrb[0].mxu0
  %1688 = vmatprep.mubr.bf16.mxu0 0
  %1689 = vmatmul.mubr.bf16.gmra.mrb[0].mxu0 %v1450
  %v1690 = vpop.f32.mrb[0].mxu0
  %v1691 = vadd.f32 0.0, %v1690
  %v1692 = vpop.f32.mrb[0].mxu0
  %v1693 = vpop.f32.mrb[0].mxu0
  %v1694 = vadd.f32 0.0, %v1693
  %v1695 = vpop.f32.mrb[0].mxu0
  %1696 = vmatprep.mubr.bf16.mxu0 0
  %1697 = vmatmul.mubr.bf16.gmra.mrb[0].mxu0 %v1453
  %v1698 = vpop.f32.mrb[0].mxu0
  %v1699 = vadd.f32 0.0, %v1698
  %v1700 = vpop.f32.mrb[0].mxu0
  %v1701 = vpop.f32.mrb[0].mxu0
  %v1702 = vadd.f32 0.0, %v1701
  %v1703 = vpop.f32.mrb[0].mxu0
  %1704 = vmatprep.mubr.bf16.mxu0 0
  %1705 = vmatmul.mubr.bf16.gmra.mrb[0].mxu0 %v1456
  %v1706 = vpop.f32.mrb[0].mxu0
  %v1707 = vadd.f32 0.0, %v1706
  %v1708 = vpop.f32.mrb[0].mxu0
  %v1709 = vpop.f32.mrb[0].mxu0
  %v1710 = vadd.f32 0.0, %v1709
  %v1711 = vpop.f32.mrb[0].mxu0
  %1712 = vmatprep.mubr.bf16.mxu0 0
  %1713 = vmatmul.mubr.bf16.gmra.mrb[0].mxu0 %v1459
  %v1714 = vpop.f32.mrb[0].mxu0
  %v1715 = vadd.f32 0.0, %v1714
  %v1716 = vpop.f32.mrb[0].mxu0
  %v1717 = vpop.f32.mrb[0].mxu0
  %v1718 = vadd.f32 0.0, %v1717
  %v1719 = vpop.f32.mrb[0].mxu0
  %1720 = vmatprep.mubr.bf16.mxu0 0
  %1721 = vmatmul.mubr.bf16.gmra.mrb[0].mxu0 %v1462
  %v1722 = vpop.f32.mrb[0].mxu0
  %v1723 = vadd.f32 0.0, %v1722
  %v1724 = vpop.f32.mrb[0].mxu0
  %v1725 = vpop.f32.mrb[0].mxu0
  %v1726 = vadd.f32 0.0, %v1725
  %v1727 = vpop.f32.mrb[0].mxu0
  %1728 = vmatprep.mubr.bf16.mxu0 0
  %1729 = vmatmul.mubr.bf16.gmra.mrb[0].mxu0 %v1465
  %v1730 = vpop.f32.mrb[0].mxu0
  %v1731 = vadd.f32 0.0, %v1730
  %v1732 = vpop.f32.mrb[0].mxu0
  %v1733 = vpop.f32.mrb[0].mxu0
  %v1734 = vadd.f32 0.0, %v1733
  %v1735 = vpop.f32.mrb[0].mxu0
  %1736 = vmatprep.mubr.bf16.mxu0 0
  %1737 = vmatmul.mubr.bf16.gmra.mrb[0].mxu0 %v1468
  %v1738 = vpop.f32.mrb[0].mxu0
  %v1739 = vadd.f32 0.0, %v1738
  %v1740 = vpop.f32.mrb[0].mxu0
  %v1741 = vpop.f32.mrb[0].mxu0
  %v1742 = vadd.f32 0.0, %v1741
  %v1743 = vpop.f32.mrb[0].mxu0
  %1744 = vmatprep.mubr.bf16.mxu0 0
  %1745 = vmatmul.mubr.bf16.gmra.mrb[0].mxu0 %v1471
  %v1746 = vpop.f32.mrb[0].mxu0
  %v1747 = vadd.f32 0.0, %v1746
  %v1748 = vpop.f32.mrb[0].mxu0
  %v1749 = vpop.f32.mrb[0].mxu0
  %v1750 = vadd.f32 0.0, %v1749
  %v1751 = vpop.f32.mrb[0].mxu0
  %1752 = vmatprep.mubr.bf16.mxu0 0
  %1753 = vmatmul.mubr.bf16.gmra.mrb[0].mxu0 %v1474
  %v1754 = vpop.f32.mrb[0].mxu0
  %v1755 = vadd.f32 0.0, %v1754
  %v1756 = vpop.f32.mrb[0].mxu0
  %v1757 = vpop.f32.mrb[0].mxu0
  %v1758 = vadd.f32 0.0, %v1757
  %v1759 = vpop.f32.mrb[0].mxu0
  %1760 = vmatprep.mubr.bf16.mxu0 0
  %1761 = vmatmul.mubr.bf16.gmra.mrb[0].mxu0 %v1477
  %v1762 = vpop.f32.mrb[0].mxu0
  %v1763 = vadd.f32 0.0, %v1762
  %v1764 = vpop.f32.mrb[0].mxu0
  %v1765 = vpop.f32.mrb[0].mxu0
  %v1766 = vadd.f32 0.0, %v1765
  %v1767 = vpop.f32.mrb[0].mxu0
  %1768 = vmatprep.mubr.bf16.mxu0 0
  %1769 = vmatmul.mubr.bf16.gmra.mrb[0].mxu0 %v1480
  %v1770 = vpop.f32.mrb[0].mxu0
  %v1771 = vadd.f32 0.0, %v1770
  %v1772 = vpop.f32.mrb[0].mxu0
  %v1773 = vpop.f32.mrb[0].mxu0
  %v1774 = vadd.f32 0.0, %v1773
  %v1775 = vpop.f32.mrb[0].mxu0
  %1776 = vmatprep.mubr.bf16.mxu0 0
  %1777 = vmatmul.mubr.bf16.gmra.mrb[0].mxu0 %v1483
  %v1778 = vpop.f32.mrb[0].mxu0
  %v1779 = vadd.f32 0.0, %v1778
  %v1780 = vpop.f32.mrb[0].mxu0
  %v1781 = vpop.f32.mrb[0].mxu0
  %v1782 = vadd.f32 0.0, %v1781
  %v1783 = vpop.f32.mrb[0].mxu0
  %1784 = vmatprep.mubr.bf16.mxu0 0
  %1785 = vmatmul.mubr.bf16.gmra.mrb[0].mxu0 %v1486
  %v1786 = vpop.f32.mrb[0].mxu0
  %v1787 = vadd.f32 0.0, %v1786
  %v1788 = vpop.f32.mrb[0].mxu0
  %v1789 = vpop.f32.mrb[0].mxu0
  %v1790 = vadd.f32 0.0, %v1789
  %v1791 = vpop.f32.mrb[0].mxu0
  %1792 = vmatprep.mubr.bf16.mxu0 0
  %1793 = vmatmul.mubr.bf16.gmra.mrb[0].mxu0 %v1489
  %v1794 = vpop.f32.mrb[0].mxu0
  %v1795 = vadd.f32 0.0, %v1794
  %v1796 = vpop.f32.mrb[0].mxu0
  %v1797 = vpop.f32.mrb[0].mxu0
  %v1798 = vadd.f32 0.0, %v1797
  %v1799 = vpop.f32.mrb[0].mxu0
  %1800 = vmatprep.mubr.bf16.mxu0 0
  %1801 = vmatmul.mubr.bf16.gmra.mrb[0].mxu0 %v1492
  %v1802 = vpop.f32.mrb[0].mxu0
  %v1803 = vadd.f32 0.0, %v1802
  %v1804 = vpop.f32.mrb[0].mxu0
  %v1805 = vpop.f32.mrb[0].mxu0
  %v1806 = vadd.f32 0.0, %v1805
  %v1807 = vpop.f32.mrb[0].mxu0
  %1808 = vmatprep.mubr.bf16.mxu0 0
  %1809 = vmatmul.mubr.bf16.gmra.mrb[0].mxu0 %v1495
  %v1810 = vpop.f32.mrb[0].mxu0
  %v1811 = vadd.f32 0.0, %v1810
  %v1812 = vpop.f32.mrb[0].mxu0
  %v1813 = vpop.f32.mrb[0].mxu0
  %v1814 = vadd.f32 0.0, %v1813
  %v1815 = vpop.f32.mrb[0].mxu0
  %1816 = vmatprep.mubr.bf16.mxu0 0
  %1817 = vmatmul.mubr.bf16.gmra.mrb[0].mxu0 %v1498
  %v1818 = vpop.f32.mrb[0].mxu0
  %v1819 = vadd.f32 0.0, %v1818
  %v1820 = vpop.f32.mrb[0].mxu0
  %v1821 = vpop.f32.mrb[0].mxu0
  %v1822 = vadd.f32 0.0, %v1821
  %v1823 = vpop.f32.mrb[0].mxu0
  %1824 = vdwg.mxu0
  %v1897 = vunpack.c.l.b16 %v1060
  %v1898 = vunpack.c.l.b16 %v1061
  %v1899 = vunpack.c.l.b16 %v1062
  %v1900 = vunpack.c.l.b16 %v1063
  %v1901 = vunpack.c.l.b16 %v1064
  %v1902 = vunpack.c.l.b16 %v1065
  %v1903 = vunpack.c.l.b16 %v1066
  %v1904 = vunpack.c.l.b16 %v1067
  %v1905 = vunpack.c.l.b16 %v1068
  %v1906 = vunpack.c.l.b16 %v1069
  %v1907 = vunpack.c.l.b16 %v1070
  %v1908 = vunpack.c.l.b16 %v1071
  %v1909 = vunpack.c.l.b16 %v1072
  %v1910 = vunpack.c.l.b16 %v1073
  %v1911 = vunpack.c.l.b16 %v1074
  %v1912 = vunpack.c.l.b16 %v1075
  %v1913 = vunpack.c.l.b16 %v1076
  %v1914 = vunpack.c.l.b16 %v1077
  %v1915 = vunpack.c.l.b16 %v1078
  %v1916 = vunpack.c.l.b16 %v1079
  %v1917 = vunpack.c.l.b16 %v1080
  %v1918 = vunpack.c.l.b16 %v1081
  %v1919 = vunpack.c.l.b16 %v1082
  %v1920 = vunpack.c.l.b16 %v1083
  %v1921 = vunpack.c.l.b16 %v1084
  %v1922 = vunpack.c.l.b16 %v1085
  %v1923 = vunpack.c.l.b16 %v1086
  %v1924 = vunpack.c.l.b16 %v1087
  %v1925 = vunpack.c.l.b16 %v1088
  %v1926 = vunpack.c.l.b16 %v1089
  %v1927 = vunpack.c.l.b16 %v1090
  %v1928 = vunpack.c.l.b16 %v1091
  %v1929 = vunpack.c.l.b16 %v1092
  %v1930 = vunpack.c.l.b16 %v1093
  %v1931 = vunpack.c.l.b16 %v1094
  %v1932 = vunpack.c.l.b16 %v1095
  %v1933 = vunpack.c.l.b16 %v1096
  %v1934 = vunpack.c.l.b16 %v1097
  %v1935 = vunpack.c.l.b16 %v1098
  %v1936 = vunpack.c.l.b16 %v1099
  %v1937 = vunpack.c.l.b16 %v1100
  %v1938 = vunpack.c.l.b16 %v1101
  %v1939 = vunpack.c.l.b16 %v1102
  %v1940 = vunpack.c.l.b16 %v1103
  %v1941 = vunpack.c.l.b16 %v1104
  %v1942 = vunpack.c.l.b16 %v1105
  %v1943 = vunpack.c.l.b16 %v1106
  %v1944 = vunpack.c.l.b16 %v1107
  %v1945 = vunpack.c.l.b16 %v1108
  %v1946 = vunpack.c.l.b16 %v1109
  %v1947 = vunpack.c.l.b16 %v1110
  %v1948 = vunpack.c.l.b16 %v1111
  %v1949 = vunpack.c.l.b16 %v1112
  %v1950 = vunpack.c.l.b16 %v1113
  %v1951 = vunpack.c.l.b16 %v1114
  %v1952 = vunpack.c.l.b16 %v1115
  %v1953 = vunpack.c.l.b16 %v1116
  %v1954 = vunpack.c.l.b16 %v1117
  %v1955 = vunpack.c.l.b16 %v1118
  %v1956 = vunpack.c.l.b16 %v1119
  %v1957 = vunpack.c.l.b16 %v1120
  %v1958 = vunpack.c.l.b16 %v1121
  %v1959 = vunpack.c.l.b16 %v1122
  %v1960 = vunpack.c.l.b16 %v1123
  %v1961 = vunpack.c.l.b16 %v1124
  %v1962 = vunpack.c.l.b16 %v1125
  %v1963 = vunpack.c.l.b16 %v1126
  %v1964 = vunpack.c.l.b16 %v1127
  %v1965 = vunpack.c.l.b16 %v1128
  %v1966 = vunpack.c.l.b16 %v1129
  %v1967 = vunpack.c.l.b16 %v1130
  %v1968 = vunpack.c.l.b16 %v1131
  %v1969 = vpack.c.b16 %v1898, %v1897
  %v1970 = vpack.c.b16 %v1900, %v1899
  %v1971 = vpack.c.b16 %v1902, %v1901
  %v1972 = vpack.c.b16 %v1904, %v1903
  %v1973 = vpack.c.b16 %v1906, %v1905
  %v1974 = vpack.c.b16 %v1908, %v1907
  %v1975 = vpack.c.b16 %v1910, %v1909
  %v1976 = vpack.c.b16 %v1912, %v1911
  %v1977 = vpack.c.b16 %v1914, %v1913
  %v1978 = vpack.c.b16 %v1916, %v1915
  %v1979 = vpack.c.b16 %v1918, %v1917
  %v1980 = vpack.c.b16 %v1920, %v1919
  %v1981 = vpack.c.b16 %v1922, %v1921
  %v1982 = vpack.c.b16 %v1924, %v1923
  %v1983 = vpack.c.b16 %v1926, %v1925
  %v1984 = vpack.c.b16 %v1928, %v1927
  %v1985 = vpack.c.b16 %v1930, %v1929
  %v1986 = vpack.c.b16 %v1932, %v1931
  %v1987 = vpack.c.b16 %v1934, %v1933
  %v1988 = vpack.c.b16 %v1936, %v1935
  %v1989 = vpack.c.b16 %v1938, %v1937
  %v1990 = vpack.c.b16 %v1940, %v1939
  %v1991 = vpack.c.b16 %v1942, %v1941
  %v1992 = vpack.c.b16 %v1944, %v1943
  %v1993 = vpack.c.b16 %v1946, %v1945
  %v1994 = vpack.c.b16 %v1948, %v1947
  %v1995 = vpack.c.b16 %v1950, %v1949
  %v1996 = vpack.c.b16 %v1952, %v1951
  %v1997 = vpack.c.b16 %v1954, %v1953
  %v1998 = vpack.c.b16 %v1956, %v1955
  %v1999 = vpack.c.b16 %v1958, %v1957
  %v2000 = vpack.c.b16 %v1960, %v1959
  %v2001 = vpack.c.b16 %v1962, %v1961
  %v2002 = vpack.c.b16 %v1964, %v1963
  %v2003 = vpack.c.b16 %v1966, %v1965
  %v2004 = vpack.c.b16 %v1968, %v1967
  %v2006 = vsel %vm1391, %v1969, 0
  %v2009 = vsel %vm1391, %v1970, 0
  %v2012 = vsel %vm1391, %v1971, 0
  %v2015 = vsel %vm1391, %v1972, 0
  %v2018 = vsel %vm1391, %v1973, 0
  %v2021 = vsel %vm1391, %v1974, 0
  %v2024 = vsel %vm1391, %v1975, 0
  %v2027 = vsel %vm1391, %v1976, 0
  %v2030 = vsel %vm1391, %v1977, 0
  %v2033 = vsel %vm1391, %v1978, 0
  %v2036 = vsel %vm1391, %v1979, 0
  %v2039 = vsel %vm1391, %v1980, 0
  %v2042 = vsel %vm1391, %v1981, 0
  %v2045 = vsel %vm1391, %v1982, 0
  %v2048 = vsel %vm1391, %v1983, 0
  %v2051 = vsel %vm1391, %v1984, 0
  %v2054 = vsel %vm1391, %v1985, 0
  %v2057 = vsel %vm1391, %v1986, 0
  %v2060 = vsel %vm1391, %v1987, 0
  %v2063 = vsel %vm1391, %v1988, 0
  %v2066 = vsel %vm1391, %v1989, 0
  %v2069 = vsel %vm1391, %v1990, 0
  %v2072 = vsel %vm1391, %v1991, 0
  %v2075 = vsel %vm1391, %v1992, 0
  %v2078 = vsel %vm1391, %v1993, 0
  %v2081 = vsel %vm1391, %v1994, 0
  %v2084 = vsel %vm1391, %v1995, 0
  %v2087 = vsel %vm1391, %v1996, 0
  %v2090 = vsel %vm1391, %v1997, 0
  %v2093 = vsel %vm1391, %v1998, 0
  %v2096 = vsel %vm1391, %v1999, 0
  %v2099 = vsel %vm1391, %v2000, 0
  %v2102 = vsel %vm1391, %v2001, 0
  %v2105 = vsel %vm1391, %v2002, 0
  %v2108 = vsel %vm1391, %v2003, 0
  %v2111 = vsel %vm1391, %v2004, 0
  %v2114 = vsel %vm1500, %v1059, 0
  %2116 = vmatprep.subr.bf16.mxu0 0
  %2117 = vmatpush1.bf16.msra.mxu0 %v1053
  %2118 = vmatprep.subr.bf16.mxu0 0
  %2119 = vmatpush1.bf16.msra.mxu0 %v1054
  %2120 = vmatprep.subr.bf16.mxu0 0
  %2121 = vmatpush1.bf16.msra.mxu0 %v1055
  %2122 = vmatprep.subr.bf16.mxu0 0
  %2123 = vmatpush1.bf16.msra.mxu0 %v1056
  %2124 = vmatprep.subr.bf16.mxu0 0
  %2125 = vmatpush1.bf16.msra.mxu0 %v1057
  %2126 = vmatprep.subr.bf16.mxu0 0
  %2127 = vmatpush1.bf16.msra.mxu0 %v1058
  %2128 = vmatprep.subr.bf16.mxu0 0
  %2129 = vmatpush1.bf16.msra.mxu0 %v2114
  %2130 = vmatprep.subr.bf16.mxu0 0
  %2131 = vmatpush1.bf16.msra.mxu0 0
  %2132 = vmatprep.subr.bf16.mxu0 0
  %2133 = vmatpush1.bf16.msra.mxu0 0
  %2134 = vmatprep.subr.bf16.mxu0 0
  %2135 = vmatpush1.bf16.msra.mxu0 0
  %2136 = vmatprep.subr.bf16.mxu0 0
  %2137 = vmatpush1.bf16.msra.mxu0 0
  %2138 = vmatprep.subr.bf16.mxu0 0
  %2139 = vmatpush1.bf16.msra.mxu0 0
  %2140 = vmatprep.subr.bf16.mxu0 0
  %2141 = vmatpush1.bf16.msra.mxu0 0
  %2142 = vmatprep.subr.bf16.mxu0 0
  %2143 = vmatpush1.bf16.msra.mxu0 0
  %2144 = vmatprep.subr.bf16.mxu0 0
  %2145 = vmatpush1.bf16.msra.mxu0 0
  %2146 = vmatprep.subr.bf16.mxu0 0
  %2147 = vmatpush1.bf16.msra.mxu0 0
  %2148 = vmatprep.mubr.bf16.mxu0 0
  %2149 = vmatmul.mubr.bf16.gmra.mrb[0].mxu0 %v2006
  %v2150 = vpop.f32.mrb[0].mxu0
  %v2151 = vadd.f32 %v1539, %v2150
  %v2152 = vpop.f32.mrb[0].mxu0
  %v2153 = vpop.f32.mrb[0].mxu0
  %v2154 = vadd.f32 %v1542, %v2153
  %v2155 = vpop.f32.mrb[0].mxu0
  %2156 = vmatprep.mubr.bf16.mxu0 0
  %2157 = vmatmul.mubr.bf16.gmra.mrb[0].mxu0 %v2009
  %v2158 = vpop.f32.mrb[0].mxu0
  %v2159 = vadd.f32 %v1547, %v2158
  %v2160 = vpop.f32.mrb[0].mxu0
  %v2161 = vpop.f32.mrb[0].mxu0
  %v2162 = vadd.f32 %v1550, %v2161
  %v2163 = vpop.f32.mrb[0].mxu0
  %2164 = vmatprep.mubr.bf16.mxu0 0
  %2165 = vmatmul.mubr.bf16.gmra.mrb[0].mxu0 %v2012
  %v2166 = vpop.f32.mrb[0].mxu0
  %v2167 = vadd.f32 %v1555, %v2166
  %v2168 = vpop.f32.mrb[0].mxu0
  %v2169 = vpop.f32.mrb[0].mxu0
  %v2170 = vadd.f32 %v1558, %v2169
  %v2171 = vpop.f32.mrb[0].mxu0
  %2172 = vmatprep.mubr.bf16.mxu0 0
  %2173 = vmatmul.mubr.bf16.gmra.mrb[0].mxu0 %v2015
  %v2174 = vpop.f32.mrb[0].mxu0
  %v2175 = vadd.f32 %v1563, %v2174
  %v2176 = vpop.f32.mrb[0].mxu0
  %v2177 = vpop.f32.mrb[0].mxu0
  %v2178 = vadd.f32 %v1566, %v2177
  %v2179 = vpop.f32.mrb[0].mxu0
  %2180 = vmatprep.mubr.bf16.mxu0 0
  %2181 = vmatmul.mubr.bf16.gmra.mrb[0].mxu0 %v2018
  %v2182 = vpop.f32.mrb[0].mxu0
  %v2183 = vadd.f32 %v1571, %v2182
  %v2184 = vpop.f32.mrb[0].mxu0
  %v2185 = vpop.f32.mrb[0].mxu0
  %v2186 = vadd.f32 %v1574, %v2185
  %v2187 = vpop.f32.mrb[0].mxu0
  %2188 = vmatprep.mubr.bf16.mxu0 0
  %2189 = vmatmul.mubr.bf16.gmra.mrb[0].mxu0 %v2021
  %v2190 = vpop.f32.mrb[0].mxu0
  %v2191 = vadd.f32 %v1579, %v2190
  %v2192 = vpop.f32.mrb[0].mxu0
  %v2193 = vpop.f32.mrb[0].mxu0
  %v2194 = vadd.f32 %v1582, %v2193
  %v2195 = vpop.f32.mrb[0].mxu0
  %2196 = vmatprep.mubr.bf16.mxu0 0
  %2197 = vmatmul.mubr.bf16.gmra.mrb[0].mxu0 %v2024
  %v2198 = vpop.f32.mrb[0].mxu0
  %v2199 = vadd.f32 %v1587, %v2198
  %v2200 = vpop.f32.mrb[0].mxu0
  %v2201 = vpop.f32.mrb[0].mxu0
  %v2202 = vadd.f32 %v1590, %v2201
  %v2203 = vpop.f32.mrb[0].mxu0
  %2204 = vmatprep.mubr.bf16.mxu0 0
  %2205 = vmatmul.mubr.bf16.gmra.mrb[0].mxu0 %v2027
  %v2206 = vpop.f32.mrb[0].mxu0
  %v2207 = vadd.f32 %v1595, %v2206
  %v2208 = vpop.f32.mrb[0].mxu0
  %v2209 = vpop.f32.mrb[0].mxu0
  %v2210 = vadd.f32 %v1598, %v2209
  %v2211 = vpop.f32.mrb[0].mxu0
  %2212 = vmatprep.mubr.bf16.mxu0 0
  %2213 = vmatmul.mubr.bf16.gmra.mrb[0].mxu0 %v2030
  %v2214 = vpop.f32.mrb[0].mxu0
  %v2215 = vadd.f32 %v1603, %v2214
  %v2216 = vpop.f32.mrb[0].mxu0
  %v2217 = vpop.f32.mrb[0].mxu0
  %v2218 = vadd.f32 %v1606, %v2217
  %v2219 = vpop.f32.mrb[0].mxu0
  %2220 = vmatprep.mubr.bf16.mxu0 0
  %2221 = vmatmul.mubr.bf16.gmra.mrb[0].mxu0 %v2033
  %v2222 = vpop.f32.mrb[0].mxu0
  %v2223 = vadd.f32 %v1611, %v2222
  %v2224 = vpop.f32.mrb[0].mxu0
  %v2225 = vpop.f32.mrb[0].mxu0
  %v2226 = vadd.f32 %v1614, %v2225
  %v2227 = vpop.f32.mrb[0].mxu0
  %2228 = vmatprep.mubr.bf16.mxu0 0
  %2229 = vmatmul.mubr.bf16.gmra.mrb[0].mxu0 %v2036
  %v2230 = vpop.f32.mrb[0].mxu0
  %v2231 = vadd.f32 %v1619, %v2230
  %v2232 = vpop.f32.mrb[0].mxu0
  %v2233 = vpop.f32.mrb[0].mxu0
  %v2234 = vadd.f32 %v1622, %v2233
  %v2235 = vpop.f32.mrb[0].mxu0
  %2236 = vmatprep.mubr.bf16.mxu0 0
  %2237 = vmatmul.mubr.bf16.gmra.mrb[0].mxu0 %v2039
  %v2238 = vpop.f32.mrb[0].mxu0
  %v2239 = vadd.f32 %v1627, %v2238
  %v2240 = vpop.f32.mrb[0].mxu0
  %v2241 = vpop.f32.mrb[0].mxu0
  %v2242 = vadd.f32 %v1630, %v2241
  %v2243 = vpop.f32.mrb[0].mxu0
  %2244 = vmatprep.mubr.bf16.mxu0 0
  %2245 = vmatmul.mubr.bf16.gmra.mrb[0].mxu0 %v2042
  %v2246 = vpop.f32.mrb[0].mxu0
  %v2247 = vadd.f32 %v1635, %v2246
  %v2248 = vpop.f32.mrb[0].mxu0
  %v2249 = vpop.f32.mrb[0].mxu0
  %v2250 = vadd.f32 %v1638, %v2249
  %v2251 = vpop.f32.mrb[0].mxu0
  %2252 = vmatprep.mubr.bf16.mxu0 0
  %2253 = vmatmul.mubr.bf16.gmra.mrb[0].mxu0 %v2045
  %v2254 = vpop.f32.mrb[0].mxu0
  %v2255 = vadd.f32 %v1643, %v2254
  %v2256 = vpop.f32.mrb[0].mxu0
  %v2257 = vpop.f32.mrb[0].mxu0
  %v2258 = vadd.f32 %v1646, %v2257
  %v2259 = vpop.f32.mrb[0].mxu0
  %2260 = vmatprep.mubr.bf16.mxu0 0
  %2261 = vmatmul.mubr.bf16.gmra.mrb[0].mxu0 %v2048
  %v2262 = vpop.f32.mrb[0].mxu0
  %v2263 = vadd.f32 %v1651, %v2262
  %v2264 = vpop.f32.mrb[0].mxu0
  %v2265 = vpop.f32.mrb[0].mxu0
  %v2266 = vadd.f32 %v1654, %v2265
  %v2267 = vpop.f32.mrb[0].mxu0
  %2268 = vmatprep.mubr.bf16.mxu0 0
  %2269 = vmatmul.mubr.bf16.gmra.mrb[0].mxu0 %v2051
  %v2270 = vpop.f32.mrb[0].mxu0
  %v2271 = vadd.f32 %v1659, %v2270
  %v2272 = vpop.f32.mrb[0].mxu0
  %v2273 = vpop.f32.mrb[0].mxu0
  %v2274 = vadd.f32 %v1662, %v2273
  %v2275 = vpop.f32.mrb[0].mxu0
  %2276 = vmatprep.mubr.bf16.mxu0 0
  %2277 = vmatmul.mubr.bf16.gmra.mrb[0].mxu0 %v2054
  %v2278 = vpop.f32.mrb[0].mxu0
  %v2279 = vadd.f32 %v1667, %v2278
  %v2280 = vpop.f32.mrb[0].mxu0
  %v2281 = vpop.f32.mrb[0].mxu0
  %v2282 = vadd.f32 %v1670, %v2281
  %v2283 = vpop.f32.mrb[0].mxu0
  %2284 = vmatprep.mubr.bf16.mxu0 0
  %2285 = vmatmul.mubr.bf16.gmra.mrb[0].mxu0 %v2057
  %v2286 = vpop.f32.mrb[0].mxu0
  %v2287 = vadd.f32 %v1675, %v2286
  %v2288 = vpop.f32.mrb[0].mxu0
  %v2289 = vpop.f32.mrb[0].mxu0
  %v2290 = vadd.f32 %v1678, %v2289
  %v2291 = vpop.f32.mrb[0].mxu0
  %2292 = vmatprep.mubr.bf16.mxu0 0
  %2293 = vmatmul.mubr.bf16.gmra.mrb[0].mxu0 %v2060
  %v2294 = vpop.f32.mrb[0].mxu0
  %v2295 = vadd.f32 %v1683, %v2294
  %v2296 = vpop.f32.mrb[0].mxu0
  %v2297 = vpop.f32.mrb[0].mxu0
  %v2298 = vadd.f32 %v1686, %v2297
  %v2299 = vpop.f32.mrb[0].mxu0
  %2300 = vmatprep.mubr.bf16.mxu0 0
  %2301 = vmatmul.mubr.bf16.gmra.mrb[0].mxu0 %v2063
  %v2302 = vpop.f32.mrb[0].mxu0
  %v2303 = vadd.f32 %v1691, %v2302
  %v2304 = vpop.f32.mrb[0].mxu0
  %v2305 = vpop.f32.mrb[0].mxu0
  %v2306 = vadd.f32 %v1694, %v2305
  %v2307 = vpop.f32.mrb[0].mxu0
  %2308 = vmatprep.mubr.bf16.mxu0 0
  %2309 = vmatmul.mubr.bf16.gmra.mrb[0].mxu0 %v2066
  %v2310 = vpop.f32.mrb[0].mxu0
  %v2311 = vadd.f32 %v1699, %v2310
  %v2312 = vpop.f32.mrb[0].mxu0
  %v2313 = vpop.f32.mrb[0].mxu0
  %v2314 = vadd.f32 %v1702, %v2313
  %v2315 = vpop.f32.mrb[0].mxu0
  %2316 = vmatprep.mubr.bf16.mxu0 0
  %2317 = vmatmul.mubr.bf16.gmra.mrb[0].mxu0 %v2069
  %v2318 = vpop.f32.mrb[0].mxu0
  %v2319 = vadd.f32 %v1707, %v2318
  %v2320 = vpop.f32.mrb[0].mxu0
  %v2321 = vpop.f32.mrb[0].mxu0
  %v2322 = vadd.f32 %v1710, %v2321
  %v2323 = vpop.f32.mrb[0].mxu0
  %2324 = vmatprep.mubr.bf16.mxu0 0
  %2325 = vmatmul.mubr.bf16.gmra.mrb[0].mxu0 %v2072
  %v2326 = vpop.f32.mrb[0].mxu0
  %v2327 = vadd.f32 %v1715, %v2326
  %v2328 = vpop.f32.mrb[0].mxu0
  %v2329 = vpop.f32.mrb[0].mxu0
  %v2330 = vadd.f32 %v1718, %v2329
  %v2331 = vpop.f32.mrb[0].mxu0
  %2332 = vmatprep.mubr.bf16.mxu0 0
  %2333 = vmatmul.mubr.bf16.gmra.mrb[0].mxu0 %v2075
  %v2334 = vpop.f32.mrb[0].mxu0
  %v2335 = vadd.f32 %v1723, %v2334
  %v2336 = vpop.f32.mrb[0].mxu0
  %v2337 = vpop.f32.mrb[0].mxu0
  %v2338 = vadd.f32 %v1726, %v2337
  %v2339 = vpop.f32.mrb[0].mxu0
  %2340 = vmatprep.mubr.bf16.mxu0 0
  %2341 = vmatmul.mubr.bf16.gmra.mrb[0].mxu0 %v2078
  %v2342 = vpop.f32.mrb[0].mxu0
  %v2343 = vadd.f32 %v1731, %v2342
  %v2344 = vpop.f32.mrb[0].mxu0
  %v2345 = vpop.f32.mrb[0].mxu0
  %v2346 = vadd.f32 %v1734, %v2345
  %v2347 = vpop.f32.mrb[0].mxu0
  %2348 = vmatprep.mubr.bf16.mxu0 0
  %2349 = vmatmul.mubr.bf16.gmra.mrb[0].mxu0 %v2081
  %v2350 = vpop.f32.mrb[0].mxu0
  %v2351 = vadd.f32 %v1739, %v2350
  %v2352 = vpop.f32.mrb[0].mxu0
  %v2353 = vpop.f32.mrb[0].mxu0
  %v2354 = vadd.f32 %v1742, %v2353
  %v2355 = vpop.f32.mrb[0].mxu0
  %2356 = vmatprep.mubr.bf16.mxu0 0
  %2357 = vmatmul.mubr.bf16.gmra.mrb[0].mxu0 %v2084
  %v2358 = vpop.f32.mrb[0].mxu0
  %v2359 = vadd.f32 %v1747, %v2358
  %v2360 = vpop.f32.mrb[0].mxu0
  %v2361 = vpop.f32.mrb[0].mxu0
  %v2362 = vadd.f32 %v1750, %v2361
  %v2363 = vpop.f32.mrb[0].mxu0
  %2364 = vmatprep.mubr.bf16.mxu0 0
  %2365 = vmatmul.mubr.bf16.gmra.mrb[0].mxu0 %v2087
  %v2366 = vpop.f32.mrb[0].mxu0
  %v2367 = vadd.f32 %v1755, %v2366
  %v2368 = vpop.f32.mrb[0].mxu0
  %v2369 = vpop.f32.mrb[0].mxu0
  %v2370 = vadd.f32 %v1758, %v2369
  %v2371 = vpop.f32.mrb[0].mxu0
  %2372 = vmatprep.mubr.bf16.mxu0 0
  %2373 = vmatmul.mubr.bf16.gmra.mrb[0].mxu0 %v2090
  %v2374 = vpop.f32.mrb[0].mxu0
  %v2375 = vadd.f32 %v1763, %v2374
  %v2376 = vpop.f32.mrb[0].mxu0
  %v2377 = vpop.f32.mrb[0].mxu0
  %v2378 = vadd.f32 %v1766, %v2377
  %v2379 = vpop.f32.mrb[0].mxu0
  %2380 = vmatprep.mubr.bf16.mxu0 0
  %2381 = vmatmul.mubr.bf16.gmra.mrb[0].mxu0 %v2093
  %v2382 = vpop.f32.mrb[0].mxu0
  %v2383 = vadd.f32 %v1771, %v2382
  %v2384 = vpop.f32.mrb[0].mxu0
  %v2385 = vpop.f32.mrb[0].mxu0
  %v2386 = vadd.f32 %v1774, %v2385
  %v2387 = vpop.f32.mrb[0].mxu0
  %2388 = vmatprep.mubr.bf16.mxu0 0
  %2389 = vmatmul.mubr.bf16.gmra.mrb[0].mxu0 %v2096
  %v2390 = vpop.f32.mrb[0].mxu0
  %v2391 = vadd.f32 %v1779, %v2390
  %v2392 = vpop.f32.mrb[0].mxu0
  %v2393 = vpop.f32.mrb[0].mxu0
  %v2394 = vadd.f32 %v1782, %v2393
  %v2395 = vpop.f32.mrb[0].mxu0
  %2396 = vmatprep.mubr.bf16.mxu0 0
  %2397 = vmatmul.mubr.bf16.gmra.mrb[0].mxu0 %v2099
  %v2398 = vpop.f32.mrb[0].mxu0
  %v2399 = vadd.f32 %v1787, %v2398
  %v2400 = vpop.f32.mrb[0].mxu0
  %v2401 = vpop.f32.mrb[0].mxu0
  %v2402 = vadd.f32 %v1790, %v2401
  %v2403 = vpop.f32.mrb[0].mxu0
  %2404 = vmatprep.mubr.bf16.mxu0 0
  %2405 = vmatmul.mubr.bf16.gmra.mrb[0].mxu0 %v2102
  %v2406 = vpop.f32.mrb[0].mxu0
  %v2407 = vadd.f32 %v1795, %v2406
  %v2408 = vpop.f32.mrb[0].mxu0
  %v2409 = vpop.f32.mrb[0].mxu0
  %v2410 = vadd.f32 %v1798, %v2409
  %v2411 = vpop.f32.mrb[0].mxu0
  %2412 = vmatprep.mubr.bf16.mxu0 0
  %2413 = vmatmul.mubr.bf16.gmra.mrb[0].mxu0 %v2105
  %v2414 = vpop.f32.mrb[0].mxu0
  %v2415 = vadd.f32 %v1803, %v2414
  %v2416 = vpop.f32.mrb[0].mxu0
  %v2417 = vpop.f32.mrb[0].mxu0
  %v2418 = vadd.f32 %v1806, %v2417
  %v2419 = vpop.f32.mrb[0].mxu0
  %2420 = vmatprep.mubr.bf16.mxu0 0
  %2421 = vmatmul.mubr.bf16.gmra.mrb[0].mxu0 %v2108
  %v2422 = vpop.f32.mrb[0].mxu0
  %v2423 = vadd.f32 %v1811, %v2422
  %v2424 = vpop.f32.mrb[0].mxu0
  %v2425 = vpop.f32.mrb[0].mxu0
  %v2426 = vadd.f32 %v1814, %v2425
  %v2427 = vpop.f32.mrb[0].mxu0
  %2428 = vmatprep.mubr.bf16.mxu0 0
  %2429 = vmatmul.mubr.bf16.gmra.mrb[0].mxu0 %v2111
  %v2430 = vpop.f32.mrb[0].mxu0
  %v2431 = vadd.f32 %v1819, %v2430
  %v2432 = vpop.f32.mrb[0].mxu0
  %v2433 = vpop.f32.mrb[0].mxu0
  %v2434 = vadd.f32 %v1822, %v2433
  %v2435 = vpop.f32.mrb[0].mxu0
  %2436 = vdwg.mxu0
  %v2437 = vpack.c.bf16 %v875, %v867
  %v2438 = vpack.c.bf16 %v891, %v883
  %v2439 = vpack.c.bf16 %v907, %v899
  %v2440 = vpack.c.bf16 %v923, %v915
  %v2441 = vpack.c.bf16 %v939, %v931
  %v2442 = vpack.c.bf16 %v955, %v947
  %v2443 = vpack.c.bf16 %v963, %v963
  %v2444 = vld [vmem:[%s2 + $0x240] sm:$0xf]
  %v2445 = vld [vmem:[%s2 + $0x244] sm:$0xf]
  %v2446 = vld [vmem:[%s2 + $0x248] sm:$0xf]
  %v2447 = vld [vmem:[%s2 + $0x24c] sm:$0xf]
  %v2448 = vld [vmem:[%s2 + $0x250] sm:$0xf]
  %v2449 = vld [vmem:[%s2 + $0x254] sm:$0xf]
  %v2450 = vld [vmem:[%s2 + $0x258] sm:$0xf]
  %v2451 = vld [vmem:[%s2 + $0x25c] sm:$0xf]
  %v2452 = vld [vmem:[%s2 + $0x260] sm:$0xf]
  %v2453 = vld [vmem:[%s2 + $0x264] sm:$0xf]
  %v2454 = vld [vmem:[%s2 + $0x268] sm:$0xf]
  %v2455 = vld [vmem:[%s2 + $0x26c] sm:$0xf]
  %v2456 = vld [vmem:[%s2 + $0x270] sm:$0xf]
  %v2457 = vld [vmem:[%s2 + $0x274] sm:$0xf]
  %v2458 = vld [vmem:[%s2 + $0x278] sm:$0xf]
  %v2459 = vld [vmem:[%s2 + $0x27c] sm:$0xf]
  %v2460 = vld [vmem:[%s2 + $0x280] sm:$0xf]
  %v2461 = vld [vmem:[%s2 + $0x284] sm:$0xf]
  %v2462 = vld [vmem:[%s2 + $0x288] sm:$0xf]
  %v2463 = vld [vmem:[%s2 + $0x28c] sm:$0xf]
  %v2464 = vld [vmem:[%s2 + $0x290] sm:$0xf]
  %v2465 = vld [vmem:[%s2 + $0x294] sm:$0xf]
  %v2466 = vld [vmem:[%s2 + $0x298] sm:$0xf]
  %v2467 = vld [vmem:[%s2 + $0x29c] sm:$0xf]
  %v2468 = vld [vmem:[%s2 + $0x2a0] sm:$0xf]
  %v2469 = vld [vmem:[%s2 + $0x2a4] sm:$0xf]
  %v2470 = vld [vmem:[%s2 + $0x2a8] sm:$0xf]
  %v2471 = vld [vmem:[%s2 + $0x2ac] sm:$0xf]
  %v2472 = vld [vmem:[%s2 + $0x2b0] sm:$0xf]
  %v2473 = vld [vmem:[%s2 + $0x2b4] sm:$0xf]
  %v2474 = vld [vmem:[%s2 + $0x2b8] sm:$0xf]
  %v2475 = vld [vmem:[%s2 + $0x2bc] sm:$0xf]
  %v2476 = vld [vmem:[%s2 + $0x2c0] sm:$0xf]
  %v2477 = vld [vmem:[%s2 + $0x2c4] sm:$0xf]
  %v2478 = vld [vmem:[%s2 + $0x2c8] sm:$0xf]
  %v2479 = vld [vmem:[%s2 + $0x2cc] sm:$0xf]
  %v2480 = vld [vmem:[%s2 + $0x2d0] sm:$0xf]
  %v2481 = vld [vmem:[%s2 + $0x2d4] sm:$0xf]
  %v2482 = vld [vmem:[%s2 + $0x2d8] sm:$0xf]
  %v2483 = vld [vmem:[%s2 + $0x2dc] sm:$0xf]
  %v2484 = vld [vmem:[%s2 + $0x2e0] sm:$0xf]
  %v2485 = vld [vmem:[%s2 + $0x2e4] sm:$0xf]
  %v2486 = vld [vmem:[%s2 + $0x2e8] sm:$0xf]
  %v2487 = vld [vmem:[%s2 + $0x2ec] sm:$0xf]
  %v2488 = vld [vmem:[%s2 + $0x2f0] sm:$0xf]
  %v2489 = vld [vmem:[%s2 + $0x2f4] sm:$0xf]
  %v2490 = vld [vmem:[%s2 + $0x2f8] sm:$0xf]
  %v2491 = vld [vmem:[%s2 + $0x2fc] sm:$0xf]
  %v2492 = vld [vmem:[%s2 + $0x300] sm:$0xf]
  %v2493 = vld [vmem:[%s2 + $0x304] sm:$0xf]
  %v2494 = vld [vmem:[%s2 + $0x308] sm:$0xf]
  %v2495 = vld [vmem:[%s2 + $0x30c] sm:$0xf]
  %v2496 = vld [vmem:[%s2 + $0x310] sm:$0xf]
  %v2497 = vld [vmem:[%s2 + $0x314] sm:$0xf]
  %v2498 = vld [vmem:[%s2 + $0x318] sm:$0xf]
  %v2499 = vld [vmem:[%s2 + $0x31c] sm:$0xf]
  %v2500 = vld [vmem:[%s2 + $0x320] sm:$0xf]
  %v2501 = vld [vmem:[%s2 + $0x324] sm:$0xf]
  %v2502 = vld [vmem:[%s2 + $0x328] sm:$0xf]
  %v2503 = vld [vmem:[%s2 + $0x32c] sm:$0xf]
  %v2504 = vld [vmem:[%s2 + $0x330] sm:$0xf]
  %v2505 = vld [vmem:[%s2 + $0x334] sm:$0xf]
  %v2506 = vld [vmem:[%s2 + $0x338] sm:$0xf]
  %v2507 = vld [vmem:[%s2 + $0x33c] sm:$0xf]
  %v2508 = vld [vmem:[%s2 + $0x340] sm:$0xf]
  %v2509 = vld [vmem:[%s2 + $0x344] sm:$0xf]
  %v2510 = vld [vmem:[%s2 + $0x348] sm:$0xf]
  %v2511 = vld [vmem:[%s2 + $0x34c] sm:$0xf]
  %v2512 = vld [vmem:[%s2 + $0x350] sm:$0xf]
  %v2513 = vld [vmem:[%s2 + $0x354] sm:$0xf]
  %v2514 = vld [vmem:[%s2 + $0x358] sm:$0xf]
  %v2515 = vld [vmem:[%s2 + $0x35c] sm:$0xf]
  %v2588 = vunpack.c.l.b16 %v2444
  %v2589 = vunpack.c.l.b16 %v2445
  %v2590 = vunpack.c.l.b16 %v2446
  %v2591 = vunpack.c.l.b16 %v2447
  %v2592 = vunpack.c.l.b16 %v2448
  %v2593 = vunpack.c.l.b16 %v2449
  %v2594 = vunpack.c.l.b16 %v2450
  %v2595 = vunpack.c.l.b16 %v2451
  %v2596 = vunpack.c.l.b16 %v2452
  %v2597 = vunpack.c.l.b16 %v2453
  %v2598 = vunpack.c.l.b16 %v2454
  %v2599 = vunpack.c.l.b16 %v2455
  %v2600 = vunpack.c.l.b16 %v2456
  %v2601 = vunpack.c.l.b16 %v2457
  %v2602 = vunpack.c.l.b16 %v2458
  %v2603 = vunpack.c.l.b16 %v2459
  %v2604 = vunpack.c.l.b16 %v2460
  %v2605 = vunpack.c.l.b16 %v2461
  %v2606 = vunpack.c.l.b16 %v2462
  %v2607 = vunpack.c.l.b16 %v2463
  %v2608 = vunpack.c.l.b16 %v2464
  %v2609 = vunpack.c.l.b16 %v2465
  %v2610 = vunpack.c.l.b16 %v2466
  %v2611 = vunpack.c.l.b16 %v2467
  %v2612 = vunpack.c.l.b16 %v2468
  %v2613 = vunpack.c.l.b16 %v2469
  %v2614 = vunpack.c.l.b16 %v2470
  %v2615 = vunpack.c.l.b16 %v2471
  %v2616 = vunpack.c.l.b16 %v2472
  %v2617 = vunpack.c.l.b16 %v2473
  %v2618 = vunpack.c.l.b16 %v2474
  %v2619 = vunpack.c.l.b16 %v2475
  %v2620 = vunpack.c.l.b16 %v2476
  %v2621 = vunpack.c.l.b16 %v2477
  %v2622 = vunpack.c.l.b16 %v2478
  %v2623 = vunpack.c.l.b16 %v2479
  %v2624 = vunpack.c.l.b16 %v2480
  %v2625 = vunpack.c.l.b16 %v2481
  %v2626 = vunpack.c.l.b16 %v2482
  %v2627 = vunpack.c.l.b16 %v2483
  %v2628 = vunpack.c.l.b16 %v2484
  %v2629 = vunpack.c.l.b16 %v2485
  %v2630 = vunpack.c.l.b16 %v2486
  %v2631 = vunpack.c.l.b16 %v2487
  %v2632 = vunpack.c.l.b16 %v2488
  %v2633 = vunpack.c.l.b16 %v2489
  %v2634 = vunpack.c.l.b16 %v2490
  %v2635 = vunpack.c.l.b16 %v2491
  %v2636 = vunpack.c.l.b16 %v2492
  %v2637 = vunpack.c.l.b16 %v2493
  %v2638 = vunpack.c.l.b16 %v2494
  %v2639 = vunpack.c.l.b16 %v2495
  %v2640 = vunpack.c.l.b16 %v2496
  %v2641 = vunpack.c.l.b16 %v2497
  %v2642 = vunpack.c.l.b16 %v2498
  %v2643 = vunpack.c.l.b16 %v2499
  %v2644 = vunpack.c.l.b16 %v2500
  %v2645 = vunpack.c.l.b16 %v2501
  %v2646 = vunpack.c.l.b16 %v2502
  %v2647 = vunpack.c.l.b16 %v2503
  %v2648 = vunpack.c.l.b16 %v2504
  %v2649 = vunpack.c.l.b16 %v2505
  %v2650 = vunpack.c.l.b16 %v2506
  %v2651 = vunpack.c.l.b16 %v2507
  %v2652 = vunpack.c.l.b16 %v2508
  %v2653 = vunpack.c.l.b16 %v2509
  %v2654 = vunpack.c.l.b16 %v2510
  %v2655 = vunpack.c.l.b16 %v2511
  %v2656 = vunpack.c.l.b16 %v2512
  %v2657 = vunpack.c.l.b16 %v2513
  %v2658 = vunpack.c.l.b16 %v2514
  %v2659 = vunpack.c.l.b16 %v2515
  %v2660 = vpack.c.b16 %v2589, %v2588
  %v2661 = vpack.c.b16 %v2591, %v2590
  %v2662 = vpack.c.b16 %v2593, %v2592
  %v2663 = vpack.c.b16 %v2595, %v2594
  %v2664 = vpack.c.b16 %v2597, %v2596
  %v2665 = vpack.c.b16 %v2599, %v2598
  %v2666 = vpack.c.b16 %v2601, %v2600
  %v2667 = vpack.c.b16 %v2603, %v2602
  %v2668 = vpack.c.b16 %v2605, %v2604
  %v2669 = vpack.c.b16 %v2607, %v2606
  %v2670 = vpack.c.b16 %v2609, %v2608
  %v2671 = vpack.c.b16 %v2611, %v2610
  %v2672 = vpack.c.b16 %v2613, %v2612
  %v2673 = vpack.c.b16 %v2615, %v2614
  %v2674 = vpack.c.b16 %v2617, %v2616
  %v2675 = vpack.c.b16 %v2619, %v2618
  %v2676 = vpack.c.b16 %v2621, %v2620
  %v2677 = vpack.c.b16 %v2623, %v2622
  %v2678 = vpack.c.b16 %v2625, %v2624
  %v2679 = vpack.c.b16 %v2627, %v2626
  %v2680 = vpack.c.b16 %v2629, %v2628
  %v2681 = vpack.c.b16 %v2631, %v2630
  %v2682 = vpack.c.b16 %v2633, %v2632
  %v2683 = vpack.c.b16 %v2635, %v2634
  %v2684 = vpack.c.b16 %v2637, %v2636
  %v2685 = vpack.c.b16 %v2639, %v2638
  %v2686 = vpack.c.b16 %v2641, %v2640
  %v2687 = vpack.c.b16 %v2643, %v2642
  %v2688 = vpack.c.b16 %v2645, %v2644
  %v2689 = vpack.c.b16 %v2647, %v2646
  %v2690 = vpack.c.b16 %v2649, %v2648
  %v2691 = vpack.c.b16 %v2651, %v2650
  %v2692 = vpack.c.b16 %v2653, %v2652
  %v2693 = vpack.c.b16 %v2655, %v2654
  %v2694 = vpack.c.b16 %v2657, %v2656
  %v2695 = vpack.c.b16 %v2659, %v2658
  %v2697 = vsel %vm1391, %v2660, 0
  %v2700 = vsel %vm1391, %v2661, 0
  %v2703 = vsel %vm1391, %v2662, 0
  %v2706 = vsel %vm1391, %v2663, 0
  %v2709 = vsel %vm1391, %v2664, 0
  %v2712 = vsel %vm1391, %v2665, 0
  %v2715 = vsel %vm1391, %v2666, 0
  %v2718 = vsel %vm1391, %v2667, 0
  %v2721 = vsel %vm1391, %v2668, 0
  %v2724 = vsel %vm1391, %v2669, 0
  %v2727 = vsel %vm1391, %v2670, 0
  %v2730 = vsel %vm1391, %v2671, 0
  %v2733 = vsel %vm1391, %v2672, 0
  %v2736 = vsel %vm1391, %v2673, 0
  %v2739 = vsel %vm1391, %v2674, 0
  %v2742 = vsel %vm1391, %v2675, 0
  %v2745 = vsel %vm1391, %v2676, 0
  %v2748 = vsel %vm1391, %v2677, 0
  %v2751 = vsel %vm1391, %v2678, 0
  %v2754 = vsel %vm1391, %v2679, 0
  %v2757 = vsel %vm1391, %v2680, 0
  %v2760 = vsel %vm1391, %v2681, 0
  %v2763 = vsel %vm1391, %v2682, 0
  %v2766 = vsel %vm1391, %v2683, 0
  %v2769 = vsel %vm1391, %v2684, 0
  %v2772 = vsel %vm1391, %v2685, 0
  %v2775 = vsel %vm1391, %v2686, 0
  %v2778 = vsel %vm1391, %v2687, 0
  %v2781 = vsel %vm1391, %v2688, 0
  %v2784 = vsel %vm1391, %v2689, 0
  %v2787 = vsel %vm1391, %v2690, 0
  %v2790 = vsel %vm1391, %v2691, 0
  %v2793 = vsel %vm1391, %v2692, 0
  %v2796 = vsel %vm1391, %v2693, 0
  %v2799 = vsel %vm1391, %v2694, 0
  %v2802 = vsel %vm1391, %v2695, 0
  %v2805 = vsel %vm1500, %v2443, 0
  %2807 = vmatprep.subr.bf16.mxu0 0
  %2808 = vmatpush1.bf16.msra.mxu0 %v2437
  %2809 = vmatprep.subr.bf16.mxu0 0
  %2810 = vmatpush1.bf16.msra.mxu0 %v2438
  %2811 = vmatprep.subr.bf16.mxu0 0
  %2812 = vmatpush1.bf16.msra.mxu0 %v2439
  %2813 = vmatprep.subr.bf16.mxu0 0
  %2814 = vmatpush1.bf16.msra.mxu0 %v2440
  %2815 = vmatprep.subr.bf16.mxu0 0
  %2816 = vmatpush1.bf16.msra.mxu0 %v2441
  %2817 = vmatprep.subr.bf16.mxu0 0
  %2818 = vmatpush1.bf16.msra.mxu0 %v2442
  %2819 = vmatprep.subr.bf16.mxu0 0
  %2820 = vmatpush1.bf16.msra.mxu0 %v2805
  %2821 = vmatprep.subr.bf16.mxu0 0
  %2822 = vmatpush1.bf16.msra.mxu0 0
  %2823 = vmatprep.subr.bf16.mxu0 0
  %2824 = vmatpush1.bf16.msra.mxu0 0
  %2825 = vmatprep.subr.bf16.mxu0 0
  %2826 = vmatpush1.bf16.msra.mxu0 0
  %2827 = vmatprep.subr.bf16.mxu0 0
  %2828 = vmatpush1.bf16.msra.mxu0 0
  %2829 = vmatprep.subr.bf16.mxu0 0
  %2830 = vmatpush1.bf16.msra.mxu0 0
  %2831 = vmatprep.subr.bf16.mxu0 0
  %2832 = vmatpush1.bf16.msra.mxu0 0
  %2833 = vmatprep.subr.bf16.mxu0 0
  %2834 = vmatpush1.bf16.msra.mxu0 0
  %2835 = vmatprep.subr.bf16.mxu0 0
  %2836 = vmatpush1.bf16.msra.mxu0 0
  %2837 = vmatprep.subr.bf16.mxu0 0
  %2838 = vmatpush1.bf16.msra.mxu0 0
  %2839 = vmatprep.mubr.bf16.mxu0 0
  %2840 = vmatmul.mubr.bf16.gmra.mrb[0].mxu0 %v2697
  %v2841 = vpop.f32.mrb[0].mxu0
  %v2842 = vadd.f32 0.0, %v2841
  %v2843 = vpop.f32.mrb[0].mxu0
  %v2844 = vpop.f32.mrb[0].mxu0
  %v2845 = vadd.f32 0.0, %v2844
  %v2846 = vpop.f32.mrb[0].mxu0
  %2847 = vmatprep.mubr.bf16.mxu0 0
  %2848 = vmatmul.mubr.bf16.gmra.mrb[0].mxu0 %v2700
  %v2849 = vpop.f32.mrb[0].mxu0
  %v2850 = vadd.f32 0.0, %v2849
  %v2851 = vpop.f32.mrb[0].mxu0
  %v2852 = vpop.f32.mrb[0].mxu0
  %v2853 = vadd.f32 0.0, %v2852
  %v2854 = vpop.f32.mrb[0].mxu0
  %2855 = vmatprep.mubr.bf16.mxu0 0
  %2856 = vmatmul.mubr.bf16.gmra.mrb[0].mxu0 %v2703
  %v2857 = vpop.f32.mrb[0].mxu0
  %v2858 = vadd.f32 0.0, %v2857
  %v2859 = vpop.f32.mrb[0].mxu0
  %v2860 = vpop.f32.mrb[0].mxu0
  %v2861 = vadd.f32 0.0, %v2860
  %v2862 = vpop.f32.mrb[0].mxu0
  %2863 = vmatprep.mubr.bf16.mxu0 0
  %2864 = vmatmul.mubr.bf16.gmra.mrb[0].mxu0 %v2706
  %v2865 = vpop.f32.mrb[0].mxu0
  %v2866 = vadd.f32 0.0, %v2865
  %v2867 = vpop.f32.mrb[0].mxu0
  %v2868 = vpop.f32.mrb[0].mxu0
  %v2869 = vadd.f32 0.0, %v2868
  %v2870 = vpop.f32.mrb[0].mxu0
  %2871 = vmatprep.mubr.bf16.mxu0 0
  %2872 = vmatmul.mubr.bf16.gmra.mrb[0].mxu0 %v2709
  %v2873 = vpop.f32.mrb[0].mxu0
  %v2874 = vadd.f32 0.0, %v2873
  %v2875 = vpop.f32.mrb[0].mxu0
  %v2876 = vpop.f32.mrb[0].mxu0
  %v2877 = vadd.f32 0.0, %v2876
  %v2878 = vpop.f32.mrb[0].mxu0
  %2879 = vmatprep.mubr.bf16.mxu0 0
  %2880 = vmatmul.mubr.bf16.gmra.mrb[0].mxu0 %v2712
  %v2881 = vpop.f32.mrb[0].mxu0
  %v2882 = vadd.f32 0.0, %v2881
  %v2883 = vpop.f32.mrb[0].mxu0
  %v2884 = vpop.f32.mrb[0].mxu0
  %v2885 = vadd.f32 0.0, %v2884
  %v2886 = vpop.f32.mrb[0].mxu0
  %2887 = vmatprep.mubr.bf16.mxu0 0
  %2888 = vmatmul.mubr.bf16.gmra.mrb[0].mxu0 %v2715
  %v2889 = vpop.f32.mrb[0].mxu0
  %v2890 = vadd.f32 0.0, %v2889
  %v2891 = vpop.f32.mrb[0].mxu0
  %v2892 = vpop.f32.mrb[0].mxu0
  %v2893 = vadd.f32 0.0, %v2892
  %v2894 = vpop.f32.mrb[0].mxu0
  %2895 = vmatprep.mubr.bf16.mxu0 0
  %2896 = vmatmul.mubr.bf16.gmra.mrb[0].mxu0 %v2718
  %v2897 = vpop.f32.mrb[0].mxu0
  %v2898 = vadd.f32 0.0, %v2897
  %v2899 = vpop.f32.mrb[0].mxu0
  %v2900 = vpop.f32.mrb[0].mxu0
  %v2901 = vadd.f32 0.0, %v2900
  %v2902 = vpop.f32.mrb[0].mxu0
  %2903 = vmatprep.mubr.bf16.mxu0 0
  %2904 = vmatmul.mubr.bf16.gmra.mrb[0].mxu0 %v2721
  %v2905 = vpop.f32.mrb[0].mxu0
  %v2906 = vadd.f32 0.0, %v2905
  %v2907 = vpop.f32.mrb[0].mxu0
  %v2908 = vpop.f32.mrb[0].mxu0
  %v2909 = vadd.f32 0.0, %v2908
  %v2910 = vpop.f32.mrb[0].mxu0
  %2911 = vmatprep.mubr.bf16.mxu0 0
  %2912 = vmatmul.mubr.bf16.gmra.mrb[0].mxu0 %v2724
  %v2913 = vpop.f32.mrb[0].mxu0
  %v2914 = vadd.f32 0.0, %v2913
  %v2915 = vpop.f32.mrb[0].mxu0
  %v2916 = vpop.f32.mrb[0].mxu0
  %v2917 = vadd.f32 0.0, %v2916
  %v2918 = vpop.f32.mrb[0].mxu0
  %2919 = vmatprep.mubr.bf16.mxu0 0
  %2920 = vmatmul.mubr.bf16.gmra.mrb[0].mxu0 %v2727
  %v2921 = vpop.f32.mrb[0].mxu0
  %v2922 = vadd.f32 0.0, %v2921
  %v2923 = vpop.f32.mrb[0].mxu0
  %v2924 = vpop.f32.mrb[0].mxu0
  %v2925 = vadd.f32 0.0, %v2924
  %v2926 = vpop.f32.mrb[0].mxu0
  %2927 = vmatprep.mubr.bf16.mxu0 0
  %2928 = vmatmul.mubr.bf16.gmra.mrb[0].mxu0 %v2730
  %v2929 = vpop.f32.mrb[0].mxu0
  %v2930 = vadd.f32 0.0, %v2929
  %v2931 = vpop.f32.mrb[0].mxu0
  %v2932 = vpop.f32.mrb[0].mxu0
  %v2933 = vadd.f32 0.0, %v2932
  %v2934 = vpop.f32.mrb[0].mxu0
  %2935 = vmatprep.mubr.bf16.mxu0 0
  %2936 = vmatmul.mubr.bf16.gmra.mrb[0].mxu0 %v2733
  %v2937 = vpop.f32.mrb[0].mxu0
  %v2938 = vadd.f32 0.0, %v2937
  %v2939 = vpop.f32.mrb[0].mxu0
  %v2940 = vpop.f32.mrb[0].mxu0
  %v2941 = vadd.f32 0.0, %v2940
  %v2942 = vpop.f32.mrb[0].mxu0
  %2943 = vmatprep.mubr.bf16.mxu0 0
  %2944 = vmatmul.mubr.bf16.gmra.mrb[0].mxu0 %v2736
  %v2945 = vpop.f32.mrb[0].mxu0
  %v2946 = vadd.f32 0.0, %v2945
  %v2947 = vpop.f32.mrb[0].mxu0
  %v2948 = vpop.f32.mrb[0].mxu0
  %v2949 = vadd.f32 0.0, %v2948
  %v2950 = vpop.f32.mrb[0].mxu0
  %2951 = vmatprep.mubr.bf16.mxu0 0
  %2952 = vmatmul.mubr.bf16.gmra.mrb[0].mxu0 %v2739
  %v2953 = vpop.f32.mrb[0].mxu0
  %v2954 = vadd.f32 0.0, %v2953
  %v2955 = vpop.f32.mrb[0].mxu0
  %v2956 = vpop.f32.mrb[0].mxu0
  %v2957 = vadd.f32 0.0, %v2956
  %v2958 = vpop.f32.mrb[0].mxu0
  %2959 = vmatprep.mubr.bf16.mxu0 0
  %2960 = vmatmul.mubr.bf16.gmra.mrb[0].mxu0 %v2742
  %v2961 = vpop.f32.mrb[0].mxu0
  %v2962 = vadd.f32 0.0, %v2961
  %v2963 = vpop.f32.mrb[0].mxu0
  %v2964 = vpop.f32.mrb[0].mxu0
  %v2965 = vadd.f32 0.0, %v2964
  %v2966 = vpop.f32.mrb[0].mxu0
  %2967 = vmatprep.mubr.bf16.mxu0 0
  %2968 = vmatmul.mubr.bf16.gmra.mrb[0].mxu0 %v2745
  %v2969 = vpop.f32.mrb[0].mxu0
  %v2970 = vadd.f32 0.0, %v2969
  %v2971 = vpop.f32.mrb[0].mxu0
  %v2972 = vpop.f32.mrb[0].mxu0
  %v2973 = vadd.f32 0.0, %v2972
  %v2974 = vpop.f32.mrb[0].mxu0
  %2975 = vmatprep.mubr.bf16.mxu0 0
  %2976 = vmatmul.mubr.bf16.gmra.mrb[0].mxu0 %v2748
  %v2977 = vpop.f32.mrb[0].mxu0
  %v2978 = vadd.f32 0.0, %v2977
  %v2979 = vpop.f32.mrb[0].mxu0
  %v2980 = vpop.f32.mrb[0].mxu0
  %v2981 = vadd.f32 0.0, %v2980
  %v2982 = vpop.f32.mrb[0].mxu0
  %2983 = vmatprep.mubr.bf16.mxu0 0
  %2984 = vmatmul.mubr.bf16.gmra.mrb[0].mxu0 %v2751
  %v2985 = vpop.f32.mrb[0].mxu0
  %v2986 = vadd.f32 0.0, %v2985
  %v2987 = vpop.f32.mrb[0].mxu0
  %v2988 = vpop.f32.mrb[0].mxu0
  %v2989 = vadd.f32 0.0, %v2988
  %v2990 = vpop.f32.mrb[0].mxu0
  %2991 = vmatprep.mubr.bf16.mxu0 0
  %2992 = vmatmul.mubr.bf16.gmra.mrb[0].mxu0 %v2754
  %v2993 = vpop.f32.mrb[0].mxu0
  %v2994 = vadd.f32 0.0, %v2993
  %v2995 = vpop.f32.mrb[0].mxu0
  %v2996 = vpop.f32.mrb[0].mxu0
  %v2997 = vadd.f32 0.0, %v2996
  %v2998 = vpop.f32.mrb[0].mxu0
  %2999 = vmatprep.mubr.bf16.mxu0 0
  %3000 = vmatmul.mubr.bf16.gmra.mrb[0].mxu0 %v2757
  %v3001 = vpop.f32.mrb[0].mxu0
  %v3002 = vadd.f32 0.0, %v3001
  %v3003 = vpop.f32.mrb[0].mxu0
  %v3004 = vpop.f32.mrb[0].mxu0
  %v3005 = vadd.f32 0.0, %v3004
  %v3006 = vpop.f32.mrb[0].mxu0
  %3007 = vmatprep.mubr.bf16.mxu0 0
  %3008 = vmatmul.mubr.bf16.gmra.mrb[0].mxu0 %v2760
  %v3009 = vpop.f32.mrb[0].mxu0
  %v3010 = vadd.f32 0.0, %v3009
  %v3011 = vpop.f32.mrb[0].mxu0
  %v3012 = vpop.f32.mrb[0].mxu0
  %v3013 = vadd.f32 0.0, %v3012
  %v3014 = vpop.f32.mrb[0].mxu0
  %3015 = vmatprep.mubr.bf16.mxu0 0
  %3016 = vmatmul.mubr.bf16.gmra.mrb[0].mxu0 %v2763
  %v3017 = vpop.f32.mrb[0].mxu0
  %v3018 = vadd.f32 0.0, %v3017
  %v3019 = vpop.f32.mrb[0].mxu0
  %v3020 = vpop.f32.mrb[0].mxu0
  %v3021 = vadd.f32 0.0, %v3020
  %v3022 = vpop.f32.mrb[0].mxu0
  %3023 = vmatprep.mubr.bf16.mxu0 0
  %3024 = vmatmul.mubr.bf16.gmra.mrb[0].mxu0 %v2766
  %v3025 = vpop.f32.mrb[0].mxu0
  %v3026 = vadd.f32 0.0, %v3025
  %v3027 = vpop.f32.mrb[0].mxu0
  %v3028 = vpop.f32.mrb[0].mxu0
  %v3029 = vadd.f32 0.0, %v3028
  %v3030 = vpop.f32.mrb[0].mxu0
  %3031 = vmatprep.mubr.bf16.mxu0 0
  %3032 = vmatmul.mubr.bf16.gmra.mrb[0].mxu0 %v2769
  %v3033 = vpop.f32.mrb[0].mxu0
  %v3034 = vadd.f32 0.0, %v3033
  %v3035 = vpop.f32.mrb[0].mxu0
  %v3036 = vpop.f32.mrb[0].mxu0
  %v3037 = vadd.f32 0.0, %v3036
  %v3038 = vpop.f32.mrb[0].mxu0
  %3039 = vmatprep.mubr.bf16.mxu0 0
  %3040 = vmatmul.mubr.bf16.gmra.mrb[0].mxu0 %v2772
  %v3041 = vpop.f32.mrb[0].mxu0
  %v3042 = vadd.f32 0.0, %v3041
  %v3043 = vpop.f32.mrb[0].mxu0
  %v3044 = vpop.f32.mrb[0].mxu0
  %v3045 = vadd.f32 0.0, %v3044
  %v3046 = vpop.f32.mrb[0].mxu0
  %3047 = vmatprep.mubr.bf16.mxu0 0
  %3048 = vmatmul.mubr.bf16.gmra.mrb[0].mxu0 %v2775
  %v3049 = vpop.f32.mrb[0].mxu0
  %v3050 = vadd.f32 0.0, %v3049
  %v3051 = vpop.f32.mrb[0].mxu0
  %v3052 = vpop.f32.mrb[0].mxu0
  %v3053 = vadd.f32 0.0, %v3052
  %v3054 = vpop.f32.mrb[0].mxu0
  %3055 = vmatprep.mubr.bf16.mxu0 0
  %3056 = vmatmul.mubr.bf16.gmra.mrb[0].mxu0 %v2778
  %v3057 = vpop.f32.mrb[0].mxu0
  %v3058 = vadd.f32 0.0, %v3057
  %v3059 = vpop.f32.mrb[0].mxu0
  %v3060 = vpop.f32.mrb[0].mxu0
  %v3061 = vadd.f32 0.0, %v3060
  %v3062 = vpop.f32.mrb[0].mxu0
  %3063 = vmatprep.mubr.bf16.mxu0 0
  %3064 = vmatmul.mubr.bf16.gmra.mrb[0].mxu0 %v2781
  %v3065 = vpop.f32.mrb[0].mxu0
  %v3066 = vadd.f32 0.0, %v3065
  %v3067 = vpop.f32.mrb[0].mxu0
  %v3068 = vpop.f32.mrb[0].mxu0
  %v3069 = vadd.f32 0.0, %v3068
  %v3070 = vpop.f32.mrb[0].mxu0
  %3071 = vmatprep.mubr.bf16.mxu0 0
  %3072 = vmatmul.mubr.bf16.gmra.mrb[0].mxu0 %v2784
  %v3073 = vpop.f32.mrb[0].mxu0
  %v3074 = vadd.f32 0.0, %v3073
  %v3075 = vpop.f32.mrb[0].mxu0
  %v3076 = vpop.f32.mrb[0].mxu0
  %v3077 = vadd.f32 0.0, %v3076
  %v3078 = vpop.f32.mrb[0].mxu0
  %3079 = vmatprep.mubr.bf16.mxu0 0
  %3080 = vmatmul.mubr.bf16.gmra.mrb[0].mxu0 %v2787
  %v3081 = vpop.f32.mrb[0].mxu0
  %v3082 = vadd.f32 0.0, %v3081
  %v3083 = vpop.f32.mrb[0].mxu0
  %v3084 = vpop.f32.mrb[0].mxu0
  %v3085 = vadd.f32 0.0, %v3084
  %v3086 = vpop.f32.mrb[0].mxu0
  %3087 = vmatprep.mubr.bf16.mxu0 0
  %3088 = vmatmul.mubr.bf16.gmra.mrb[0].mxu0 %v2790
  %v3089 = vpop.f32.mrb[0].mxu0
  %v3090 = vadd.f32 0.0, %v3089
  %v3091 = vpop.f32.mrb[0].mxu0
  %v3092 = vpop.f32.mrb[0].mxu0
  %v3093 = vadd.f32 0.0, %v3092
  %v3094 = vpop.f32.mrb[0].mxu0
  %3095 = vmatprep.mubr.bf16.mxu0 0
  %3096 = vmatmul.mubr.bf16.gmra.mrb[0].mxu0 %v2793
  %v3097 = vpop.f32.mrb[0].mxu0
  %v3098 = vadd.f32 0.0, %v3097
  %v3099 = vpop.f32.mrb[0].mxu0
  %v3100 = vpop.f32.mrb[0].mxu0
  %v3101 = vadd.f32 0.0, %v3100
  %v3102 = vpop.f32.mrb[0].mxu0
  %3103 = vmatprep.mubr.bf16.mxu0 0
  %3104 = vmatmul.mubr.bf16.gmra.mrb[0].mxu0 %v2796
  %v3105 = vpop.f32.mrb[0].mxu0
  %v3106 = vadd.f32 0.0, %v3105
  %v3107 = vpop.f32.mrb[0].mxu0
  %v3108 = vpop.f32.mrb[0].mxu0
  %v3109 = vadd.f32 0.0, %v3108
  %v3110 = vpop.f32.mrb[0].mxu0
  %3111 = vmatprep.mubr.bf16.mxu0 0
  %3112 = vmatmul.mubr.bf16.gmra.mrb[0].mxu0 %v2799
  %v3113 = vpop.f32.mrb[0].mxu0
  %v3114 = vadd.f32 0.0, %v3113
  %v3115 = vpop.f32.mrb[0].mxu0
  %v3116 = vpop.f32.mrb[0].mxu0
  %v3117 = vadd.f32 0.0, %v3116
  %v3118 = vpop.f32.mrb[0].mxu0
  %3119 = vmatprep.mubr.bf16.mxu0 0
  %3120 = vmatmul.mubr.bf16.gmra.mrb[0].mxu0 %v2802
  %v3121 = vpop.f32.mrb[0].mxu0
  %v3122 = vadd.f32 0.0, %v3121
  %v3123 = vpop.f32.mrb[0].mxu0
  %v3124 = vpop.f32.mrb[0].mxu0
  %v3125 = vadd.f32 0.0, %v3124
  %v3126 = vpop.f32.mrb[0].mxu0
  %3127 = vdwg.mxu0
  %v3128 = vadd.f32 %v2151, %v2842
  %v3129 = vadd.f32 %v2154, %v2845
  %v3130 = vadd.f32 %v2159, %v2850
  %v3131 = vadd.f32 %v2162, %v2853
  %v3132 = vadd.f32 %v2167, %v2858
  %v3133 = vadd.f32 %v2170, %v2861
  %v3134 = vadd.f32 %v2175, %v2866
  %v3135 = vadd.f32 %v2178, %v2869
  %v3136 = vadd.f32 %v2183, %v2874
  %v3137 = vadd.f32 %v2186, %v2877
  %v3138 = vadd.f32 %v2191, %v2882
  %v3139 = vadd.f32 %v2194, %v2885
  %v3140 = vadd.f32 %v2199, %v2890
  %v3141 = vadd.f32 %v2202, %v2893
  %v3142 = vadd.f32 %v2207, %v2898
  %v3143 = vadd.f32 %v2210, %v2901
  %v3144 = vadd.f32 %v2215, %v2906
  %v3145 = vadd.f32 %v2218, %v2909
  %v3146 = vadd.f32 %v2223, %v2914
  %v3147 = vadd.f32 %v2226, %v2917
  %v3148 = vadd.f32 %v2231, %v2922
  %v3149 = vadd.f32 %v2234, %v2925
  %v3150 = vadd.f32 %v2239, %v2930
  %v3151 = vadd.f32 %v2242, %v2933
  %v3152 = vadd.f32 %v2247, %v2938
  %v3153 = vadd.f32 %v2250, %v2941
  %v3154 = vadd.f32 %v2255, %v2946
  %v3155 = vadd.f32 %v2258, %v2949
  %v3156 = vadd.f32 %v2263, %v2954
  %v3157 = vadd.f32 %v2266, %v2957
  %v3158 = vadd.f32 %v2271, %v2962
  %v3159 = vadd.f32 %v2274, %v2965
  %v3160 = vadd.f32 %v2279, %v2970
  %v3161 = vadd.f32 %v2282, %v2973
  %v3162 = vadd.f32 %v2287, %v2978
  %v3163 = vadd.f32 %v2290, %v2981
  %v3164 = vadd.f32 %v2295, %v2986
  %v3165 = vadd.f32 %v2298, %v2989
  %v3166 = vadd.f32 %v2303, %v2994
  %v3167 = vadd.f32 %v2306, %v2997
  %v3168 = vadd.f32 %v2311, %v3002
  %v3169 = vadd.f32 %v2314, %v3005
  %v3170 = vadd.f32 %v2319, %v3010
  %v3171 = vadd.f32 %v2322, %v3013
  %v3172 = vadd.f32 %v2327, %v3018
  %v3173 = vadd.f32 %v2330, %v3021
  %v3174 = vadd.f32 %v2335, %v3026
  %v3175 = vadd.f32 %v2338, %v3029
  %v3176 = vadd.f32 %v2343, %v3034
  %v3177 = vadd.f32 %v2346, %v3037
  %v3178 = vadd.f32 %v2351, %v3042
  %v3179 = vadd.f32 %v2354, %v3045
  %v3180 = vadd.f32 %v2359, %v3050
  %v3181 = vadd.f32 %v2362, %v3053
  %v3182 = vadd.f32 %v2367, %v3058
  %v3183 = vadd.f32 %v2370, %v3061
  %v3184 = vadd.f32 %v2375, %v3066
  %v3185 = vadd.f32 %v2378, %v3069
  %v3186 = vadd.f32 %v2383, %v3074
  %v3187 = vadd.f32 %v2386, %v3077
  %v3188 = vadd.f32 %v2391, %v3082
  %v3189 = vadd.f32 %v2394, %v3085
  %v3190 = vadd.f32 %v2399, %v3090
  %v3191 = vadd.f32 %v2402, %v3093
  %v3192 = vadd.f32 %v2407, %v3098
  %v3193 = vadd.f32 %v2410, %v3101
  %v3194 = vadd.f32 %v2415, %v3106
  %v3195 = vadd.f32 %v2418, %v3109
  %v3196 = vadd.f32 %v2423, %v3114
  %v3197 = vadd.f32 %v2426, %v3117
  %v3198 = vadd.f32 %v2431, %v3122
  %v3199 = vadd.f32 %v2434, %v3125
  %v3200 = vpack.c.bf16 %v876, %v868
  %v3201 = vpack.c.bf16 %v892, %v884
  %v3202 = vpack.c.bf16 %v908, %v900
  %v3203 = vpack.c.bf16 %v924, %v916
  %v3204 = vpack.c.bf16 %v940, %v932
  %v3205 = vpack.c.bf16 %v956, %v948
  %v3206 = vpack.c.bf16 %v964, %v964
  %v3207 = vld [vmem:[%s2 + $0x360] sm:$0xf]
  %v3208 = vld [vmem:[%s2 + $0x364] sm:$0xf]
  %v3209 = vld [vmem:[%s2 + $0x368] sm:$0xf]
  %v3210 = vld [vmem:[%s2 + $0x36c] sm:$0xf]
  %v3211 = vld [vmem:[%s2 + $0x370] sm:$0xf]
  %v3212 = vld [vmem:[%s2 + $0x374] sm:$0xf]
  %v3213 = vld [vmem:[%s2 + $0x378] sm:$0xf]
  %v3214 = vld [vmem:[%s2 + $0x37c] sm:$0xf]
  %v3215 = vld [vmem:[%s2 + $0x380] sm:$0xf]
  %v3216 = vld [vmem:[%s2 + $0x384] sm:$0xf]
  %v3217 = vld [vmem:[%s2 + $0x388] sm:$0xf]
  %v3218 = vld [vmem:[%s2 + $0x38c] sm:$0xf]
  %v3219 = vld [vmem:[%s2 + $0x390] sm:$0xf]
  %v3220 = vld [vmem:[%s2 + $0x394] sm:$0xf]
  %v3221 = vld [vmem:[%s2 + $0x398] sm:$0xf]
  %v3222 = vld [vmem:[%s2 + $0x39c] sm:$0xf]
  %v3223 = vld [vmem:[%s2 + $0x3a0] sm:$0xf]
  %v3224 = vld [vmem:[%s2 + $0x3a4] sm:$0xf]
  %v3225 = vld [vmem:[%s2 + $0x3a8] sm:$0xf]
  %v3226 = vld [vmem:[%s2 + $0x3ac] sm:$0xf]
  %v3227 = vld [vmem:[%s2 + $0x3b0] sm:$0xf]
  %v3228 = vld [vmem:[%s2 + $0x3b4] sm:$0xf]
  %v3229 = vld [vmem:[%s2 + $0x3b8] sm:$0xf]
  %v3230 = vld [vmem:[%s2 + $0x3bc] sm:$0xf]
  %v3231 = vld [vmem:[%s2 + $0x3c0] sm:$0xf]
  %v3232 = vld [vmem:[%s2 + $0x3c4] sm:$0xf]
  %v3233 = vld [vmem:[%s2 + $0x3c8] sm:$0xf]
  %v3234 = vld [vmem:[%s2 + $0x3cc] sm:$0xf]
  %v3235 = vld [vmem:[%s2 + $0x3d0] sm:$0xf]
  %v3236 = vld [vmem:[%s2 + $0x3d4] sm:$0xf]
  %v3237 = vld [vmem:[%s2 + $0x3d8] sm:$0xf]
  %v3238 = vld [vmem:[%s2 + $0x3dc] sm:$0xf]
  %v3239 = vld [vmem:[%s2 + $0x3e0] sm:$0xf]
  %v3240 = vld [vmem:[%s2 + $0x3e4] sm:$0xf]
  %v3241 = vld [vmem:[%s2 + $0x3e8] sm:$0xf]
  %v3242 = vld [vmem:[%s2 + $0x3ec] sm:$0xf]
  %v3243 = vld [vmem:[%s2 + $0x3f0] sm:$0xf]
  %v3244 = vld [vmem:[%s2 + $0x3f4] sm:$0xf]
  %v3245 = vld [vmem:[%s2 + $0x3f8] sm:$0xf]
  %v3246 = vld [vmem:[%s2 + $0x3fc] sm:$0xf]
  %v3247 = vld [vmem:[%s2 + $0x400] sm:$0xf]
  %v3248 = vld [vmem:[%s2 + $0x404] sm:$0xf]
  %v3249 = vld [vmem:[%s2 + $0x408] sm:$0xf]
  %v3250 = vld [vmem:[%s2 + $0x40c] sm:$0xf]
  %v3251 = vld [vmem:[%s2 + $0x410] sm:$0xf]
  %v3252 = vld [vmem:[%s2 + $0x414] sm:$0xf]
  %v3253 = vld [vmem:[%s2 + $0x418] sm:$0xf]
  %v3254 = vld [vmem:[%s2 + $0x41c] sm:$0xf]
  %v3255 = vld [vmem:[%s2 + $0x420] sm:$0xf]
  %v3256 = vld [vmem:[%s2 + $0x424] sm:$0xf]
  %v3257 = vld [vmem:[%s2 + $0x428] sm:$0xf]
  %v3258 = vld [vmem:[%s2 + $0x42c] sm:$0xf]
  %v3259 = vld [vmem:[%s2 + $0x430] sm:$0xf]
  %v3260 = vld [vmem:[%s2 + $0x434] sm:$0xf]
  %v3261 = vld [vmem:[%s2 + $0x438] sm:$0xf]
  %v3262 = vld [vmem:[%s2 + $0x43c] sm:$0xf]
  %v3263 = vld [vmem:[%s2 + $0x440] sm:$0xf]
  %v3264 = vld [vmem:[%s2 + $0x444] sm:$0xf]
  %v3265 = vld [vmem:[%s2 + $0x448] sm:$0xf]
  %v3266 = vld [vmem:[%s2 + $0x44c] sm:$0xf]
  %v3267 = vld [vmem:[%s2 + $0x450] sm:$0xf]
  %v3268 = vld [vmem:[%s2 + $0x454] sm:$0xf]
  %v3269 = vld [vmem:[%s2 + $0x458] sm:$0xf]
  %v3270 = vld [vmem:[%s2 + $0x45c] sm:$0xf]
  %v3271 = vld [vmem:[%s2 + $0x460] sm:$0xf]
  %v3272 = vld [vmem:[%s2 + $0x464] sm:$0xf]
  %v3273 = vld [vmem:[%s2 + $0x468] sm:$0xf]
  %v3274 = vld [vmem:[%s2 + $0x46c] sm:$0xf]
  %v3275 = vld [vmem:[%s2 + $0x470] sm:$0xf]
  %v3276 = vld [vmem:[%s2 + $0x474] sm:$0xf]
  %v3277 = vld [vmem:[%s2 + $0x478] sm:$0xf]
  %v3278 = vld [vmem:[%s2 + $0x47c] sm:$0xf]
  %v3351 = vunpack.c.l.b16 %v3207
  %v3352 = vunpack.c.l.b16 %v3208
  %v3353 = vunpack.c.l.b16 %v3209
  %v3354 = vunpack.c.l.b16 %v3210
  %v3355 = vunpack.c.l.b16 %v3211
  %v3356 = vunpack.c.l.b16 %v3212
  %v3357 = vunpack.c.l.b16 %v3213
  %v3358 = vunpack.c.l.b16 %v3214
  %v3359 = vunpack.c.l.b16 %v3215
  %v3360 = vunpack.c.l.b16 %v3216
  %v3361 = vunpack.c.l.b16 %v3217
  %v3362 = vunpack.c.l.b16 %v3218
  %v3363 = vunpack.c.l.b16 %v3219
  %v3364 = vunpack.c.l.b16 %v3220
  %v3365 = vunpack.c.l.b16 %v3221
  %v3366 = vunpack.c.l.b16 %v3222
  %v3367 = vunpack.c.l.b16 %v3223
  %v3368 = vunpack.c.l.b16 %v3224
  %v3369 = vunpack.c.l.b16 %v3225
  %v3370 = vunpack.c.l.b16 %v3226
  %v3371 = vunpack.c.l.b16 %v3227
  %v3372 = vunpack.c.l.b16 %v3228
  %v3373 = vunpack.c.l.b16 %v3229
  %v3374 = vunpack.c.l.b16 %v3230
  %v3375 = vunpack.c.l.b16 %v3231
  %v3376 = vunpack.c.l.b16 %v3232
  %v3377 = vunpack.c.l.b16 %v3233
  %v3378 = vunpack.c.l.b16 %v3234
  %v3379 = vunpack.c.l.b16 %v3235
  %v3380 = vunpack.c.l.b16 %v3236
  %v3381 = vunpack.c.l.b16 %v3237
  %v3382 = vunpack.c.l.b16 %v3238
  %v3383 = vunpack.c.l.b16 %v3239
  %v3384 = vunpack.c.l.b16 %v3240
  %v3385 = vunpack.c.l.b16 %v3241
  %v3386 = vunpack.c.l.b16 %v3242
  %v3387 = vunpack.c.l.b16 %v3243
  %v3388 = vunpack.c.l.b16 %v3244
  %v3389 = vunpack.c.l.b16 %v3245
  %v3390 = vunpack.c.l.b16 %v3246
  %v3391 = vunpack.c.l.b16 %v3247
  %v3392 = vunpack.c.l.b16 %v3248
  %v3393 = vunpack.c.l.b16 %v3249
  %v3394 = vunpack.c.l.b16 %v3250
  %v3395 = vunpack.c.l.b16 %v3251
  %v3396 = vunpack.c.l.b16 %v3252
  %v3397 = vunpack.c.l.b16 %v3253
  %v3398 = vunpack.c.l.b16 %v3254
  %v3399 = vunpack.c.l.b16 %v3255
  %v3400 = vunpack.c.l.b16 %v3256
  %v3401 = vunpack.c.l.b16 %v3257
  %v3402 = vunpack.c.l.b16 %v3258
  %v3403 = vunpack.c.l.b16 %v3259
  %v3404 = vunpack.c.l.b16 %v3260
  %v3405 = vunpack.c.l.b16 %v3261
  %v3406 = vunpack.c.l.b16 %v3262
  %v3407 = vunpack.c.l.b16 %v3263
  %v3408 = vunpack.c.l.b16 %v3264
  %v3409 = vunpack.c.l.b16 %v3265
  %v3410 = vunpack.c.l.b16 %v3266
  %v3411 = vunpack.c.l.b16 %v3267
  %v3412 = vunpack.c.l.b16 %v3268
  %v3413 = vunpack.c.l.b16 %v3269
  %v3414 = vunpack.c.l.b16 %v3270
  %v3415 = vunpack.c.l.b16 %v3271
  %v3416 = vunpack.c.l.b16 %v3272
  %v3417 = vunpack.c.l.b16 %v3273
  %v3418 = vunpack.c.l.b16 %v3274
  %v3419 = vunpack.c.l.b16 %v3275
  %v3420 = vunpack.c.l.b16 %v3276
  %v3421 = vunpack.c.l.b16 %v3277
  %v3422 = vunpack.c.l.b16 %v3278
  %v3423 = vpack.c.b16 %v3352, %v3351
  %v3424 = vpack.c.b16 %v3354, %v3353
  %v3425 = vpack.c.b16 %v3356, %v3355
  %v3426 = vpack.c.b16 %v3358, %v3357
  %v3427 = vpack.c.b16 %v3360, %v3359
  %v3428 = vpack.c.b16 %v3362, %v3361
  %v3429 = vpack.c.b16 %v3364, %v3363
  %v3430 = vpack.c.b16 %v3366, %v3365
  %v3431 = vpack.c.b16 %v3368, %v3367
  %v3432 = vpack.c.b16 %v3370, %v3369
  %v3433 = vpack.c.b16 %v3372, %v3371
  %v3434 = vpack.c.b16 %v3374, %v3373
  %v3435 = vpack.c.b16 %v3376, %v3375
  %v3436 = vpack.c.b16 %v3378, %v3377
  %v3437 = vpack.c.b16 %v3380, %v3379
  %v3438 = vpack.c.b16 %v3382, %v3381
  %v3439 = vpack.c.b16 %v3384, %v3383
  %v3440 = vpack.c.b16 %v3386, %v3385
  %v3441 = vpack.c.b16 %v3388, %v3387
  %v3442 = vpack.c.b16 %v3390, %v3389
  %v3443 = vpack.c.b16 %v3392, %v3391
  %v3444 = vpack.c.b16 %v3394, %v3393
  %v3445 = vpack.c.b16 %v3396, %v3395
  %v3446 = vpack.c.b16 %v3398, %v3397
  %v3447 = vpack.c.b16 %v3400, %v3399
  %v3448 = vpack.c.b16 %v3402, %v3401
  %v3449 = vpack.c.b16 %v3404, %v3403
  %v3450 = vpack.c.b16 %v3406, %v3405
  %v3451 = vpack.c.b16 %v3408, %v3407
  %v3452 = vpack.c.b16 %v3410, %v3409
  %v3453 = vpack.c.b16 %v3412, %v3411
  %v3454 = vpack.c.b16 %v3414, %v3413
  %v3455 = vpack.c.b16 %v3416, %v3415
  %v3456 = vpack.c.b16 %v3418, %v3417
  %v3457 = vpack.c.b16 %v3420, %v3419
  %v3458 = vpack.c.b16 %v3422, %v3421
  %v3460 = vsel %vm1391, %v3423, 0
  %v3463 = vsel %vm1391, %v3424, 0
  %v3466 = vsel %vm1391, %v3425, 0
  %v3469 = vsel %vm1391, %v3426, 0
  %v3472 = vsel %vm1391, %v3427, 0
  %v3475 = vsel %vm1391, %v3428, 0
  %v3478 = vsel %vm1391, %v3429, 0
  %v3481 = vsel %vm1391, %v3430, 0
  %v3484 = vsel %vm1391, %v3431, 0
  %v3487 = vsel %vm1391, %v3432, 0
  %v3490 = vsel %vm1391, %v3433, 0
  %v3493 = vsel %vm1391, %v3434, 0
  %v3496 = vsel %vm1391, %v3435, 0
  %v3499 = vsel %vm1391, %v3436, 0
  %v3502 = vsel %vm1391, %v3437, 0
  %v3505 = vsel %vm1391, %v3438, 0
  %v3508 = vsel %vm1391, %v3439, 0
  %v3511 = vsel %vm1391, %v3440, 0
  %v3514 = vsel %vm1391, %v3441, 0
  %v3517 = vsel %vm1391, %v3442, 0
  %v3520 = vsel %vm1391, %v3443, 0
  %v3523 = vsel %vm1391, %v3444, 0
  %v3526 = vsel %vm1391, %v3445, 0
  %v3529 = vsel %vm1391, %v3446, 0
  %v3532 = vsel %vm1391, %v3447, 0
  %v3535 = vsel %vm1391, %v3448, 0
  %v3538 = vsel %vm1391, %v3449, 0
  %v3541 = vsel %vm1391, %v3450, 0
  %v3544 = vsel %vm1391, %v3451, 0
  %v3547 = vsel %vm1391, %v3452, 0
  %v3550 = vsel %vm1391, %v3453, 0
  %v3553 = vsel %vm1391, %v3454, 0
  %v3556 = vsel %vm1391, %v3455, 0
  %v3559 = vsel %vm1391, %v3456, 0
  %v3562 = vsel %vm1391, %v3457, 0
  %v3565 = vsel %vm1391, %v3458, 0
  %v3568 = vsel %vm1500, %v3206, 0
  %3570 = vmatprep.subr.bf16.mxu0 0
  %3571 = vmatpush1.bf16.msra.mxu0 %v3200
  %3572 = vmatprep.subr.bf16.mxu0 0
  %3573 = vmatpush1.bf16.msra.mxu0 %v3201
  %3574 = vmatprep.subr.bf16.mxu0 0
  %3575 = vmatpush1.bf16.msra.mxu0 %v3202
  %3576 = vmatprep.subr.bf16.mxu0 0
  %3577 = vmatpush1.bf16.msra.mxu0 %v3203
  %3578 = vmatprep.subr.bf16.mxu0 0
  %3579 = vmatpush1.bf16.msra.mxu0 %v3204
  %3580 = vmatprep.subr.bf16.mxu0 0
  %3581 = vmatpush1.bf16.msra.mxu0 %v3205
  %3582 = vmatprep.subr.bf16.mxu0 0
  %3583 = vmatpush1.bf16.msra.mxu0 %v3568
  %3584 = vmatprep.subr.bf16.mxu0 0
  %3585 = vmatpush1.bf16.msra.mxu0 0
  %3586 = vmatprep.subr.bf16.mxu0 0
  %3587 = vmatpush1.bf16.msra.mxu0 0
  %3588 = vmatprep.subr.bf16.mxu0 0
  %3589 = vmatpush1.bf16.msra.mxu0 0
  %3590 = vmatprep.subr.bf16.mxu0 0
  %3591 = vmatpush1.bf16.msra.mxu0 0
  %3592 = vmatprep.subr.bf16.mxu0 0
  %3593 = vmatpush1.bf16.msra.mxu0 0
  %3594 = vmatprep.subr.bf16.mxu0 0
  %3595 = vmatpush1.bf16.msra.mxu0 0
  %3596 = vmatprep.subr.bf16.mxu0 0
  %3597 = vmatpush1.bf16.msra.mxu0 0
  %3598 = vmatprep.subr.bf16.mxu0 0
  %3599 = vmatpush1.bf16.msra.mxu0 0
  %3600 = vmatprep.subr.bf16.mxu0 0
  %3601 = vmatpush1.bf16.msra.mxu0 0
  %3602 = vmatprep.mubr.bf16.mxu0 0
  %3603 = vmatmul.mubr.bf16.gmra.mrb[0].mxu0 %v3460
  %v3604 = vpop.f32.mrb[0].mxu0
  %v3605 = vadd.f32 0.0, %v3604
  %v3606 = vpop.f32.mrb[0].mxu0
  %v3607 = vpop.f32.mrb[0].mxu0
  %v3608 = vadd.f32 0.0, %v3607
  %v3609 = vpop.f32.mrb[0].mxu0
  %3610 = vmatprep.mubr.bf16.mxu0 0
  %3611 = vmatmul.mubr.bf16.gmra.mrb[0].mxu0 %v3463
  %v3612 = vpop.f32.mrb[0].mxu0
  %v3613 = vadd.f32 0.0, %v3612
  %v3614 = vpop.f32.mrb[0].mxu0
  %v3615 = vpop.f32.mrb[0].mxu0
  %v3616 = vadd.f32 0.0, %v3615
  %v3617 = vpop.f32.mrb[0].mxu0
  %3618 = vmatprep.mubr.bf16.mxu0 0
  %3619 = vmatmul.mubr.bf16.gmra.mrb[0].mxu0 %v3466
  %v3620 = vpop.f32.mrb[0].mxu0
  %v3621 = vadd.f32 0.0, %v3620
  %v3622 = vpop.f32.mrb[0].mxu0
  %v3623 = vpop.f32.mrb[0].mxu0
  %v3624 = vadd.f32 0.0, %v3623
  %v3625 = vpop.f32.mrb[0].mxu0
  %3626 = vmatprep.mubr.bf16.mxu0 0
  %3627 = vmatmul.mubr.bf16.gmra.mrb[0].mxu0 %v3469
  %v3628 = vpop.f32.mrb[0].mxu0
  %v3629 = vadd.f32 0.0, %v3628
  %v3630 = vpop.f32.mrb[0].mxu0
  %v3631 = vpop.f32.mrb[0].mxu0
  %v3632 = vadd.f32 0.0, %v3631
  %v3633 = vpop.f32.mrb[0].mxu0
  %3634 = vmatprep.mubr.bf16.mxu0 0
  %3635 = vmatmul.mubr.bf16.gmra.mrb[0].mxu0 %v3472
  %v3636 = vpop.f32.mrb[0].mxu0
  %v3637 = vadd.f32 0.0, %v3636
  %v3638 = vpop.f32.mrb[0].mxu0
  %v3639 = vpop.f32.mrb[0].mxu0
  %v3640 = vadd.f32 0.0, %v3639
  %v3641 = vpop.f32.mrb[0].mxu0
  %3642 = vmatprep.mubr.bf16.mxu0 0
  %3643 = vmatmul.mubr.bf16.gmra.mrb[0].mxu0 %v3475
  %v3644 = vpop.f32.mrb[0].mxu0
  %v3645 = vadd.f32 0.0, %v3644
  %v3646 = vpop.f32.mrb[0].mxu0
  %v3647 = vpop.f32.mrb[0].mxu0
  %v3648 = vadd.f32 0.0, %v3647
  %v3649 = vpop.f32.mrb[0].mxu0
  %3650 = vmatprep.mubr.bf16.mxu0 0
  %3651 = vmatmul.mubr.bf16.gmra.mrb[0].mxu0 %v3478
  %v3652 = vpop.f32.mrb[0].mxu0
  %v3653 = vadd.f32 0.0, %v3652
  %v3654 = vpop.f32.mrb[0].mxu0
  %v3655 = vpop.f32.mrb[0].mxu0
  %v3656 = vadd.f32 0.0, %v3655
  %v3657 = vpop.f32.mrb[0].mxu0
  %3658 = vmatprep.mubr.bf16.mxu0 0
  %3659 = vmatmul.mubr.bf16.gmra.mrb[0].mxu0 %v3481
  %v3660 = vpop.f32.mrb[0].mxu0
  %v3661 = vadd.f32 0.0, %v3660
  %v3662 = vpop.f32.mrb[0].mxu0
  %v3663 = vpop.f32.mrb[0].mxu0
  %v3664 = vadd.f32 0.0, %v3663
  %v3665 = vpop.f32.mrb[0].mxu0
  %3666 = vmatprep.mubr.bf16.mxu0 0
  %3667 = vmatmul.mubr.bf16.gmra.mrb[0].mxu0 %v3484
  %v3668 = vpop.f32.mrb[0].mxu0
  %v3669 = vadd.f32 0.0, %v3668
  %v3670 = vpop.f32.mrb[0].mxu0
  %v3671 = vpop.f32.mrb[0].mxu0
  %v3672 = vadd.f32 0.0, %v3671
  %v3673 = vpop.f32.mrb[0].mxu0
  %3674 = vmatprep.mubr.bf16.mxu0 0
  %3675 = vmatmul.mubr.bf16.gmra.mrb[0].mxu0 %v3487
  %v3676 = vpop.f32.mrb[0].mxu0
  %v3677 = vadd.f32 0.0, %v3676
  %v3678 = vpop.f32.mrb[0].mxu0
  %v3679 = vpop.f32.mrb[0].mxu0
  %v3680 = vadd.f32 0.0, %v3679
  %v3681 = vpop.f32.mrb[0].mxu0
  %3682 = vmatprep.mubr.bf16.mxu0 0
  %3683 = vmatmul.mubr.bf16.gmra.mrb[0].mxu0 %v3490
  %v3684 = vpop.f32.mrb[0].mxu0
  %v3685 = vadd.f32 0.0, %v3684
  %v3686 = vpop.f32.mrb[0].mxu0
  %v3687 = vpop.f32.mrb[0].mxu0
  %v3688 = vadd.f32 0.0, %v3687
  %v3689 = vpop.f32.mrb[0].mxu0
  %3690 = vmatprep.mubr.bf16.mxu0 0
  %3691 = vmatmul.mubr.bf16.gmra.mrb[0].mxu0 %v3493
  %v3692 = vpop.f32.mrb[0].mxu0
  %v3693 = vadd.f32 0.0, %v3692
  %v3694 = vpop.f32.mrb[0].mxu0
  %v3695 = vpop.f32.mrb[0].mxu0
  %v3696 = vadd.f32 0.0, %v3695
  %v3697 = vpop.f32.mrb[0].mxu0
  %3698 = vmatprep.mubr.bf16.mxu0 0
  %3699 = vmatmul.mubr.bf16.gmra.mrb[0].mxu0 %v3496
  %v3700 = vpop.f32.mrb[0].mxu0
  %v3701 = vadd.f32 0.0, %v3700
  %v3702 = vpop.f32.mrb[0].mxu0
  %v3703 = vpop.f32.mrb[0].mxu0
  %v3704 = vadd.f32 0.0, %v3703
  %v3705 = vpop.f32.mrb[0].mxu0
  %3706 = vmatprep.mubr.bf16.mxu0 0
  %3707 = vmatmul.mubr.bf16.gmra.mrb[0].mxu0 %v3499
  %v3708 = vpop.f32.mrb[0].mxu0
  %v3709 = vadd.f32 0.0, %v3708
  %v3710 = vpop.f32.mrb[0].mxu0
  %v3711 = vpop.f32.mrb[0].mxu0
  %v3712 = vadd.f32 0.0, %v3711
  %v3713 = vpop.f32.mrb[0].mxu0
  %3714 = vmatprep.mubr.bf16.mxu0 0
  %3715 = vmatmul.mubr.bf16.gmra.mrb[0].mxu0 %v3502
  %v3716 = vpop.f32.mrb[0].mxu0
  %v3717 = vadd.f32 0.0, %v3716
  %v3718 = vpop.f32.mrb[0].mxu0
  %v3719 = vpop.f32.mrb[0].mxu0
  %v3720 = vadd.f32 0.0, %v3719
  %v3721 = vpop.f32.mrb[0].mxu0
  %3722 = vmatprep.mubr.bf16.mxu0 0
  %3723 = vmatmul.mubr.bf16.gmra.mrb[0].mxu0 %v3505
  %v3724 = vpop.f32.mrb[0].mxu0
  %v3725 = vadd.f32 0.0, %v3724
  %v3726 = vpop.f32.mrb[0].mxu0
  %v3727 = vpop.f32.mrb[0].mxu0
  %v3728 = vadd.f32 0.0, %v3727
  %v3729 = vpop.f32.mrb[0].mxu0
  %3730 = vmatprep.mubr.bf16.mxu0 0
  %3731 = vmatmul.mubr.bf16.gmra.mrb[0].mxu0 %v3508
  %v3732 = vpop.f32.mrb[0].mxu0
  %v3733 = vadd.f32 0.0, %v3732
  %v3734 = vpop.f32.mrb[0].mxu0
  %v3735 = vpop.f32.mrb[0].mxu0
  %v3736 = vadd.f32 0.0, %v3735
  %v3737 = vpop.f32.mrb[0].mxu0
  %3738 = vmatprep.mubr.bf16.mxu0 0
  %3739 = vmatmul.mubr.bf16.gmra.mrb[0].mxu0 %v3511
  %v3740 = vpop.f32.mrb[0].mxu0
  %v3741 = vadd.f32 0.0, %v3740
  %v3742 = vpop.f32.mrb[0].mxu0
  %v3743 = vpop.f32.mrb[0].mxu0
  %v3744 = vadd.f32 0.0, %v3743
  %v3745 = vpop.f32.mrb[0].mxu0
  %3746 = vmatprep.mubr.bf16.mxu0 0
  %3747 = vmatmul.mubr.bf16.gmra.mrb[0].mxu0 %v3514
  %v3748 = vpop.f32.mrb[0].mxu0
  %v3749 = vadd.f32 0.0, %v3748
  %v3750 = vpop.f32.mrb[0].mxu0
  %v3751 = vpop.f32.mrb[0].mxu0
  %v3752 = vadd.f32 0.0, %v3751
  %v3753 = vpop.f32.mrb[0].mxu0
  %3754 = vmatprep.mubr.bf16.mxu0 0
  %3755 = vmatmul.mubr.bf16.gmra.mrb[0].mxu0 %v3517
  %v3756 = vpop.f32.mrb[0].mxu0
  %v3757 = vadd.f32 0.0, %v3756
  %v3758 = vpop.f32.mrb[0].mxu0
  %v3759 = vpop.f32.mrb[0].mxu0
  %v3760 = vadd.f32 0.0, %v3759
  %v3761 = vpop.f32.mrb[0].mxu0
  %3762 = vmatprep.mubr.bf16.mxu0 0
  %3763 = vmatmul.mubr.bf16.gmra.mrb[0].mxu0 %v3520
  %v3764 = vpop.f32.mrb[0].mxu0
  %v3765 = vadd.f32 0.0, %v3764
  %v3766 = vpop.f32.mrb[0].mxu0
  %v3767 = vpop.f32.mrb[0].mxu0
  %v3768 = vadd.f32 0.0, %v3767
  %v3769 = vpop.f32.mrb[0].mxu0
  %3770 = vmatprep.mubr.bf16.mxu0 0
  %3771 = vmatmul.mubr.bf16.gmra.mrb[0].mxu0 %v3523
  %v3772 = vpop.f32.mrb[0].mxu0
  %v3773 = vadd.f32 0.0, %v3772
  %v3774 = vpop.f32.mrb[0].mxu0
  %v3775 = vpop.f32.mrb[0].mxu0
  %v3776 = vadd.f32 0.0, %v3775
  %v3777 = vpop.f32.mrb[0].mxu0
  %3778 = vmatprep.mubr.bf16.mxu0 0
  %3779 = vmatmul.mubr.bf16.gmra.mrb[0].mxu0 %v3526
  %v3780 = vpop.f32.mrb[0].mxu0
  %v3781 = vadd.f32 0.0, %v3780
  %v3782 = vpop.f32.mrb[0].mxu0
  %v3783 = vpop.f32.mrb[0].mxu0
  %v3784 = vadd.f32 0.0, %v3783
  %v3785 = vpop.f32.mrb[0].mxu0
  %3786 = vmatprep.mubr.bf16.mxu0 0
  %3787 = vmatmul.mubr.bf16.gmra.mrb[0].mxu0 %v3529
  %v3788 = vpop.f32.mrb[0].mxu0
  %v3789 = vadd.f32 0.0, %v3788
  %v3790 = vpop.f32.mrb[0].mxu0
  %v3791 = vpop.f32.mrb[0].mxu0
  %v3792 = vadd.f32 0.0, %v3791
  %v3793 = vpop.f32.mrb[0].mxu0
  %3794 = vmatprep.mubr.bf16.mxu0 0
  %3795 = vmatmul.mubr.bf16.gmra.mrb[0].mxu0 %v3532
  %v3796 = vpop.f32.mrb[0].mxu0
  %v3797 = vadd.f32 0.0, %v3796
  %v3798 = vpop.f32.mrb[0].mxu0
  %v3799 = vpop.f32.mrb[0].mxu0
  %v3800 = vadd.f32 0.0, %v3799
  %v3801 = vpop.f32.mrb[0].mxu0
  %3802 = vmatprep.mubr.bf16.mxu0 0
  %3803 = vmatmul.mubr.bf16.gmra.mrb[0].mxu0 %v3535
  %v3804 = vpop.f32.mrb[0].mxu0
  %v3805 = vadd.f32 0.0, %v3804
  %v3806 = vpop.f32.mrb[0].mxu0
  %v3807 = vpop.f32.mrb[0].mxu0
  %v3808 = vadd.f32 0.0, %v3807
  %v3809 = vpop.f32.mrb[0].mxu0
  %3810 = vmatprep.mubr.bf16.mxu0 0
  %3811 = vmatmul.mubr.bf16.gmra.mrb[0].mxu0 %v3538
  %v3812 = vpop.f32.mrb[0].mxu0
  %v3813 = vadd.f32 0.0, %v3812
  %v3814 = vpop.f32.mrb[0].mxu0
  %v3815 = vpop.f32.mrb[0].mxu0
  %v3816 = vadd.f32 0.0, %v3815
  %v3817 = vpop.f32.mrb[0].mxu0
  %3818 = vmatprep.mubr.bf16.mxu0 0
  %3819 = vmatmul.mubr.bf16.gmra.mrb[0].mxu0 %v3541
  %v3820 = vpop.f32.mrb[0].mxu0
  %v3821 = vadd.f32 0.0, %v3820
  %v3822 = vpop.f32.mrb[0].mxu0
  %v3823 = vpop.f32.mrb[0].mxu0
  %v3824 = vadd.f32 0.0, %v3823
  %v3825 = vpop.f32.mrb[0].mxu0
  %3826 = vmatprep.mubr.bf16.mxu0 0
  %3827 = vmatmul.mubr.bf16.gmra.mrb[0].mxu0 %v3544
  %v3828 = vpop.f32.mrb[0].mxu0
  %v3829 = vadd.f32 0.0, %v3828
  %v3830 = vpop.f32.mrb[0].mxu0
  %v3831 = vpop.f32.mrb[0].mxu0
  %v3832 = vadd.f32 0.0, %v3831
  %v3833 = vpop.f32.mrb[0].mxu0
  %3834 = vmatprep.mubr.bf16.mxu0 0
  %3835 = vmatmul.mubr.bf16.gmra.mrb[0].mxu0 %v3547
  %v3836 = vpop.f32.mrb[0].mxu0
  %v3837 = vadd.f32 0.0, %v3836
  %v3838 = vpop.f32.mrb[0].mxu0
  %v3839 = vpop.f32.mrb[0].mxu0
  %v3840 = vadd.f32 0.0, %v3839
  %v3841 = vpop.f32.mrb[0].mxu0
  %3842 = vmatprep.mubr.bf16.mxu0 0
  %3843 = vmatmul.mubr.bf16.gmra.mrb[0].mxu0 %v3550
  %v3844 = vpop.f32.mrb[0].mxu0
  %v3845 = vadd.f32 0.0, %v3844
  %v3846 = vpop.f32.mrb[0].mxu0
  %v3847 = vpop.f32.mrb[0].mxu0
  %v3848 = vadd.f32 0.0, %v3847
  %v3849 = vpop.f32.mrb[0].mxu0
  %3850 = vmatprep.mubr.bf16.mxu0 0
  %3851 = vmatmul.mubr.bf16.gmra.mrb[0].mxu0 %v3553
  %v3852 = vpop.f32.mrb[0].mxu0
  %v3853 = vadd.f32 0.0, %v3852
  %v3854 = vpop.f32.mrb[0].mxu0
  %v3855 = vpop.f32.mrb[0].mxu0
  %v3856 = vadd.f32 0.0, %v3855
  %v3857 = vpop.f32.mrb[0].mxu0
  %3858 = vmatprep.mubr.bf16.mxu0 0
  %3859 = vmatmul.mubr.bf16.gmra.mrb[0].mxu0 %v3556
  %v3860 = vpop.f32.mrb[0].mxu0
  %v3861 = vadd.f32 0.0, %v3860
  %v3862 = vpop.f32.mrb[0].mxu0
  %v3863 = vpop.f32.mrb[0].mxu0
  %v3864 = vadd.f32 0.0, %v3863
  %v3865 = vpop.f32.mrb[0].mxu0
  %3866 = vmatprep.mubr.bf16.mxu0 0
  %3867 = vmatmul.mubr.bf16.gmra.mrb[0].mxu0 %v3559
  %v3868 = vpop.f32.mrb[0].mxu0
  %v3869 = vadd.f32 0.0, %v3868
  %v3870 = vpop.f32.mrb[0].mxu0
  %v3871 = vpop.f32.mrb[0].mxu0
  %v3872 = vadd.f32 0.0, %v3871
  %v3873 = vpop.f32.mrb[0].mxu0
  %3874 = vmatprep.mubr.bf16.mxu0 0
  %3875 = vmatmul.mubr.bf16.gmra.mrb[0].mxu0 %v3562
  %v3876 = vpop.f32.mrb[0].mxu0
  %v3877 = vadd.f32 0.0, %v3876
  %v3878 = vpop.f32.mrb[0].mxu0
  %v3879 = vpop.f32.mrb[0].mxu0
  %v3880 = vadd.f32 0.0, %v3879
  %v3881 = vpop.f32.mrb[0].mxu0
  %3882 = vmatprep.mubr.bf16.mxu0 0
  %3883 = vmatmul.mubr.bf16.gmra.mrb[0].mxu0 %v3565
  %v3884 = vpop.f32.mrb[0].mxu0
  %v3885 = vadd.f32 0.0, %v3884
  %v3886 = vpop.f32.mrb[0].mxu0
  %v3887 = vpop.f32.mrb[0].mxu0
  %v3888 = vadd.f32 0.0, %v3887
  %v3889 = vpop.f32.mrb[0].mxu0
  %3890 = vdwg.mxu0
  %v3891 = vadd.f32 %v3128, %v3605
  %v3892 = vadd.f32 %v3129, %v3608
  %v3893 = vadd.f32 %v3130, %v3613
  %v3894 = vadd.f32 %v3131, %v3616
  %v3895 = vadd.f32 %v3132, %v3621
  %v3896 = vadd.f32 %v3133, %v3624
  %v3897 = vadd.f32 %v3134, %v3629
  %v3898 = vadd.f32 %v3135, %v3632
  %v3899 = vadd.f32 %v3136, %v3637
  %v3900 = vadd.f32 %v3137, %v3640
  %v3901 = vadd.f32 %v3138, %v3645
  %v3902 = vadd.f32 %v3139, %v3648
  %v3903 = vadd.f32 %v3140, %v3653
  %v3904 = vadd.f32 %v3141, %v3656
  %v3905 = vadd.f32 %v3142, %v3661
  %v3906 = vadd.f32 %v3143, %v3664
  %v3907 = vadd.f32 %v3144, %v3669
  %v3908 = vadd.f32 %v3145, %v3672
  %v3909 = vadd.f32 %v3146, %v3677
  %v3910 = vadd.f32 %v3147, %v3680
  %v3911 = vadd.f32 %v3148, %v3685
  %v3912 = vadd.f32 %v3149, %v3688
  %v3913 = vadd.f32 %v3150, %v3693
  %v3914 = vadd.f32 %v3151, %v3696
  %v3915 = vadd.f32 %v3152, %v3701
  %v3916 = vadd.f32 %v3153, %v3704
  %v3917 = vadd.f32 %v3154, %v3709
  %v3918 = vadd.f32 %v3155, %v3712
  %v3919 = vadd.f32 %v3156, %v3717
  %v3920 = vadd.f32 %v3157, %v3720
  %v3921 = vadd.f32 %v3158, %v3725
  %v3922 = vadd.f32 %v3159, %v3728
  %v3923 = vadd.f32 %v3160, %v3733
  %v3924 = vadd.f32 %v3161, %v3736
  %v3925 = vadd.f32 %v3162, %v3741
  %v3926 = vadd.f32 %v3163, %v3744
  %v3927 = vadd.f32 %v3164, %v3749
  %v3928 = vadd.f32 %v3165, %v3752
  %v3929 = vadd.f32 %v3166, %v3757
  %v3930 = vadd.f32 %v3167, %v3760
  %v3931 = vadd.f32 %v3168, %v3765
  %v3932 = vadd.f32 %v3169, %v3768
  %v3933 = vadd.f32 %v3170, %v3773
  %v3934 = vadd.f32 %v3171, %v3776
  %v3935 = vadd.f32 %v3172, %v3781
  %v3936 = vadd.f32 %v3173, %v3784
  %v3937 = vadd.f32 %v3174, %v3789
  %v3938 = vadd.f32 %v3175, %v3792
  %v3939 = vadd.f32 %v3176, %v3797
  %v3940 = vadd.f32 %v3177, %v3800
  %v3941 = vadd.f32 %v3178, %v3805
  %v3942 = vadd.f32 %v3179, %v3808
  %v3943 = vadd.f32 %v3180, %v3813
  %v3944 = vadd.f32 %v3181, %v3816
  %v3945 = vadd.f32 %v3182, %v3821
  %v3946 = vadd.f32 %v3183, %v3824
  %v3947 = vadd.f32 %v3184, %v3829
  %v3948 = vadd.f32 %v3185, %v3832
  %v3949 = vadd.f32 %v3186, %v3837
  %v3950 = vadd.f32 %v3187, %v3840
  %v3951 = vadd.f32 %v3188, %v3845
  %v3952 = vadd.f32 %v3189, %v3848
  %v3953 = vadd.f32 %v3190, %v3853
  %v3954 = vadd.f32 %v3191, %v3856
  %v3955 = vadd.f32 %v3192, %v3861
  %v3956 = vadd.f32 %v3193, %v3864
  %v3957 = vadd.f32 %v3194, %v3869
  %v3958 = vadd.f32 %v3195, %v3872
  %v3959 = vadd.f32 %v3196, %v3877
  %v3960 = vadd.f32 %v3197, %v3880
  %v3961 = vadd.f32 %v3198, %v3885
  %v3962 = vadd.f32 %v3199, %v3888
  %3964 = vset.pattern.permute.xlu0 0
  %3965 = vperm.xlu0 %3964, %v969
  %v3966 = vpop.permute.xlu0 %3965
  %3969 = vset.pattern.permute.xlu0 0
  %3970 = vperm.xlu0 %3969, %v970
  %v3971 = vpop.permute.xlu0 %3970
  %3974 = vset.pattern.permute.xlu0 0
  %3975 = vperm.xlu0 %3974, %v971
  %v3976 = vpop.permute.xlu0 %3975
  %3979 = vset.pattern.permute.xlu0 0
  %3980 = vperm.xlu0 %3979, %v972
  %v3981 = vpop.permute.xlu0 %3980
  %3984 = vset.pattern.permute.xlu0 0
  %3985 = vperm.xlu0 %3984, %v973
  %v3986 = vpop.permute.xlu0 %3985
  %3989 = vset.pattern.permute.xlu0 0
  %3990 = vperm.xlu0 %3989, %v974
  %v3991 = vpop.permute.xlu0 %3990
  %3994 = vset.pattern.permute.xlu0 0
  %3995 = vperm.xlu0 %3994, %v975
  %v3996 = vpop.permute.xlu0 %3995
  %3999 = vset.pattern.permute.xlu0 0
  %4000 = vperm.xlu0 %3999, %v976
  %v4001 = vpop.permute.xlu0 %4000
  %4004 = vset.pattern.permute.xlu0 0
  %4005 = vperm.xlu0 %4004, %v977
  %v4006 = vpop.permute.xlu0 %4005
  %4009 = vset.pattern.permute.xlu0 0
  %4010 = vperm.xlu0 %4009, %v978
  %v4011 = vpop.permute.xlu0 %4010
  %4014 = vset.pattern.permute.xlu0 0
  %4015 = vperm.xlu0 %4014, %v979
  %v4016 = vpop.permute.xlu0 %4015
  %4019 = vset.pattern.permute.xlu0 0
  %4020 = vperm.xlu0 %4019, %v980
  %v4021 = vpop.permute.xlu0 %4020
  %4024 = vset.pattern.permute.xlu0 0
  %4025 = vperm.xlu0 %4024, %v981
  %v4026 = vpop.permute.xlu0 %4025
  %4029 = vset.pattern.permute.xlu0 0
  %4030 = vperm.xlu0 %4029, %v982
  %v4031 = vpop.permute.xlu0 %4030
  %4034 = vset.pattern.permute.xlu0 0
  %4035 = vperm.xlu0 %4034, %v983
  %v4036 = vpop.permute.xlu0 %4035
  %4039 = vset.pattern.permute.xlu0 0
  %4040 = vperm.xlu0 %4039, %v984
  %v4041 = vpop.permute.xlu0 %4040
  %4044 = vset.pattern.permute.xlu0 0
  %4045 = vperm.xlu0 %4044, %v985
  %v4046 = vpop.permute.xlu0 %4045
  %4049 = vset.pattern.permute.xlu0 0
  %4050 = vperm.xlu0 %4049, %v986
  %v4051 = vpop.permute.xlu0 %4050
  %4054 = vset.pattern.permute.xlu0 0
  %4055 = vperm.xlu0 %4054, %v987
  %v4056 = vpop.permute.xlu0 %4055
  %4059 = vset.pattern.permute.xlu0 0
  %4060 = vperm.xlu0 %4059, %v988
  %v4061 = vpop.permute.xlu0 %4060
  %4064 = vset.pattern.permute.xlu0 0
  %4065 = vperm.xlu0 %4064, %v989
  %v4066 = vpop.permute.xlu0 %4065
  %4069 = vset.pattern.permute.xlu0 0
  %4070 = vperm.xlu0 %4069, %v990
  %v4071 = vpop.permute.xlu0 %4070
  %4074 = vset.pattern.permute.xlu0 0
  %4075 = vperm.xlu0 %4074, %v991
  %v4076 = vpop.permute.xlu0 %4075
  %4079 = vset.pattern.permute.xlu0 0
  %4080 = vperm.xlu0 %4079, %v992
  %v4081 = vpop.permute.xlu0 %4080
  %4084 = vset.pattern.permute.xlu0 0
  %4085 = vperm.xlu0 %4084, %v993
  %v4086 = vpop.permute.xlu0 %4085
  %4089 = vset.pattern.permute.xlu0 0
  %4090 = vperm.xlu0 %4089, %v994
  %v4091 = vpop.permute.xlu0 %4090
  %4094 = vset.pattern.permute.xlu0 0
  %4095 = vperm.xlu0 %4094, %v995
  %v4096 = vpop.permute.xlu0 %4095
  %4099 = vset.pattern.permute.xlu0 0
  %4100 = vperm.xlu0 %4099, %v996
  %v4101 = vpop.permute.xlu0 %4100
  %4104 = vset.pattern.permute.xlu0 0
  %4105 = vperm.xlu0 %4104, %v997
  %v4106 = vpop.permute.xlu0 %4105
  %4109 = vset.pattern.permute.xlu0 0
  %4110 = vperm.xlu0 %4109, %v998
  %v4111 = vpop.permute.xlu0 %4110
  %4114 = vset.pattern.permute.xlu0 0
  %4115 = vperm.xlu0 %4114, %v999
  %v4116 = vpop.permute.xlu0 %4115
  %4119 = vset.pattern.permute.xlu0 0
  %4120 = vperm.xlu0 %4119, %v1000
  %v4121 = vpop.permute.xlu0 %4120
  %4124 = vset.pattern.permute.xlu0 0
  %4125 = vperm.xlu0 %4124, %v1001
  %v4126 = vpop.permute.xlu0 %4125
  %4129 = vset.pattern.permute.xlu0 0
  %4130 = vperm.xlu0 %4129, %v1002
  %v4131 = vpop.permute.xlu0 %4130
  %4134 = vset.pattern.permute.xlu0 0
  %4135 = vperm.xlu0 %4134, %v1003
  %v4136 = vpop.permute.xlu0 %4135
  %4139 = vset.pattern.permute.xlu0 0
  %4140 = vperm.xlu0 %4139, %v1004
  %v4141 = vpop.permute.xlu0 %4140
  %4144 = vset.pattern.permute.xlu0 0
  %4145 = vperm.xlu0 %4144, %v1005
  %v4146 = vpop.permute.xlu0 %4145
  %4149 = vset.pattern.permute.xlu0 0
  %4150 = vperm.xlu0 %4149, %v1006
  %v4151 = vpop.permute.xlu0 %4150
  %4154 = vset.pattern.permute.xlu0 0
  %4155 = vperm.xlu0 %4154, %v1007
  %v4156 = vpop.permute.xlu0 %4155
  %4159 = vset.pattern.permute.xlu0 0
  %4160 = vperm.xlu0 %4159, %v1008
  %v4161 = vpop.permute.xlu0 %4160
  %4164 = vset.pattern.permute.xlu0 0
  %4165 = vperm.xlu0 %4164, %v1009
  %v4166 = vpop.permute.xlu0 %4165
  %4169 = vset.pattern.permute.xlu0 0
  %4170 = vperm.xlu0 %4169, %v1010
  %v4171 = vpop.permute.xlu0 %4170
  %4174 = vset.pattern.permute.xlu0 0
  %4175 = vperm.xlu0 %4174, %v1011
  %v4176 = vpop.permute.xlu0 %4175
  %4179 = vset.pattern.permute.xlu0 0
  %4180 = vperm.xlu0 %4179, %v1012
  %v4181 = vpop.permute.xlu0 %4180
  %4184 = vset.pattern.permute.xlu0 0
  %4185 = vperm.xlu0 %4184, %v1013
  %v4186 = vpop.permute.xlu0 %4185
  %4189 = vset.pattern.permute.xlu0 0
  %4190 = vperm.xlu0 %4189, %v1014
  %v4191 = vpop.permute.xlu0 %4190
  %4194 = vset.pattern.permute.xlu0 0
  %4195 = vperm.xlu0 %4194, %v1015
  %v4196 = vpop.permute.xlu0 %4195
  %4199 = vset.pattern.permute.xlu0 0
  %4200 = vperm.xlu0 %4199, %v1016
  %v4201 = vpop.permute.xlu0 %4200
  %4204 = vset.pattern.permute.xlu0 0
  %4205 = vperm.xlu0 %4204, %v1017
  %v4206 = vpop.permute.xlu0 %4205
  %4209 = vset.pattern.permute.xlu0 0
  %4210 = vperm.xlu0 %4209, %v1018
  %v4211 = vpop.permute.xlu0 %4210
  %4214 = vset.pattern.permute.xlu0 0
  %4215 = vperm.xlu0 %4214, %v1019
  %v4216 = vpop.permute.xlu0 %4215
  %4219 = vset.pattern.permute.xlu0 0
  %4220 = vperm.xlu0 %4219, %v1020
  %v4221 = vpop.permute.xlu0 %4220
  %4224 = vset.pattern.permute.xlu0 0
  %4225 = vperm.xlu0 %4224, %v1021
  %v4226 = vpop.permute.xlu0 %4225
  %4229 = vset.pattern.permute.xlu0 0
  %4230 = vperm.xlu0 %4229, %v1022
  %v4231 = vpop.permute.xlu0 %4230
  %4234 = vset.pattern.permute.xlu0 0
  %4235 = vperm.xlu0 %4234, %v1023
  %v4236 = vpop.permute.xlu0 %4235
  %4239 = vset.pattern.permute.xlu0 0
  %4240 = vperm.xlu0 %4239, %v1024
  %v4241 = vpop.permute.xlu0 %4240
  %4244 = vset.pattern.permute.xlu0 0
  %4245 = vperm.xlu0 %4244, %v1025
  %v4246 = vpop.permute.xlu0 %4245
  %4249 = vset.pattern.permute.xlu0 0
  %4250 = vperm.xlu0 %4249, %v1026
  %v4251 = vpop.permute.xlu0 %4250
  %4254 = vset.pattern.permute.xlu0 0
  %4255 = vperm.xlu0 %4254, %v1027
  %v4256 = vpop.permute.xlu0 %4255
  %4259 = vset.pattern.permute.xlu0 0
  %4260 = vperm.xlu0 %4259, %v1028
  %v4261 = vpop.permute.xlu0 %4260
  %4264 = vset.pattern.permute.xlu0 0
  %4265 = vperm.xlu0 %4264, %v1029
  %v4266 = vpop.permute.xlu0 %4265
  %4269 = vset.pattern.permute.xlu0 0
  %4270 = vperm.xlu0 %4269, %v1030
  %v4271 = vpop.permute.xlu0 %4270
  %4274 = vset.pattern.permute.xlu0 0
  %4275 = vperm.xlu0 %4274, %v1031
  %v4276 = vpop.permute.xlu0 %4275
  %4279 = vset.pattern.permute.xlu0 0
  %4280 = vperm.xlu0 %4279, %v1032
  %v4281 = vpop.permute.xlu0 %4280
  %4284 = vset.pattern.permute.xlu0 0
  %4285 = vperm.xlu0 %4284, %v1033
  %v4286 = vpop.permute.xlu0 %4285
  %4289 = vset.pattern.permute.xlu0 0
  %4290 = vperm.xlu0 %4289, %v1034
  %v4291 = vpop.permute.xlu0 %4290
  %4294 = vset.pattern.permute.xlu0 0
  %4295 = vperm.xlu0 %4294, %v1035
  %v4296 = vpop.permute.xlu0 %4295
  %4299 = vset.pattern.permute.xlu0 0
  %4300 = vperm.xlu0 %4299, %v1036
  %v4301 = vpop.permute.xlu0 %4300
  %4304 = vset.pattern.permute.xlu0 0
  %4305 = vperm.xlu0 %4304, %v1037
  %v4306 = vpop.permute.xlu0 %4305
  %4309 = vset.pattern.permute.xlu0 0
  %4310 = vperm.xlu0 %4309, %v1038
  %v4311 = vpop.permute.xlu0 %4310
  %4314 = vset.pattern.permute.xlu0 0
  %4315 = vperm.xlu0 %4314, %v1039
  %v4316 = vpop.permute.xlu0 %4315
  %4319 = vset.pattern.permute.xlu0 0
  %4320 = vperm.xlu0 %4319, %v1040
  %v4321 = vpop.permute.xlu0 %4320
  %v4323 = vadd.f32 %v3891, %v3966
  %v4324 = vadd.f32 %v3892, %v3971
  %v4325 = vadd.f32 %v3893, %v3976
  %v4326 = vadd.f32 %v3894, %v3981
  %v4327 = vadd.f32 %v3895, %v3986
  %v4328 = vadd.f32 %v3896, %v3991
  %v4329 = vadd.f32 %v3897, %v3996
  %v4330 = vadd.f32 %v3898, %v4001
  %v4331 = vadd.f32 %v3899, %v4006
  %v4332 = vadd.f32 %v3900, %v4011
  %v4333 = vadd.f32 %v3901, %v4016
  %v4334 = vadd.f32 %v3902, %v4021
  %v4335 = vadd.f32 %v3903, %v4026
  %v4336 = vadd.f32 %v3904, %v4031
  %v4337 = vadd.f32 %v3905, %v4036
  %v4338 = vadd.f32 %v3906, %v4041
  %v4339 = vadd.f32 %v3907, %v4046
  %v4340 = vadd.f32 %v3908, %v4051
  %v4341 = vadd.f32 %v3909, %v4056
  %v4342 = vadd.f32 %v3910, %v4061
  %v4343 = vadd.f32 %v3911, %v4066
  %v4344 = vadd.f32 %v3912, %v4071
  %v4345 = vadd.f32 %v3913, %v4076
  %v4346 = vadd.f32 %v3914, %v4081
  %v4347 = vadd.f32 %v3915, %v4086
  %v4348 = vadd.f32 %v3916, %v4091
  %v4349 = vadd.f32 %v3917, %v4096
  %v4350 = vadd.f32 %v3918, %v4101
  %v4351 = vadd.f32 %v3919, %v4106
  %v4352 = vadd.f32 %v3920, %v4111
  %v4353 = vadd.f32 %v3921, %v4116
  %v4354 = vadd.f32 %v3922, %v4121
  %v4355 = vadd.f32 %v3923, %v4126
  %v4356 = vadd.f32 %v3924, %v4131
  %v4357 = vadd.f32 %v3925, %v4136
  %v4358 = vadd.f32 %v3926, %v4141
  %v4359 = vadd.f32 %v3927, %v4146
  %v4360 = vadd.f32 %v3928, %v4151
  %v4361 = vadd.f32 %v3929, %v4156
  %v4362 = vadd.f32 %v3930, %v4161
  %v4363 = vadd.f32 %v3931, %v4166
  %v4364 = vadd.f32 %v3932, %v4171
  %v4365 = vadd.f32 %v3933, %v4176
  %v4366 = vadd.f32 %v3934, %v4181
  %v4367 = vadd.f32 %v3935, %v4186
  %v4368 = vadd.f32 %v3936, %v4191
  %v4369 = vadd.f32 %v3937, %v4196
  %v4370 = vadd.f32 %v3938, %v4201
  %v4371 = vadd.f32 %v3939, %v4206
  %v4372 = vadd.f32 %v3940, %v4211
  %v4373 = vadd.f32 %v3941, %v4216
  %v4374 = vadd.f32 %v3942, %v4221
  %v4375 = vadd.f32 %v3943, %v4226
  %v4376 = vadd.f32 %v3944, %v4231
  %v4377 = vadd.f32 %v3945, %v4236
  %v4378 = vadd.f32 %v3946, %v4241
  %v4379 = vadd.f32 %v3947, %v4246
  %v4380 = vadd.f32 %v3948, %v4251
  %v4381 = vadd.f32 %v3949, %v4256
  %v4382 = vadd.f32 %v3950, %v4261
  %v4383 = vadd.f32 %v3951, %v4266
  %v4384 = vadd.f32 %v3952, %v4271
  %v4385 = vadd.f32 %v3953, %v4276
  %v4386 = vadd.f32 %v3954, %v4281
  %v4387 = vadd.f32 %v3955, %v4286
  %v4388 = vadd.f32 %v3956, %v4291
  %v4389 = vadd.f32 %v3957, %v4296
  %v4390 = vadd.f32 %v3958, %v4301
  %v4391 = vadd.f32 %v3959, %v4306
  %v4392 = vadd.f32 %v3960, %v4311
  %v4393 = vadd.f32 %v3961, %v4316
  %v4394 = vadd.f32 %v3962, %v4321
  %v4395 = vmax.f32 %v4323, 0.0
  %v4396 = vmax.f32 %v4324, 0.0
  %v4397 = vmax.f32 %v4325, 0.0
  %v4398 = vmax.f32 %v4326, 0.0
  %v4399 = vmax.f32 %v4327, 0.0
  %v4400 = vmax.f32 %v4328, 0.0
  %v4401 = vmax.f32 %v4329, 0.0
  %v4402 = vmax.f32 %v4330, 0.0
  %v4403 = vmax.f32 %v4331, 0.0
  %v4404 = vmax.f32 %v4332, 0.0
  %v4405 = vmax.f32 %v4333, 0.0
  %v4406 = vmax.f32 %v4334, 0.0
  %v4407 = vmax.f32 %v4335, 0.0
  %v4408 = vmax.f32 %v4336, 0.0
  %v4409 = vmax.f32 %v4337, 0.0
  %v4410 = vmax.f32 %v4338, 0.0
  %v4411 = vmax.f32 %v4339, 0.0
  %v4412 = vmax.f32 %v4340, 0.0
  %v4413 = vmax.f32 %v4341, 0.0
  %v4414 = vmax.f32 %v4342, 0.0
  %v4415 = vmax.f32 %v4343, 0.0
  %v4416 = vmax.f32 %v4344, 0.0
  %v4417 = vmax.f32 %v4345, 0.0
  %v4418 = vmax.f32 %v4346, 0.0
  %v4419 = vmax.f32 %v4347, 0.0
  %v4420 = vmax.f32 %v4348, 0.0
  %v4421 = vmax.f32 %v4349, 0.0
  %v4422 = vmax.f32 %v4350, 0.0
  %v4423 = vmax.f32 %v4351, 0.0
  %v4424 = vmax.f32 %v4352, 0.0
  %v4425 = vmax.f32 %v4353, 0.0
  %v4426 = vmax.f32 %v4354, 0.0
  %v4427 = vmax.f32 %v4355, 0.0
  %v4428 = vmax.f32 %v4356, 0.0
  %v4429 = vmax.f32 %v4357, 0.0
  %v4430 = vmax.f32 %v4358, 0.0
  %v4431 = vmax.f32 %v4359, 0.0
  %v4432 = vmax.f32 %v4360, 0.0
  %v4433 = vmax.f32 %v4361, 0.0
  %v4434 = vmax.f32 %v4362, 0.0
  %v4435 = vmax.f32 %v4363, 0.0
  %v4436 = vmax.f32 %v4364, 0.0
  %v4437 = vmax.f32 %v4365, 0.0
  %v4438 = vmax.f32 %v4366, 0.0
  %v4439 = vmax.f32 %v4367, 0.0
  %v4440 = vmax.f32 %v4368, 0.0
  %v4441 = vmax.f32 %v4369, 0.0
  %v4442 = vmax.f32 %v4370, 0.0
  %v4443 = vmax.f32 %v4371, 0.0
  %v4444 = vmax.f32 %v4372, 0.0
  %v4445 = vmax.f32 %v4373, 0.0
  %v4446 = vmax.f32 %v4374, 0.0
  %v4447 = vmax.f32 %v4375, 0.0
  %v4448 = vmax.f32 %v4376, 0.0
  %v4449 = vmax.f32 %v4377, 0.0
  %v4450 = vmax.f32 %v4378, 0.0
  %v4451 = vmax.f32 %v4379, 0.0
  %v4452 = vmax.f32 %v4380, 0.0
  %v4453 = vmax.f32 %v4381, 0.0
  %v4454 = vmax.f32 %v4382, 0.0
  %v4455 = vmax.f32 %v4383, 0.0
  %v4456 = vmax.f32 %v4384, 0.0
  %v4457 = vmax.f32 %v4385, 0.0
  %v4458 = vmax.f32 %v4386, 0.0
  %v4459 = vmax.f32 %v4387, 0.0
  %v4460 = vmax.f32 %v4388, 0.0
  %v4461 = vmax.f32 %v4389, 0.0
  %v4462 = vmax.f32 %v4390, 0.0
  %v4463 = vmax.f32 %v4391, 0.0
  %v4464 = vmax.f32 %v4392, 0.0
  %v4465 = vmax.f32 %v4393, 0.0
  %v4466 = vmax.f32 %v4394, 0.0
  %v4467 = vld [vmem:[%s3] sm:$0xff]
  %v4468 = vld [vmem:[%s3 + $0x8] sm:$0xff]
  %v4469 = vld [vmem:[%s3 + $0x10] sm:$0xf]
  %v4470 = vld [vmem:[%s3 + $0x14] sm:$0xff]
  %v4471 = vld [vmem:[%s3 + $0x1c] sm:$0xff]
  %v4472 = vld [vmem:[%s3 + $0x24] sm:$0xf]
  %v4473 = vld [vmem:[%s3 + $0x28] sm:$0xff]
  %v4474 = vld [vmem:[%s3 + $0x30] sm:$0xff]
  %v4475 = vld [vmem:[%s3 + $0x38] sm:$0xf]
  %v4476 = vld [vmem:[%s3 + $0x3c] sm:$0xff]
  %v4477 = vld [vmem:[%s3 + $0x44] sm:$0xff]
  %v4478 = vld [vmem:[%s3 + $0x4c] sm:$0xf]
  %v4479 = vld [vmem:[%s3 + $0x50] sm:$0xff]
  %v4480 = vld [vmem:[%s3 + $0x58] sm:$0xff]
  %v4481 = vld [vmem:[%s3 + $0x60] sm:$0xf]
  %v4482 = vld [vmem:[%s3 + $0x64] sm:$0xff]
  %v4483 = vld [vmem:[%s3 + $0x6c] sm:$0xff]
  %v4484 = vld [vmem:[%s3 + $0x74] sm:$0xf]
  %v4485 = vld [vmem:[%s3 + $0x78] sm:$0xff]
  %v4486 = vld [vmem:[%s3 + $0x80] sm:$0xff]
  %v4487 = vld [vmem:[%s3 + $0x88] sm:$0xf]
  %v4488 = vld [vmem:[%s3 + $0x8c] sm:$0xff]
  %v4489 = vld [vmem:[%s3 + $0x94] sm:$0xff]
  %v4490 = vld [vmem:[%s3 + $0x9c] sm:$0xf]
  %v4491 = vpack.c.bf16 %v4396, %v4395
  %v4492 = vpack.c.bf16 %v4398, %v4397
  %v4493 = vpack.c.bf16 %v4400, %v4399
  %v4494 = vpack.c.bf16 %v4402, %v4401
  %v4495 = vpack.c.bf16 %v4404, %v4403
  %v4496 = vpack.c.bf16 %v4406, %v4405
  %v4497 = vpack.c.bf16 %v4408, %v4407
  %v4498 = vpack.c.bf16 %v4410, %v4409
  %v4499 = vpack.c.bf16 %v4412, %v4411
  %v4500 = vpack.c.bf16 %v4414, %v4413
  %v4501 = vpack.c.bf16 %v4416, %v4415
  %v4502 = vpack.c.bf16 %v4418, %v4417
  %v4503 = vpack.c.bf16 %v4420, %v4419
  %v4504 = vpack.c.bf16 %v4422, %v4421
  %v4505 = vpack.c.bf16 %v4424, %v4423
  %v4506 = vpack.c.bf16 %v4426, %v4425
  %v4507 = vpack.c.bf16 %v4428, %v4427
  %v4508 = vpack.c.bf16 %v4430, %v4429
  %v4509 = vpack.c.bf16 %v4432, %v4431
  %v4510 = vpack.c.bf16 %v4434, %v4433
  %v4511 = vpack.c.bf16 %v4436, %v4435
  %v4512 = vpack.c.bf16 %v4438, %v4437
  %v4513 = vpack.c.bf16 %v4440, %v4439
  %v4514 = vpack.c.bf16 %v4442, %v4441
  %v4515 = vpack.c.bf16 %v4444, %v4443
  %v4516 = vpack.c.bf16 %v4446, %v4445
  %v4517 = vpack.c.bf16 %v4448, %v4447
  %v4518 = vpack.c.bf16 %v4450, %v4449
  %v4519 = vpack.c.bf16 %v4452, %v4451
  %v4520 = vpack.c.bf16 %v4454, %v4453
  %v4521 = vpack.c.bf16 %v4456, %v4455
  %v4522 = vpack.c.bf16 %v4458, %v4457
  %v4523 = vpack.c.bf16 %v4460, %v4459
  %v4524 = vpack.c.bf16 %v4462, %v4461
  %v4525 = vpack.c.bf16 %v4464, %v4463
  %v4526 = vpack.c.bf16 %v4466, %v4465
  %4528 = vset.pattern.permute.xlu0 0
  %4529 = vperm.xlu0 %4528, %v1041
  %v4530 = vpop.permute.xlu0 %4529
  %4533 = vset.pattern.permute.xlu0 0
  %4534 = vperm.xlu0 %4533, %v1042
  %v4535 = vpop.permute.xlu0 %4534
  %4538 = vset.pattern.permute.xlu0 0
  %4539 = vperm.xlu0 %4538, %v1043
  %v4540 = vpop.permute.xlu0 %4539
  %4543 = vset.pattern.permute.xlu0 0
  %4544 = vperm.xlu0 %4543, %v1044
  %v4545 = vpop.permute.xlu0 %4544
  %4548 = vset.pattern.permute.xlu0 0
  %4549 = vperm.xlu0 %4548, %v1045
  %v4550 = vpop.permute.xlu0 %4549
  %4553 = vset.pattern.permute.xlu0 0
  %4554 = vperm.xlu0 %4553, %v1046
  %v4555 = vpop.permute.xlu0 %4554
  %4558 = vset.pattern.permute.xlu0 0
  %4559 = vperm.xlu0 %4558, %v1047
  %v4560 = vpop.permute.xlu0 %4559
  %4563 = vset.pattern.permute.xlu0 0
  %4564 = vperm.xlu0 %4563, %v1048
  %v4565 = vpop.permute.xlu0 %4564
  %v4591 = vunpack.c.l.b16 %v4467
  %v4592 = vunpack.c.h.b16 %v4467
  %v4593 = vunpack.c.l.b16 %v4468
  %v4594 = vunpack.c.h.b16 %v4468
  %v4595 = vunpack.c.l.b16 %v4469
  %v4596 = vunpack.c.l.b16 %v4470
  %v4597 = vunpack.c.h.b16 %v4470
  %v4598 = vunpack.c.l.b16 %v4471
  %v4599 = vunpack.c.h.b16 %v4471
  %v4600 = vunpack.c.l.b16 %v4472
  %v4601 = vunpack.c.l.b16 %v4473
  %v4602 = vunpack.c.h.b16 %v4473
  %v4603 = vunpack.c.l.b16 %v4474
  %v4604 = vunpack.c.h.b16 %v4474
  %v4605 = vunpack.c.l.b16 %v4475
  %v4606 = vunpack.c.l.b16 %v4476
  %v4607 = vunpack.c.h.b16 %v4476
  %v4608 = vunpack.c.l.b16 %v4477
  %v4609 = vunpack.c.h.b16 %v4477
  %v4610 = vunpack.c.l.b16 %v4478
  %v4611 = vunpack.c.l.b16 %v4479
  %v4612 = vunpack.c.h.b16 %v4479
  %v4613 = vunpack.c.l.b16 %v4480
  %v4614 = vunpack.c.h.b16 %v4480
  %v4615 = vunpack.c.l.b16 %v4481
  %v4616 = vunpack.c.l.b16 %v4482
  %v4617 = vunpack.c.h.b16 %v4482
  %v4618 = vunpack.c.l.b16 %v4483
  %v4619 = vunpack.c.h.b16 %v4483
  %v4620 = vunpack.c.l.b16 %v4484
  %v4621 = vunpack.c.l.b16 %v4485
  %v4622 = vunpack.c.h.b16 %v4485
  %v4623 = vunpack.c.l.b16 %v4486
  %v4624 = vunpack.c.h.b16 %v4486
  %v4625 = vunpack.c.l.b16 %v4487
  %v4626 = vunpack.c.l.b16 %v4488
  %v4627 = vunpack.c.h.b16 %v4488
  %v4628 = vunpack.c.l.b16 %v4489
  %v4629 = vunpack.c.h.b16 %v4489
  %v4630 = vunpack.c.l.b16 %v4490
  %v4631 = vpack.c.b16 %v4596, %v4591
  %v4632 = vpack.c.b16 %v4597, %v4592
  %v4633 = vpack.c.b16 %v4598, %v4593
  %v4634 = vpack.c.b16 %v4599, %v4594
  %v4635 = vpack.c.b16 %v4600, %v4595
  %v4636 = vpack.c.b16 %v4606, %v4601
  %v4637 = vpack.c.b16 %v4607, %v4602
  %v4638 = vpack.c.b16 %v4608, %v4603
  %v4639 = vpack.c.b16 %v4609, %v4604
  %v4640 = vpack.c.b16 %v4610, %v4605
  %v4641 = vpack.c.b16 %v4616, %v4611
  %v4642 = vpack.c.b16 %v4617, %v4612
  %v4643 = vpack.c.b16 %v4618, %v4613
  %v4644 = vpack.c.b16 %v4619, %v4614
  %v4645 = vpack.c.b16 %v4620, %v4615
  %v4646 = vpack.c.b16 %v4626, %v4621
  %v4647 = vpack.c.b16 %v4627, %v4622
  %v4648 = vpack.c.b16 %v4628, %v4623
  %v4649 = vpack.c.b16 %v4629, %v4624
  %v4650 = vpack.c.b16 %v4630, %v4625
  %vm4667 = vcmask 523264
  %v4669 = vsel %vm4667, %v4635, 0
  %v4672 = vsel %vm4667, %v4640, 0
  %v4675 = vsel %vm4667, %v4645, 0
  %v4678 = vsel %vm4667, %v4650, 0
  %4680 = vmatprep.subr.bf16.mxu0 0
  %4681 = vmatpush1.bf16.msra.mxu0 %v4491
  %4682 = vmatprep.subr.bf16.mxu0 0
  %4683 = vmatpush1.bf16.msra.mxu0 %v4492
  %4684 = vmatprep.subr.bf16.mxu0 0
  %4685 = vmatpush1.bf16.msra.mxu0 %v4493
  %4686 = vmatprep.subr.bf16.mxu0 0
  %4687 = vmatpush1.bf16.msra.mxu0 %v4494
  %4688 = vmatprep.subr.bf16.mxu0 0
  %4689 = vmatpush1.bf16.msra.mxu0 %v4495
  %4690 = vmatprep.subr.bf16.mxu0 0
  %4691 = vmatpush1.bf16.msra.mxu0 %v4496
  %4692 = vmatprep.subr.bf16.mxu0 0
  %4693 = vmatpush1.bf16.msra.mxu0 %v4497
  %4694 = vmatprep.subr.bf16.mxu0 0
  %4695 = vmatpush1.bf16.msra.mxu0 %v4498
  %4696 = vmatprep.subr.bf16.mxu0 0
  %4697 = vmatpush1.bf16.msra.mxu0 %v4499
  %4698 = vmatprep.subr.bf16.mxu0 0
  %4699 = vmatpush1.bf16.msra.mxu0 %v4500
  %4700 = vmatprep.subr.bf16.mxu0 0
  %4701 = vmatpush1.bf16.msra.mxu0 %v4501
  %4702 = vmatprep.subr.bf16.mxu0 0
  %4703 = vmatpush1.bf16.msra.mxu0 %v4502
  %4704 = vmatprep.subr.bf16.mxu0 0
  %4705 = vmatpush1.bf16.msra.mxu0 %v4503
  %4706 = vmatprep.subr.bf16.mxu0 0
  %4707 = vmatpush1.bf16.msra.mxu0 %v4504
  %4708 = vmatprep.subr.bf16.mxu0 0
  %4709 = vmatpush1.bf16.msra.mxu0 %v4505
  %4710 = vmatprep.subr.bf16.mxu0 0
  %4711 = vmatpush1.bf16.msra.mxu0 %v4506
  %4712 = vmatprep.mubr.bf16.mxu0 %v4632
  %4713 = vmatmul.mubr.bf16.gmra.mrb[0].mxu0 %v4631
  %v4714 = vpop.f32.mrb[0].mxu0
  %v4715 = vadd.f32 %v4530, %v4714
  %v4716 = vpop.f32.mrb[0].mxu0
  %v4717 = vpop.f32.mrb[0].mxu0
  %v4718 = vadd.f32 %v4535, %v4717
  %v4719 = vpop.f32.mrb[0].mxu0
  %4720 = vmatprep.mubr.bf16.mxu0 %v4637
  %4721 = vmatmul.mubr.bf16.gmra.mrb[0].mxu0 %v4636
  %v4722 = vpop.f32.mrb[0].mxu0
  %v4723 = vadd.f32 %v4540, %v4722
  %v4724 = vpop.f32.mrb[0].mxu0
  %v4725 = vpop.f32.mrb[0].mxu0
  %v4726 = vadd.f32 %v4545, %v4725
  %v4727 = vpop.f32.mrb[0].mxu0
  %4728 = vmatprep.mubr.bf16.mxu0 %v4642
  %4729 = vmatmul.mubr.bf16.gmra.mrb[0].mxu0 %v4641
  %v4730 = vpop.f32.mrb[0].mxu0
  %v4731 = vadd.f32 %v4550, %v4730
  %v4732 = vpop.f32.mrb[0].mxu0
  %v4733 = vpop.f32.mrb[0].mxu0
  %v4734 = vadd.f32 %v4555, %v4733
  %v4735 = vpop.f32.mrb[0].mxu0
  %4736 = vmatprep.mubr.bf16.mxu0 %v4647
  %4737 = vmatmul.mubr.bf16.gmra.mrb[0].mxu0 %v4646
  %v4738 = vpop.f32.mrb[0].mxu0
  %v4739 = vadd.f32 %v4560, %v4738
  %v4740 = vpop.f32.mrb[0].mxu0
  %v4741 = vpop.f32.mrb[0].mxu0
  %v4742 = vadd.f32 %v4565, %v4741
  %v4743 = vpop.f32.mrb[0].mxu0
  %4744 = vdwg.mxu0
  %4745 = vmatprep.subr.bf16.mxu0 0
  %4746 = vmatpush1.bf16.msra.mxu0 %v4507
  %4747 = vmatprep.subr.bf16.mxu0 0
  %4748 = vmatpush1.bf16.msra.mxu0 %v4508
  %4749 = vmatprep.subr.bf16.mxu0 0
  %4750 = vmatpush1.bf16.msra.mxu0 %v4509
  %4751 = vmatprep.subr.bf16.mxu0 0
  %4752 = vmatpush1.bf16.msra.mxu0 %v4510
  %4753 = vmatprep.subr.bf16.mxu0 0
  %4754 = vmatpush1.bf16.msra.mxu0 %v4511
  %4755 = vmatprep.subr.bf16.mxu0 0
  %4756 = vmatpush1.bf16.msra.mxu0 %v4512
  %4757 = vmatprep.subr.bf16.mxu0 0
  %4758 = vmatpush1.bf16.msra.mxu0 %v4513
  %4759 = vmatprep.subr.bf16.mxu0 0
  %4760 = vmatpush1.bf16.msra.mxu0 %v4514
  %4761 = vmatprep.subr.bf16.mxu0 0
  %4762 = vmatpush1.bf16.msra.mxu0 %v4515
  %4763 = vmatprep.subr.bf16.mxu0 0
  %4764 = vmatpush1.bf16.msra.mxu0 %v4516
  %4765 = vmatprep.subr.bf16.mxu0 0
  %4766 = vmatpush1.bf16.msra.mxu0 %v4517
  %4767 = vmatprep.subr.bf16.mxu0 0
  %4768 = vmatpush1.bf16.msra.mxu0 %v4518
  %4769 = vmatprep.subr.bf16.mxu0 0
  %4770 = vmatpush1.bf16.msra.mxu0 %v4519
  %4771 = vmatprep.subr.bf16.mxu0 0
  %4772 = vmatpush1.bf16.msra.mxu0 %v4520
  %4773 = vmatprep.subr.bf16.mxu0 0
  %4774 = vmatpush1.bf16.msra.mxu0 %v4521
  %4775 = vmatprep.subr.bf16.mxu0 0
  %4776 = vmatpush1.bf16.msra.mxu0 %v4522
  %4777 = vmatprep.mubr.bf16.mxu0 %v4634
  %4778 = vmatmul.mubr.bf16.gmra.mrb[0].mxu0 %v4633
  %v4779 = vpop.f32.mrb[0].mxu0
  %v4780 = vadd.f32 %v4715, %v4779
  %v4781 = vpop.f32.mrb[0].mxu0
  %v4782 = vpop.f32.mrb[0].mxu0
  %v4783 = vadd.f32 %v4718, %v4782
  %v4784 = vpop.f32.mrb[0].mxu0
  %4785 = vmatprep.mubr.bf16.mxu0 %v4639
  %4786 = vmatmul.mubr.bf16.gmra.mrb[0].mxu0 %v4638
  %v4787 = vpop.f32.mrb[0].mxu0
  %v4788 = vadd.f32 %v4723, %v4787
  %v4789 = vpop.f32.mrb[0].mxu0
  %v4790 = vpop.f32.mrb[0].mxu0
  %v4791 = vadd.f32 %v4726, %v4790
  %v4792 = vpop.f32.mrb[0].mxu0
  %4793 = vmatprep.mubr.bf16.mxu0 %v4644
  %4794 = vmatmul.mubr.bf16.gmra.mrb[0].mxu0 %v4643
  %v4795 = vpop.f32.mrb[0].mxu0
  %v4796 = vadd.f32 %v4731, %v4795
  %v4797 = vpop.f32.mrb[0].mxu0
  %v4798 = vpop.f32.mrb[0].mxu0
  %v4799 = vadd.f32 %v4734, %v4798
  %v4800 = vpop.f32.mrb[0].mxu0
  %4801 = vmatprep.mubr.bf16.mxu0 %v4649
  %4802 = vmatmul.mubr.bf16.gmra.mrb[0].mxu0 %v4648
  %v4803 = vpop.f32.mrb[0].mxu0
  %v4804 = vadd.f32 %v4739, %v4803
  %v4805 = vpop.f32.mrb[0].mxu0
  %v4806 = vpop.f32.mrb[0].mxu0
  %v4807 = vadd.f32 %v4742, %v4806
  %v4808 = vpop.f32.mrb[0].mxu0
  %4809 = vdwg.mxu0
  %4810 = vmatprep.subr.bf16.mxu0 0
  %4811 = vmatpush1.bf16.msra.mxu0 %v4523
  %4812 = vmatprep.subr.bf16.mxu0 0
  %4813 = vmatpush1.bf16.msra.mxu0 %v4524
  %4814 = vmatprep.subr.bf16.mxu0 0
  %4815 = vmatpush1.bf16.msra.mxu0 %v4525
  %4816 = vmatprep.subr.bf16.mxu0 0
  %4817 = vmatpush1.bf16.msra.mxu0 %v4526
  %4818 = vmatprep.subr.bf16.mxu0 0
  %4819 = vmatpush1.bf16.msra.mxu0 0
  %4820 = vmatprep.subr.bf16.mxu0 0
  %4821 = vmatpush1.bf16.msra.mxu0 0
  %4822 = vmatprep.subr.bf16.mxu0 0
  %4823 = vmatpush1.bf16.msra.mxu0 0
  %4824 = vmatprep.subr.bf16.mxu0 0
  %4825 = vmatpush1.bf16.msra.mxu0 0
  %4826 = vmatprep.subr.bf16.mxu0 0
  %4827 = vmatpush1.bf16.msra.mxu0 0
  %4828 = vmatprep.subr.bf16.mxu0 0
  %4829 = vmatpush1.bf16.msra.mxu0 0
  %4830 = vmatprep.subr.bf16.mxu0 0
  %4831 = vmatpush1.bf16.msra.mxu0 0
  %4832 = vmatprep.subr.bf16.mxu0 0
  %4833 = vmatpush1.bf16.msra.mxu0 0
  %4834 = vmatprep.subr.bf16.mxu0 0
  %4835 = vmatpush1.bf16.msra.mxu0 0
  %4836 = vmatprep.subr.bf16.mxu0 0
  %4837 = vmatpush1.bf16.msra.mxu0 0
  %4838 = vmatprep.subr.bf16.mxu0 0
  %4839 = vmatpush1.bf16.msra.mxu0 0
  %4840 = vmatprep.subr.bf16.mxu0 0
  %4841 = vmatpush1.bf16.msra.mxu0 0
  %4842 = vmatprep.mubr.bf16.mxu0 0
  %4843 = vmatmul.mubr.bf16.gmra.mrb[0].mxu0 %v4669
  %v4844 = vpop.f32.mrb[0].mxu0
  %v4845 = vadd.f32 %v4780, %v4844
  %v4846 = vpop.f32.mrb[0].mxu0
  %v4847 = vpop.f32.mrb[0].mxu0
  %v4848 = vadd.f32 %v4783, %v4847
  %v4849 = vpop.f32.mrb[0].mxu0
  %4850 = vmatprep.mubr.bf16.mxu0 0
  %4851 = vmatmul.mubr.bf16.gmra.mrb[0].mxu0 %v4672
  %v4852 = vpop.f32.mrb[0].mxu0
  %v4853 = vadd.f32 %v4788, %v4852
  %v4854 = vpop.f32.mrb[0].mxu0
  %v4855 = vpop.f32.mrb[0].mxu0
  %v4856 = vadd.f32 %v4791, %v4855
  %v4857 = vpop.f32.mrb[0].mxu0
  %4858 = vmatprep.mubr.bf16.mxu0 0
  %4859 = vmatmul.mubr.bf16.gmra.mrb[0].mxu0 %v4675
  %v4860 = vpop.f32.mrb[0].mxu0
  %v4861 = vadd.f32 %v4796, %v4860
  %v4862 = vpop.f32.mrb[0].mxu0
  %v4863 = vpop.f32.mrb[0].mxu0
  %v4864 = vadd.f32 %v4799, %v4863
  %v4865 = vpop.f32.mrb[0].mxu0
  %4866 = vmatprep.mubr.bf16.mxu0 0
  %4867 = vmatmul.mubr.bf16.gmra.mrb[0].mxu0 %v4678
  %v4868 = vpop.f32.mrb[0].mxu0
  %v4869 = vadd.f32 %v4804, %v4868
  %v4870 = vpop.f32.mrb[0].mxu0
  %v4871 = vpop.f32.mrb[0].mxu0
  %v4872 = vadd.f32 %v4807, %v4871
  %v4873 = vpop.f32.mrb[0].mxu0
  %4874 = vdwg.mxu0
  %v4875 = vmax.f32 %v4845, 0.0
  %v4876 = vmax.f32 %v4848, 0.0
  %v4877 = vmax.f32 %v4853, 0.0
  %v4878 = vmax.f32 %v4856, 0.0
  %v4879 = vmax.f32 %v4861, 0.0
  %v4880 = vmax.f32 %v4864, 0.0
  %v4881 = vmax.f32 %v4869, 0.0
  %v4882 = vmax.f32 %v4872, 0.0
  %v4883 = vld [vmem:[%s4] sm:$0xf]
  %v4884 = vld [vmem:[%s4 + $0x4] sm:$0xf]
  %v4885 = vld [vmem:[%s4 + $0x8] sm:$0xf]
  %v4886 = vld [vmem:[%s4 + $0xc] sm:$0xf]
  %v4887 = vpack.c.bf16 %v4876, %v4875
  %v4888 = vpack.c.bf16 %v4878, %v4877
  %v4889 = vpack.c.bf16 %v4880, %v4879
  %v4890 = vpack.c.bf16 %v4882, %v4881
  %4892 = vset.pattern.permute.xlu0 0
  %4893 = vperm.xlu0 %4892, %v1049
  %v4894 = vpop.permute.xlu0 %4893
  %4897 = vset.pattern.permute.xlu0 0
  %4898 = vperm.xlu0 %4897, %v1050
  %v4899 = vpop.permute.xlu0 %4898
  %4902 = vset.pattern.permute.xlu0 0
  %4903 = vperm.xlu0 %4902, %v1051
  %v4904 = vpop.permute.xlu0 %4903
  %4907 = vset.pattern.permute.xlu0 0
  %4908 = vperm.xlu0 %4907, %v1052
  %v4909 = vpop.permute.xlu0 %4908
  %v4915 = vunpack.c.l.b16 %v4883
  %v4916 = vunpack.c.l.b16 %v4884
  %v4917 = vunpack.c.l.b16 %v4885
  %v4918 = vunpack.c.l.b16 %v4886
  %v4919 = vpack.c.b16 %v4916, %v4915
  %v4920 = vpack.c.b16 %v4918, %v4917
  %v4922 = vsel %vm4667, %v4919, 0
  %v4925 = vsel %vm4667, %v4920, 0
  %4927 = vmatprep.subr.bf16.mxu0 0
  %4928 = vmatpush1.bf16.msra.mxu0 %v4887
  %4929 = vmatprep.subr.bf16.mxu0 0
  %4930 = vmatpush1.bf16.msra.mxu0 %v4888
  %4931 = vmatprep.subr.bf16.mxu0 0
  %4932 = vmatpush1.bf16.msra.mxu0 %v4889
  %4933 = vmatprep.subr.bf16.mxu0 0
  %4934 = vmatpush1.bf16.msra.mxu0 %v4890
  %4935 = vmatprep.subr.bf16.mxu0 0
  %4936 = vmatpush1.bf16.msra.mxu0 0
  %4937 = vmatprep.subr.bf16.mxu0 0
  %4938 = vmatpush1.bf16.msra.mxu0 0
  %4939 = vmatprep.subr.bf16.mxu0 0
  %4940 = vmatpush1.bf16.msra.mxu0 0
  %4941 = vmatprep.subr.bf16.mxu0 0
  %4942 = vmatpush1.bf16.msra.mxu0 0
  %4943 = vmatprep.subr.bf16.mxu0 0
  %4944 = vmatpush1.bf16.msra.mxu0 0
  %4945 = vmatprep.subr.bf16.mxu0 0
  %4946 = vmatpush1.bf16.msra.mxu0 0
  %4947 = vmatprep.subr.bf16.mxu0 0
  %4948 = vmatpush1.bf16.msra.mxu0 0
  %4949 = vmatprep.subr.bf16.mxu0 0
  %4950 = vmatpush1.bf16.msra.mxu0 0
  %4951 = vmatprep.subr.bf16.mxu0 0
  %4952 = vmatpush1.bf16.msra.mxu0 0
  %4953 = vmatprep.subr.bf16.mxu0 0
  %4954 = vmatpush1.bf16.msra.mxu0 0
  %4955 = vmatprep.subr.bf16.mxu0 0
  %4956 = vmatpush1.bf16.msra.mxu0 0
  %4957 = vmatprep.subr.bf16.mxu0 0
  %4958 = vmatpush1.bf16.msra.mxu0 0
  %4959 = vmatprep.mubr.bf16.mxu0 0
  %4960 = vmatmul.mubr.bf16.gmra.mrb[0].mxu0 %v4922
  %v4961 = vpop.f32.mrb[0].mxu0
  %v4962 = vadd.f32 %v4894, %v4961
  %v4963 = vpop.f32.mrb[0].mxu0
  %v4964 = vpop.f32.mrb[0].mxu0
  %v4965 = vadd.f32 %v4899, %v4964
  %v4966 = vpop.f32.mrb[0].mxu0
  %4967 = vmatprep.mubr.bf16.mxu0 0
  %4968 = vmatmul.mubr.bf16.gmra.mrb[0].mxu0 %v4925
  %v4969 = vpop.f32.mrb[0].mxu0
  %v4970 = vadd.f32 %v4904, %v4969
  %v4971 = vpop.f32.mrb[0].mxu0
  %v4972 = vpop.f32.mrb[0].mxu0
  %v4973 = vadd.f32 %v4909, %v4972
  %v4974 = vpop.f32.mrb[0].mxu0
  %4975 = vdwg.mxu0
  %v4976 = vmax.f32 %v4962, 0.0
  %v4977 = vmax.f32 %v4965, 0.0
  %v4978 = vmax.f32 %v4970, 0.0
  %v4979 = vmax.f32 %v4973, 0.0
  %4980 = vst [vmem:[%s6] sm:$0xff] %v4976
  %4981 = vst [vmem:[%s6 + $0x8] sm:$0xff] %v4977
  %4982 = vst [vmem:[%s6 + $0x10] sm:$0xff] %v4978
  %4983 = vst [vmem:[%s6 + $0x18] sm:$0xff] %v4979
  %v4984 = vld [vmem:[%s5 + $0x2a0] sm:$0xff]
  %v4985 = vld [vmem:[%s5 + $0x2a8] sm:$0xff]
  %v4986 = vld [vmem:[%s5 + $0x2b0] sm:$0xff]
  %v4987 = vld [vmem:[%s5 + $0x2b8] sm:$0xff]
  %v4988 = vld [vmem:[%s5 + $0x2c0] sm:$0xff]
  %v4989 = vld [vmem:[%s5 + $0x2c8] sm:$0xff]
  %v4990 = vld [vmem:[%s5 + $0x2d0] sm:$0xff]
  %v4991 = vld [vmem:[%s5 + $0x2d8] sm:$0xff]
  %v4992 = vld [vmem:[%s5 + $0x2e0] sm:$0xff]
  %v4993 = vld [vmem:[%s5 + $0x2e8] sm:$0xff]
  %v4994 = vld [vmem:[%s5 + $0x2f0] sm:$0xff]
  %v4995 = vld [vmem:[%s5 + $0x2f8] sm:$0xff]
  %v4996 = vld [vmem:[%s5 + $0x300] sm:$0xff]
  %v4997 = vld [vmem:[%s5 + $0x308] sm:$0xff]
  %v4998 = vld [vmem:[%s5 + $0x310] sm:$0xff]
  %v4999 = vld [vmem:[%s5 + $0x318] sm:$0xff]
  %v5000 = vld [vmem:[%s5 + $0x320] sm:$0xff]
  %v5001 = vld [vmem:[%s5 + $0x328] sm:$0xff]
  %v5002 = vld [vmem:[%s5 + $0x330] sm:$0xff]
  %v5003 = vld [vmem:[%s5 + $0x338] sm:$0xff]
  %v5004 = vld [vmem:[%s5 + $0x340] sm:$0xff]
  %v5005 = vld [vmem:[%s5 + $0x348] sm:$0xff]
  %v5006 = vld [vmem:[%s5 + $0x350] sm:$0xff]
  %v5007 = vld [vmem:[%s5 + $0x358] sm:$0xff]
  %v5008 = vld [vmem:[%s5 + $0x360] sm:$0xff]
  %v5009 = vld [vmem:[%s5 + $0x368] sm:$0xff]
  %v5010 = vld [vmem:[%s5 + $0x370] sm:$0xff]
  %v5011 = vld [vmem:[%s5 + $0x378] sm:$0xff]
  %v5012 = vld [vmem:[%s5 + $0x380] sm:$0xff]
  %v5013 = vld [vmem:[%s5 + $0x388] sm:$0xff]
  %v5014 = vld [vmem:[%s5 + $0x390] sm:$0xff]
  %v5015 = vld [vmem:[%s5 + $0x398] sm:$0xff]
  %v5016 = vld [vmem:[%s5 + $0x3a0] sm:$0xff]
  %v5017 = vld [vmem:[%s5 + $0x3a8] sm:$0xff]
  %v5018 = vld [vmem:[%s5 + $0x3b0] sm:$0xff]
  %v5019 = vld [vmem:[%s5 + $0x3b8] sm:$0xff]
  %v5020 = vld [vmem:[%s5 + $0x3c0] sm:$0xff]
  %v5021 = vld [vmem:[%s5 + $0x3c8] sm:$0xff]
  %v5022 = vld [vmem:[%s5 + $0x3d0] sm:$0xff]
  %v5023 = vld [vmem:[%s5 + $0x3d8] sm:$0xff]
  %v5024 = vld [vmem:[%s5 + $0x3e0] sm:$0xff]
  %v5025 = vld [vmem:[%s5 + $0x3e8] sm:$0xff]
  %v5026 = vld [vmem:[%s5 + $0x3f0] sm:$0xff]
  %v5027 = vld [vmem:[%s5 + $0x3f8] sm:$0xff]
  %v5028 = vld [vmem:[%s5 + $0x400] sm:$0xff]
  %v5029 = vld [vmem:[%s5 + $0x408] sm:$0xff]
  %v5030 = vld [vmem:[%s5 + $0x410] sm:$0xff]
  %v5031 = vld [vmem:[%s5 + $0x418] sm:$0xff]
  %v5032 = vld [vmem:[%s5 + $0x420] sm:$0xff]
  %v5033 = vld [vmem:[%s5 + $0x428] sm:$0xff]
  %v5034 = vld [vmem:[%s5 + $0x430] sm:$0xff]
  %v5035 = vld [vmem:[%s5 + $0x438] sm:$0xff]
  %v5036 = vld [vmem:[%s5 + $0x440] sm:$0xff]
  %v5037 = vld [vmem:[%s5 + $0x448] sm:$0xff]
  %v5038 = vld [vmem:[%s5 + $0x450] sm:$0xff]
  %v5039 = vld [vmem:[%s5 + $0x458] sm:$0xff]
  %v5040 = vld [vmem:[%s5 + $0x460] sm:$0xff]
  %v5041 = vld [vmem:[%s5 + $0x468] sm:$0xff]
  %v5042 = vld [vmem:[%s5 + $0x470] sm:$0xff]
  %v5043 = vld [vmem:[%s5 + $0x478] sm:$0xff]
  %v5044 = vld [vmem:[%s5 + $0x480] sm:$0xff]
  %v5045 = vld [vmem:[%s5 + $0x488] sm:$0xff]
  %v5046 = vld [vmem:[%s5 + $0x490] sm:$0xff]
  %v5047 = vld [vmem:[%s5 + $0x498] sm:$0xff]
  %v5048 = vld [vmem:[%s5 + $0x4a0] sm:$0xff]
  %v5049 = vld [vmem:[%s5 + $0x4a8] sm:$0xff]
  %v5050 = vld [vmem:[%s5 + $0x4b0] sm:$0xff]
  %v5051 = vld [vmem:[%s5 + $0x4b8] sm:$0xff]
  %v5052 = vld [vmem:[%s5 + $0x4c0] sm:$0xff]
  %v5053 = vld [vmem:[%s5 + $0x4c8] sm:$0xff]
  %v5054 = vld [vmem:[%s5 + $0x4d0] sm:$0xff]
  %v5055 = vld [vmem:[%s5 + $0x4d8] sm:$0xff]
  %v5056 = vld [vmem:[%s5 + $0x4e0] sm:$0xff]
  %v5057 = vld [vmem:[%s5 + $0x4e8] sm:$0xff]
  %v5058 = vld [vmem:[%s5 + $0x4f0] sm:$0xff]
  %v5059 = vld [vmem:[%s5 + $0x4f8] sm:$0xff]
  %v5060 = vld [vmem:[%s5 + $0x500] sm:$0xff]
  %v5061 = vld [vmem:[%s5 + $0x508] sm:$0xff]
  %v5062 = vld [vmem:[%s5 + $0x510] sm:$0xff]
  %v5063 = vld [vmem:[%s5 + $0x518] sm:$0xff]
  %v5064 = vld [vmem:[%s5 + $0x520] sm:$0xff]
  %v5065 = vld [vmem:[%s5 + $0x528] sm:$0xff]
  %v5066 = vld [vmem:[%s5 + $0x530] sm:$0xff]
  %v5067 = vld [vmem:[%s5 + $0x538] sm:$0xff]
  %v5068 = vpack.c.bf16 %v877, %v869
  %v5069 = vpack.c.bf16 %v893, %v885
  %v5070 = vpack.c.bf16 %v909, %v901
  %v5071 = vpack.c.bf16 %v925, %v917
  %v5072 = vpack.c.bf16 %v941, %v933
  %v5073 = vpack.c.bf16 %v957, %v949
  %v5074 = vpack.c.bf16 %v965, %v965
  %v5075 = vld [vmem:[%s2 + $0x480] sm:$0xf]
  %v5076 = vld [vmem:[%s2 + $0x484] sm:$0xf]
  %v5077 = vld [vmem:[%s2 + $0x488] sm:$0xf]
  %v5078 = vld [vmem:[%s2 + $0x48c] sm:$0xf]
  %v5079 = vld [vmem:[%s2 + $0x490] sm:$0xf]
  %v5080 = vld [vmem:[%s2 + $0x494] sm:$0xf]
  %v5081 = vld [vmem:[%s2 + $0x498] sm:$0xf]
  %v5082 = vld [vmem:[%s2 + $0x49c] sm:$0xf]
  %v5083 = vld [vmem:[%s2 + $0x4a0] sm:$0xf]
  %v5084 = vld [vmem:[%s2 + $0x4a4] sm:$0xf]
  %v5085 = vld [vmem:[%s2 + $0x4a8] sm:$0xf]
  %v5086 = vld [vmem:[%s2 + $0x4ac] sm:$0xf]
  %v5087 = vld [vmem:[%s2 + $0x4b0] sm:$0xf]
  %v5088 = vld [vmem:[%s2 + $0x4b4] sm:$0xf]
  %v5089 = vld [vmem:[%s2 + $0x4b8] sm:$0xf]
  %v5090 = vld [vmem:[%s2 + $0x4bc] sm:$0xf]
  %v5091 = vld [vmem:[%s2 + $0x4c0] sm:$0xf]
  %v5092 = vld [vmem:[%s2 + $0x4c4] sm:$0xf]
  %v5093 = vld [vmem:[%s2 + $0x4c8] sm:$0xf]
  %v5094 = vld [vmem:[%s2 + $0x4cc] sm:$0xf]
  %v5095 = vld [vmem:[%s2 + $0x4d0] sm:$0xf]
  %v5096 = vld [vmem:[%s2 + $0x4d4] sm:$0xf]
  %v5097 = vld [vmem:[%s2 + $0x4d8] sm:$0xf]
  %v5098 = vld [vmem:[%s2 + $0x4dc] sm:$0xf]
  %v5099 = vld [vmem:[%s2 + $0x4e0] sm:$0xf]
  %v5100 = vld [vmem:[%s2 + $0x4e4] sm:$0xf]
  %v5101 = vld [vmem:[%s2 + $0x4e8] sm:$0xf]
  %v5102 = vld [vmem:[%s2 + $0x4ec] sm:$0xf]
  %v5103 = vld [vmem:[%s2 + $0x4f0] sm:$0xf]
  %v5104 = vld [vmem:[%s2 + $0x4f4] sm:$0xf]
  %v5105 = vld [vmem:[%s2 + $0x4f8] sm:$0xf]
  %v5106 = vld [vmem:[%s2 + $0x4fc] sm:$0xf]
  %v5107 = vld [vmem:[%s2 + $0x500] sm:$0xf]
  %v5108 = vld [vmem:[%s2 + $0x504] sm:$0xf]
  %v5109 = vld [vmem:[%s2 + $0x508] sm:$0xf]
  %v5110 = vld [vmem:[%s2 + $0x50c] sm:$0xf]
  %v5111 = vld [vmem:[%s2 + $0x510] sm:$0xf]
  %v5112 = vld [vmem:[%s2 + $0x514] sm:$0xf]
  %v5113 = vld [vmem:[%s2 + $0x518] sm:$0xf]
  %v5114 = vld [vmem:[%s2 + $0x51c] sm:$0xf]
  %v5115 = vld [vmem:[%s2 + $0x520] sm:$0xf]
  %v5116 = vld [vmem:[%s2 + $0x524] sm:$0xf]
  %v5117 = vld [vmem:[%s2 + $0x528] sm:$0xf]
  %v5118 = vld [vmem:[%s2 + $0x52c] sm:$0xf]
  %v5119 = vld [vmem:[%s2 + $0x530] sm:$0xf]
  %v5120 = vld [vmem:[%s2 + $0x534] sm:$0xf]
  %v5121 = vld [vmem:[%s2 + $0x538] sm:$0xf]
  %v5122 = vld [vmem:[%s2 + $0x53c] sm:$0xf]
  %v5123 = vld [vmem:[%s2 + $0x540] sm:$0xf]
  %v5124 = vld [vmem:[%s2 + $0x544] sm:$0xf]
  %v5125 = vld [vmem:[%s2 + $0x548] sm:$0xf]
  %v5126 = vld [vmem:[%s2 + $0x54c] sm:$0xf]
  %v5127 = vld [vmem:[%s2 + $0x550] sm:$0xf]
  %v5128 = vld [vmem:[%s2 + $0x554] sm:$0xf]
  %v5129 = vld [vmem:[%s2 + $0x558] sm:$0xf]
  %v5130 = vld [vmem:[%s2 + $0x55c] sm:$0xf]
  %v5131 = vld [vmem:[%s2 + $0x560] sm:$0xf]
  %v5132 = vld [vmem:[%s2 + $0x564] sm:$0xf]
  %v5133 = vld [vmem:[%s2 + $0x568] sm:$0xf]
  %v5134 = vld [vmem:[%s2 + $0x56c] sm:$0xf]
  %v5135 = vld [vmem:[%s2 + $0x570] sm:$0xf]
  %v5136 = vld [vmem:[%s2 + $0x574] sm:$0xf]
  %v5137 = vld [vmem:[%s2 + $0x578] sm:$0xf]
  %v5138 = vld [vmem:[%s2 + $0x57c] sm:$0xf]
  %v5139 = vld [vmem:[%s2 + $0x580] sm:$0xf]
  %v5140 = vld [vmem:[%s2 + $0x584] sm:$0xf]
  %v5141 = vld [vmem:[%s2 + $0x588] sm:$0xf]
  %v5142 = vld [vmem:[%s2 + $0x58c] sm:$0xf]
  %v5143 = vld [vmem:[%s2 + $0x590] sm:$0xf]
  %v5144 = vld [vmem:[%s2 + $0x594] sm:$0xf]
  %v5145 = vld [vmem:[%s2 + $0x598] sm:$0xf]
  %v5146 = vld [vmem:[%s2 + $0x59c] sm:$0xf]
  %v5147 = vpack.c.bf16 %v878, %v870
  %v5148 = vpack.c.bf16 %v894, %v886
  %v5149 = vpack.c.bf16 %v910, %v902
  %v5150 = vpack.c.bf16 %v926, %v918
  %v5151 = vpack.c.bf16 %v942, %v934
  %v5152 = vpack.c.bf16 %v958, %v950
  %v5153 = vpack.c.bf16 %v966, %v966
  %v5154 = vld [vmem:[%s2 + $0x5a0] sm:$0xf]
  %v5155 = vld [vmem:[%s2 + $0x5a4] sm:$0xf]
  %v5156 = vld [vmem:[%s2 + $0x5a8] sm:$0xf]
  %v5157 = vld [vmem:[%s2 + $0x5ac] sm:$0xf]
  %v5158 = vld [vmem:[%s2 + $0x5b0] sm:$0xf]
  %v5159 = vld [vmem:[%s2 + $0x5b4] sm:$0xf]
  %v5160 = vld [vmem:[%s2 + $0x5b8] sm:$0xf]
  %v5161 = vld [vmem:[%s2 + $0x5bc] sm:$0xf]
  %v5162 = vld [vmem:[%s2 + $0x5c0] sm:$0xf]
  %v5163 = vld [vmem:[%s2 + $0x5c4] sm:$0xf]
  %v5164 = vld [vmem:[%s2 + $0x5c8] sm:$0xf]
  %v5165 = vld [vmem:[%s2 + $0x5cc] sm:$0xf]
  %v5166 = vld [vmem:[%s2 + $0x5d0] sm:$0xf]
  %v5167 = vld [vmem:[%s2 + $0x5d4] sm:$0xf]
  %v5168 = vld [vmem:[%s2 + $0x5d8] sm:$0xf]
  %v5169 = vld [vmem:[%s2 + $0x5dc] sm:$0xf]
  %v5170 = vld [vmem:[%s2 + $0x5e0] sm:$0xf]
  %v5171 = vld [vmem:[%s2 + $0x5e4] sm:$0xf]
  %v5172 = vld [vmem:[%s2 + $0x5e8] sm:$0xf]
  %v5173 = vld [vmem:[%s2 + $0x5ec] sm:$0xf]
  %v5174 = vld [vmem:[%s2 + $0x5f0] sm:$0xf]
  %v5175 = vld [vmem:[%s2 + $0x5f4] sm:$0xf]
  %v5176 = vld [vmem:[%s2 + $0x5f8] sm:$0xf]
  %v5177 = vld [vmem:[%s2 + $0x5fc] sm:$0xf]
  %v5178 = vld [vmem:[%s2 + $0x600] sm:$0xf]
  %v5179 = vld [vmem:[%s2 + $0x604] sm:$0xf]
  %v5180 = vld [vmem:[%s2 + $0x608] sm:$0xf]
  %v5181 = vld [vmem:[%s2 + $0x60c] sm:$0xf]
  %v5182 = vld [vmem:[%s2 + $0x610] sm:$0xf]
  %v5183 = vld [vmem:[%s2 + $0x614] sm:$0xf]
  %v5184 = vld [vmem:[%s2 + $0x618] sm:$0xf]
  %v5185 = vld [vmem:[%s2 + $0x61c] sm:$0xf]
  %v5186 = vld [vmem:[%s2 + $0x620] sm:$0xf]
  %v5187 = vld [vmem:[%s2 + $0x624] sm:$0xf]
  %v5188 = vld [vmem:[%s2 + $0x628] sm:$0xf]
  %v5189 = vld [vmem:[%s2 + $0x62c] sm:$0xf]
  %v5190 = vld [vmem:[%s2 + $0x630] sm:$0xf]
  %v5191 = vld [vmem:[%s2 + $0x634] sm:$0xf]
  %v5192 = vld [vmem:[%s2 + $0x638] sm:$0xf]
  %v5193 = vld [vmem:[%s2 + $0x63c] sm:$0xf]
  %v5194 = vld [vmem:[%s2 + $0x640] sm:$0xf]
  %v5195 = vld [vmem:[%s2 + $0x644] sm:$0xf]
  %v5196 = vld [vmem:[%s2 + $0x648] sm:$0xf]
  %v5197 = vld [vmem:[%s2 + $0x64c] sm:$0xf]
  %v5198 = vld [vmem:[%s2 + $0x650] sm:$0xf]
  %v5199 = vld [vmem:[%s2 + $0x654] sm:$0xf]
  %v5200 = vld [vmem:[%s2 + $0x658] sm:$0xf]
  %v5201 = vld [vmem:[%s2 + $0x65c] sm:$0xf]
  %v5202 = vld [vmem:[%s2 + $0x660] sm:$0xf]
  %v5203 = vld [vmem:[%s2 + $0x664] sm:$0xf]
  %v5204 = vld [vmem:[%s2 + $0x668] sm:$0xf]
  %v5205 = vld [vmem:[%s2 + $0x66c] sm:$0xf]
  %v5206 = vld [vmem:[%s2 + $0x670] sm:$0xf]
  %v5207 = vld [vmem:[%s2 + $0x674] sm:$0xf]
  %v5208 = vld [vmem:[%s2 + $0x678] sm:$0xf]
  %v5209 = vld [vmem:[%s2 + $0x67c] sm:$0xf]
  %v5210 = vld [vmem:[%s2 + $0x680] sm:$0xf]
  %v5211 = vld [vmem:[%s2 + $0x684] sm:$0xf]
  %v5212 = vld [vmem:[%s2 + $0x688] sm:$0xf]
  %v5213 = vld [vmem:[%s2 + $0x68c] sm:$0xf]
  %v5214 = vld [vmem:[%s2 + $0x690] sm:$0xf]
  %v5215 = vld [vmem:[%s2 + $0x694] sm:$0xf]
  %v5216 = vld [vmem:[%s2 + $0x698] sm:$0xf]
  %v5217 = vld [vmem:[%s2 + $0x69c] sm:$0xf]
  %v5218 = vld [vmem:[%s2 + $0x6a0] sm:$0xf]
  %v5219 = vld [vmem:[%s2 + $0x6a4] sm:$0xf]
  %v5220 = vld [vmem:[%s2 + $0x6a8] sm:$0xf]
  %v5221 = vld [vmem:[%s2 + $0x6ac] sm:$0xf]
  %v5222 = vld [vmem:[%s2 + $0x6b0] sm:$0xf]
  %v5223 = vld [vmem:[%s2 + $0x6b4] sm:$0xf]
  %v5224 = vld [vmem:[%s2 + $0x6b8] sm:$0xf]
  %v5225 = vld [vmem:[%s2 + $0x6bc] sm:$0xf]
  %v5298 = vunpack.c.l.b16 %v5154
  %v5299 = vunpack.c.l.b16 %v5155
  %v5300 = vunpack.c.l.b16 %v5156
  %v5301 = vunpack.c.l.b16 %v5157
  %v5302 = vunpack.c.l.b16 %v5158
  %v5303 = vunpack.c.l.b16 %v5159
  %v5304 = vunpack.c.l.b16 %v5160
  %v5305 = vunpack.c.l.b16 %v5161
  %v5306 = vunpack.c.l.b16 %v5162
  %v5307 = vunpack.c.l.b16 %v5163
  %v5308 = vunpack.c.l.b16 %v5164
  %v5309 = vunpack.c.l.b16 %v5165
  %v5310 = vunpack.c.l.b16 %v5166
  %v5311 = vunpack.c.l.b16 %v5167
  %v5312 = vunpack.c.l.b16 %v5168
  %v5313 = vunpack.c.l.b16 %v5169
  %v5314 = vunpack.c.l.b16 %v5170
  %v5315 = vunpack.c.l.b16 %v5171
  %v5316 = vunpack.c.l.b16 %v5172
  %v5317 = vunpack.c.l.b16 %v5173
  %v5318 = vunpack.c.l.b16 %v5174
  %v5319 = vunpack.c.l.b16 %v5175
  %v5320 = vunpack.c.l.b16 %v5176
  %v5321 = vunpack.c.l.b16 %v5177
  %v5322 = vunpack.c.l.b16 %v5178
  %v5323 = vunpack.c.l.b16 %v5179
  %v5324 = vunpack.c.l.b16 %v5180
  %v5325 = vunpack.c.l.b16 %v5181
  %v5326 = vunpack.c.l.b16 %v5182
  %v5327 = vunpack.c.l.b16 %v5183
  %v5328 = vunpack.c.l.b16 %v5184
  %v5329 = vunpack.c.l.b16 %v5185
  %v5330 = vunpack.c.l.b16 %v5186
  %v5331 = vunpack.c.l.b16 %v5187
  %v5332 = vunpack.c.l.b16 %v5188
  %v5333 = vunpack.c.l.b16 %v5189
  %v5334 = vunpack.c.l.b16 %v5190
  %v5335 = vunpack.c.l.b16 %v5191
  %v5336 = vunpack.c.l.b16 %v5192
  %v5337 = vunpack.c.l.b16 %v5193
  %v5338 = vunpack.c.l.b16 %v5194
  %v5339 = vunpack.c.l.b16 %v5195
  %v5340 = vunpack.c.l.b16 %v5196
  %v5341 = vunpack.c.l.b16 %v5197
  %v5342 = vunpack.c.l.b16 %v5198
  %v5343 = vunpack.c.l.b16 %v5199
  %v5344 = vunpack.c.l.b16 %v5200
  %v5345 = vunpack.c.l.b16 %v5201
  %v5346 = vunpack.c.l.b16 %v5202
  %v5347 = vunpack.c.l.b16 %v5203
  %v5348 = vunpack.c.l.b16 %v5204
  %v5349 = vunpack.c.l.b16 %v5205
  %v5350 = vunpack.c.l.b16 %v5206
  %v5351 = vunpack.c.l.b16 %v5207
  %v5352 = vunpack.c.l.b16 %v5208
  %v5353 = vunpack.c.l.b16 %v5209
  %v5354 = vunpack.c.l.b16 %v5210
  %v5355 = vunpack.c.l.b16 %v5211
  %v5356 = vunpack.c.l.b16 %v5212
  %v5357 = vunpack.c.l.b16 %v5213
  %v5358 = vunpack.c.l.b16 %v5214
  %v5359 = vunpack.c.l.b16 %v5215
  %v5360 = vunpack.c.l.b16 %v5216
  %v5361 = vunpack.c.l.b16 %v5217
  %v5362 = vunpack.c.l.b16 %v5218
  %v5363 = vunpack.c.l.b16 %v5219
  %v5364 = vunpack.c.l.b16 %v5220
  %v5365 = vunpack.c.l.b16 %v5221
  %v5366 = vunpack.c.l.b16 %v5222
  %v5367 = vunpack.c.l.b16 %v5223
  %v5368 = vunpack.c.l.b16 %v5224
  %v5369 = vunpack.c.l.b16 %v5225
  %v5370 = vpack.c.b16 %v5299, %v5298
  %v5371 = vpack.c.b16 %v5301, %v5300
  %v5372 = vpack.c.b16 %v5303, %v5302
  %v5373 = vpack.c.b16 %v5305, %v5304
  %v5374 = vpack.c.b16 %v5307, %v5306
  %v5375 = vpack.c.b16 %v5309, %v5308
  %v5376 = vpack.c.b16 %v5311, %v5310
  %v5377 = vpack.c.b16 %v5313, %v5312
  %v5378 = vpack.c.b16 %v5315, %v5314
  %v5379 = vpack.c.b16 %v5317, %v5316
  %v5380 = vpack.c.b16 %v5319, %v5318
  %v5381 = vpack.c.b16 %v5321, %v5320
  %v5382 = vpack.c.b16 %v5323, %v5322
  %v5383 = vpack.c.b16 %v5325, %v5324
  %v5384 = vpack.c.b16 %v5327, %v5326
  %v5385 = vpack.c.b16 %v5329, %v5328
  %v5386 = vpack.c.b16 %v5331, %v5330
  %v5387 = vpack.c.b16 %v5333, %v5332
  %v5388 = vpack.c.b16 %v5335, %v5334
  %v5389 = vpack.c.b16 %v5337, %v5336
  %v5390 = vpack.c.b16 %v5339, %v5338
  %v5391 = vpack.c.b16 %v5341, %v5340
  %v5392 = vpack.c.b16 %v5343, %v5342
  %v5393 = vpack.c.b16 %v5345, %v5344
  %v5394 = vpack.c.b16 %v5347, %v5346
  %v5395 = vpack.c.b16 %v5349, %v5348
  %v5396 = vpack.c.b16 %v5351, %v5350
  %v5397 = vpack.c.b16 %v5353, %v5352
  %v5398 = vpack.c.b16 %v5355, %v5354
  %v5399 = vpack.c.b16 %v5357, %v5356
  %v5400 = vpack.c.b16 %v5359, %v5358
  %v5401 = vpack.c.b16 %v5361, %v5360
  %v5402 = vpack.c.b16 %v5363, %v5362
  %v5403 = vpack.c.b16 %v5365, %v5364
  %v5404 = vpack.c.b16 %v5367, %v5366
  %v5405 = vpack.c.b16 %v5369, %v5368
  %v5407 = vsel %vm1391, %v5370, 0
  %v5410 = vsel %vm1391, %v5371, 0
  %v5413 = vsel %vm1391, %v5372, 0
  %v5416 = vsel %vm1391, %v5373, 0
  %v5419 = vsel %vm1391, %v5374, 0
  %v5422 = vsel %vm1391, %v5375, 0
  %v5425 = vsel %vm1391, %v5376, 0
  %v5428 = vsel %vm1391, %v5377, 0
  %v5431 = vsel %vm1391, %v5378, 0
  %v5434 = vsel %vm1391, %v5379, 0
  %v5437 = vsel %vm1391, %v5380, 0
  %v5440 = vsel %vm1391, %v5381, 0
  %v5443 = vsel %vm1391, %v5382, 0
  %v5446 = vsel %vm1391, %v5383, 0
  %v5449 = vsel %vm1391, %v5384, 0
  %v5452 = vsel %vm1391, %v5385, 0
  %v5455 = vsel %vm1391, %v5386, 0
  %v5458 = vsel %vm1391, %v5387, 0
  %v5461 = vsel %vm1391, %v5388, 0
  %v5464 = vsel %vm1391, %v5389, 0
  %v5467 = vsel %vm1391, %v5390, 0
  %v5470 = vsel %vm1391, %v5391, 0
  %v5473 = vsel %vm1391, %v5392, 0
  %v5476 = vsel %vm1391, %v5393, 0
  %v5479 = vsel %vm1391, %v5394, 0
  %v5482 = vsel %vm1391, %v5395, 0
  %v5485 = vsel %vm1391, %v5396, 0
  %v5488 = vsel %vm1391, %v5397, 0
  %v5491 = vsel %vm1391, %v5398, 0
  %v5494 = vsel %vm1391, %v5399, 0
  %v5497 = vsel %vm1391, %v5400, 0
  %v5500 = vsel %vm1391, %v5401, 0
  %v5503 = vsel %vm1391, %v5402, 0
  %v5506 = vsel %vm1391, %v5403, 0
  %v5509 = vsel %vm1391, %v5404, 0
  %v5512 = vsel %vm1391, %v5405, 0
  %v5515 = vsel %vm1500, %v5153, 0
  %5517 = vmatprep.subr.bf16.mxu0 0
  %5518 = vmatpush1.bf16.msra.mxu0 %v5147
  %5519 = vmatprep.subr.bf16.mxu0 0
  %5520 = vmatpush1.bf16.msra.mxu0 %v5148
  %5521 = vmatprep.subr.bf16.mxu0 0
  %5522 = vmatpush1.bf16.msra.mxu0 %v5149
  %5523 = vmatprep.subr.bf16.mxu0 0
  %5524 = vmatpush1.bf16.msra.mxu0 %v5150
  %5525 = vmatprep.subr.bf16.mxu0 0
  %5526 = vmatpush1.bf16.msra.mxu0 %v5151
  %5527 = vmatprep.subr.bf16.mxu0 0
  %5528 = vmatpush1.bf16.msra.mxu0 %v5152
  %5529 = vmatprep.subr.bf16.mxu0 0
  %5530 = vmatpush1.bf16.msra.mxu0 %v5515
  %5531 = vmatprep.subr.bf16.mxu0 0
  %5532 = vmatpush1.bf16.msra.mxu0 0
  %5533 = vmatprep.subr.bf16.mxu0 0
  %5534 = vmatpush1.bf16.msra.mxu0 0
  %5535 = vmatprep.subr.bf16.mxu0 0
  %5536 = vmatpush1.bf16.msra.mxu0 0
  %5537 = vmatprep.subr.bf16.mxu0 0
  %5538 = vmatpush1.bf16.msra.mxu0 0
  %5539 = vmatprep.subr.bf16.mxu0 0
  %5540 = vmatpush1.bf16.msra.mxu0 0
  %5541 = vmatprep.subr.bf16.mxu0 0
  %5542 = vmatpush1.bf16.msra.mxu0 0
  %5543 = vmatprep.subr.bf16.mxu0 0
  %5544 = vmatpush1.bf16.msra.mxu0 0
  %5545 = vmatprep.subr.bf16.mxu0 0
  %5546 = vmatpush1.bf16.msra.mxu0 0
  %5547 = vmatprep.subr.bf16.mxu0 0
  %5548 = vmatpush1.bf16.msra.mxu0 0
  %5549 = vmatprep.mubr.bf16.mxu0 0
  %5550 = vmatmul.mubr.bf16.gmra.mrb[0].mxu0 %v5407
  %v5551 = vpop.f32.mrb[0].mxu0
  %v5552 = vadd.f32 0.0, %v5551
  %v5553 = vpop.f32.mrb[0].mxu0
  %v5554 = vpop.f32.mrb[0].mxu0
  %v5555 = vadd.f32 0.0, %v5554
  %v5556 = vpop.f32.mrb[0].mxu0
  %5557 = vmatprep.mubr.bf16.mxu0 0
  %5558 = vmatmul.mubr.bf16.gmra.mrb[0].mxu0 %v5410
  %v5559 = vpop.f32.mrb[0].mxu0
  %v5560 = vadd.f32 0.0, %v5559
  %v5561 = vpop.f32.mrb[0].mxu0
  %v5562 = vpop.f32.mrb[0].mxu0
  %v5563 = vadd.f32 0.0, %v5562
  %v5564 = vpop.f32.mrb[0].mxu0
  %5565 = vmatprep.mubr.bf16.mxu0 0
  %5566 = vmatmul.mubr.bf16.gmra.mrb[0].mxu0 %v5413
  %v5567 = vpop.f32.mrb[0].mxu0
  %v5568 = vadd.f32 0.0, %v5567
  %v5569 = vpop.f32.mrb[0].mxu0
  %v5570 = vpop.f32.mrb[0].mxu0
  %v5571 = vadd.f32 0.0, %v5570
  %v5572 = vpop.f32.mrb[0].mxu0
  %5573 = vmatprep.mubr.bf16.mxu0 0
  %5574 = vmatmul.mubr.bf16.gmra.mrb[0].mxu0 %v5416
  %v5575 = vpop.f32.mrb[0].mxu0
  %v5576 = vadd.f32 0.0, %v5575
  %v5577 = vpop.f32.mrb[0].mxu0
  %v5578 = vpop.f32.mrb[0].mxu0
  %v5579 = vadd.f32 0.0, %v5578
  %v5580 = vpop.f32.mrb[0].mxu0
  %5581 = vmatprep.mubr.bf16.mxu0 0
  %5582 = vmatmul.mubr.bf16.gmra.mrb[0].mxu0 %v5419
  %v5583 = vpop.f32.mrb[0].mxu0
  %v5584 = vadd.f32 0.0, %v5583
  %v5585 = vpop.f32.mrb[0].mxu0
  %v5586 = vpop.f32.mrb[0].mxu0
  %v5587 = vadd.f32 0.0, %v5586
  %v5588 = vpop.f32.mrb[0].mxu0
  %5589 = vmatprep.mubr.bf16.mxu0 0
  %5590 = vmatmul.mubr.bf16.gmra.mrb[0].mxu0 %v5422
  %v5591 = vpop.f32.mrb[0].mxu0
  %v5592 = vadd.f32 0.0, %v5591
  %v5593 = vpop.f32.mrb[0].mxu0
  %v5594 = vpop.f32.mrb[0].mxu0
  %v5595 = vadd.f32 0.0, %v5594
  %v5596 = vpop.f32.mrb[0].mxu0
  %5597 = vmatprep.mubr.bf16.mxu0 0
  %5598 = vmatmul.mubr.bf16.gmra.mrb[0].mxu0 %v5425
  %v5599 = vpop.f32.mrb[0].mxu0
  %v5600 = vadd.f32 0.0, %v5599
  %v5601 = vpop.f32.mrb[0].mxu0
  %v5602 = vpop.f32.mrb[0].mxu0
  %v5603 = vadd.f32 0.0, %v5602
  %v5604 = vpop.f32.mrb[0].mxu0
  %5605 = vmatprep.mubr.bf16.mxu0 0
  %5606 = vmatmul.mubr.bf16.gmra.mrb[0].mxu0 %v5428
  %v5607 = vpop.f32.mrb[0].mxu0
  %v5608 = vadd.f32 0.0, %v5607
  %v5609 = vpop.f32.mrb[0].mxu0
  %v5610 = vpop.f32.mrb[0].mxu0
  %v5611 = vadd.f32 0.0, %v5610
  %v5612 = vpop.f32.mrb[0].mxu0
  %5613 = vmatprep.mubr.bf16.mxu0 0
  %5614 = vmatmul.mubr.bf16.gmra.mrb[0].mxu0 %v5431
  %v5615 = vpop.f32.mrb[0].mxu0
  %v5616 = vadd.f32 0.0, %v5615
  %v5617 = vpop.f32.mrb[0].mxu0
  %v5618 = vpop.f32.mrb[0].mxu0
  %v5619 = vadd.f32 0.0, %v5618
  %v5620 = vpop.f32.mrb[0].mxu0
  %5621 = vmatprep.mubr.bf16.mxu0 0
  %5622 = vmatmul.mubr.bf16.gmra.mrb[0].mxu0 %v5434
  %v5623 = vpop.f32.mrb[0].mxu0
  %v5624 = vadd.f32 0.0, %v5623
  %v5625 = vpop.f32.mrb[0].mxu0
  %v5626 = vpop.f32.mrb[0].mxu0
  %v5627 = vadd.f32 0.0, %v5626
  %v5628 = vpop.f32.mrb[0].mxu0
  %5629 = vmatprep.mubr.bf16.mxu0 0
  %5630 = vmatmul.mubr.bf16.gmra.mrb[0].mxu0 %v5437
  %v5631 = vpop.f32.mrb[0].mxu0
  %v5632 = vadd.f32 0.0, %v5631
  %v5633 = vpop.f32.mrb[0].mxu0
  %v5634 = vpop.f32.mrb[0].mxu0
  %v5635 = vadd.f32 0.0, %v5634
  %v5636 = vpop.f32.mrb[0].mxu0
  %5637 = vmatprep.mubr.bf16.mxu0 0
  %5638 = vmatmul.mubr.bf16.gmra.mrb[0].mxu0 %v5440
  %v5639 = vpop.f32.mrb[0].mxu0
  %v5640 = vadd.f32 0.0, %v5639
  %v5641 = vpop.f32.mrb[0].mxu0
  %v5642 = vpop.f32.mrb[0].mxu0
  %v5643 = vadd.f32 0.0, %v5642
  %v5644 = vpop.f32.mrb[0].mxu0
  %5645 = vmatprep.mubr.bf16.mxu0 0
  %5646 = vmatmul.mubr.bf16.gmra.mrb[0].mxu0 %v5443
  %v5647 = vpop.f32.mrb[0].mxu0
  %v5648 = vadd.f32 0.0, %v5647
  %v5649 = vpop.f32.mrb[0].mxu0
  %v5650 = vpop.f32.mrb[0].mxu0
  %v5651 = vadd.f32 0.0, %v5650
  %v5652 = vpop.f32.mrb[0].mxu0
  %5653 = vmatprep.mubr.bf16.mxu0 0
  %5654 = vmatmul.mubr.bf16.gmra.mrb[0].mxu0 %v5446
  %v5655 = vpop.f32.mrb[0].mxu0
  %v5656 = vadd.f32 0.0, %v5655
  %v5657 = vpop.f32.mrb[0].mxu0
  %v5658 = vpop.f32.mrb[0].mxu0
  %v5659 = vadd.f32 0.0, %v5658
  %v5660 = vpop.f32.mrb[0].mxu0
  %5661 = vmatprep.mubr.bf16.mxu0 0
  %5662 = vmatmul.mubr.bf16.gmra.mrb[0].mxu0 %v5449
  %v5663 = vpop.f32.mrb[0].mxu0
  %v5664 = vadd.f32 0.0, %v5663
  %v5665 = vpop.f32.mrb[0].mxu0
  %v5666 = vpop.f32.mrb[0].mxu0
  %v5667 = vadd.f32 0.0, %v5666
  %v5668 = vpop.f32.mrb[0].mxu0
  %5669 = vmatprep.mubr.bf16.mxu0 0
  %5670 = vmatmul.mubr.bf16.gmra.mrb[0].mxu0 %v5452
  %v5671 = vpop.f32.mrb[0].mxu0
  %v5672 = vadd.f32 0.0, %v5671
  %v5673 = vpop.f32.mrb[0].mxu0
  %v5674 = vpop.f32.mrb[0].mxu0
  %v5675 = vadd.f32 0.0, %v5674
  %v5676 = vpop.f32.mrb[0].mxu0
  %5677 = vmatprep.mubr.bf16.mxu0 0
  %5678 = vmatmul.mubr.bf16.gmra.mrb[0].mxu0 %v5455
  %v5679 = vpop.f32.mrb[0].mxu0
  %v5680 = vadd.f32 0.0, %v5679
  %v5681 = vpop.f32.mrb[0].mxu0
  %v5682 = vpop.f32.mrb[0].mxu0
  %v5683 = vadd.f32 0.0, %v5682
  %v5684 = vpop.f32.mrb[0].mxu0
  %5685 = vmatprep.mubr.bf16.mxu0 0
  %5686 = vmatmul.mubr.bf16.gmra.mrb[0].mxu0 %v5458
  %v5687 = vpop.f32.mrb[0].mxu0
  %v5688 = vadd.f32 0.0, %v5687
  %v5689 = vpop.f32.mrb[0].mxu0
  %v5690 = vpop.f32.mrb[0].mxu0
  %v5691 = vadd.f32 0.0, %v5690
  %v5692 = vpop.f32.mrb[0].mxu0
  %5693 = vmatprep.mubr.bf16.mxu0 0
  %5694 = vmatmul.mubr.bf16.gmra.mrb[0].mxu0 %v5461
  %v5695 = vpop.f32.mrb[0].mxu0
  %v5696 = vadd.f32 0.0, %v5695
  %v5697 = vpop.f32.mrb[0].mxu0
  %v5698 = vpop.f32.mrb[0].mxu0
  %v5699 = vadd.f32 0.0, %v5698
  %v5700 = vpop.f32.mrb[0].mxu0
  %5701 = vmatprep.mubr.bf16.mxu0 0
  %5702 = vmatmul.mubr.bf16.gmra.mrb[0].mxu0 %v5464
  %v5703 = vpop.f32.mrb[0].mxu0
  %v5704 = vadd.f32 0.0, %v5703
  %v5705 = vpop.f32.mrb[0].mxu0
  %v5706 = vpop.f32.mrb[0].mxu0
  %v5707 = vadd.f32 0.0, %v5706
  %v5708 = vpop.f32.mrb[0].mxu0
  %5709 = vmatprep.mubr.bf16.mxu0 0
  %5710 = vmatmul.mubr.bf16.gmra.mrb[0].mxu0 %v5467
  %v5711 = vpop.f32.mrb[0].mxu0
  %v5712 = vadd.f32 0.0, %v5711
  %v5713 = vpop.f32.mrb[0].mxu0
  %v5714 = vpop.f32.mrb[0].mxu0
  %v5715 = vadd.f32 0.0, %v5714
  %v5716 = vpop.f32.mrb[0].mxu0
  %5717 = vmatprep.mubr.bf16.mxu0 0
  %5718 = vmatmul.mubr.bf16.gmra.mrb[0].mxu0 %v5470
  %v5719 = vpop.f32.mrb[0].mxu0
  %v5720 = vadd.f32 0.0, %v5719
  %v5721 = vpop.f32.mrb[0].mxu0
  %v5722 = vpop.f32.mrb[0].mxu0
  %v5723 = vadd.f32 0.0, %v5722
  %v5724 = vpop.f32.mrb[0].mxu0
  %5725 = vmatprep.mubr.bf16.mxu0 0
  %5726 = vmatmul.mubr.bf16.gmra.mrb[0].mxu0 %v5473
  %v5727 = vpop.f32.mrb[0].mxu0
  %v5728 = vadd.f32 0.0, %v5727
  %v5729 = vpop.f32.mrb[0].mxu0
  %v5730 = vpop.f32.mrb[0].mxu0
  %v5731 = vadd.f32 0.0, %v5730
  %v5732 = vpop.f32.mrb[0].mxu0
  %5733 = vmatprep.mubr.bf16.mxu0 0
  %5734 = vmatmul.mubr.bf16.gmra.mrb[0].mxu0 %v5476
  %v5735 = vpop.f32.mrb[0].mxu0
  %v5736 = vadd.f32 0.0, %v5735
  %v5737 = vpop.f32.mrb[0].mxu0
  %v5738 = vpop.f32.mrb[0].mxu0
  %v5739 = vadd.f32 0.0, %v5738
  %v5740 = vpop.f32.mrb[0].mxu0
  %5741 = vmatprep.mubr.bf16.mxu0 0
  %5742 = vmatmul.mubr.bf16.gmra.mrb[0].mxu0 %v5479
  %v5743 = vpop.f32.mrb[0].mxu0
  %v5744 = vadd.f32 0.0, %v5743
  %v5745 = vpop.f32.mrb[0].mxu0
  %v5746 = vpop.f32.mrb[0].mxu0
  %v5747 = vadd.f32 0.0, %v5746
  %v5748 = vpop.f32.mrb[0].mxu0
  %5749 = vmatprep.mubr.bf16.mxu0 0
  %5750 = vmatmul.mubr.bf16.gmra.mrb[0].mxu0 %v5482
  %v5751 = vpop.f32.mrb[0].mxu0
  %v5752 = vadd.f32 0.0, %v5751
  %v5753 = vpop.f32.mrb[0].mxu0
  %v5754 = vpop.f32.mrb[0].mxu0
  %v5755 = vadd.f32 0.0, %v5754
  %v5756 = vpop.f32.mrb[0].mxu0
  %5757 = vmatprep.mubr.bf16.mxu0 0
  %5758 = vmatmul.mubr.bf16.gmra.mrb[0].mxu0 %v5485
  %v5759 = vpop.f32.mrb[0].mxu0
  %v5760 = vadd.f32 0.0, %v5759
  %v5761 = vpop.f32.mrb[0].mxu0
  %v5762 = vpop.f32.mrb[0].mxu0
  %v5763 = vadd.f32 0.0, %v5762
  %v5764 = vpop.f32.mrb[0].mxu0
  %5765 = vmatprep.mubr.bf16.mxu0 0
  %5766 = vmatmul.mubr.bf16.gmra.mrb[0].mxu0 %v5488
  %v5767 = vpop.f32.mrb[0].mxu0
  %v5768 = vadd.f32 0.0, %v5767
  %v5769 = vpop.f32.mrb[0].mxu0
  %v5770 = vpop.f32.mrb[0].mxu0
  %v5771 = vadd.f32 0.0, %v5770
  %v5772 = vpop.f32.mrb[0].mxu0
  %5773 = vmatprep.mubr.bf16.mxu0 0
  %5774 = vmatmul.mubr.bf16.gmra.mrb[0].mxu0 %v5491
  %v5775 = vpop.f32.mrb[0].mxu0
  %v5776 = vadd.f32 0.0, %v5775
  %v5777 = vpop.f32.mrb[0].mxu0
  %v5778 = vpop.f32.mrb[0].mxu0
  %v5779 = vadd.f32 0.0, %v5778
  %v5780 = vpop.f32.mrb[0].mxu0
  %5781 = vmatprep.mubr.bf16.mxu0 0
  %5782 = vmatmul.mubr.bf16.gmra.mrb[0].mxu0 %v5494
  %v5783 = vpop.f32.mrb[0].mxu0
  %v5784 = vadd.f32 0.0, %v5783
  %v5785 = vpop.f32.mrb[0].mxu0
  %v5786 = vpop.f32.mrb[0].mxu0
  %v5787 = vadd.f32 0.0, %v5786
  %v5788 = vpop.f32.mrb[0].mxu0
  %5789 = vmatprep.mubr.bf16.mxu0 0
  %5790 = vmatmul.mubr.bf16.gmra.mrb[0].mxu0 %v5497
  %v5791 = vpop.f32.mrb[0].mxu0
  %v5792 = vadd.f32 0.0, %v5791
  %v5793 = vpop.f32.mrb[0].mxu0
  %v5794 = vpop.f32.mrb[0].mxu0
  %v5795 = vadd.f32 0.0, %v5794
  %v5796 = vpop.f32.mrb[0].mxu0
  %5797 = vmatprep.mubr.bf16.mxu0 0
  %5798 = vmatmul.mubr.bf16.gmra.mrb[0].mxu0 %v5500
  %v5799 = vpop.f32.mrb[0].mxu0
  %v5800 = vadd.f32 0.0, %v5799
  %v5801 = vpop.f32.mrb[0].mxu0
  %v5802 = vpop.f32.mrb[0].mxu0
  %v5803 = vadd.f32 0.0, %v5802
  %v5804 = vpop.f32.mrb[0].mxu0
  %5805 = vmatprep.mubr.bf16.mxu0 0
  %5806 = vmatmul.mubr.bf16.gmra.mrb[0].mxu0 %v5503
  %v5807 = vpop.f32.mrb[0].mxu0
  %v5808 = vadd.f32 0.0, %v5807
  %v5809 = vpop.f32.mrb[0].mxu0
  %v5810 = vpop.f32.mrb[0].mxu0
  %v5811 = vadd.f32 0.0, %v5810
  %v5812 = vpop.f32.mrb[0].mxu0
  %5813 = vmatprep.mubr.bf16.mxu0 0
  %5814 = vmatmul.mubr.bf16.gmra.mrb[0].mxu0 %v5506
  %v5815 = vpop.f32.mrb[0].mxu0
  %v5816 = vadd.f32 0.0, %v5815
  %v5817 = vpop.f32.mrb[0].mxu0
  %v5818 = vpop.f32.mrb[0].mxu0
  %v5819 = vadd.f32 0.0, %v5818
  %v5820 = vpop.f32.mrb[0].mxu0
  %5821 = vmatprep.mubr.bf16.mxu0 0
  %5822 = vmatmul.mubr.bf16.gmra.mrb[0].mxu0 %v5509
  %v5823 = vpop.f32.mrb[0].mxu0
  %v5824 = vadd.f32 0.0, %v5823
  %v5825 = vpop.f32.mrb[0].mxu0
  %v5826 = vpop.f32.mrb[0].mxu0
  %v5827 = vadd.f32 0.0, %v5826
  %v5828 = vpop.f32.mrb[0].mxu0
  %5829 = vmatprep.mubr.bf16.mxu0 0
  %5830 = vmatmul.mubr.bf16.gmra.mrb[0].mxu0 %v5512
  %v5831 = vpop.f32.mrb[0].mxu0
  %v5832 = vadd.f32 0.0, %v5831
  %v5833 = vpop.f32.mrb[0].mxu0
  %v5834 = vpop.f32.mrb[0].mxu0
  %v5835 = vadd.f32 0.0, %v5834
  %v5836 = vpop.f32.mrb[0].mxu0
  %5837 = vdwg.mxu0
  %v5910 = vunpack.c.l.b16 %v5075
  %v5911 = vunpack.c.l.b16 %v5076
  %v5912 = vunpack.c.l.b16 %v5077
  %v5913 = vunpack.c.l.b16 %v5078
  %v5914 = vunpack.c.l.b16 %v5079
  %v5915 = vunpack.c.l.b16 %v5080
  %v5916 = vunpack.c.l.b16 %v5081
  %v5917 = vunpack.c.l.b16 %v5082
  %v5918 = vunpack.c.l.b16 %v5083
  %v5919 = vunpack.c.l.b16 %v5084
  %v5920 = vunpack.c.l.b16 %v5085
  %v5921 = vunpack.c.l.b16 %v5086
  %v5922 = vunpack.c.l.b16 %v5087
  %v5923 = vunpack.c.l.b16 %v5088
  %v5924 = vunpack.c.l.b16 %v5089
  %v5925 = vunpack.c.l.b16 %v5090
  %v5926 = vunpack.c.l.b16 %v5091
  %v5927 = vunpack.c.l.b16 %v5092
  %v5928 = vunpack.c.l.b16 %v5093
  %v5929 = vunpack.c.l.b16 %v5094
  %v5930 = vunpack.c.l.b16 %v5095
  %v5931 = vunpack.c.l.b16 %v5096
  %v5932 = vunpack.c.l.b16 %v5097
  %v5933 = vunpack.c.l.b16 %v5098
  %v5934 = vunpack.c.l.b16 %v5099
  %v5935 = vunpack.c.l.b16 %v5100
  %v5936 = vunpack.c.l.b16 %v5101
  %v5937 = vunpack.c.l.b16 %v5102
  %v5938 = vunpack.c.l.b16 %v5103
  %v5939 = vunpack.c.l.b16 %v5104
  %v5940 = vunpack.c.l.b16 %v5105
  %v5941 = vunpack.c.l.b16 %v5106
  %v5942 = vunpack.c.l.b16 %v5107
  %v5943 = vunpack.c.l.b16 %v5108
  %v5944 = vunpack.c.l.b16 %v5109
  %v5945 = vunpack.c.l.b16 %v5110
  %v5946 = vunpack.c.l.b16 %v5111
  %v5947 = vunpack.c.l.b16 %v5112
  %v5948 = vunpack.c.l.b16 %v5113
  %v5949 = vunpack.c.l.b16 %v5114
  %v5950 = vunpack.c.l.b16 %v5115
  %v5951 = vunpack.c.l.b16 %v5116
  %v5952 = vunpack.c.l.b16 %v5117
  %v5953 = vunpack.c.l.b16 %v5118
  %v5954 = vunpack.c.l.b16 %v5119
  %v5955 = vunpack.c.l.b16 %v5120
  %v5956 = vunpack.c.l.b16 %v5121
  %v5957 = vunpack.c.l.b16 %v5122
  %v5958 = vunpack.c.l.b16 %v5123
  %v5959 = vunpack.c.l.b16 %v5124
  %v5960 = vunpack.c.l.b16 %v5125
  %v5961 = vunpack.c.l.b16 %v5126
  %v5962 = vunpack.c.l.b16 %v5127
  %v5963 = vunpack.c.l.b16 %v5128
  %v5964 = vunpack.c.l.b16 %v5129
  %v5965 = vunpack.c.l.b16 %v5130
  %v5966 = vunpack.c.l.b16 %v5131
  %v5967 = vunpack.c.l.b16 %v5132
  %v5968 = vunpack.c.l.b16 %v5133
  %v5969 = vunpack.c.l.b16 %v5134
  %v5970 = vunpack.c.l.b16 %v5135
  %v5971 = vunpack.c.l.b16 %v5136
  %v5972 = vunpack.c.l.b16 %v5137
  %v5973 = vunpack.c.l.b16 %v5138
  %v5974 = vunpack.c.l.b16 %v5139
  %v5975 = vunpack.c.l.b16 %v5140
  %v5976 = vunpack.c.l.b16 %v5141
  %v5977 = vunpack.c.l.b16 %v5142
  %v5978 = vunpack.c.l.b16 %v5143
  %v5979 = vunpack.c.l.b16 %v5144
  %v5980 = vunpack.c.l.b16 %v5145
  %v5981 = vunpack.c.l.b16 %v5146
  %v5982 = vpack.c.b16 %v5911, %v5910
  %v5983 = vpack.c.b16 %v5913, %v5912
  %v5984 = vpack.c.b16 %v5915, %v5914
  %v5985 = vpack.c.b16 %v5917, %v5916
  %v5986 = vpack.c.b16 %v5919, %v5918
  %v5987 = vpack.c.b16 %v5921, %v5920
  %v5988 = vpack.c.b16 %v5923, %v5922
  %v5989 = vpack.c.b16 %v5925, %v5924
  %v5990 = vpack.c.b16 %v5927, %v5926
  %v5991 = vpack.c.b16 %v5929, %v5928
  %v5992 = vpack.c.b16 %v5931, %v5930
  %v5993 = vpack.c.b16 %v5933, %v5932
  %v5994 = vpack.c.b16 %v5935, %v5934
  %v5995 = vpack.c.b16 %v5937, %v5936
  %v5996 = vpack.c.b16 %v5939, %v5938
  %v5997 = vpack.c.b16 %v5941, %v5940
  %v5998 = vpack.c.b16 %v5943, %v5942
  %v5999 = vpack.c.b16 %v5945, %v5944
  %v6000 = vpack.c.b16 %v5947, %v5946
  %v6001 = vpack.c.b16 %v5949, %v5948
  %v6002 = vpack.c.b16 %v5951, %v5950
  %v6003 = vpack.c.b16 %v5953, %v5952
  %v6004 = vpack.c.b16 %v5955, %v5954
  %v6005 = vpack.c.b16 %v5957, %v5956
  %v6006 = vpack.c.b16 %v5959, %v5958
  %v6007 = vpack.c.b16 %v5961, %v5960
  %v6008 = vpack.c.b16 %v5963, %v5962
  %v6009 = vpack.c.b16 %v5965, %v5964
  %v6010 = vpack.c.b16 %v5967, %v5966
  %v6011 = vpack.c.b16 %v5969, %v5968
  %v6012 = vpack.c.b16 %v5971, %v5970
  %v6013 = vpack.c.b16 %v5973, %v5972
  %v6014 = vpack.c.b16 %v5975, %v5974
  %v6015 = vpack.c.b16 %v5977, %v5976
  %v6016 = vpack.c.b16 %v5979, %v5978
  %v6017 = vpack.c.b16 %v5981, %v5980
  %v6019 = vsel %vm1391, %v5982, 0
  %v6022 = vsel %vm1391, %v5983, 0
  %v6025 = vsel %vm1391, %v5984, 0
  %v6028 = vsel %vm1391, %v5985, 0
  %v6031 = vsel %vm1391, %v5986, 0
  %v6034 = vsel %vm1391, %v5987, 0
  %v6037 = vsel %vm1391, %v5988, 0
  %v6040 = vsel %vm1391, %v5989, 0
  %v6043 = vsel %vm1391, %v5990, 0
  %v6046 = vsel %vm1391, %v5991, 0
  %v6049 = vsel %vm1391, %v5992, 0
  %v6052 = vsel %vm1391, %v5993, 0
  %v6055 = vsel %vm1391, %v5994, 0
  %v6058 = vsel %vm1391, %v5995, 0
  %v6061 = vsel %vm1391, %v5996, 0
  %v6064 = vsel %vm1391, %v5997, 0
  %v6067 = vsel %vm1391, %v5998, 0
  %v6070 = vsel %vm1391, %v5999, 0
  %v6073 = vsel %vm1391, %v6000, 0
  %v6076 = vsel %vm1391, %v6001, 0
  %v6079 = vsel %vm1391, %v6002, 0
  %v6082 = vsel %vm1391, %v6003, 0
  %v6085 = vsel %vm1391, %v6004, 0
  %v6088 = vsel %vm1391, %v6005, 0
  %v6091 = vsel %vm1391, %v6006, 0
  %v6094 = vsel %vm1391, %v6007, 0
  %v6097 = vsel %vm1391, %v6008, 0
  %v6100 = vsel %vm1391, %v6009, 0
  %v6103 = vsel %vm1391, %v6010, 0
  %v6106 = vsel %vm1391, %v6011, 0
  %v6109 = vsel %vm1391, %v6012, 0
  %v6112 = vsel %vm1391, %v6013, 0
  %v6115 = vsel %vm1391, %v6014, 0
  %v6118 = vsel %vm1391, %v6015, 0
  %v6121 = vsel %vm1391, %v6016, 0
  %v6124 = vsel %vm1391, %v6017, 0
  %v6127 = vsel %vm1500, %v5074, 0
  %6129 = vmatprep.subr.bf16.mxu0 0
  %6130 = vmatpush1.bf16.msra.mxu0 %v5068
  %6131 = vmatprep.subr.bf16.mxu0 0
  %6132 = vmatpush1.bf16.msra.mxu0 %v5069
  %6133 = vmatprep.subr.bf16.mxu0 0
  %6134 = vmatpush1.bf16.msra.mxu0 %v5070
  %6135 = vmatprep.subr.bf16.mxu0 0
  %6136 = vmatpush1.bf16.msra.mxu0 %v5071
  %6137 = vmatprep.subr.bf16.mxu0 0
  %6138 = vmatpush1.bf16.msra.mxu0 %v5072
  %6139 = vmatprep.subr.bf16.mxu0 0
  %6140 = vmatpush1.bf16.msra.mxu0 %v5073
  %6141 = vmatprep.subr.bf16.mxu0 0
  %6142 = vmatpush1.bf16.msra.mxu0 %v6127
  %6143 = vmatprep.subr.bf16.mxu0 0
  %6144 = vmatpush1.bf16.msra.mxu0 0
  %6145 = vmatprep.subr.bf16.mxu0 0
  %6146 = vmatpush1.bf16.msra.mxu0 0
  %6147 = vmatprep.subr.bf16.mxu0 0
  %6148 = vmatpush1.bf16.msra.mxu0 0
  %6149 = vmatprep.subr.bf16.mxu0 0
  %6150 = vmatpush1.bf16.msra.mxu0 0
  %6151 = vmatprep.subr.bf16.mxu0 0
  %6152 = vmatpush1.bf16.msra.mxu0 0
  %6153 = vmatprep.subr.bf16.mxu0 0
  %6154 = vmatpush1.bf16.msra.mxu0 0
  %6155 = vmatprep.subr.bf16.mxu0 0
  %6156 = vmatpush1.bf16.msra.mxu0 0
  %6157 = vmatprep.subr.bf16.mxu0 0
  %6158 = vmatpush1.bf16.msra.mxu0 0
  %6159 = vmatprep.subr.bf16.mxu0 0
  %6160 = vmatpush1.bf16.msra.mxu0 0
  %6161 = vmatprep.mubr.bf16.mxu0 0
  %6162 = vmatmul.mubr.bf16.gmra.mrb[0].mxu0 %v6019
  %v6163 = vpop.f32.mrb[0].mxu0
  %v6164 = vadd.f32 %v5552, %v6163
  %v6165 = vpop.f32.mrb[0].mxu0
  %v6166 = vpop.f32.mrb[0].mxu0
  %v6167 = vadd.f32 %v5555, %v6166
  %v6168 = vpop.f32.mrb[0].mxu0
  %6169 = vmatprep.mubr.bf16.mxu0 0
  %6170 = vmatmul.mubr.bf16.gmra.mrb[0].mxu0 %v6022
  %v6171 = vpop.f32.mrb[0].mxu0
  %v6172 = vadd.f32 %v5560, %v6171
  %v6173 = vpop.f32.mrb[0].mxu0
  %v6174 = vpop.f32.mrb[0].mxu0
  %v6175 = vadd.f32 %v5563, %v6174
  %v6176 = vpop.f32.mrb[0].mxu0
  %6177 = vmatprep.mubr.bf16.mxu0 0
  %6178 = vmatmul.mubr.bf16.gmra.mrb[0].mxu0 %v6025
  %v6179 = vpop.f32.mrb[0].mxu0
  %v6180 = vadd.f32 %v5568, %v6179
  %v6181 = vpop.f32.mrb[0].mxu0
  %v6182 = vpop.f32.mrb[0].mxu0
  %v6183 = vadd.f32 %v5571, %v6182
  %v6184 = vpop.f32.mrb[0].mxu0
  %6185 = vmatprep.mubr.bf16.mxu0 0
  %6186 = vmatmul.mubr.bf16.gmra.mrb[0].mxu0 %v6028
  %v6187 = vpop.f32.mrb[0].mxu0
  %v6188 = vadd.f32 %v5576, %v6187
  %v6189 = vpop.f32.mrb[0].mxu0
  %v6190 = vpop.f32.mrb[0].mxu0
  %v6191 = vadd.f32 %v5579, %v6190
  %v6192 = vpop.f32.mrb[0].mxu0
  %6193 = vmatprep.mubr.bf16.mxu0 0
  %6194 = vmatmul.mubr.bf16.gmra.mrb[0].mxu0 %v6031
  %v6195 = vpop.f32.mrb[0].mxu0
  %v6196 = vadd.f32 %v5584, %v6195
  %v6197 = vpop.f32.mrb[0].mxu0
  %v6198 = vpop.f32.mrb[0].mxu0
  %v6199 = vadd.f32 %v5587, %v6198
  %v6200 = vpop.f32.mrb[0].mxu0
  %6201 = vmatprep.mubr.bf16.mxu0 0
  %6202 = vmatmul.mubr.bf16.gmra.mrb[0].mxu0 %v6034
  %v6203 = vpop.f32.mrb[0].mxu0
  %v6204 = vadd.f32 %v5592, %v6203
  %v6205 = vpop.f32.mrb[0].mxu0
  %v6206 = vpop.f32.mrb[0].mxu0
  %v6207 = vadd.f32 %v5595, %v6206
  %v6208 = vpop.f32.mrb[0].mxu0
  %6209 = vmatprep.mubr.bf16.mxu0 0
  %6210 = vmatmul.mubr.bf16.gmra.mrb[0].mxu0 %v6037
  %v6211 = vpop.f32.mrb[0].mxu0
  %v6212 = vadd.f32 %v5600, %v6211
  %v6213 = vpop.f32.mrb[0].mxu0
  %v6214 = vpop.f32.mrb[0].mxu0
  %v6215 = vadd.f32 %v5603, %v6214
  %v6216 = vpop.f32.mrb[0].mxu0
  %6217 = vmatprep.mubr.bf16.mxu0 0
  %6218 = vmatmul.mubr.bf16.gmra.mrb[0].mxu0 %v6040
  %v6219 = vpop.f32.mrb[0].mxu0
  %v6220 = vadd.f32 %v5608, %v6219
  %v6221 = vpop.f32.mrb[0].mxu0
  %v6222 = vpop.f32.mrb[0].mxu0
  %v6223 = vadd.f32 %v5611, %v6222
  %v6224 = vpop.f32.mrb[0].mxu0
  %6225 = vmatprep.mubr.bf16.mxu0 0
  %6226 = vmatmul.mubr.bf16.gmra.mrb[0].mxu0 %v6043
  %v6227 = vpop.f32.mrb[0].mxu0
  %v6228 = vadd.f32 %v5616, %v6227
  %v6229 = vpop.f32.mrb[0].mxu0
  %v6230 = vpop.f32.mrb[0].mxu0
  %v6231 = vadd.f32 %v5619, %v6230
  %v6232 = vpop.f32.mrb[0].mxu0
  %6233 = vmatprep.mubr.bf16.mxu0 0
  %6234 = vmatmul.mubr.bf16.gmra.mrb[0].mxu0 %v6046
  %v6235 = vpop.f32.mrb[0].mxu0
  %v6236 = vadd.f32 %v5624, %v6235
  %v6237 = vpop.f32.mrb[0].mxu0
  %v6238 = vpop.f32.mrb[0].mxu0
  %v6239 = vadd.f32 %v5627, %v6238
  %v6240 = vpop.f32.mrb[0].mxu0
  %6241 = vmatprep.mubr.bf16.mxu0 0
  %6242 = vmatmul.mubr.bf16.gmra.mrb[0].mxu0 %v6049
  %v6243 = vpop.f32.mrb[0].mxu0
  %v6244 = vadd.f32 %v5632, %v6243
  %v6245 = vpop.f32.mrb[0].mxu0
  %v6246 = vpop.f32.mrb[0].mxu0
  %v6247 = vadd.f32 %v5635, %v6246
  %v6248 = vpop.f32.mrb[0].mxu0
  %6249 = vmatprep.mubr.bf16.mxu0 0
  %6250 = vmatmul.mubr.bf16.gmra.mrb[0].mxu0 %v6052
  %v6251 = vpop.f32.mrb[0].mxu0
  %v6252 = vadd.f32 %v5640, %v6251
  %v6253 = vpop.f32.mrb[0].mxu0
  %v6254 = vpop.f32.mrb[0].mxu0
  %v6255 = vadd.f32 %v5643, %v6254
  %v6256 = vpop.f32.mrb[0].mxu0
  %6257 = vmatprep.mubr.bf16.mxu0 0
  %6258 = vmatmul.mubr.bf16.gmra.mrb[0].mxu0 %v6055
  %v6259 = vpop.f32.mrb[0].mxu0
  %v6260 = vadd.f32 %v5648, %v6259
  %v6261 = vpop.f32.mrb[0].mxu0
  %v6262 = vpop.f32.mrb[0].mxu0
  %v6263 = vadd.f32 %v5651, %v6262
  %v6264 = vpop.f32.mrb[0].mxu0
  %6265 = vmatprep.mubr.bf16.mxu0 0
  %6266 = vmatmul.mubr.bf16.gmra.mrb[0].mxu0 %v6058
  %v6267 = vpop.f32.mrb[0].mxu0
  %v6268 = vadd.f32 %v5656, %v6267
  %v6269 = vpop.f32.mrb[0].mxu0
  %v6270 = vpop.f32.mrb[0].mxu0
  %v6271 = vadd.f32 %v5659, %v6270
  %v6272 = vpop.f32.mrb[0].mxu0
  %6273 = vmatprep.mubr.bf16.mxu0 0
  %6274 = vmatmul.mubr.bf16.gmra.mrb[0].mxu0 %v6061
  %v6275 = vpop.f32.mrb[0].mxu0
  %v6276 = vadd.f32 %v5664, %v6275
  %v6277 = vpop.f32.mrb[0].mxu0
  %v6278 = vpop.f32.mrb[0].mxu0
  %v6279 = vadd.f32 %v5667, %v6278
  %v6280 = vpop.f32.mrb[0].mxu0
  %6281 = vmatprep.mubr.bf16.mxu0 0
  %6282 = vmatmul.mubr.bf16.gmra.mrb[0].mxu0 %v6064
  %v6283 = vpop.f32.mrb[0].mxu0
  %v6284 = vadd.f32 %v5672, %v6283
  %v6285 = vpop.f32.mrb[0].mxu0
  %v6286 = vpop.f32.mrb[0].mxu0
  %v6287 = vadd.f32 %v5675, %v6286
  %v6288 = vpop.f32.mrb[0].mxu0
  %6289 = vmatprep.mubr.bf16.mxu0 0
  %6290 = vmatmul.mubr.bf16.gmra.mrb[0].mxu0 %v6067
  %v6291 = vpop.f32.mrb[0].mxu0
  %v6292 = vadd.f32 %v5680, %v6291
  %v6293 = vpop.f32.mrb[0].mxu0
  %v6294 = vpop.f32.mrb[0].mxu0
  %v6295 = vadd.f32 %v5683, %v6294
  %v6296 = vpop.f32.mrb[0].mxu0
  %6297 = vmatprep.mubr.bf16.mxu0 0
  %6298 = vmatmul.mubr.bf16.gmra.mrb[0].mxu0 %v6070
  %v6299 = vpop.f32.mrb[0].mxu0
  %v6300 = vadd.f32 %v5688, %v6299
  %v6301 = vpop.f32.mrb[0].mxu0
  %v6302 = vpop.f32.mrb[0].mxu0
  %v6303 = vadd.f32 %v5691, %v6302
  %v6304 = vpop.f32.mrb[0].mxu0
  %6305 = vmatprep.mubr.bf16.mxu0 0
  %6306 = vmatmul.mubr.bf16.gmra.mrb[0].mxu0 %v6073
  %v6307 = vpop.f32.mrb[0].mxu0
  %v6308 = vadd.f32 %v5696, %v6307
  %v6309 = vpop.f32.mrb[0].mxu0
  %v6310 = vpop.f32.mrb[0].mxu0
  %v6311 = vadd.f32 %v5699, %v6310
  %v6312 = vpop.f32.mrb[0].mxu0
  %6313 = vmatprep.mubr.bf16.mxu0 0
  %6314 = vmatmul.mubr.bf16.gmra.mrb[0].mxu0 %v6076
  %v6315 = vpop.f32.mrb[0].mxu0
  %v6316 = vadd.f32 %v5704, %v6315
  %v6317 = vpop.f32.mrb[0].mxu0
  %v6318 = vpop.f32.mrb[0].mxu0
  %v6319 = vadd.f32 %v5707, %v6318
  %v6320 = vpop.f32.mrb[0].mxu0
  %6321 = vmatprep.mubr.bf16.mxu0 0
  %6322 = vmatmul.mubr.bf16.gmra.mrb[0].mxu0 %v6079
  %v6323 = vpop.f32.mrb[0].mxu0
  %v6324 = vadd.f32 %v5712, %v6323
  %v6325 = vpop.f32.mrb[0].mxu0
  %v6326 = vpop.f32.mrb[0].mxu0
  %v6327 = vadd.f32 %v5715, %v6326
  %v6328 = vpop.f32.mrb[0].mxu0
  %6329 = vmatprep.mubr.bf16.mxu0 0
  %6330 = vmatmul.mubr.bf16.gmra.mrb[0].mxu0 %v6082
  %v6331 = vpop.f32.mrb[0].mxu0
  %v6332 = vadd.f32 %v5720, %v6331
  %v6333 = vpop.f32.mrb[0].mxu0
  %v6334 = vpop.f32.mrb[0].mxu0
  %v6335 = vadd.f32 %v5723, %v6334
  %v6336 = vpop.f32.mrb[0].mxu0
  %6337 = vmatprep.mubr.bf16.mxu0 0
  %6338 = vmatmul.mubr.bf16.gmra.mrb[0].mxu0 %v6085
  %v6339 = vpop.f32.mrb[0].mxu0
  %v6340 = vadd.f32 %v5728, %v6339
  %v6341 = vpop.f32.mrb[0].mxu0
  %v6342 = vpop.f32.mrb[0].mxu0
  %v6343 = vadd.f32 %v5731, %v6342
  %v6344 = vpop.f32.mrb[0].mxu0
  %6345 = vmatprep.mubr.bf16.mxu0 0
  %6346 = vmatmul.mubr.bf16.gmra.mrb[0].mxu0 %v6088
  %v6347 = vpop.f32.mrb[0].mxu0
  %v6348 = vadd.f32 %v5736, %v6347
  %v6349 = vpop.f32.mrb[0].mxu0
  %v6350 = vpop.f32.mrb[0].mxu0
  %v6351 = vadd.f32 %v5739, %v6350
  %v6352 = vpop.f32.mrb[0].mxu0
  %6353 = vmatprep.mubr.bf16.mxu0 0
  %6354 = vmatmul.mubr.bf16.gmra.mrb[0].mxu0 %v6091
  %v6355 = vpop.f32.mrb[0].mxu0
  %v6356 = vadd.f32 %v5744, %v6355
  %v6357 = vpop.f32.mrb[0].mxu0
  %v6358 = vpop.f32.mrb[0].mxu0
  %v6359 = vadd.f32 %v5747, %v6358
  %v6360 = vpop.f32.mrb[0].mxu0
  %6361 = vmatprep.mubr.bf16.mxu0 0
  %6362 = vmatmul.mubr.bf16.gmra.mrb[0].mxu0 %v6094
  %v6363 = vpop.f32.mrb[0].mxu0
  %v6364 = vadd.f32 %v5752, %v6363
  %v6365 = vpop.f32.mrb[0].mxu0
  %v6366 = vpop.f32.mrb[0].mxu0
  %v6367 = vadd.f32 %v5755, %v6366
  %v6368 = vpop.f32.mrb[0].mxu0
  %6369 = vmatprep.mubr.bf16.mxu0 0
  %6370 = vmatmul.mubr.bf16.gmra.mrb[0].mxu0 %v6097
  %v6371 = vpop.f32.mrb[0].mxu0
  %v6372 = vadd.f32 %v5760, %v6371
  %v6373 = vpop.f32.mrb[0].mxu0
  %v6374 = vpop.f32.mrb[0].mxu0
  %v6375 = vadd.f32 %v5763, %v6374
  %v6376 = vpop.f32.mrb[0].mxu0
  %6377 = vmatprep.mubr.bf16.mxu0 0
  %6378 = vmatmul.mubr.bf16.gmra.mrb[0].mxu0 %v6100
  %v6379 = vpop.f32.mrb[0].mxu0
  %v6380 = vadd.f32 %v5768, %v6379
  %v6381 = vpop.f32.mrb[0].mxu0
  %v6382 = vpop.f32.mrb[0].mxu0
  %v6383 = vadd.f32 %v5771, %v6382
  %v6384 = vpop.f32.mrb[0].mxu0
  %6385 = vmatprep.mubr.bf16.mxu0 0
  %6386 = vmatmul.mubr.bf16.gmra.mrb[0].mxu0 %v6103
  %v6387 = vpop.f32.mrb[0].mxu0
  %v6388 = vadd.f32 %v5776, %v6387
  %v6389 = vpop.f32.mrb[0].mxu0
  %v6390 = vpop.f32.mrb[0].mxu0
  %v6391 = vadd.f32 %v5779, %v6390
  %v6392 = vpop.f32.mrb[0].mxu0
  %6393 = vmatprep.mubr.bf16.mxu0 0
  %6394 = vmatmul.mubr.bf16.gmra.mrb[0].mxu0 %v6106
  %v6395 = vpop.f32.mrb[0].mxu0
  %v6396 = vadd.f32 %v5784, %v6395
  %v6397 = vpop.f32.mrb[0].mxu0
  %v6398 = vpop.f32.mrb[0].mxu0
  %v6399 = vadd.f32 %v5787, %v6398
  %v6400 = vpop.f32.mrb[0].mxu0
  %6401 = vmatprep.mubr.bf16.mxu0 0
  %6402 = vmatmul.mubr.bf16.gmra.mrb[0].mxu0 %v6109
  %v6403 = vpop.f32.mrb[0].mxu0
  %v6404 = vadd.f32 %v5792, %v6403
  %v6405 = vpop.f32.mrb[0].mxu0
  %v6406 = vpop.f32.mrb[0].mxu0
  %v6407 = vadd.f32 %v5795, %v6406
  %v6408 = vpop.f32.mrb[0].mxu0
  %6409 = vmatprep.mubr.bf16.mxu0 0
  %6410 = vmatmul.mubr.bf16.gmra.mrb[0].mxu0 %v6112
  %v6411 = vpop.f32.mrb[0].mxu0
  %v6412 = vadd.f32 %v5800, %v6411
  %v6413 = vpop.f32.mrb[0].mxu0
  %v6414 = vpop.f32.mrb[0].mxu0
  %v6415 = vadd.f32 %v5803, %v6414
  %v6416 = vpop.f32.mrb[0].mxu0
  %6417 = vmatprep.mubr.bf16.mxu0 0
  %6418 = vmatmul.mubr.bf16.gmra.mrb[0].mxu0 %v6115
  %v6419 = vpop.f32.mrb[0].mxu0
  %v6420 = vadd.f32 %v5808, %v6419
  %v6421 = vpop.f32.mrb[0].mxu0
  %v6422 = vpop.f32.mrb[0].mxu0
  %v6423 = vadd.f32 %v5811, %v6422
  %v6424 = vpop.f32.mrb[0].mxu0
  %6425 = vmatprep.mubr.bf16.mxu0 0
  %6426 = vmatmul.mubr.bf16.gmra.mrb[0].mxu0 %v6118
  %v6427 = vpop.f32.mrb[0].mxu0
  %v6428 = vadd.f32 %v5816, %v6427
  %v6429 = vpop.f32.mrb[0].mxu0
  %v6430 = vpop.f32.mrb[0].mxu0
  %v6431 = vadd.f32 %v5819, %v6430
  %v6432 = vpop.f32.mrb[0].mxu0
  %6433 = vmatprep.mubr.bf16.mxu0 0
  %6434 = vmatmul.mubr.bf16.gmra.mrb[0].mxu0 %v6121
  %v6435 = vpop.f32.mrb[0].mxu0
  %v6436 = vadd.f32 %v5824, %v6435
  %v6437 = vpop.f32.mrb[0].mxu0
  %v6438 = vpop.f32.mrb[0].mxu0
  %v6439 = vadd.f32 %v5827, %v6438
  %v6440 = vpop.f32.mrb[0].mxu0
  %6441 = vmatprep.mubr.bf16.mxu0 0
  %6442 = vmatmul.mubr.bf16.gmra.mrb[0].mxu0 %v6124
  %v6443 = vpop.f32.mrb[0].mxu0
  %v6444 = vadd.f32 %v5832, %v6443
  %v6445 = vpop.f32.mrb[0].mxu0
  %v6446 = vpop.f32.mrb[0].mxu0
  %v6447 = vadd.f32 %v5835, %v6446
  %v6448 = vpop.f32.mrb[0].mxu0
  %6449 = vdwg.mxu0
  %v6450 = vpack.c.bf16 %v879, %v871
  %v6451 = vpack.c.bf16 %v895, %v887
  %v6452 = vpack.c.bf16 %v911, %v903
  %v6453 = vpack.c.bf16 %v927, %v919
  %v6454 = vpack.c.bf16 %v943, %v935
  %v6455 = vpack.c.bf16 %v959, %v951
  %v6456 = vpack.c.bf16 %v967, %v967
  %v6457 = vld [vmem:[%s2 + $0x6c0] sm:$0xf]
  %v6458 = vld [vmem:[%s2 + $0x6c4] sm:$0xf]
  %v6459 = vld [vmem:[%s2 + $0x6c8] sm:$0xf]
  %v6460 = vld [vmem:[%s2 + $0x6cc] sm:$0xf]
  %v6461 = vld [vmem:[%s2 + $0x6d0] sm:$0xf]
  %v6462 = vld [vmem:[%s2 + $0x6d4] sm:$0xf]
  %v6463 = vld [vmem:[%s2 + $0x6d8] sm:$0xf]
  %v6464 = vld [vmem:[%s2 + $0x6dc] sm:$0xf]
  %v6465 = vld [vmem:[%s2 + $0x6e0] sm:$0xf]
  %v6466 = vld [vmem:[%s2 + $0x6e4] sm:$0xf]
  %v6467 = vld [vmem:[%s2 + $0x6e8] sm:$0xf]
  %v6468 = vld [vmem:[%s2 + $0x6ec] sm:$0xf]
  %v6469 = vld [vmem:[%s2 + $0x6f0] sm:$0xf]
  %v6470 = vld [vmem:[%s2 + $0x6f4] sm:$0xf]
  %v6471 = vld [vmem:[%s2 + $0x6f8] sm:$0xf]
  %v6472 = vld [vmem:[%s2 + $0x6fc] sm:$0xf]
  %v6473 = vld [vmem:[%s2 + $0x700] sm:$0xf]
  %v6474 = vld [vmem:[%s2 + $0x704] sm:$0xf]
  %v6475 = vld [vmem:[%s2 + $0x708] sm:$0xf]
  %v6476 = vld [vmem:[%s2 + $0x70c] sm:$0xf]
  %v6477 = vld [vmem:[%s2 + $0x710] sm:$0xf]
  %v6478 = vld [vmem:[%s2 + $0x714] sm:$0xf]
  %v6479 = vld [vmem:[%s2 + $0x718] sm:$0xf]
  %v6480 = vld [vmem:[%s2 + $0x71c] sm:$0xf]
  %v6481 = vld [vmem:[%s2 + $0x720] sm:$0xf]
  %v6482 = vld [vmem:[%s2 + $0x724] sm:$0xf]
  %v6483 = vld [vmem:[%s2 + $0x728] sm:$0xf]
  %v6484 = vld [vmem:[%s2 + $0x72c] sm:$0xf]
  %v6485 = vld [vmem:[%s2 + $0x730] sm:$0xf]
  %v6486 = vld [vmem:[%s2 + $0x734] sm:$0xf]
  %v6487 = vld [vmem:[%s2 + $0x738] sm:$0xf]
  %v6488 = vld [vmem:[%s2 + $0x73c] sm:$0xf]
  %v6489 = vld [vmem:[%s2 + $0x740] sm:$0xf]
  %v6490 = vld [vmem:[%s2 + $0x744] sm:$0xf]
  %v6491 = vld [vmem:[%s2 + $0x748] sm:$0xf]
  %v6492 = vld [vmem:[%s2 + $0x74c] sm:$0xf]
  %v6493 = vld [vmem:[%s2 + $0x750] sm:$0xf]
  %v6494 = vld [vmem:[%s2 + $0x754] sm:$0xf]
  %v6495 = vld [vmem:[%s2 + $0x758] sm:$0xf]
  %v6496 = vld [vmem:[%s2 + $0x75c] sm:$0xf]
  %v6497 = vld [vmem:[%s2 + $0x760] sm:$0xf]
  %v6498 = vld [vmem:[%s2 + $0x764] sm:$0xf]
  %v6499 = vld [vmem:[%s2 + $0x768] sm:$0xf]
  %v6500 = vld [vmem:[%s2 + $0x76c] sm:$0xf]
  %v6501 = vld [vmem:[%s2 + $0x770] sm:$0xf]
  %v6502 = vld [vmem:[%s2 + $0x774] sm:$0xf]
  %v6503 = vld [vmem:[%s2 + $0x778] sm:$0xf]
  %v6504 = vld [vmem:[%s2 + $0x77c] sm:$0xf]
  %v6505 = vld [vmem:[%s2 + $0x780] sm:$0xf]
  %v6506 = vld [vmem:[%s2 + $0x784] sm:$0xf]
  %v6507 = vld [vmem:[%s2 + $0x788] sm:$0xf]
  %v6508 = vld [vmem:[%s2 + $0x78c] sm:$0xf]
  %v6509 = vld [vmem:[%s2 + $0x790] sm:$0xf]
  %v6510 = vld [vmem:[%s2 + $0x794] sm:$0xf]
  %v6511 = vld [vmem:[%s2 + $0x798] sm:$0xf]
  %v6512 = vld [vmem:[%s2 + $0x79c] sm:$0xf]
  %v6513 = vld [vmem:[%s2 + $0x7a0] sm:$0xf]
  %v6514 = vld [vmem:[%s2 + $0x7a4] sm:$0xf]
  %v6515 = vld [vmem:[%s2 + $0x7a8] sm:$0xf]
  %v6516 = vld [vmem:[%s2 + $0x7ac] sm:$0xf]
  %v6517 = vld [vmem:[%s2 + $0x7b0] sm:$0xf]
  %v6518 = vld [vmem:[%s2 + $0x7b4] sm:$0xf]
  %v6519 = vld [vmem:[%s2 + $0x7b8] sm:$0xf]
  %v6520 = vld [vmem:[%s2 + $0x7bc] sm:$0xf]
  %v6521 = vld [vmem:[%s2 + $0x7c0] sm:$0xf]
  %v6522 = vld [vmem:[%s2 + $0x7c4] sm:$0xf]
  %v6523 = vld [vmem:[%s2 + $0x7c8] sm:$0xf]
  %v6524 = vld [vmem:[%s2 + $0x7cc] sm:$0xf]
  %v6525 = vld [vmem:[%s2 + $0x7d0] sm:$0xf]
  %v6526 = vld [vmem:[%s2 + $0x7d4] sm:$0xf]
  %v6527 = vld [vmem:[%s2 + $0x7d8] sm:$0xf]
  %v6528 = vld [vmem:[%s2 + $0x7dc] sm:$0xf]
  %v6601 = vunpack.c.l.b16 %v6457
  %v6602 = vunpack.c.l.b16 %v6458
  %v6603 = vunpack.c.l.b16 %v6459
  %v6604 = vunpack.c.l.b16 %v6460
  %v6605 = vunpack.c.l.b16 %v6461
  %v6606 = vunpack.c.l.b16 %v6462
  %v6607 = vunpack.c.l.b16 %v6463
  %v6608 = vunpack.c.l.b16 %v6464
  %v6609 = vunpack.c.l.b16 %v6465
  %v6610 = vunpack.c.l.b16 %v6466
  %v6611 = vunpack.c.l.b16 %v6467
  %v6612 = vunpack.c.l.b16 %v6468
  %v6613 = vunpack.c.l.b16 %v6469
  %v6614 = vunpack.c.l.b16 %v6470
  %v6615 = vunpack.c.l.b16 %v6471
  %v6616 = vunpack.c.l.b16 %v6472
  %v6617 = vunpack.c.l.b16 %v6473
  %v6618 = vunpack.c.l.b16 %v6474
  %v6619 = vunpack.c.l.b16 %v6475
  %v6620 = vunpack.c.l.b16 %v6476
  %v6621 = vunpack.c.l.b16 %v6477
  %v6622 = vunpack.c.l.b16 %v6478
  %v6623 = vunpack.c.l.b16 %v6479
  %v6624 = vunpack.c.l.b16 %v6480
  %v6625 = vunpack.c.l.b16 %v6481
  %v6626 = vunpack.c.l.b16 %v6482
  %v6627 = vunpack.c.l.b16 %v6483
  %v6628 = vunpack.c.l.b16 %v6484
  %v6629 = vunpack.c.l.b16 %v6485
  %v6630 = vunpack.c.l.b16 %v6486
  %v6631 = vunpack.c.l.b16 %v6487
  %v6632 = vunpack.c.l.b16 %v6488
  %v6633 = vunpack.c.l.b16 %v6489
  %v6634 = vunpack.c.l.b16 %v6490
  %v6635 = vunpack.c.l.b16 %v6491
  %v6636 = vunpack.c.l.b16 %v6492
  %v6637 = vunpack.c.l.b16 %v6493
  %v6638 = vunpack.c.l.b16 %v6494
  %v6639 = vunpack.c.l.b16 %v6495
  %v6640 = vunpack.c.l.b16 %v6496
  %v6641 = vunpack.c.l.b16 %v6497
  %v6642 = vunpack.c.l.b16 %v6498
  %v6643 = vunpack.c.l.b16 %v6499
  %v6644 = vunpack.c.l.b16 %v6500
  %v6645 = vunpack.c.l.b16 %v6501
  %v6646 = vunpack.c.l.b16 %v6502
  %v6647 = vunpack.c.l.b16 %v6503
  %v6648 = vunpack.c.l.b16 %v6504
  %v6649 = vunpack.c.l.b16 %v6505
  %v6650 = vunpack.c.l.b16 %v6506
  %v6651 = vunpack.c.l.b16 %v6507
  %v6652 = vunpack.c.l.b16 %v6508
  %v6653 = vunpack.c.l.b16 %v6509
  %v6654 = vunpack.c.l.b16 %v6510
  %v6655 = vunpack.c.l.b16 %v6511
  %v6656 = vunpack.c.l.b16 %v6512
  %v6657 = vunpack.c.l.b16 %v6513
  %v6658 = vunpack.c.l.b16 %v6514
  %v6659 = vunpack.c.l.b16 %v6515
  %v6660 = vunpack.c.l.b16 %v6516
  %v6661 = vunpack.c.l.b16 %v6517
  %v6662 = vunpack.c.l.b16 %v6518
  %v6663 = vunpack.c.l.b16 %v6519
  %v6664 = vunpack.c.l.b16 %v6520
  %v6665 = vunpack.c.l.b16 %v6521
  %v6666 = vunpack.c.l.b16 %v6522
  %v6667 = vunpack.c.l.b16 %v6523
  %v6668 = vunpack.c.l.b16 %v6524
  %v6669 = vunpack.c.l.b16 %v6525
  %v6670 = vunpack.c.l.b16 %v6526
  %v6671 = vunpack.c.l.b16 %v6527
  %v6672 = vunpack.c.l.b16 %v6528
  %v6673 = vpack.c.b16 %v6602, %v6601
  %v6674 = vpack.c.b16 %v6604, %v6603
  %v6675 = vpack.c.b16 %v6606, %v6605
  %v6676 = vpack.c.b16 %v6608, %v6607
  %v6677 = vpack.c.b16 %v6610, %v6609
  %v6678 = vpack.c.b16 %v6612, %v6611
  %v6679 = vpack.c.b16 %v6614, %v6613
  %v6680 = vpack.c.b16 %v6616, %v6615
  %v6681 = vpack.c.b16 %v6618, %v6617
  %v6682 = vpack.c.b16 %v6620, %v6619
  %v6683 = vpack.c.b16 %v6622, %v6621
  %v6684 = vpack.c.b16 %v6624, %v6623
  %v6685 = vpack.c.b16 %v6626, %v6625
  %v6686 = vpack.c.b16 %v6628, %v6627
  %v6687 = vpack.c.b16 %v6630, %v6629
  %v6688 = vpack.c.b16 %v6632, %v6631
  %v6689 = vpack.c.b16 %v6634, %v6633
  %v6690 = vpack.c.b16 %v6636, %v6635
  %v6691 = vpack.c.b16 %v6638, %v6637
  %v6692 = vpack.c.b16 %v6640, %v6639
  %v6693 = vpack.c.b16 %v6642, %v6641
  %v6694 = vpack.c.b16 %v6644, %v6643
  %v6695 = vpack.c.b16 %v6646, %v6645
  %v6696 = vpack.c.b16 %v6648, %v6647
  %v6697 = vpack.c.b16 %v6650, %v6649
  %v6698 = vpack.c.b16 %v6652, %v6651
  %v6699 = vpack.c.b16 %v6654, %v6653
  %v6700 = vpack.c.b16 %v6656, %v6655
  %v6701 = vpack.c.b16 %v6658, %v6657
  %v6702 = vpack.c.b16 %v6660, %v6659
  %v6703 = vpack.c.b16 %v6662, %v6661
  %v6704 = vpack.c.b16 %v6664, %v6663
  %v6705 = vpack.c.b16 %v6666, %v6665
  %v6706 = vpack.c.b16 %v6668, %v6667
  %v6707 = vpack.c.b16 %v6670, %v6669
  %v6708 = vpack.c.b16 %v6672, %v6671
  %v6710 = vsel %vm1391, %v6673, 0
  %v6713 = vsel %vm1391, %v6674, 0
  %v6716 = vsel %vm1391, %v6675, 0
  %v6719 = vsel %vm1391, %v6676, 0
  %v6722 = vsel %vm1391, %v6677, 0
  %v6725 = vsel %vm1391, %v6678, 0
  %v6728 = vsel %vm1391, %v6679, 0
  %v6731 = vsel %vm1391, %v6680, 0
  %v6734 = vsel %vm1391, %v6681, 0
  %v6737 = vsel %vm1391, %v6682, 0
  %v6740 = vsel %vm1391, %v6683, 0
  %v6743 = vsel %vm1391, %v6684, 0
  %v6746 = vsel %vm1391, %v6685, 0
  %v6749 = vsel %vm1391, %v6686, 0
  %v6752 = vsel %vm1391, %v6687, 0
  %v6755 = vsel %vm1391, %v6688, 0
  %v6758 = vsel %vm1391, %v6689, 0
  %v6761 = vsel %vm1391, %v6690, 0
  %v6764 = vsel %vm1391, %v6691, 0
  %v6767 = vsel %vm1391, %v6692, 0
  %v6770 = vsel %vm1391, %v6693, 0
  %v6773 = vsel %vm1391, %v6694, 0
  %v6776 = vsel %vm1391, %v6695, 0
  %v6779 = vsel %vm1391, %v6696, 0
  %v6782 = vsel %vm1391, %v6697, 0
  %v6785 = vsel %vm1391, %v6698, 0
  %v6788 = vsel %vm1391, %v6699, 0
  %v6791 = vsel %vm1391, %v6700, 0
  %v6794 = vsel %vm1391, %v6701, 0
  %v6797 = vsel %vm1391, %v6702, 0
  %v6800 = vsel %vm1391, %v6703, 0
  %v6803 = vsel %vm1391, %v6704, 0
  %v6806 = vsel %vm1391, %v6705, 0
  %v6809 = vsel %vm1391, %v6706, 0
  %v6812 = vsel %vm1391, %v6707, 0
  %v6815 = vsel %vm1391, %v6708, 0
  %v6818 = vsel %vm1500, %v6456, 0
  %6820 = vmatprep.subr.bf16.mxu0 0
  %6821 = vmatpush1.bf16.msra.mxu0 %v6450
  %6822 = vmatprep.subr.bf16.mxu0 0
  %6823 = vmatpush1.bf16.msra.mxu0 %v6451
  %6824 = vmatprep.subr.bf16.mxu0 0
  %6825 = vmatpush1.bf16.msra.mxu0 %v6452
  %6826 = vmatprep.subr.bf16.mxu0 0
  %6827 = vmatpush1.bf16.msra.mxu0 %v6453
  %6828 = vmatprep.subr.bf16.mxu0 0
  %6829 = vmatpush1.bf16.msra.mxu0 %v6454
  %6830 = vmatprep.subr.bf16.mxu0 0
  %6831 = vmatpush1.bf16.msra.mxu0 %v6455
  %6832 = vmatprep.subr.bf16.mxu0 0
  %6833 = vmatpush1.bf16.msra.mxu0 %v6818
  %6834 = vmatprep.subr.bf16.mxu0 0
  %6835 = vmatpush1.bf16.msra.mxu0 0
  %6836 = vmatprep.subr.bf16.mxu0 0
  %6837 = vmatpush1.bf16.msra.mxu0 0
  %6838 = vmatprep.subr.bf16.mxu0 0
  %6839 = vmatpush1.bf16.msra.mxu0 0
  %6840 = vmatprep.subr.bf16.mxu0 0
  %6841 = vmatpush1.bf16.msra.mxu0 0
  %6842 = vmatprep.subr.bf16.mxu0 0
  %6843 = vmatpush1.bf16.msra.mxu0 0
  %6844 = vmatprep.subr.bf16.mxu0 0
  %6845 = vmatpush1.bf16.msra.mxu0 0
  %6846 = vmatprep.subr.bf16.mxu0 0
  %6847 = vmatpush1.bf16.msra.mxu0 0
  %6848 = vmatprep.subr.bf16.mxu0 0
  %6849 = vmatpush1.bf16.msra.mxu0 0
  %6850 = vmatprep.subr.bf16.mxu0 0
  %6851 = vmatpush1.bf16.msra.mxu0 0
  %6852 = vmatprep.mubr.bf16.mxu0 0
  %6853 = vmatmul.mubr.bf16.gmra.mrb[0].mxu0 %v6710
  %v6854 = vpop.f32.mrb[0].mxu0
  %v6855 = vadd.f32 0.0, %v6854
  %v6856 = vpop.f32.mrb[0].mxu0
  %v6857 = vpop.f32.mrb[0].mxu0
  %v6858 = vadd.f32 0.0, %v6857
  %v6859 = vpop.f32.mrb[0].mxu0
  %6860 = vmatprep.mubr.bf16.mxu0 0
  %6861 = vmatmul.mubr.bf16.gmra.mrb[0].mxu0 %v6713
  %v6862 = vpop.f32.mrb[0].mxu0
  %v6863 = vadd.f32 0.0, %v6862
  %v6864 = vpop.f32.mrb[0].mxu0
  %v6865 = vpop.f32.mrb[0].mxu0
  %v6866 = vadd.f32 0.0, %v6865
  %v6867 = vpop.f32.mrb[0].mxu0
  %6868 = vmatprep.mubr.bf16.mxu0 0
  %6869 = vmatmul.mubr.bf16.gmra.mrb[0].mxu0 %v6716
  %v6870 = vpop.f32.mrb[0].mxu0
  %v6871 = vadd.f32 0.0, %v6870
  %v6872 = vpop.f32.mrb[0].mxu0
  %v6873 = vpop.f32.mrb[0].mxu0
  %v6874 = vadd.f32 0.0, %v6873
  %v6875 = vpop.f32.mrb[0].mxu0
  %6876 = vmatprep.mubr.bf16.mxu0 0
  %6877 = vmatmul.mubr.bf16.gmra.mrb[0].mxu0 %v6719
  %v6878 = vpop.f32.mrb[0].mxu0
  %v6879 = vadd.f32 0.0, %v6878
  %v6880 = vpop.f32.mrb[0].mxu0
  %v6881 = vpop.f32.mrb[0].mxu0
  %v6882 = vadd.f32 0.0, %v6881
  %v6883 = vpop.f32.mrb[0].mxu0
  %6884 = vmatprep.mubr.bf16.mxu0 0
  %6885 = vmatmul.mubr.bf16.gmra.mrb[0].mxu0 %v6722
  %v6886 = vpop.f32.mrb[0].mxu0
  %v6887 = vadd.f32 0.0, %v6886
  %v6888 = vpop.f32.mrb[0].mxu0
  %v6889 = vpop.f32.mrb[0].mxu0
  %v6890 = vadd.f32 0.0, %v6889
  %v6891 = vpop.f32.mrb[0].mxu0
  %6892 = vmatprep.mubr.bf16.mxu0 0
  %6893 = vmatmul.mubr.bf16.gmra.mrb[0].mxu0 %v6725
  %v6894 = vpop.f32.mrb[0].mxu0
  %v6895 = vadd.f32 0.0, %v6894
  %v6896 = vpop.f32.mrb[0].mxu0
  %v6897 = vpop.f32.mrb[0].mxu0
  %v6898 = vadd.f32 0.0, %v6897
  %v6899 = vpop.f32.mrb[0].mxu0
  %6900 = vmatprep.mubr.bf16.mxu0 0
  %6901 = vmatmul.mubr.bf16.gmra.mrb[0].mxu0 %v6728
  %v6902 = vpop.f32.mrb[0].mxu0
  %v6903 = vadd.f32 0.0, %v6902
  %v6904 = vpop.f32.mrb[0].mxu0
  %v6905 = vpop.f32.mrb[0].mxu0
  %v6906 = vadd.f32 0.0, %v6905
  %v6907 = vpop.f32.mrb[0].mxu0
  %6908 = vmatprep.mubr.bf16.mxu0 0
  %6909 = vmatmul.mubr.bf16.gmra.mrb[0].mxu0 %v6731
  %v6910 = vpop.f32.mrb[0].mxu0
  %v6911 = vadd.f32 0.0, %v6910
  %v6912 = vpop.f32.mrb[0].mxu0
  %v6913 = vpop.f32.mrb[0].mxu0
  %v6914 = vadd.f32 0.0, %v6913
  %v6915 = vpop.f32.mrb[0].mxu0
  %6916 = vmatprep.mubr.bf16.mxu0 0
  %6917 = vmatmul.mubr.bf16.gmra.mrb[0].mxu0 %v6734
  %v6918 = vpop.f32.mrb[0].mxu0
  %v6919 = vadd.f32 0.0, %v6918
  %v6920 = vpop.f32.mrb[0].mxu0
  %v6921 = vpop.f32.mrb[0].mxu0
  %v6922 = vadd.f32 0.0, %v6921
  %v6923 = vpop.f32.mrb[0].mxu0
  %6924 = vmatprep.mubr.bf16.mxu0 0
  %6925 = vmatmul.mubr.bf16.gmra.mrb[0].mxu0 %v6737
  %v6926 = vpop.f32.mrb[0].mxu0
  %v6927 = vadd.f32 0.0, %v6926
  %v6928 = vpop.f32.mrb[0].mxu0
  %v6929 = vpop.f32.mrb[0].mxu0
  %v6930 = vadd.f32 0.0, %v6929
  %v6931 = vpop.f32.mrb[0].mxu0
  %6932 = vmatprep.mubr.bf16.mxu0 0
  %6933 = vmatmul.mubr.bf16.gmra.mrb[0].mxu0 %v6740
  %v6934 = vpop.f32.mrb[0].mxu0
  %v6935 = vadd.f32 0.0, %v6934
  %v6936 = vpop.f32.mrb[0].mxu0
  %v6937 = vpop.f32.mrb[0].mxu0
  %v6938 = vadd.f32 0.0, %v6937
  %v6939 = vpop.f32.mrb[0].mxu0
  %6940 = vmatprep.mubr.bf16.mxu0 0
  %6941 = vmatmul.mubr.bf16.gmra.mrb[0].mxu0 %v6743
  %v6942 = vpop.f32.mrb[0].mxu0
  %v6943 = vadd.f32 0.0, %v6942
  %v6944 = vpop.f32.mrb[0].mxu0
  %v6945 = vpop.f32.mrb[0].mxu0
  %v6946 = vadd.f32 0.0, %v6945
  %v6947 = vpop.f32.mrb[0].mxu0
  %6948 = vmatprep.mubr.bf16.mxu0 0
  %6949 = vmatmul.mubr.bf16.gmra.mrb[0].mxu0 %v6746
  %v6950 = vpop.f32.mrb[0].mxu0
  %v6951 = vadd.f32 0.0, %v6950
  %v6952 = vpop.f32.mrb[0].mxu0
  %v6953 = vpop.f32.mrb[0].mxu0
  %v6954 = vadd.f32 0.0, %v6953
  %v6955 = vpop.f32.mrb[0].mxu0
  %6956 = vmatprep.mubr.bf16.mxu0 0
  %6957 = vmatmul.mubr.bf16.gmra.mrb[0].mxu0 %v6749
  %v6958 = vpop.f32.mrb[0].mxu0
  %v6959 = vadd.f32 0.0, %v6958
  %v6960 = vpop.f32.mrb[0].mxu0
  %v6961 = vpop.f32.mrb[0].mxu0
  %v6962 = vadd.f32 0.0, %v6961
  %v6963 = vpop.f32.mrb[0].mxu0
  %6964 = vmatprep.mubr.bf16.mxu0 0
  %6965 = vmatmul.mubr.bf16.gmra.mrb[0].mxu0 %v6752
  %v6966 = vpop.f32.mrb[0].mxu0
  %v6967 = vadd.f32 0.0, %v6966
  %v6968 = vpop.f32.mrb[0].mxu0
  %v6969 = vpop.f32.mrb[0].mxu0
  %v6970 = vadd.f32 0.0, %v6969
  %v6971 = vpop.f32.mrb[0].mxu0
  %6972 = vmatprep.mubr.bf16.mxu0 0
  %6973 = vmatmul.mubr.bf16.gmra.mrb[0].mxu0 %v6755
  %v6974 = vpop.f32.mrb[0].mxu0
  %v6975 = vadd.f32 0.0, %v6974
  %v6976 = vpop.f32.mrb[0].mxu0
  %v6977 = vpop.f32.mrb[0].mxu0
  %v6978 = vadd.f32 0.0, %v6977
  %v6979 = vpop.f32.mrb[0].mxu0
  %6980 = vmatprep.mubr.bf16.mxu0 0
  %6981 = vmatmul.mubr.bf16.gmra.mrb[0].mxu0 %v6758
  %v6982 = vpop.f32.mrb[0].mxu0
  %v6983 = vadd.f32 0.0, %v6982
  %v6984 = vpop.f32.mrb[0].mxu0
  %v6985 = vpop.f32.mrb[0].mxu0
  %v6986 = vadd.f32 0.0, %v6985
  %v6987 = vpop.f32.mrb[0].mxu0
  %6988 = vmatprep.mubr.bf16.mxu0 0
  %6989 = vmatmul.mubr.bf16.gmra.mrb[0].mxu0 %v6761
  %v6990 = vpop.f32.mrb[0].mxu0
  %v6991 = vadd.f32 0.0, %v6990
  %v6992 = vpop.f32.mrb[0].mxu0
  %v6993 = vpop.f32.mrb[0].mxu0
  %v6994 = vadd.f32 0.0, %v6993
  %v6995 = vpop.f32.mrb[0].mxu0
  %6996 = vmatprep.mubr.bf16.mxu0 0
  %6997 = vmatmul.mubr.bf16.gmra.mrb[0].mxu0 %v6764
  %v6998 = vpop.f32.mrb[0].mxu0
  %v6999 = vadd.f32 0.0, %v6998
  %v7000 = vpop.f32.mrb[0].mxu0
  %v7001 = vpop.f32.mrb[0].mxu0
  %v7002 = vadd.f32 0.0, %v7001
  %v7003 = vpop.f32.mrb[0].mxu0
  %7004 = vmatprep.mubr.bf16.mxu0 0
  %7005 = vmatmul.mubr.bf16.gmra.mrb[0].mxu0 %v6767
  %v7006 = vpop.f32.mrb[0].mxu0
  %v7007 = vadd.f32 0.0, %v7006
  %v7008 = vpop.f32.mrb[0].mxu0
  %v7009 = vpop.f32.mrb[0].mxu0
  %v7010 = vadd.f32 0.0, %v7009
  %v7011 = vpop.f32.mrb[0].mxu0
  %7012 = vmatprep.mubr.bf16.mxu0 0
  %7013 = vmatmul.mubr.bf16.gmra.mrb[0].mxu0 %v6770
  %v7014 = vpop.f32.mrb[0].mxu0
  %v7015 = vadd.f32 0.0, %v7014
  %v7016 = vpop.f32.mrb[0].mxu0
  %v7017 = vpop.f32.mrb[0].mxu0
  %v7018 = vadd.f32 0.0, %v7017
  %v7019 = vpop.f32.mrb[0].mxu0
  %7020 = vmatprep.mubr.bf16.mxu0 0
  %7021 = vmatmul.mubr.bf16.gmra.mrb[0].mxu0 %v6773
  %v7022 = vpop.f32.mrb[0].mxu0
  %v7023 = vadd.f32 0.0, %v7022
  %v7024 = vpop.f32.mrb[0].mxu0
  %v7025 = vpop.f32.mrb[0].mxu0
  %v7026 = vadd.f32 0.0, %v7025
  %v7027 = vpop.f32.mrb[0].mxu0
  %7028 = vmatprep.mubr.bf16.mxu0 0
  %7029 = vmatmul.mubr.bf16.gmra.mrb[0].mxu0 %v6776
  %v7030 = vpop.f32.mrb[0].mxu0
  %v7031 = vadd.f32 0.0, %v7030
  %v7032 = vpop.f32.mrb[0].mxu0
  %v7033 = vpop.f32.mrb[0].mxu0
  %v7034 = vadd.f32 0.0, %v7033
  %v7035 = vpop.f32.mrb[0].mxu0
  %7036 = vmatprep.mubr.bf16.mxu0 0
  %7037 = vmatmul.mubr.bf16.gmra.mrb[0].mxu0 %v6779
  %v7038 = vpop.f32.mrb[0].mxu0
  %v7039 = vadd.f32 0.0, %v7038
  %v7040 = vpop.f32.mrb[0].mxu0
  %v7041 = vpop.f32.mrb[0].mxu0
  %v7042 = vadd.f32 0.0, %v7041
  %v7043 = vpop.f32.mrb[0].mxu0
  %7044 = vmatprep.mubr.bf16.mxu0 0
  %7045 = vmatmul.mubr.bf16.gmra.mrb[0].mxu0 %v6782
  %v7046 = vpop.f32.mrb[0].mxu0
  %v7047 = vadd.f32 0.0, %v7046
  %v7048 = vpop.f32.mrb[0].mxu0
  %v7049 = vpop.f32.mrb[0].mxu0
  %v7050 = vadd.f32 0.0, %v7049
  %v7051 = vpop.f32.mrb[0].mxu0
  %7052 = vmatprep.mubr.bf16.mxu0 0
  %7053 = vmatmul.mubr.bf16.gmra.mrb[0].mxu0 %v6785
  %v7054 = vpop.f32.mrb[0].mxu0
  %v7055 = vadd.f32 0.0, %v7054
  %v7056 = vpop.f32.mrb[0].mxu0
  %v7057 = vpop.f32.mrb[0].mxu0
  %v7058 = vadd.f32 0.0, %v7057
  %v7059 = vpop.f32.mrb[0].mxu0
  %7060 = vmatprep.mubr.bf16.mxu0 0
  %7061 = vmatmul.mubr.bf16.gmra.mrb[0].mxu0 %v6788
  %v7062 = vpop.f32.mrb[0].mxu0
  %v7063 = vadd.f32 0.0, %v7062
  %v7064 = vpop.f32.mrb[0].mxu0
  %v7065 = vpop.f32.mrb[0].mxu0
  %v7066 = vadd.f32 0.0, %v7065
  %v7067 = vpop.f32.mrb[0].mxu0
  %7068 = vmatprep.mubr.bf16.mxu0 0
  %7069 = vmatmul.mubr.bf16.gmra.mrb[0].mxu0 %v6791
  %v7070 = vpop.f32.mrb[0].mxu0
  %v7071 = vadd.f32 0.0, %v7070
  %v7072 = vpop.f32.mrb[0].mxu0
  %v7073 = vpop.f32.mrb[0].mxu0
  %v7074 = vadd.f32 0.0, %v7073
  %v7075 = vpop.f32.mrb[0].mxu0
  %7076 = vmatprep.mubr.bf16.mxu0 0
  %7077 = vmatmul.mubr.bf16.gmra.mrb[0].mxu0 %v6794
  %v7078 = vpop.f32.mrb[0].mxu0
  %v7079 = vadd.f32 0.0, %v7078
  %v7080 = vpop.f32.mrb[0].mxu0
  %v7081 = vpop.f32.mrb[0].mxu0
  %v7082 = vadd.f32 0.0, %v7081
  %v7083 = vpop.f32.mrb[0].mxu0
  %7084 = vmatprep.mubr.bf16.mxu0 0
  %7085 = vmatmul.mubr.bf16.gmra.mrb[0].mxu0 %v6797
  %v7086 = vpop.f32.mrb[0].mxu0
  %v7087 = vadd.f32 0.0, %v7086
  %v7088 = vpop.f32.mrb[0].mxu0
  %v7089 = vpop.f32.mrb[0].mxu0
  %v7090 = vadd.f32 0.0, %v7089
  %v7091 = vpop.f32.mrb[0].mxu0
  %7092 = vmatprep.mubr.bf16.mxu0 0
  %7093 = vmatmul.mubr.bf16.gmra.mrb[0].mxu0 %v6800
  %v7094 = vpop.f32.mrb[0].mxu0
  %v7095 = vadd.f32 0.0, %v7094
  %v7096 = vpop.f32.mrb[0].mxu0
  %v7097 = vpop.f32.mrb[0].mxu0
  %v7098 = vadd.f32 0.0, %v7097
  %v7099 = vpop.f32.mrb[0].mxu0
  %7100 = vmatprep.mubr.bf16.mxu0 0
  %7101 = vmatmul.mubr.bf16.gmra.mrb[0].mxu0 %v6803
  %v7102 = vpop.f32.mrb[0].mxu0
  %v7103 = vadd.f32 0.0, %v7102
  %v7104 = vpop.f32.mrb[0].mxu0
  %v7105 = vpop.f32.mrb[0].mxu0
  %v7106 = vadd.f32 0.0, %v7105
  %v7107 = vpop.f32.mrb[0].mxu0
  %7108 = vmatprep.mubr.bf16.mxu0 0
  %7109 = vmatmul.mubr.bf16.gmra.mrb[0].mxu0 %v6806
  %v7110 = vpop.f32.mrb[0].mxu0
  %v7111 = vadd.f32 0.0, %v7110
  %v7112 = vpop.f32.mrb[0].mxu0
  %v7113 = vpop.f32.mrb[0].mxu0
  %v7114 = vadd.f32 0.0, %v7113
  %v7115 = vpop.f32.mrb[0].mxu0
  %7116 = vmatprep.mubr.bf16.mxu0 0
  %7117 = vmatmul.mubr.bf16.gmra.mrb[0].mxu0 %v6809
  %v7118 = vpop.f32.mrb[0].mxu0
  %v7119 = vadd.f32 0.0, %v7118
  %v7120 = vpop.f32.mrb[0].mxu0
  %v7121 = vpop.f32.mrb[0].mxu0
  %v7122 = vadd.f32 0.0, %v7121
  %v7123 = vpop.f32.mrb[0].mxu0
  %7124 = vmatprep.mubr.bf16.mxu0 0
  %7125 = vmatmul.mubr.bf16.gmra.mrb[0].mxu0 %v6812
  %v7126 = vpop.f32.mrb[0].mxu0
  %v7127 = vadd.f32 0.0, %v7126
  %v7128 = vpop.f32.mrb[0].mxu0
  %v7129 = vpop.f32.mrb[0].mxu0
  %v7130 = vadd.f32 0.0, %v7129
  %v7131 = vpop.f32.mrb[0].mxu0
  %7132 = vmatprep.mubr.bf16.mxu0 0
  %7133 = vmatmul.mubr.bf16.gmra.mrb[0].mxu0 %v6815
  %v7134 = vpop.f32.mrb[0].mxu0
  %v7135 = vadd.f32 0.0, %v7134
  %v7136 = vpop.f32.mrb[0].mxu0
  %v7137 = vpop.f32.mrb[0].mxu0
  %v7138 = vadd.f32 0.0, %v7137
  %v7139 = vpop.f32.mrb[0].mxu0
  %7140 = vdwg.mxu0
  %v7141 = vadd.f32 %v6164, %v6855
  %v7142 = vadd.f32 %v6167, %v6858
  %v7143 = vadd.f32 %v6172, %v6863
  %v7144 = vadd.f32 %v6175, %v6866
  %v7145 = vadd.f32 %v6180, %v6871
  %v7146 = vadd.f32 %v6183, %v6874
  %v7147 = vadd.f32 %v6188, %v6879
  %v7148 = vadd.f32 %v6191, %v6882
  %v7149 = vadd.f32 %v6196, %v6887
  %v7150 = vadd.f32 %v6199, %v6890
  %v7151 = vadd.f32 %v6204, %v6895
  %v7152 = vadd.f32 %v6207, %v6898
  %v7153 = vadd.f32 %v6212, %v6903
  %v7154 = vadd.f32 %v6215, %v6906
  %v7155 = vadd.f32 %v6220, %v6911
  %v7156 = vadd.f32 %v6223, %v6914
  %v7157 = vadd.f32 %v6228, %v6919
  %v7158 = vadd.f32 %v6231, %v6922
  %v7159 = vadd.f32 %v6236, %v6927
  %v7160 = vadd.f32 %v6239, %v6930
  %v7161 = vadd.f32 %v6244, %v6935
  %v7162 = vadd.f32 %v6247, %v6938
  %v7163 = vadd.f32 %v6252, %v6943
  %v7164 = vadd.f32 %v6255, %v6946
  %v7165 = vadd.f32 %v6260, %v6951
  %v7166 = vadd.f32 %v6263, %v6954
  %v7167 = vadd.f32 %v6268, %v6959
  %v7168 = vadd.f32 %v6271, %v6962
  %v7169 = vadd.f32 %v6276, %v6967
  %v7170 = vadd.f32 %v6279, %v6970
  %v7171 = vadd.f32 %v6284, %v6975
  %v7172 = vadd.f32 %v6287, %v6978
  %v7173 = vadd.f32 %v6292, %v6983
  %v7174 = vadd.f32 %v6295, %v6986
  %v7175 = vadd.f32 %v6300, %v6991
  %v7176 = vadd.f32 %v6303, %v6994
  %v7177 = vadd.f32 %v6308, %v6999
  %v7178 = vadd.f32 %v6311, %v7002
  %v7179 = vadd.f32 %v6316, %v7007
  %v7180 = vadd.f32 %v6319, %v7010
  %v7181 = vadd.f32 %v6324, %v7015
  %v7182 = vadd.f32 %v6327, %v7018
  %v7183 = vadd.f32 %v6332, %v7023
  %v7184 = vadd.f32 %v6335, %v7026
  %v7185 = vadd.f32 %v6340, %v7031
  %v7186 = vadd.f32 %v6343, %v7034
  %v7187 = vadd.f32 %v6348, %v7039
  %v7188 = vadd.f32 %v6351, %v7042
  %v7189 = vadd.f32 %v6356, %v7047
  %v7190 = vadd.f32 %v6359, %v7050
  %v7191 = vadd.f32 %v6364, %v7055
  %v7192 = vadd.f32 %v6367, %v7058
  %v7193 = vadd.f32 %v6372, %v7063
  %v7194 = vadd.f32 %v6375, %v7066
  %v7195 = vadd.f32 %v6380, %v7071
  %v7196 = vadd.f32 %v6383, %v7074
  %v7197 = vadd.f32 %v6388, %v7079
  %v7198 = vadd.f32 %v6391, %v7082
  %v7199 = vadd.f32 %v6396, %v7087
  %v7200 = vadd.f32 %v6399, %v7090
  %v7201 = vadd.f32 %v6404, %v7095
  %v7202 = vadd.f32 %v6407, %v7098
  %v7203 = vadd.f32 %v6412, %v7103
  %v7204 = vadd.f32 %v6415, %v7106
  %v7205 = vadd.f32 %v6420, %v7111
  %v7206 = vadd.f32 %v6423, %v7114
  %v7207 = vadd.f32 %v6428, %v7119
  %v7208 = vadd.f32 %v6431, %v7122
  %v7209 = vadd.f32 %v6436, %v7127
  %v7210 = vadd.f32 %v6439, %v7130
  %v7211 = vadd.f32 %v6444, %v7135
  %v7212 = vadd.f32 %v6447, %v7138
  %v7213 = vpack.c.bf16 %v880, %v872
  %v7214 = vpack.c.bf16 %v896, %v888
  %v7215 = vpack.c.bf16 %v912, %v904
  %v7216 = vpack.c.bf16 %v928, %v920
  %v7217 = vpack.c.bf16 %v944, %v936
  %v7218 = vpack.c.bf16 %v960, %v952
  %v7219 = vpack.c.bf16 %v968, %v968
  %v7220 = vld [vmem:[%s2 + $0x7e0] sm:$0xf]
  %v7221 = vld [vmem:[%s2 + $0x7e4] sm:$0xf]
  %v7222 = vld [vmem:[%s2 + $0x7e8] sm:$0xf]
  %v7223 = vld [vmem:[%s2 + $0x7ec] sm:$0xf]
  %v7224 = vld [vmem:[%s2 + $0x7f0] sm:$0xf]
  %v7225 = vld [vmem:[%s2 + $0x7f4] sm:$0xf]
  %v7226 = vld [vmem:[%s2 + $0x7f8] sm:$0xf]
  %v7227 = vld [vmem:[%s2 + $0x7fc] sm:$0xf]
  %v7228 = vld [vmem:[%s2 + $0x800] sm:$0xf]
  %v7229 = vld [vmem:[%s2 + $0x804] sm:$0xf]
  %v7230 = vld [vmem:[%s2 + $0x808] sm:$0xf]
  %v7231 = vld [vmem:[%s2 + $0x80c] sm:$0xf]
  %v7232 = vld [vmem:[%s2 + $0x810] sm:$0xf]
  %v7233 = vld [vmem:[%s2 + $0x814] sm:$0xf]
  %v7234 = vld [vmem:[%s2 + $0x818] sm:$0xf]
  %v7235 = vld [vmem:[%s2 + $0x81c] sm:$0xf]
  %v7236 = vld [vmem:[%s2 + $0x820] sm:$0xf]
  %v7237 = vld [vmem:[%s2 + $0x824] sm:$0xf]
  %v7238 = vld [vmem:[%s2 + $0x828] sm:$0xf]
  %v7239 = vld [vmem:[%s2 + $0x82c] sm:$0xf]
  %v7240 = vld [vmem:[%s2 + $0x830] sm:$0xf]
  %v7241 = vld [vmem:[%s2 + $0x834] sm:$0xf]
  %v7242 = vld [vmem:[%s2 + $0x838] sm:$0xf]
  %v7243 = vld [vmem:[%s2 + $0x83c] sm:$0xf]
  %v7244 = vld [vmem:[%s2 + $0x840] sm:$0xf]
  %v7245 = vld [vmem:[%s2 + $0x844] sm:$0xf]
  %v7246 = vld [vmem:[%s2 + $0x848] sm:$0xf]
  %v7247 = vld [vmem:[%s2 + $0x84c] sm:$0xf]
  %v7248 = vld [vmem:[%s2 + $0x850] sm:$0xf]
  %v7249 = vld [vmem:[%s2 + $0x854] sm:$0xf]
  %v7250 = vld [vmem:[%s2 + $0x858] sm:$0xf]
  %v7251 = vld [vmem:[%s2 + $0x85c] sm:$0xf]
  %v7252 = vld [vmem:[%s2 + $0x860] sm:$0xf]
  %v7253 = vld [vmem:[%s2 + $0x864] sm:$0xf]
  %v7254 = vld [vmem:[%s2 + $0x868] sm:$0xf]
  %v7255 = vld [vmem:[%s2 + $0x86c] sm:$0xf]
  %v7256 = vld [vmem:[%s2 + $0x870] sm:$0xf]
  %v7257 = vld [vmem:[%s2 + $0x874] sm:$0xf]
  %v7258 = vld [vmem:[%s2 + $0x878] sm:$0xf]
  %v7259 = vld [vmem:[%s2 + $0x87c] sm:$0xf]
  %v7260 = vld [vmem:[%s2 + $0x880] sm:$0xf]
  %v7261 = vld [vmem:[%s2 + $0x884] sm:$0xf]
  %v7262 = vld [vmem:[%s2 + $0x888] sm:$0xf]
  %v7263 = vld [vmem:[%s2 + $0x88c] sm:$0xf]
  %v7264 = vld [vmem:[%s2 + $0x890] sm:$0xf]
  %v7265 = vld [vmem:[%s2 + $0x894] sm:$0xf]
  %v7266 = vld [vmem:[%s2 + $0x898] sm:$0xf]
  %v7267 = vld [vmem:[%s2 + $0x89c] sm:$0xf]
  %v7268 = vld [vmem:[%s2 + $0x8a0] sm:$0xf]
  %v7269 = vld [vmem:[%s2 + $0x8a4] sm:$0xf]
  %v7270 = vld [vmem:[%s2 + $0x8a8] sm:$0xf]
  %v7271 = vld [vmem:[%s2 + $0x8ac] sm:$0xf]
  %v7272 = vld [vmem:[%s2 + $0x8b0] sm:$0xf]
  %v7273 = vld [vmem:[%s2 + $0x8b4] sm:$0xf]
  %v7274 = vld [vmem:[%s2 + $0x8b8] sm:$0xf]
  %v7275 = vld [vmem:[%s2 + $0x8bc] sm:$0xf]
  %v7276 = vld [vmem:[%s2 + $0x8c0] sm:$0xf]
  %v7277 = vld [vmem:[%s2 + $0x8c4] sm:$0xf]
  %v7278 = vld [vmem:[%s2 + $0x8c8] sm:$0xf]
  %v7279 = vld [vmem:[%s2 + $0x8cc] sm:$0xf]
  %v7280 = vld [vmem:[%s2 + $0x8d0] sm:$0xf]
  %v7281 = vld [vmem:[%s2 + $0x8d4] sm:$0xf]
  %v7282 = vld [vmem:[%s2 + $0x8d8] sm:$0xf]
  %v7283 = vld [vmem:[%s2 + $0x8dc] sm:$0xf]
  %v7284 = vld [vmem:[%s2 + $0x8e0] sm:$0xf]
  %v7285 = vld [vmem:[%s2 + $0x8e4] sm:$0xf]
  %v7286 = vld [vmem:[%s2 + $0x8e8] sm:$0xf]
  %v7287 = vld [vmem:[%s2 + $0x8ec] sm:$0xf]
  %v7288 = vld [vmem:[%s2 + $0x8f0] sm:$0xf]
  %v7289 = vld [vmem:[%s2 + $0x8f4] sm:$0xf]
  %v7290 = vld [vmem:[%s2 + $0x8f8] sm:$0xf]
  %v7291 = vld [vmem:[%s2 + $0x8fc] sm:$0xf]
  %v7364 = vunpack.c.l.b16 %v7220
  %v7365 = vunpack.c.l.b16 %v7221
  %v7366 = vunpack.c.l.b16 %v7222
  %v7367 = vunpack.c.l.b16 %v7223
  %v7368 = vunpack.c.l.b16 %v7224
  %v7369 = vunpack.c.l.b16 %v7225
  %v7370 = vunpack.c.l.b16 %v7226
  %v7371 = vunpack.c.l.b16 %v7227
  %v7372 = vunpack.c.l.b16 %v7228
  %v7373 = vunpack.c.l.b16 %v7229
  %v7374 = vunpack.c.l.b16 %v7230
  %v7375 = vunpack.c.l.b16 %v7231
  %v7376 = vunpack.c.l.b16 %v7232
  %v7377 = vunpack.c.l.b16 %v7233
  %v7378 = vunpack.c.l.b16 %v7234
  %v7379 = vunpack.c.l.b16 %v7235
  %v7380 = vunpack.c.l.b16 %v7236
  %v7381 = vunpack.c.l.b16 %v7237
  %v7382 = vunpack.c.l.b16 %v7238
  %v7383 = vunpack.c.l.b16 %v7239
  %v7384 = vunpack.c.l.b16 %v7240
  %v7385 = vunpack.c.l.b16 %v7241
  %v7386 = vunpack.c.l.b16 %v7242
  %v7387 = vunpack.c.l.b16 %v7243
  %v7388 = vunpack.c.l.b16 %v7244
  %v7389 = vunpack.c.l.b16 %v7245
  %v7390 = vunpack.c.l.b16 %v7246
  %v7391 = vunpack.c.l.b16 %v7247
  %v7392 = vunpack.c.l.b16 %v7248
  %v7393 = vunpack.c.l.b16 %v7249
  %v7394 = vunpack.c.l.b16 %v7250
  %v7395 = vunpack.c.l.b16 %v7251
  %v7396 = vunpack.c.l.b16 %v7252
  %v7397 = vunpack.c.l.b16 %v7253
  %v7398 = vunpack.c.l.b16 %v7254
  %v7399 = vunpack.c.l.b16 %v7255
  %v7400 = vunpack.c.l.b16 %v7256
  %v7401 = vunpack.c.l.b16 %v7257
  %v7402 = vunpack.c.l.b16 %v7258
  %v7403 = vunpack.c.l.b16 %v7259
  %v7404 = vunpack.c.l.b16 %v7260
  %v7405 = vunpack.c.l.b16 %v7261
  %v7406 = vunpack.c.l.b16 %v7262
  %v7407 = vunpack.c.l.b16 %v7263
  %v7408 = vunpack.c.l.b16 %v7264
  %v7409 = vunpack.c.l.b16 %v7265
  %v7410 = vunpack.c.l.b16 %v7266
  %v7411 = vunpack.c.l.b16 %v7267
  %v7412 = vunpack.c.l.b16 %v7268
  %v7413 = vunpack.c.l.b16 %v7269
  %v7414 = vunpack.c.l.b16 %v7270
  %v7415 = vunpack.c.l.b16 %v7271
  %v7416 = vunpack.c.l.b16 %v7272
  %v7417 = vunpack.c.l.b16 %v7273
  %v7418 = vunpack.c.l.b16 %v7274
  %v7419 = vunpack.c.l.b16 %v7275
  %v7420 = vunpack.c.l.b16 %v7276
  %v7421 = vunpack.c.l.b16 %v7277
  %v7422 = vunpack.c.l.b16 %v7278
  %v7423 = vunpack.c.l.b16 %v7279
  %v7424 = vunpack.c.l.b16 %v7280
  %v7425 = vunpack.c.l.b16 %v7281
  %v7426 = vunpack.c.l.b16 %v7282
  %v7427 = vunpack.c.l.b16 %v7283
  %v7428 = vunpack.c.l.b16 %v7284
  %v7429 = vunpack.c.l.b16 %v7285
  %v7430 = vunpack.c.l.b16 %v7286
  %v7431 = vunpack.c.l.b16 %v7287
  %v7432 = vunpack.c.l.b16 %v7288
  %v7433 = vunpack.c.l.b16 %v7289
  %v7434 = vunpack.c.l.b16 %v7290
  %v7435 = vunpack.c.l.b16 %v7291
  %v7436 = vpack.c.b16 %v7365, %v7364
  %v7437 = vpack.c.b16 %v7367, %v7366
  %v7438 = vpack.c.b16 %v7369, %v7368
  %v7439 = vpack.c.b16 %v7371, %v7370
  %v7440 = vpack.c.b16 %v7373, %v7372
  %v7441 = vpack.c.b16 %v7375, %v7374
  %v7442 = vpack.c.b16 %v7377, %v7376
  %v7443 = vpack.c.b16 %v7379, %v7378
  %v7444 = vpack.c.b16 %v7381, %v7380
  %v7445 = vpack.c.b16 %v7383, %v7382
  %v7446 = vpack.c.b16 %v7385, %v7384
  %v7447 = vpack.c.b16 %v7387, %v7386
  %v7448 = vpack.c.b16 %v7389, %v7388
  %v7449 = vpack.c.b16 %v7391, %v7390
  %v7450 = vpack.c.b16 %v7393, %v7392
  %v7451 = vpack.c.b16 %v7395, %v7394
  %v7452 = vpack.c.b16 %v7397, %v7396
  %v7453 = vpack.c.b16 %v7399, %v7398
  %v7454 = vpack.c.b16 %v7401, %v7400
  %v7455 = vpack.c.b16 %v7403, %v7402
  %v7456 = vpack.c.b16 %v7405, %v7404
  %v7457 = vpack.c.b16 %v7407, %v7406
  %v7458 = vpack.c.b16 %v7409, %v7408
  %v7459 = vpack.c.b16 %v7411, %v7410
  %v7460 = vpack.c.b16 %v7413, %v7412
  %v7461 = vpack.c.b16 %v7415, %v7414
  %v7462 = vpack.c.b16 %v7417, %v7416
  %v7463 = vpack.c.b16 %v7419, %v7418
  %v7464 = vpack.c.b16 %v7421, %v7420
  %v7465 = vpack.c.b16 %v7423, %v7422
  %v7466 = vpack.c.b16 %v7425, %v7424
  %v7467 = vpack.c.b16 %v7427, %v7426
  %v7468 = vpack.c.b16 %v7429, %v7428
  %v7469 = vpack.c.b16 %v7431, %v7430
  %v7470 = vpack.c.b16 %v7433, %v7432
  %v7471 = vpack.c.b16 %v7435, %v7434
  %v7473 = vsel %vm1391, %v7436, 0
  %v7476 = vsel %vm1391, %v7437, 0
  %v7479 = vsel %vm1391, %v7438, 0
  %v7482 = vsel %vm1391, %v7439, 0
  %v7485 = vsel %vm1391, %v7440, 0
  %v7488 = vsel %vm1391, %v7441, 0
  %v7491 = vsel %vm1391, %v7442, 0
  %v7494 = vsel %vm1391, %v7443, 0
  %v7497 = vsel %vm1391, %v7444, 0
  %v7500 = vsel %vm1391, %v7445, 0
  %v7503 = vsel %vm1391, %v7446, 0
  %v7506 = vsel %vm1391, %v7447, 0
  %v7509 = vsel %vm1391, %v7448, 0
  %v7512 = vsel %vm1391, %v7449, 0
  %v7515 = vsel %vm1391, %v7450, 0
  %v7518 = vsel %vm1391, %v7451, 0
  %v7521 = vsel %vm1391, %v7452, 0
  %v7524 = vsel %vm1391, %v7453, 0
  %v7527 = vsel %vm1391, %v7454, 0
  %v7530 = vsel %vm1391, %v7455, 0
  %v7533 = vsel %vm1391, %v7456, 0
  %v7536 = vsel %vm1391, %v7457, 0
  %v7539 = vsel %vm1391, %v7458, 0
  %v7542 = vsel %vm1391, %v7459, 0
  %v7545 = vsel %vm1391, %v7460, 0
  %v7548 = vsel %vm1391, %v7461, 0
  %v7551 = vsel %vm1391, %v7462, 0
  %v7554 = vsel %vm1391, %v7463, 0
  %v7557 = vsel %vm1391, %v7464, 0
  %v7560 = vsel %vm1391, %v7465, 0
  %v7563 = vsel %vm1391, %v7466, 0
  %v7566 = vsel %vm1391, %v7467, 0
  %v7569 = vsel %vm1391, %v7468, 0
  %v7572 = vsel %vm1391, %v7469, 0
  %v7575 = vsel %vm1391, %v7470, 0
  %v7578 = vsel %vm1391, %v7471, 0
  %v7581 = vsel %vm1500, %v7219, 0
  %7583 = vmatprep.subr.bf16.mxu0 0
  %7584 = vmatpush1.bf16.msra.mxu0 %v7213
  %7585 = vmatprep.subr.bf16.mxu0 0
  %7586 = vmatpush1.bf16.msra.mxu0 %v7214
  %7587 = vmatprep.subr.bf16.mxu0 0
  %7588 = vmatpush1.bf16.msra.mxu0 %v7215
  %7589 = vmatprep.subr.bf16.mxu0 0
  %7590 = vmatpush1.bf16.msra.mxu0 %v7216
  %7591 = vmatprep.subr.bf16.mxu0 0
  %7592 = vmatpush1.bf16.msra.mxu0 %v7217
  %7593 = vmatprep.subr.bf16.mxu0 0
  %7594 = vmatpush1.bf16.msra.mxu0 %v7218
  %7595 = vmatprep.subr.bf16.mxu0 0
  %7596 = vmatpush1.bf16.msra.mxu0 %v7581
  %7597 = vmatprep.subr.bf16.mxu0 0
  %7598 = vmatpush1.bf16.msra.mxu0 0
  %7599 = vmatprep.subr.bf16.mxu0 0
  %7600 = vmatpush1.bf16.msra.mxu0 0
  %7601 = vmatprep.subr.bf16.mxu0 0
  %7602 = vmatpush1.bf16.msra.mxu0 0
  %7603 = vmatprep.subr.bf16.mxu0 0
  %7604 = vmatpush1.bf16.msra.mxu0 0
  %7605 = vmatprep.subr.bf16.mxu0 0
  %7606 = vmatpush1.bf16.msra.mxu0 0
  %7607 = vmatprep.subr.bf16.mxu0 0
  %7608 = vmatpush1.bf16.msra.mxu0 0
  %7609 = vmatprep.subr.bf16.mxu0 0
  %7610 = vmatpush1.bf16.msra.mxu0 0
  %7611 = vmatprep.subr.bf16.mxu0 0
  %7612 = vmatpush1.bf16.msra.mxu0 0
  %7613 = vmatprep.subr.bf16.mxu0 0
  %7614 = vmatpush1.bf16.msra.mxu0 0
  %7615 = vmatprep.mubr.bf16.mxu0 0
  %7616 = vmatmul.mubr.bf16.gmra.mrb[0].mxu0 %v7473
  %v7617 = vpop.f32.mrb[0].mxu0
  %v7618 = vadd.f32 0.0, %v7617
  %v7619 = vpop.f32.mrb[0].mxu0
  %v7620 = vpop.f32.mrb[0].mxu0
  %v7621 = vadd.f32 0.0, %v7620
  %v7622 = vpop.f32.mrb[0].mxu0
  %7623 = vmatprep.mubr.bf16.mxu0 0
  %7624 = vmatmul.mubr.bf16.gmra.mrb[0].mxu0 %v7476
  %v7625 = vpop.f32.mrb[0].mxu0
  %v7626 = vadd.f32 0.0, %v7625
  %v7627 = vpop.f32.mrb[0].mxu0
  %v7628 = vpop.f32.mrb[0].mxu0
  %v7629 = vadd.f32 0.0, %v7628
  %v7630 = vpop.f32.mrb[0].mxu0
  %7631 = vmatprep.mubr.bf16.mxu0 0
  %7632 = vmatmul.mubr.bf16.gmra.mrb[0].mxu0 %v7479
  %v7633 = vpop.f32.mrb[0].mxu0
  %v7634 = vadd.f32 0.0, %v7633
  %v7635 = vpop.f32.mrb[0].mxu0
  %v7636 = vpop.f32.mrb[0].mxu0
  %v7637 = vadd.f32 0.0, %v7636
  %v7638 = vpop.f32.mrb[0].mxu0
  %7639 = vmatprep.mubr.bf16.mxu0 0
  %7640 = vmatmul.mubr.bf16.gmra.mrb[0].mxu0 %v7482
  %v7641 = vpop.f32.mrb[0].mxu0
  %v7642 = vadd.f32 0.0, %v7641
  %v7643 = vpop.f32.mrb[0].mxu0
  %v7644 = vpop.f32.mrb[0].mxu0
  %v7645 = vadd.f32 0.0, %v7644
  %v7646 = vpop.f32.mrb[0].mxu0
  %7647 = vmatprep.mubr.bf16.mxu0 0
  %7648 = vmatmul.mubr.bf16.gmra.mrb[0].mxu0 %v7485
  %v7649 = vpop.f32.mrb[0].mxu0
  %v7650 = vadd.f32 0.0, %v7649
  %v7651 = vpop.f32.mrb[0].mxu0
  %v7652 = vpop.f32.mrb[0].mxu0
  %v7653 = vadd.f32 0.0, %v7652
  %v7654 = vpop.f32.mrb[0].mxu0
  %7655 = vmatprep.mubr.bf16.mxu0 0
  %7656 = vmatmul.mubr.bf16.gmra.mrb[0].mxu0 %v7488
  %v7657 = vpop.f32.mrb[0].mxu0
  %v7658 = vadd.f32 0.0, %v7657
  %v7659 = vpop.f32.mrb[0].mxu0
  %v7660 = vpop.f32.mrb[0].mxu0
  %v7661 = vadd.f32 0.0, %v7660
  %v7662 = vpop.f32.mrb[0].mxu0
  %7663 = vmatprep.mubr.bf16.mxu0 0
  %7664 = vmatmul.mubr.bf16.gmra.mrb[0].mxu0 %v7491
  %v7665 = vpop.f32.mrb[0].mxu0
  %v7666 = vadd.f32 0.0, %v7665
  %v7667 = vpop.f32.mrb[0].mxu0
  %v7668 = vpop.f32.mrb[0].mxu0
  %v7669 = vadd.f32 0.0, %v7668
  %v7670 = vpop.f32.mrb[0].mxu0
  %7671 = vmatprep.mubr.bf16.mxu0 0
  %7672 = vmatmul.mubr.bf16.gmra.mrb[0].mxu0 %v7494
  %v7673 = vpop.f32.mrb[0].mxu0
  %v7674 = vadd.f32 0.0, %v7673
  %v7675 = vpop.f32.mrb[0].mxu0
  %v7676 = vpop.f32.mrb[0].mxu0
  %v7677 = vadd.f32 0.0, %v7676
  %v7678 = vpop.f32.mrb[0].mxu0
  %7679 = vmatprep.mubr.bf16.mxu0 0
  %7680 = vmatmul.mubr.bf16.gmra.mrb[0].mxu0 %v7497
  %v7681 = vpop.f32.mrb[0].mxu0
  %v7682 = vadd.f32 0.0, %v7681
  %v7683 = vpop.f32.mrb[0].mxu0
  %v7684 = vpop.f32.mrb[0].mxu0
  %v7685 = vadd.f32 0.0, %v7684
  %v7686 = vpop.f32.mrb[0].mxu0
  %7687 = vmatprep.mubr.bf16.mxu0 0
  %7688 = vmatmul.mubr.bf16.gmra.mrb[0].mxu0 %v7500
  %v7689 = vpop.f32.mrb[0].mxu0
  %v7690 = vadd.f32 0.0, %v7689
  %v7691 = vpop.f32.mrb[0].mxu0
  %v7692 = vpop.f32.mrb[0].mxu0
  %v7693 = vadd.f32 0.0, %v7692
  %v7694 = vpop.f32.mrb[0].mxu0
  %7695 = vmatprep.mubr.bf16.mxu0 0
  %7696 = vmatmul.mubr.bf16.gmra.mrb[0].mxu0 %v7503
  %v7697 = vpop.f32.mrb[0].mxu0
  %v7698 = vadd.f32 0.0, %v7697
  %v7699 = vpop.f32.mrb[0].mxu0
  %v7700 = vpop.f32.mrb[0].mxu0
  %v7701 = vadd.f32 0.0, %v7700
  %v7702 = vpop.f32.mrb[0].mxu0
  %7703 = vmatprep.mubr.bf16.mxu0 0
  %7704 = vmatmul.mubr.bf16.gmra.mrb[0].mxu0 %v7506
  %v7705 = vpop.f32.mrb[0].mxu0
  %v7706 = vadd.f32 0.0, %v7705
  %v7707 = vpop.f32.mrb[0].mxu0
  %v7708 = vpop.f32.mrb[0].mxu0
  %v7709 = vadd.f32 0.0, %v7708
  %v7710 = vpop.f32.mrb[0].mxu0
  %7711 = vmatprep.mubr.bf16.mxu0 0
  %7712 = vmatmul.mubr.bf16.gmra.mrb[0].mxu0 %v7509
  %v7713 = vpop.f32.mrb[0].mxu0
  %v7714 = vadd.f32 0.0, %v7713
  %v7715 = vpop.f32.mrb[0].mxu0
  %v7716 = vpop.f32.mrb[0].mxu0
  %v7717 = vadd.f32 0.0, %v7716
  %v7718 = vpop.f32.mrb[0].mxu0
  %7719 = vmatprep.mubr.bf16.mxu0 0
  %7720 = vmatmul.mubr.bf16.gmra.mrb[0].mxu0 %v7512
  %v7721 = vpop.f32.mrb[0].mxu0
  %v7722 = vadd.f32 0.0, %v7721
  %v7723 = vpop.f32.mrb[0].mxu0
  %v7724 = vpop.f32.mrb[0].mxu0
  %v7725 = vadd.f32 0.0, %v7724
  %v7726 = vpop.f32.mrb[0].mxu0
  %7727 = vmatprep.mubr.bf16.mxu0 0
  %7728 = vmatmul.mubr.bf16.gmra.mrb[0].mxu0 %v7515
  %v7729 = vpop.f32.mrb[0].mxu0
  %v7730 = vadd.f32 0.0, %v7729
  %v7731 = vpop.f32.mrb[0].mxu0
  %v7732 = vpop.f32.mrb[0].mxu0
  %v7733 = vadd.f32 0.0, %v7732
  %v7734 = vpop.f32.mrb[0].mxu0
  %7735 = vmatprep.mubr.bf16.mxu0 0
  %7736 = vmatmul.mubr.bf16.gmra.mrb[0].mxu0 %v7518
  %v7737 = vpop.f32.mrb[0].mxu0
  %v7738 = vadd.f32 0.0, %v7737
  %v7739 = vpop.f32.mrb[0].mxu0
  %v7740 = vpop.f32.mrb[0].mxu0
  %v7741 = vadd.f32 0.0, %v7740
  %v7742 = vpop.f32.mrb[0].mxu0
  %7743 = vmatprep.mubr.bf16.mxu0 0
  %7744 = vmatmul.mubr.bf16.gmra.mrb[0].mxu0 %v7521
  %v7745 = vpop.f32.mrb[0].mxu0
  %v7746 = vadd.f32 0.0, %v7745
  %v7747 = vpop.f32.mrb[0].mxu0
  %v7748 = vpop.f32.mrb[0].mxu0
  %v7749 = vadd.f32 0.0, %v7748
  %v7750 = vpop.f32.mrb[0].mxu0
  %7751 = vmatprep.mubr.bf16.mxu0 0
  %7752 = vmatmul.mubr.bf16.gmra.mrb[0].mxu0 %v7524
  %v7753 = vpop.f32.mrb[0].mxu0
  %v7754 = vadd.f32 0.0, %v7753
  %v7755 = vpop.f32.mrb[0].mxu0
  %v7756 = vpop.f32.mrb[0].mxu0
  %v7757 = vadd.f32 0.0, %v7756
  %v7758 = vpop.f32.mrb[0].mxu0
  %7759 = vmatprep.mubr.bf16.mxu0 0
  %7760 = vmatmul.mubr.bf16.gmra.mrb[0].mxu0 %v7527
  %v7761 = vpop.f32.mrb[0].mxu0
  %v7762 = vadd.f32 0.0, %v7761
  %v7763 = vpop.f32.mrb[0].mxu0
  %v7764 = vpop.f32.mrb[0].mxu0
  %v7765 = vadd.f32 0.0, %v7764
  %v7766 = vpop.f32.mrb[0].mxu0
  %7767 = vmatprep.mubr.bf16.mxu0 0
  %7768 = vmatmul.mubr.bf16.gmra.mrb[0].mxu0 %v7530
  %v7769 = vpop.f32.mrb[0].mxu0
  %v7770 = vadd.f32 0.0, %v7769
  %v7771 = vpop.f32.mrb[0].mxu0
  %v7772 = vpop.f32.mrb[0].mxu0
  %v7773 = vadd.f32 0.0, %v7772
  %v7774 = vpop.f32.mrb[0].mxu0
  %7775 = vmatprep.mubr.bf16.mxu0 0
  %7776 = vmatmul.mubr.bf16.gmra.mrb[0].mxu0 %v7533
  %v7777 = vpop.f32.mrb[0].mxu0
  %v7778 = vadd.f32 0.0, %v7777
  %v7779 = vpop.f32.mrb[0].mxu0
  %v7780 = vpop.f32.mrb[0].mxu0
  %v7781 = vadd.f32 0.0, %v7780
  %v7782 = vpop.f32.mrb[0].mxu0
  %7783 = vmatprep.mubr.bf16.mxu0 0
  %7784 = vmatmul.mubr.bf16.gmra.mrb[0].mxu0 %v7536
  %v7785 = vpop.f32.mrb[0].mxu0
  %v7786 = vadd.f32 0.0, %v7785
  %v7787 = vpop.f32.mrb[0].mxu0
  %v7788 = vpop.f32.mrb[0].mxu0
  %v7789 = vadd.f32 0.0, %v7788
  %v7790 = vpop.f32.mrb[0].mxu0
  %7791 = vmatprep.mubr.bf16.mxu0 0
  %7792 = vmatmul.mubr.bf16.gmra.mrb[0].mxu0 %v7539
  %v7793 = vpop.f32.mrb[0].mxu0
  %v7794 = vadd.f32 0.0, %v7793
  %v7795 = vpop.f32.mrb[0].mxu0
  %v7796 = vpop.f32.mrb[0].mxu0
  %v7797 = vadd.f32 0.0, %v7796
  %v7798 = vpop.f32.mrb[0].mxu0
  %7799 = vmatprep.mubr.bf16.mxu0 0
  %7800 = vmatmul.mubr.bf16.gmra.mrb[0].mxu0 %v7542
  %v7801 = vpop.f32.mrb[0].mxu0
  %v7802 = vadd.f32 0.0, %v7801
  %v7803 = vpop.f32.mrb[0].mxu0
  %v7804 = vpop.f32.mrb[0].mxu0
  %v7805 = vadd.f32 0.0, %v7804
  %v7806 = vpop.f32.mrb[0].mxu0
  %7807 = vmatprep.mubr.bf16.mxu0 0
  %7808 = vmatmul.mubr.bf16.gmra.mrb[0].mxu0 %v7545
  %v7809 = vpop.f32.mrb[0].mxu0
  %v7810 = vadd.f32 0.0, %v7809
  %v7811 = vpop.f32.mrb[0].mxu0
  %v7812 = vpop.f32.mrb[0].mxu0
  %v7813 = vadd.f32 0.0, %v7812
  %v7814 = vpop.f32.mrb[0].mxu0
  %7815 = vmatprep.mubr.bf16.mxu0 0
  %7816 = vmatmul.mubr.bf16.gmra.mrb[0].mxu0 %v7548
  %v7817 = vpop.f32.mrb[0].mxu0
  %v7818 = vadd.f32 0.0, %v7817
  %v7819 = vpop.f32.mrb[0].mxu0
  %v7820 = vpop.f32.mrb[0].mxu0
  %v7821 = vadd.f32 0.0, %v7820
  %v7822 = vpop.f32.mrb[0].mxu0
  %7823 = vmatprep.mubr.bf16.mxu0 0
  %7824 = vmatmul.mubr.bf16.gmra.mrb[0].mxu0 %v7551
  %v7825 = vpop.f32.mrb[0].mxu0
  %v7826 = vadd.f32 0.0, %v7825
  %v7827 = vpop.f32.mrb[0].mxu0
  %v7828 = vpop.f32.mrb[0].mxu0
  %v7829 = vadd.f32 0.0, %v7828
  %v7830 = vpop.f32.mrb[0].mxu0
  %7831 = vmatprep.mubr.bf16.mxu0 0
  %7832 = vmatmul.mubr.bf16.gmra.mrb[0].mxu0 %v7554
  %v7833 = vpop.f32.mrb[0].mxu0
  %v7834 = vadd.f32 0.0, %v7833
  %v7835 = vpop.f32.mrb[0].mxu0
  %v7836 = vpop.f32.mrb[0].mxu0
  %v7837 = vadd.f32 0.0, %v7836
  %v7838 = vpop.f32.mrb[0].mxu0
  %7839 = vmatprep.mubr.bf16.mxu0 0
  %7840 = vmatmul.mubr.bf16.gmra.mrb[0].mxu0 %v7557
  %v7841 = vpop.f32.mrb[0].mxu0
  %v7842 = vadd.f32 0.0, %v7841
  %v7843 = vpop.f32.mrb[0].mxu0
  %v7844 = vpop.f32.mrb[0].mxu0
  %v7845 = vadd.f32 0.0, %v7844
  %v7846 = vpop.f32.mrb[0].mxu0
  %7847 = vmatprep.mubr.bf16.mxu0 0
  %7848 = vmatmul.mubr.bf16.gmra.mrb[0].mxu0 %v7560
  %v7849 = vpop.f32.mrb[0].mxu0
  %v7850 = vadd.f32 0.0, %v7849
  %v7851 = vpop.f32.mrb[0].mxu0
  %v7852 = vpop.f32.mrb[0].mxu0
  %v7853 = vadd.f32 0.0, %v7852
  %v7854 = vpop.f32.mrb[0].mxu0
  %7855 = vmatprep.mubr.bf16.mxu0 0
  %7856 = vmatmul.mubr.bf16.gmra.mrb[0].mxu0 %v7563
  %v7857 = vpop.f32.mrb[0].mxu0
  %v7858 = vadd.f32 0.0, %v7857
  %v7859 = vpop.f32.mrb[0].mxu0
  %v7860 = vpop.f32.mrb[0].mxu0
  %v7861 = vadd.f32 0.0, %v7860
  %v7862 = vpop.f32.mrb[0].mxu0
  %7863 = vmatprep.mubr.bf16.mxu0 0
  %7864 = vmatmul.mubr.bf16.gmra.mrb[0].mxu0 %v7566
  %v7865 = vpop.f32.mrb[0].mxu0
  %v7866 = vadd.f32 0.0, %v7865
  %v7867 = vpop.f32.mrb[0].mxu0
  %v7868 = vpop.f32.mrb[0].mxu0
  %v7869 = vadd.f32 0.0, %v7868
  %v7870 = vpop.f32.mrb[0].mxu0
  %7871 = vmatprep.mubr.bf16.mxu0 0
  %7872 = vmatmul.mubr.bf16.gmra.mrb[0].mxu0 %v7569
  %v7873 = vpop.f32.mrb[0].mxu0
  %v7874 = vadd.f32 0.0, %v7873
  %v7875 = vpop.f32.mrb[0].mxu0
  %v7876 = vpop.f32.mrb[0].mxu0
  %v7877 = vadd.f32 0.0, %v7876
  %v7878 = vpop.f32.mrb[0].mxu0
  %7879 = vmatprep.mubr.bf16.mxu0 0
  %7880 = vmatmul.mubr.bf16.gmra.mrb[0].mxu0 %v7572
  %v7881 = vpop.f32.mrb[0].mxu0
  %v7882 = vadd.f32 0.0, %v7881
  %v7883 = vpop.f32.mrb[0].mxu0
  %v7884 = vpop.f32.mrb[0].mxu0
  %v7885 = vadd.f32 0.0, %v7884
  %v7886 = vpop.f32.mrb[0].mxu0
  %7887 = vmatprep.mubr.bf16.mxu0 0
  %7888 = vmatmul.mubr.bf16.gmra.mrb[0].mxu0 %v7575
  %v7889 = vpop.f32.mrb[0].mxu0
  %v7890 = vadd.f32 0.0, %v7889
  %v7891 = vpop.f32.mrb[0].mxu0
  %v7892 = vpop.f32.mrb[0].mxu0
  %v7893 = vadd.f32 0.0, %v7892
  %v7894 = vpop.f32.mrb[0].mxu0
  %7895 = vmatprep.mubr.bf16.mxu0 0
  %7896 = vmatmul.mubr.bf16.gmra.mrb[0].mxu0 %v7578
  %v7897 = vpop.f32.mrb[0].mxu0
  %v7898 = vadd.f32 0.0, %v7897
  %v7899 = vpop.f32.mrb[0].mxu0
  %v7900 = vpop.f32.mrb[0].mxu0
  %v7901 = vadd.f32 0.0, %v7900
  %v7902 = vpop.f32.mrb[0].mxu0
  %7903 = vdwg.mxu0
  %v7904 = vadd.f32 %v7141, %v7618
  %v7905 = vadd.f32 %v7142, %v7621
  %v7906 = vadd.f32 %v7143, %v7626
  %v7907 = vadd.f32 %v7144, %v7629
  %v7908 = vadd.f32 %v7145, %v7634
  %v7909 = vadd.f32 %v7146, %v7637
  %v7910 = vadd.f32 %v7147, %v7642
  %v7911 = vadd.f32 %v7148, %v7645
  %v7912 = vadd.f32 %v7149, %v7650
  %v7913 = vadd.f32 %v7150, %v7653
  %v7914 = vadd.f32 %v7151, %v7658
  %v7915 = vadd.f32 %v7152, %v7661
  %v7916 = vadd.f32 %v7153, %v7666
  %v7917 = vadd.f32 %v7154, %v7669
  %v7918 = vadd.f32 %v7155, %v7674
  %v7919 = vadd.f32 %v7156, %v7677
  %v7920 = vadd.f32 %v7157, %v7682
  %v7921 = vadd.f32 %v7158, %v7685
  %v7922 = vadd.f32 %v7159, %v7690
  %v7923 = vadd.f32 %v7160, %v7693
  %v7924 = vadd.f32 %v7161, %v7698
  %v7925 = vadd.f32 %v7162, %v7701
  %v7926 = vadd.f32 %v7163, %v7706
  %v7927 = vadd.f32 %v7164, %v7709
  %v7928 = vadd.f32 %v7165, %v7714
  %v7929 = vadd.f32 %v7166, %v7717
  %v7930 = vadd.f32 %v7167, %v7722
  %v7931 = vadd.f32 %v7168, %v7725
  %v7932 = vadd.f32 %v7169, %v7730
  %v7933 = vadd.f32 %v7170, %v7733
  %v7934 = vadd.f32 %v7171, %v7738
  %v7935 = vadd.f32 %v7172, %v7741
  %v7936 = vadd.f32 %v7173, %v7746
  %v7937 = vadd.f32 %v7174, %v7749
  %v7938 = vadd.f32 %v7175, %v7754
  %v7939 = vadd.f32 %v7176, %v7757
  %v7940 = vadd.f32 %v7177, %v7762
  %v7941 = vadd.f32 %v7178, %v7765
  %v7942 = vadd.f32 %v7179, %v7770
  %v7943 = vadd.f32 %v7180, %v7773
  %v7944 = vadd.f32 %v7181, %v7778
  %v7945 = vadd.f32 %v7182, %v7781
  %v7946 = vadd.f32 %v7183, %v7786
  %v7947 = vadd.f32 %v7184, %v7789
  %v7948 = vadd.f32 %v7185, %v7794
  %v7949 = vadd.f32 %v7186, %v7797
  %v7950 = vadd.f32 %v7187, %v7802
  %v7951 = vadd.f32 %v7188, %v7805
  %v7952 = vadd.f32 %v7189, %v7810
  %v7953 = vadd.f32 %v7190, %v7813
  %v7954 = vadd.f32 %v7191, %v7818
  %v7955 = vadd.f32 %v7192, %v7821
  %v7956 = vadd.f32 %v7193, %v7826
  %v7957 = vadd.f32 %v7194, %v7829
  %v7958 = vadd.f32 %v7195, %v7834
  %v7959 = vadd.f32 %v7196, %v7837
  %v7960 = vadd.f32 %v7197, %v7842
  %v7961 = vadd.f32 %v7198, %v7845
  %v7962 = vadd.f32 %v7199, %v7850
  %v7963 = vadd.f32 %v7200, %v7853
  %v7964 = vadd.f32 %v7201, %v7858
  %v7965 = vadd.f32 %v7202, %v7861
  %v7966 = vadd.f32 %v7203, %v7866
  %v7967 = vadd.f32 %v7204, %v7869
  %v7968 = vadd.f32 %v7205, %v7874
  %v7969 = vadd.f32 %v7206, %v7877
  %v7970 = vadd.f32 %v7207, %v7882
  %v7971 = vadd.f32 %v7208, %v7885
  %v7972 = vadd.f32 %v7209, %v7890
  %v7973 = vadd.f32 %v7210, %v7893
  %v7974 = vadd.f32 %v7211, %v7898
  %v7975 = vadd.f32 %v7212, %v7901
  %7977 = vset.pattern.permute.xlu0 0
  %7978 = vperm.xlu0 %7977, %v4984
  %v7979 = vpop.permute.xlu0 %7978
  %7982 = vset.pattern.permute.xlu0 0
  %7983 = vperm.xlu0 %7982, %v4985
  %v7984 = vpop.permute.xlu0 %7983
  %7987 = vset.pattern.permute.xlu0 0
  %7988 = vperm.xlu0 %7987, %v4986
  %v7989 = vpop.permute.xlu0 %7988
  %7992 = vset.pattern.permute.xlu0 0
  %7993 = vperm.xlu0 %7992, %v4987
  %v7994 = vpop.permute.xlu0 %7993
  %7997 = vset.pattern.permute.xlu0 0
  %7998 = vperm.xlu0 %7997, %v4988
  %v7999 = vpop.permute.xlu0 %7998
  %8002 = vset.pattern.permute.xlu0 0
  %8003 = vperm.xlu0 %8002, %v4989
  %v8004 = vpop.permute.xlu0 %8003
  %8007 = vset.pattern.permute.xlu0 0
  %8008 = vperm.xlu0 %8007, %v4990
  %v8009 = vpop.permute.xlu0 %8008
  %8012 = vset.pattern.permute.xlu0 0
  %8013 = vperm.xlu0 %8012, %v4991
  %v8014 = vpop.permute.xlu0 %8013
  %8017 = vset.pattern.permute.xlu0 0
  %8018 = vperm.xlu0 %8017, %v4992
  %v8019 = vpop.permute.xlu0 %8018
  %8022 = vset.pattern.permute.xlu0 0
  %8023 = vperm.xlu0 %8022, %v4993
  %v8024 = vpop.permute.xlu0 %8023
  %8027 = vset.pattern.permute.xlu0 0
  %8028 = vperm.xlu0 %8027, %v4994
  %v8029 = vpop.permute.xlu0 %8028
  %8032 = vset.pattern.permute.xlu0 0
  %8033 = vperm.xlu0 %8032, %v4995
  %v8034 = vpop.permute.xlu0 %8033
  %8037 = vset.pattern.permute.xlu0 0
  %8038 = vperm.xlu0 %8037, %v4996
  %v8039 = vpop.permute.xlu0 %8038
  %8042 = vset.pattern.permute.xlu0 0
  %8043 = vperm.xlu0 %8042, %v4997
  %v8044 = vpop.permute.xlu0 %8043
  %8047 = vset.pattern.permute.xlu0 0
  %8048 = vperm.xlu0 %8047, %v4998
  %v8049 = vpop.permute.xlu0 %8048
  %8052 = vset.pattern.permute.xlu0 0
  %8053 = vperm.xlu0 %8052, %v4999
  %v8054 = vpop.permute.xlu0 %8053
  %8057 = vset.pattern.permute.xlu0 0
  %8058 = vperm.xlu0 %8057, %v5000
  %v8059 = vpop.permute.xlu0 %8058
  %8062 = vset.pattern.permute.xlu0 0
  %8063 = vperm.xlu0 %8062, %v5001
  %v8064 = vpop.permute.xlu0 %8063
  %8067 = vset.pattern.permute.xlu0 0
  %8068 = vperm.xlu0 %8067, %v5002
  %v8069 = vpop.permute.xlu0 %8068
  %8072 = vset.pattern.permute.xlu0 0
  %8073 = vperm.xlu0 %8072, %v5003
  %v8074 = vpop.permute.xlu0 %8073
  %8077 = vset.pattern.permute.xlu0 0
  %8078 = vperm.xlu0 %8077, %v5004
  %v8079 = vpop.permute.xlu0 %8078
  %8082 = vset.pattern.permute.xlu0 0
  %8083 = vperm.xlu0 %8082, %v5005
  %v8084 = vpop.permute.xlu0 %8083
  %8087 = vset.pattern.permute.xlu0 0
  %8088 = vperm.xlu0 %8087, %v5006
  %v8089 = vpop.permute.xlu0 %8088
  %8092 = vset.pattern.permute.xlu0 0
  %8093 = vperm.xlu0 %8092, %v5007
  %v8094 = vpop.permute.xlu0 %8093
  %8097 = vset.pattern.permute.xlu0 0
  %8098 = vperm.xlu0 %8097, %v5008
  %v8099 = vpop.permute.xlu0 %8098
  %8102 = vset.pattern.permute.xlu0 0
  %8103 = vperm.xlu0 %8102, %v5009
  %v8104 = vpop.permute.xlu0 %8103
  %8107 = vset.pattern.permute.xlu0 0
  %8108 = vperm.xlu0 %8107, %v5010
  %v8109 = vpop.permute.xlu0 %8108
  %8112 = vset.pattern.permute.xlu0 0
  %8113 = vperm.xlu0 %8112, %v5011
  %v8114 = vpop.permute.xlu0 %8113
  %8117 = vset.pattern.permute.xlu0 0
  %8118 = vperm.xlu0 %8117, %v5012
  %v8119 = vpop.permute.xlu0 %8118
  %8122 = vset.pattern.permute.xlu0 0
  %8123 = vperm.xlu0 %8122, %v5013
  %v8124 = vpop.permute.xlu0 %8123
  %8127 = vset.pattern.permute.xlu0 0
  %8128 = vperm.xlu0 %8127, %v5014
  %v8129 = vpop.permute.xlu0 %8128
  %8132 = vset.pattern.permute.xlu0 0
  %8133 = vperm.xlu0 %8132, %v5015
  %v8134 = vpop.permute.xlu0 %8133
  %8137 = vset.pattern.permute.xlu0 0
  %8138 = vperm.xlu0 %8137, %v5016
  %v8139 = vpop.permute.xlu0 %8138
  %8142 = vset.pattern.permute.xlu0 0
  %8143 = vperm.xlu0 %8142, %v5017
  %v8144 = vpop.permute.xlu0 %8143
  %8147 = vset.pattern.permute.xlu0 0
  %8148 = vperm.xlu0 %8147, %v5018
  %v8149 = vpop.permute.xlu0 %8148
  %8152 = vset.pattern.permute.xlu0 0
  %8153 = vperm.xlu0 %8152, %v5019
  %v8154 = vpop.permute.xlu0 %8153
  %8157 = vset.pattern.permute.xlu0 0
  %8158 = vperm.xlu0 %8157, %v5020
  %v8159 = vpop.permute.xlu0 %8158
  %8162 = vset.pattern.permute.xlu0 0
  %8163 = vperm.xlu0 %8162, %v5021
  %v8164 = vpop.permute.xlu0 %8163
  %8167 = vset.pattern.permute.xlu0 0
  %8168 = vperm.xlu0 %8167, %v5022
  %v8169 = vpop.permute.xlu0 %8168
  %8172 = vset.pattern.permute.xlu0 0
  %8173 = vperm.xlu0 %8172, %v5023
  %v8174 = vpop.permute.xlu0 %8173
  %8177 = vset.pattern.permute.xlu0 0
  %8178 = vperm.xlu0 %8177, %v5024
  %v8179 = vpop.permute.xlu0 %8178
  %8182 = vset.pattern.permute.xlu0 0
  %8183 = vperm.xlu0 %8182, %v5025
  %v8184 = vpop.permute.xlu0 %8183
  %8187 = vset.pattern.permute.xlu0 0
  %8188 = vperm.xlu0 %8187, %v5026
  %v8189 = vpop.permute.xlu0 %8188
  %8192 = vset.pattern.permute.xlu0 0
  %8193 = vperm.xlu0 %8192, %v5027
  %v8194 = vpop.permute.xlu0 %8193
  %8197 = vset.pattern.permute.xlu0 0
  %8198 = vperm.xlu0 %8197, %v5028
  %v8199 = vpop.permute.xlu0 %8198
  %8202 = vset.pattern.permute.xlu0 0
  %8203 = vperm.xlu0 %8202, %v5029
  %v8204 = vpop.permute.xlu0 %8203
  %8207 = vset.pattern.permute.xlu0 0
  %8208 = vperm.xlu0 %8207, %v5030
  %v8209 = vpop.permute.xlu0 %8208
  %8212 = vset.pattern.permute.xlu0 0
  %8213 = vperm.xlu0 %8212, %v5031
  %v8214 = vpop.permute.xlu0 %8213
  %8217 = vset.pattern.permute.xlu0 0
  %8218 = vperm.xlu0 %8217, %v5032
  %v8219 = vpop.permute.xlu0 %8218
  %8222 = vset.pattern.permute.xlu0 0
  %8223 = vperm.xlu0 %8222, %v5033
  %v8224 = vpop.permute.xlu0 %8223
  %8227 = vset.pattern.permute.xlu0 0
  %8228 = vperm.xlu0 %8227, %v5034
  %v8229 = vpop.permute.xlu0 %8228
  %8232 = vset.pattern.permute.xlu0 0
  %8233 = vperm.xlu0 %8232, %v5035
  %v8234 = vpop.permute.xlu0 %8233
  %8237 = vset.pattern.permute.xlu0 0
  %8238 = vperm.xlu0 %8237, %v5036
  %v8239 = vpop.permute.xlu0 %8238
  %8242 = vset.pattern.permute.xlu0 0
  %8243 = vperm.xlu0 %8242, %v5037
  %v8244 = vpop.permute.xlu0 %8243
  %8247 = vset.pattern.permute.xlu0 0
  %8248 = vperm.xlu0 %8247, %v5038
  %v8249 = vpop.permute.xlu0 %8248
  %8252 = vset.pattern.permute.xlu0 0
  %8253 = vperm.xlu0 %8252, %v5039
  %v8254 = vpop.permute.xlu0 %8253
  %8257 = vset.pattern.permute.xlu0 0
  %8258 = vperm.xlu0 %8257, %v5040
  %v8259 = vpop.permute.xlu0 %8258
  %8262 = vset.pattern.permute.xlu0 0
  %8263 = vperm.xlu0 %8262, %v5041
  %v8264 = vpop.permute.xlu0 %8263
  %8267 = vset.pattern.permute.xlu0 0
  %8268 = vperm.xlu0 %8267, %v5042
  %v8269 = vpop.permute.xlu0 %8268
  %8272 = vset.pattern.permute.xlu0 0
  %8273 = vperm.xlu0 %8272, %v5043
  %v8274 = vpop.permute.xlu0 %8273
  %8277 = vset.pattern.permute.xlu0 0
  %8278 = vperm.xlu0 %8277, %v5044
  %v8279 = vpop.permute.xlu0 %8278
  %8282 = vset.pattern.permute.xlu0 0
  %8283 = vperm.xlu0 %8282, %v5045
  %v8284 = vpop.permute.xlu0 %8283
  %8287 = vset.pattern.permute.xlu0 0
  %8288 = vperm.xlu0 %8287, %v5046
  %v8289 = vpop.permute.xlu0 %8288
  %8292 = vset.pattern.permute.xlu0 0
  %8293 = vperm.xlu0 %8292, %v5047
  %v8294 = vpop.permute.xlu0 %8293
  %8297 = vset.pattern.permute.xlu0 0
  %8298 = vperm.xlu0 %8297, %v5048
  %v8299 = vpop.permute.xlu0 %8298
  %8302 = vset.pattern.permute.xlu0 0
  %8303 = vperm.xlu0 %8302, %v5049
  %v8304 = vpop.permute.xlu0 %8303
  %8307 = vset.pattern.permute.xlu0 0
  %8308 = vperm.xlu0 %8307, %v5050
  %v8309 = vpop.permute.xlu0 %8308
  %8312 = vset.pattern.permute.xlu0 0
  %8313 = vperm.xlu0 %8312, %v5051
  %v8314 = vpop.permute.xlu0 %8313
  %8317 = vset.pattern.permute.xlu0 0
  %8318 = vperm.xlu0 %8317, %v5052
  %v8319 = vpop.permute.xlu0 %8318
  %8322 = vset.pattern.permute.xlu0 0
  %8323 = vperm.xlu0 %8322, %v5053
  %v8324 = vpop.permute.xlu0 %8323
  %8327 = vset.pattern.permute.xlu0 0
  %8328 = vperm.xlu0 %8327, %v5054
  %v8329 = vpop.permute.xlu0 %8328
  %8332 = vset.pattern.permute.xlu0 0
  %8333 = vperm.xlu0 %8332, %v5055
  %v8334 = vpop.permute.xlu0 %8333
  %v8336 = vadd.f32 %v7904, %v7979
  %v8337 = vadd.f32 %v7905, %v7984
  %v8338 = vadd.f32 %v7906, %v7989
  %v8339 = vadd.f32 %v7907, %v7994
  %v8340 = vadd.f32 %v7908, %v7999
  %v8341 = vadd.f32 %v7909, %v8004
  %v8342 = vadd.f32 %v7910, %v8009
  %v8343 = vadd.f32 %v7911, %v8014
  %v8344 = vadd.f32 %v7912, %v8019
  %v8345 = vadd.f32 %v7913, %v8024
  %v8346 = vadd.f32 %v7914, %v8029
  %v8347 = vadd.f32 %v7915, %v8034
  %v8348 = vadd.f32 %v7916, %v8039
  %v8349 = vadd.f32 %v7917, %v8044
  %v8350 = vadd.f32 %v7918, %v8049
  %v8351 = vadd.f32 %v7919, %v8054
  %v8352 = vadd.f32 %v7920, %v8059
  %v8353 = vadd.f32 %v7921, %v8064
  %v8354 = vadd.f32 %v7922, %v8069
  %v8355 = vadd.f32 %v7923, %v8074
  %v8356 = vadd.f32 %v7924, %v8079
  %v8357 = vadd.f32 %v7925, %v8084
  %v8358 = vadd.f32 %v7926, %v8089
  %v8359 = vadd.f32 %v7927, %v8094
  %v8360 = vadd.f32 %v7928, %v8099
  %v8361 = vadd.f32 %v7929, %v8104
  %v8362 = vadd.f32 %v7930, %v8109
  %v8363 = vadd.f32 %v7931, %v8114
  %v8364 = vadd.f32 %v7932, %v8119
  %v8365 = vadd.f32 %v7933, %v8124
  %v8366 = vadd.f32 %v7934, %v8129
  %v8367 = vadd.f32 %v7935, %v8134
  %v8368 = vadd.f32 %v7936, %v8139
  %v8369 = vadd.f32 %v7937, %v8144
  %v8370 = vadd.f32 %v7938, %v8149
  %v8371 = vadd.f32 %v7939, %v8154
  %v8372 = vadd.f32 %v7940, %v8159
  %v8373 = vadd.f32 %v7941, %v8164
  %v8374 = vadd.f32 %v7942, %v8169
  %v8375 = vadd.f32 %v7943, %v8174
  %v8376 = vadd.f32 %v7944, %v8179
  %v8377 = vadd.f32 %v7945, %v8184
  %v8378 = vadd.f32 %v7946, %v8189
  %v8379 = vadd.f32 %v7947, %v8194
  %v8380 = vadd.f32 %v7948, %v8199
  %v8381 = vadd.f32 %v7949, %v8204
  %v8382 = vadd.f32 %v7950, %v8209
  %v8383 = vadd.f32 %v7951, %v8214
  %v8384 = vadd.f32 %v7952, %v8219
  %v8385 = vadd.f32 %v7953, %v8224
  %v8386 = vadd.f32 %v7954, %v8229
  %v8387 = vadd.f32 %v7955, %v8234
  %v8388 = vadd.f32 %v7956, %v8239
  %v8389 = vadd.f32 %v7957, %v8244
  %v8390 = vadd.f32 %v7958, %v8249
  %v8391 = vadd.f32 %v7959, %v8254
  %v8392 = vadd.f32 %v7960, %v8259
  %v8393 = vadd.f32 %v7961, %v8264
  %v8394 = vadd.f32 %v7962, %v8269
  %v8395 = vadd.f32 %v7963, %v8274
  %v8396 = vadd.f32 %v7964, %v8279
  %v8397 = vadd.f32 %v7965, %v8284
  %v8398 = vadd.f32 %v7966, %v8289
  %v8399 = vadd.f32 %v7967, %v8294
  %v8400 = vadd.f32 %v7968, %v8299
  %v8401 = vadd.f32 %v7969, %v8304
  %v8402 = vadd.f32 %v7970, %v8309
  %v8403 = vadd.f32 %v7971, %v8314
  %v8404 = vadd.f32 %v7972, %v8319
  %v8405 = vadd.f32 %v7973, %v8324
  %v8406 = vadd.f32 %v7974, %v8329
  %v8407 = vadd.f32 %v7975, %v8334
  %v8408 = vmax.f32 %v8336, 0.0
  %v8409 = vmax.f32 %v8337, 0.0
  %v8410 = vmax.f32 %v8338, 0.0
  %v8411 = vmax.f32 %v8339, 0.0
  %v8412 = vmax.f32 %v8340, 0.0
  %v8413 = vmax.f32 %v8341, 0.0
  %v8414 = vmax.f32 %v8342, 0.0
  %v8415 = vmax.f32 %v8343, 0.0
  %v8416 = vmax.f32 %v8344, 0.0
  %v8417 = vmax.f32 %v8345, 0.0
  %v8418 = vmax.f32 %v8346, 0.0
  %v8419 = vmax.f32 %v8347, 0.0
  %v8420 = vmax.f32 %v8348, 0.0
  %v8421 = vmax.f32 %v8349, 0.0
  %v8422 = vmax.f32 %v8350, 0.0
  %v8423 = vmax.f32 %v8351, 0.0
  %v8424 = vmax.f32 %v8352, 0.0
  %v8425 = vmax.f32 %v8353, 0.0
  %v8426 = vmax.f32 %v8354, 0.0
  %v8427 = vmax.f32 %v8355, 0.0
  %v8428 = vmax.f32 %v8356, 0.0
  %v8429 = vmax.f32 %v8357, 0.0
  %v8430 = vmax.f32 %v8358, 0.0
  %v8431 = vmax.f32 %v8359, 0.0
  %v8432 = vmax.f32 %v8360, 0.0
  %v8433 = vmax.f32 %v8361, 0.0
  %v8434 = vmax.f32 %v8362, 0.0
  %v8435 = vmax.f32 %v8363, 0.0
  %v8436 = vmax.f32 %v8364, 0.0
  %v8437 = vmax.f32 %v8365, 0.0
  %v8438 = vmax.f32 %v8366, 0.0
  %v8439 = vmax.f32 %v8367, 0.0
  %v8440 = vmax.f32 %v8368, 0.0
  %v8441 = vmax.f32 %v8369, 0.0
  %v8442 = vmax.f32 %v8370, 0.0
  %v8443 = vmax.f32 %v8371, 0.0
  %v8444 = vmax.f32 %v8372, 0.0
  %v8445 = vmax.f32 %v8373, 0.0
  %v8446 = vmax.f32 %v8374, 0.0
  %v8447 = vmax.f32 %v8375, 0.0
  %v8448 = vmax.f32 %v8376, 0.0
  %v8449 = vmax.f32 %v8377, 0.0
  %v8450 = vmax.f32 %v8378, 0.0
  %v8451 = vmax.f32 %v8379, 0.0
  %v8452 = vmax.f32 %v8380, 0.0
  %v8453 = vmax.f32 %v8381, 0.0
  %v8454 = vmax.f32 %v8382, 0.0
  %v8455 = vmax.f32 %v8383, 0.0
  %v8456 = vmax.f32 %v8384, 0.0
  %v8457 = vmax.f32 %v8385, 0.0
  %v8458 = vmax.f32 %v8386, 0.0
  %v8459 = vmax.f32 %v8387, 0.0
  %v8460 = vmax.f32 %v8388, 0.0
  %v8461 = vmax.f32 %v8389, 0.0
  %v8462 = vmax.f32 %v8390, 0.0
  %v8463 = vmax.f32 %v8391, 0.0
  %v8464 = vmax.f32 %v8392, 0.0
  %v8465 = vmax.f32 %v8393, 0.0
  %v8466 = vmax.f32 %v8394, 0.0
  %v8467 = vmax.f32 %v8395, 0.0
  %v8468 = vmax.f32 %v8396, 0.0
  %v8469 = vmax.f32 %v8397, 0.0
  %v8470 = vmax.f32 %v8398, 0.0
  %v8471 = vmax.f32 %v8399, 0.0
  %v8472 = vmax.f32 %v8400, 0.0
  %v8473 = vmax.f32 %v8401, 0.0
  %v8474 = vmax.f32 %v8402, 0.0
  %v8475 = vmax.f32 %v8403, 0.0
  %v8476 = vmax.f32 %v8404, 0.0
  %v8477 = vmax.f32 %v8405, 0.0
  %v8478 = vmax.f32 %v8406, 0.0
  %v8479 = vmax.f32 %v8407, 0.0
  %v8480 = vld [vmem:[%s3 + $0xa0] sm:$0xff]
  %v8481 = vld [vmem:[%s3 + $0xa8] sm:$0xff]
  %v8482 = vld [vmem:[%s3 + $0xb0] sm:$0xf]
  %v8483 = vld [vmem:[%s3 + $0xb4] sm:$0xff]
  %v8484 = vld [vmem:[%s3 + $0xbc] sm:$0xff]
  %v8485 = vld [vmem:[%s3 + $0xc4] sm:$0xf]
  %v8486 = vld [vmem:[%s3 + $0xc8] sm:$0xff]
  %v8487 = vld [vmem:[%s3 + $0xd0] sm:$0xff]
  %v8488 = vld [vmem:[%s3 + $0xd8] sm:$0xf]
  %v8489 = vld [vmem:[%s3 + $0xdc] sm:$0xff]
  %v8490 = vld [vmem:[%s3 + $0xe4] sm:$0xff]
  %v8491 = vld [vmem:[%s3 + $0xec] sm:$0xf]
  %v8492 = vld [vmem:[%s3 + $0xf0] sm:$0xff]
  %v8493 = vld [vmem:[%s3 + $0xf8] sm:$0xff]
  %v8494 = vld [vmem:[%s3 + $0x100] sm:$0xf]
  %v8495 = vld [vmem:[%s3 + $0x104] sm:$0xff]
  %v8496 = vld [vmem:[%s3 + $0x10c] sm:$0xff]
  %v8497 = vld [vmem:[%s3 + $0x114] sm:$0xf]
  %v8498 = vld [vmem:[%s3 + $0x118] sm:$0xff]
  %v8499 = vld [vmem:[%s3 + $0x120] sm:$0xff]
  %v8500 = vld [vmem:[%s3 + $0x128] sm:$0xf]
  %v8501 = vld [vmem:[%s3 + $0x12c] sm:$0xff]
  %v8502 = vld [vmem:[%s3 + $0x134] sm:$0xff]
  %v8503 = vld [vmem:[%s3 + $0x13c] sm:$0xf]
  %v8504 = vpack.c.bf16 %v8409, %v8408
  %v8505 = vpack.c.bf16 %v8411, %v8410
  %v8506 = vpack.c.bf16 %v8413, %v8412
  %v8507 = vpack.c.bf16 %v8415, %v8414
  %v8508 = vpack.c.bf16 %v8417, %v8416
  %v8509 = vpack.c.bf16 %v8419, %v8418
  %v8510 = vpack.c.bf16 %v8421, %v8420
  %v8511 = vpack.c.bf16 %v8423, %v8422
  %v8512 = vpack.c.bf16 %v8425, %v8424
  %v8513 = vpack.c.bf16 %v8427, %v8426
  %v8514 = vpack.c.bf16 %v8429, %v8428
  %v8515 = vpack.c.bf16 %v8431, %v8430
  %v8516 = vpack.c.bf16 %v8433, %v8432
  %v8517 = vpack.c.bf16 %v8435, %v8434
  %v8518 = vpack.c.bf16 %v8437, %v8436
  %v8519 = vpack.c.bf16 %v8439, %v8438
  %v8520 = vpack.c.bf16 %v8441, %v8440
  %v8521 = vpack.c.bf16 %v8443, %v8442
  %v8522 = vpack.c.bf16 %v8445, %v8444
  %v8523 = vpack.c.bf16 %v8447, %v8446
  %v8524 = vpack.c.bf16 %v8449, %v8448
  %v8525 = vpack.c.bf16 %v8451, %v8450
  %v8526 = vpack.c.bf16 %v8453, %v8452
  %v8527 = vpack.c.bf16 %v8455, %v8454
  %v8528 = vpack.c.bf16 %v8457, %v8456
  %v8529 = vpack.c.bf16 %v8459, %v8458
  %v8530 = vpack.c.bf16 %v8461, %v8460
  %v8531 = vpack.c.bf16 %v8463, %v8462
  %v8532 = vpack.c.bf16 %v8465, %v8464
  %v8533 = vpack.c.bf16 %v8467, %v8466
  %v8534 = vpack.c.bf16 %v8469, %v8468
  %v8535 = vpack.c.bf16 %v8471, %v8470
  %v8536 = vpack.c.bf16 %v8473, %v8472
  %v8537 = vpack.c.bf16 %v8475, %v8474
  %v8538 = vpack.c.bf16 %v8477, %v8476
  %v8539 = vpack.c.bf16 %v8479, %v8478
  %8541 = vset.pattern.permute.xlu0 0
  %8542 = vperm.xlu0 %8541, %v5056
  %v8543 = vpop.permute.xlu0 %8542
  %8546 = vset.pattern.permute.xlu0 0
  %8547 = vperm.xlu0 %8546, %v5057
  %v8548 = vpop.permute.xlu0 %8547
  %8551 = vset.pattern.permute.xlu0 0
  %8552 = vperm.xlu0 %8551, %v5058
  %v8553 = vpop.permute.xlu0 %8552
  %8556 = vset.pattern.permute.xlu0 0
  %8557 = vperm.xlu0 %8556, %v5059
  %v8558 = vpop.permute.xlu0 %8557
  %8561 = vset.pattern.permute.xlu0 0
  %8562 = vperm.xlu0 %8561, %v5060
  %v8563 = vpop.permute.xlu0 %8562
  %8566 = vset.pattern.permute.xlu0 0
  %8567 = vperm.xlu0 %8566, %v5061
  %v8568 = vpop.permute.xlu0 %8567
  %8571 = vset.pattern.permute.xlu0 0
  %8572 = vperm.xlu0 %8571, %v5062
  %v8573 = vpop.permute.xlu0 %8572
  %8576 = vset.pattern.permute.xlu0 0
  %8577 = vperm.xlu0 %8576, %v5063
  %v8578 = vpop.permute.xlu0 %8577
  %v8604 = vunpack.c.l.b16 %v8480
  %v8605 = vunpack.c.h.b16 %v8480
  %v8606 = vunpack.c.l.b16 %v8481
  %v8607 = vunpack.c.h.b16 %v8481
  %v8608 = vunpack.c.l.b16 %v8482
  %v8609 = vunpack.c.l.b16 %v8483
  %v8610 = vunpack.c.h.b16 %v8483
  %v8611 = vunpack.c.l.b16 %v8484
  %v8612 = vunpack.c.h.b16 %v8484
  %v8613 = vunpack.c.l.b16 %v8485
  %v8614 = vunpack.c.l.b16 %v8486
  %v8615 = vunpack.c.h.b16 %v8486
  %v8616 = vunpack.c.l.b16 %v8487
  %v8617 = vunpack.c.h.b16 %v8487
  %v8618 = vunpack.c.l.b16 %v8488
  %v8619 = vunpack.c.l.b16 %v8489
  %v8620 = vunpack.c.h.b16 %v8489
  %v8621 = vunpack.c.l.b16 %v8490
  %v8622 = vunpack.c.h.b16 %v8490
  %v8623 = vunpack.c.l.b16 %v8491
  %v8624 = vunpack.c.l.b16 %v8492
  %v8625 = vunpack.c.h.b16 %v8492
  %v8626 = vunpack.c.l.b16 %v8493
  %v8627 = vunpack.c.h.b16 %v8493
  %v8628 = vunpack.c.l.b16 %v8494
  %v8629 = vunpack.c.l.b16 %v8495
  %v8630 = vunpack.c.h.b16 %v8495
  %v8631 = vunpack.c.l.b16 %v8496
  %v8632 = vunpack.c.h.b16 %v8496
  %v8633 = vunpack.c.l.b16 %v8497
  %v8634 = vunpack.c.l.b16 %v8498
  %v8635 = vunpack.c.h.b16 %v8498
  %v8636 = vunpack.c.l.b16 %v8499
  %v8637 = vunpack.c.h.b16 %v8499
  %v8638 = vunpack.c.l.b16 %v8500
  %v8639 = vunpack.c.l.b16 %v8501
  %v8640 = vunpack.c.h.b16 %v8501
  %v8641 = vunpack.c.l.b16 %v8502
  %v8642 = vunpack.c.h.b16 %v8502
  %v8643 = vunpack.c.l.b16 %v8503
  %v8644 = vpack.c.b16 %v8609, %v8604
  %v8645 = vpack.c.b16 %v8610, %v8605
  %v8646 = vpack.c.b16 %v8611, %v8606
  %v8647 = vpack.c.b16 %v8612, %v8607
  %v8648 = vpack.c.b16 %v8613, %v8608
  %v8649 = vpack.c.b16 %v8619, %v8614
  %v8650 = vpack.c.b16 %v8620, %v8615
  %v8651 = vpack.c.b16 %v8621, %v8616
  %v8652 = vpack.c.b16 %v8622, %v8617
  %v8653 = vpack.c.b16 %v8623, %v8618
  %v8654 = vpack.c.b16 %v8629, %v8624
  %v8655 = vpack.c.b16 %v8630, %v8625
  %v8656 = vpack.c.b16 %v8631, %v8626
  %v8657 = vpack.c.b16 %v8632, %v8627
  %v8658 = vpack.c.b16 %v8633, %v8628
  %v8659 = vpack.c.b16 %v8639, %v8634
  %v8660 = vpack.c.b16 %v8640, %v8635
  %v8661 = vpack.c.b16 %v8641, %v8636
  %v8662 = vpack.c.b16 %v8642, %v8637
  %v8663 = vpack.c.b16 %v8643, %v8638
  %v8681 = vsel %vm4667, %v8648, 0
  %v8684 = vsel %vm4667, %v8653, 0
  %v8687 = vsel %vm4667, %v8658, 0
  %v8690 = vsel %vm4667, %v8663, 0
  %8692 = vmatprep.subr.bf16.mxu0 0
  %8693 = vmatpush1.bf16.msra.mxu0 %v8504
  %8694 = vmatprep.subr.bf16.mxu0 0
  %8695 = vmatpush1.bf16.msra.mxu0 %v8505
  %8696 = vmatprep.subr.bf16.mxu0 0
  %8697 = vmatpush1.bf16.msra.mxu0 %v8506
  %8698 = vmatprep.subr.bf16.mxu0 0
  %8699 = vmatpush1.bf16.msra.mxu0 %v8507
  %8700 = vmatprep.subr.bf16.mxu0 0
  %8701 = vmatpush1.bf16.msra.mxu0 %v8508
  %8702 = vmatprep.subr.bf16.mxu0 0
  %8703 = vmatpush1.bf16.msra.mxu0 %v8509
  %8704 = vmatprep.subr.bf16.mxu0 0
  %8705 = vmatpush1.bf16.msra.mxu0 %v8510
  %8706 = vmatprep.subr.bf16.mxu0 0
  %8707 = vmatpush1.bf16.msra.mxu0 %v8511
  %8708 = vmatprep.subr.bf16.mxu0 0
  %8709 = vmatpush1.bf16.msra.mxu0 %v8512
  %8710 = vmatprep.subr.bf16.mxu0 0
  %8711 = vmatpush1.bf16.msra.mxu0 %v8513
  %8712 = vmatprep.subr.bf16.mxu0 0
  %8713 = vmatpush1.bf16.msra.mxu0 %v8514
  %8714 = vmatprep.subr.bf16.mxu0 0
  %8715 = vmatpush1.bf16.msra.mxu0 %v8515
  %8716 = vmatprep.subr.bf16.mxu0 0
  %8717 = vmatpush1.bf16.msra.mxu0 %v8516
  %8718 = vmatprep.subr.bf16.mxu0 0
  %8719 = vmatpush1.bf16.msra.mxu0 %v8517
  %8720 = vmatprep.subr.bf16.mxu0 0
  %8721 = vmatpush1.bf16.msra.mxu0 %v8518
  %8722 = vmatprep.subr.bf16.mxu0 0
  %8723 = vmatpush1.bf16.msra.mxu0 %v8519
  %8724 = vmatprep.mubr.bf16.mxu0 %v8645
  %8725 = vmatmul.mubr.bf16.gmra.mrb[0].mxu0 %v8644
  %v8726 = vpop.f32.mrb[0].mxu0
  %v8727 = vadd.f32 %v8543, %v8726
  %v8728 = vpop.f32.mrb[0].mxu0
  %v8729 = vpop.f32.mrb[0].mxu0
  %v8730 = vadd.f32 %v8548, %v8729
  %v8731 = vpop.f32.mrb[0].mxu0
  %8732 = vmatprep.mubr.bf16.mxu0 %v8650
  %8733 = vmatmul.mubr.bf16.gmra.mrb[0].mxu0 %v8649
  %v8734 = vpop.f32.mrb[0].mxu0
  %v8735 = vadd.f32 %v8553, %v8734
  %v8736 = vpop.f32.mrb[0].mxu0
  %v8737 = vpop.f32.mrb[0].mxu0
  %v8738 = vadd.f32 %v8558, %v8737
  %v8739 = vpop.f32.mrb[0].mxu0
  %8740 = vmatprep.mubr.bf16.mxu0 %v8655
  %8741 = vmatmul.mubr.bf16.gmra.mrb[0].mxu0 %v8654
  %v8742 = vpop.f32.mrb[0].mxu0
  %v8743 = vadd.f32 %v8563, %v8742
  %v8744 = vpop.f32.mrb[0].mxu0
  %v8745 = vpop.f32.mrb[0].mxu0
  %v8746 = vadd.f32 %v8568, %v8745
  %v8747 = vpop.f32.mrb[0].mxu0
  %8748 = vmatprep.mubr.bf16.mxu0 %v8660
  %8749 = vmatmul.mubr.bf16.gmra.mrb[0].mxu0 %v8659
  %v8750 = vpop.f32.mrb[0].mxu0
  %v8751 = vadd.f32 %v8573, %v8750
  %v8752 = vpop.f32.mrb[0].mxu0
  %v8753 = vpop.f32.mrb[0].mxu0
  %v8754 = vadd.f32 %v8578, %v8753
  %v8755 = vpop.f32.mrb[0].mxu0
  %8756 = vdwg.mxu0
  %8757 = vmatprep.subr.bf16.mxu0 0
  %8758 = vmatpush1.bf16.msra.mxu0 %v8520
  %8759 = vmatprep.subr.bf16.mxu0 0
  %8760 = vmatpush1.bf16.msra.mxu0 %v8521
  %8761 = vmatprep.subr.bf16.mxu0 0
  %8762 = vmatpush1.bf16.msra.mxu0 %v8522
  %8763 = vmatprep.subr.bf16.mxu0 0
  %8764 = vmatpush1.bf16.msra.mxu0 %v8523
  %8765 = vmatprep.subr.bf16.mxu0 0
  %8766 = vmatpush1.bf16.msra.mxu0 %v8524
  %8767 = vmatprep.subr.bf16.mxu0 0
  %8768 = vmatpush1.bf16.msra.mxu0 %v8525
  %8769 = vmatprep.subr.bf16.mxu0 0
  %8770 = vmatpush1.bf16.msra.mxu0 %v8526
  %8771 = vmatprep.subr.bf16.mxu0 0
  %8772 = vmatpush1.bf16.msra.mxu0 %v8527
  %8773 = vmatprep.subr.bf16.mxu0 0
  %8774 = vmatpush1.bf16.msra.mxu0 %v8528
  %8775 = vmatprep.subr.bf16.mxu0 0
  %8776 = vmatpush1.bf16.msra.mxu0 %v8529
  %8777 = vmatprep.subr.bf16.mxu0 0
  %8778 = vmatpush1.bf16.msra.mxu0 %v8530
  %8779 = vmatprep.subr.bf16.mxu0 0
  %8780 = vmatpush1.bf16.msra.mxu0 %v8531
  %8781 = vmatprep.subr.bf16.mxu0 0
  %8782 = vmatpush1.bf16.msra.mxu0 %v8532
  %8783 = vmatprep.subr.bf16.mxu0 0
  %8784 = vmatpush1.bf16.msra.mxu0 %v8533
  %8785 = vmatprep.subr.bf16.mxu0 0
  %8786 = vmatpush1.bf16.msra.mxu0 %v8534
  %8787 = vmatprep.subr.bf16.mxu0 0
  %8788 = vmatpush1.bf16.msra.mxu0 %v8535
  %8789 = vmatprep.mubr.bf16.mxu0 %v8647
  %8790 = vmatmul.mubr.bf16.gmra.mrb[0].mxu0 %v8646
  %v8791 = vpop.f32.mrb[0].mxu0
  %v8792 = vadd.f32 %v8727, %v8791
  %v8793 = vpop.f32.mrb[0].mxu0
  %v8794 = vpop.f32.mrb[0].mxu0
  %v8795 = vadd.f32 %v8730, %v8794
  %v8796 = vpop.f32.mrb[0].mxu0
  %8797 = vmatprep.mubr.bf16.mxu0 %v8652
  %8798 = vmatmul.mubr.bf16.gmra.mrb[0].mxu0 %v8651
  %v8799 = vpop.f32.mrb[0].mxu0
  %v8800 = vadd.f32 %v8735, %v8799
  %v8801 = vpop.f32.mrb[0].mxu0
  %v8802 = vpop.f32.mrb[0].mxu0
  %v8803 = vadd.f32 %v8738, %v8802
  %v8804 = vpop.f32.mrb[0].mxu0
  %8805 = vmatprep.mubr.bf16.mxu0 %v8657
  %8806 = vmatmul.mubr.bf16.gmra.mrb[0].mxu0 %v8656
  %v8807 = vpop.f32.mrb[0].mxu0
  %v8808 = vadd.f32 %v8743, %v8807
  %v8809 = vpop.f32.mrb[0].mxu0
  %v8810 = vpop.f32.mrb[0].mxu0
  %v8811 = vadd.f32 %v8746, %v8810
  %v8812 = vpop.f32.mrb[0].mxu0
  %8813 = vmatprep.mubr.bf16.mxu0 %v8662
  %8814 = vmatmul.mubr.bf16.gmra.mrb[0].mxu0 %v8661
  %v8815 = vpop.f32.mrb[0].mxu0
  %v8816 = vadd.f32 %v8751, %v8815
  %v8817 = vpop.f32.mrb[0].mxu0
  %v8818 = vpop.f32.mrb[0].mxu0
  %v8819 = vadd.f32 %v8754, %v8818
  %v8820 = vpop.f32.mrb[0].mxu0
  %8821 = vdwg.mxu0
  %8822 = vmatprep.subr.bf16.mxu0 0
  %8823 = vmatpush1.bf16.msra.mxu0 %v8536
  %8824 = vmatprep.subr.bf16.mxu0 0
  %8825 = vmatpush1.bf16.msra.mxu0 %v8537
  %8826 = vmatprep.subr.bf16.mxu0 0
  %8827 = vmatpush1.bf16.msra.mxu0 %v8538
  %8828 = vmatprep.subr.bf16.mxu0 0
  %8829 = vmatpush1.bf16.msra.mxu0 %v8539
  %8830 = vmatprep.subr.bf16.mxu0 0
  %8831 = vmatpush1.bf16.msra.mxu0 0
  %8832 = vmatprep.subr.bf16.mxu0 0
  %8833 = vmatpush1.bf16.msra.mxu0 0
  %8834 = vmatprep.subr.bf16.mxu0 0
  %8835 = vmatpush1.bf16.msra.mxu0 0
  %8836 = vmatprep.subr.bf16.mxu0 0
  %8837 = vmatpush1.bf16.msra.mxu0 0
  %8838 = vmatprep.subr.bf16.mxu0 0
  %8839 = vmatpush1.bf16.msra.mxu0 0
  %8840 = vmatprep.subr.bf16.mxu0 0
  %8841 = vmatpush1.bf16.msra.mxu0 0
  %8842 = vmatprep.subr.bf16.mxu0 0
  %8843 = vmatpush1.bf16.msra.mxu0 0
  %8844 = vmatprep.subr.bf16.mxu0 0
  %8845 = vmatpush1.bf16.msra.mxu0 0
  %8846 = vmatprep.subr.bf16.mxu0 0
  %8847 = vmatpush1.bf16.msra.mxu0 0
  %8848 = vmatprep.subr.bf16.mxu0 0
  %8849 = vmatpush1.bf16.msra.mxu0 0
  %8850 = vmatprep.subr.bf16.mxu0 0
  %8851 = vmatpush1.bf16.msra.mxu0 0
  %8852 = vmatprep.subr.bf16.mxu0 0
  %8853 = vmatpush1.bf16.msra.mxu0 0
  %8854 = vmatprep.mubr.bf16.mxu0 0
  %8855 = vmatmul.mubr.bf16.gmra.mrb[0].mxu0 %v8681
  %v8856 = vpop.f32.mrb[0].mxu0
  %v8857 = vadd.f32 %v8792, %v8856
  %v8858 = vpop.f32.mrb[0].mxu0
  %v8859 = vpop.f32.mrb[0].mxu0
  %v8860 = vadd.f32 %v8795, %v8859
  %v8861 = vpop.f32.mrb[0].mxu0
  %8862 = vmatprep.mubr.bf16.mxu0 0
  %8863 = vmatmul.mubr.bf16.gmra.mrb[0].mxu0 %v8684
  %v8864 = vpop.f32.mrb[0].mxu0
  %v8865 = vadd.f32 %v8800, %v8864
  %v8866 = vpop.f32.mrb[0].mxu0
  %v8867 = vpop.f32.mrb[0].mxu0
  %v8868 = vadd.f32 %v8803, %v8867
  %v8869 = vpop.f32.mrb[0].mxu0
  %8870 = vmatprep.mubr.bf16.mxu0 0
  %8871 = vmatmul.mubr.bf16.gmra.mrb[0].mxu0 %v8687
  %v8872 = vpop.f32.mrb[0].mxu0
  %v8873 = vadd.f32 %v8808, %v8872
  %v8874 = vpop.f32.mrb[0].mxu0
  %v8875 = vpop.f32.mrb[0].mxu0
  %v8876 = vadd.f32 %v8811, %v8875
  %v8877 = vpop.f32.mrb[0].mxu0
  %8878 = vmatprep.mubr.bf16.mxu0 0
  %8879 = vmatmul.mubr.bf16.gmra.mrb[0].mxu0 %v8690
  %v8880 = vpop.f32.mrb[0].mxu0
  %v8881 = vadd.f32 %v8816, %v8880
  %v8882 = vpop.f32.mrb[0].mxu0
  %v8883 = vpop.f32.mrb[0].mxu0
  %v8884 = vadd.f32 %v8819, %v8883
  %v8885 = vpop.f32.mrb[0].mxu0
  %8886 = vdwg.mxu0
  %v8887 = vmax.f32 %v8857, 0.0
  %v8888 = vmax.f32 %v8860, 0.0
  %v8889 = vmax.f32 %v8865, 0.0
  %v8890 = vmax.f32 %v8868, 0.0
  %v8891 = vmax.f32 %v8873, 0.0
  %v8892 = vmax.f32 %v8876, 0.0
  %v8893 = vmax.f32 %v8881, 0.0
  %v8894 = vmax.f32 %v8884, 0.0
  %v8895 = vld [vmem:[%s4 + $0x10] sm:$0xf]
  %v8896 = vld [vmem:[%s4 + $0x14] sm:$0xf]
  %v8897 = vld [vmem:[%s4 + $0x18] sm:$0xf]
  %v8898 = vld [vmem:[%s4 + $0x1c] sm:$0xf]
  %v8899 = vpack.c.bf16 %v8888, %v8887
  %v8900 = vpack.c.bf16 %v8890, %v8889
  %v8901 = vpack.c.bf16 %v8892, %v8891
  %v8902 = vpack.c.bf16 %v8894, %v8893
  %8904 = vset.pattern.permute.xlu0 0
  %8905 = vperm.xlu0 %8904, %v5064
  %v8906 = vpop.permute.xlu0 %8905
  %8909 = vset.pattern.permute.xlu0 0
  %8910 = vperm.xlu0 %8909, %v5065
  %v8911 = vpop.permute.xlu0 %8910
  %8914 = vset.pattern.permute.xlu0 0
  %8915 = vperm.xlu0 %8914, %v5066
  %v8916 = vpop.permute.xlu0 %8915
  %8919 = vset.pattern.permute.xlu0 0
  %8920 = vperm.xlu0 %8919, %v5067
  %v8921 = vpop.permute.xlu0 %8920
  %v8927 = vunpack.c.l.b16 %v8895
  %v8928 = vunpack.c.l.b16 %v8896
  %v8929 = vunpack.c.l.b16 %v8897
  %v8930 = vunpack.c.l.b16 %v8898
  %v8931 = vpack.c.b16 %v8928, %v8927
  %v8932 = vpack.c.b16 %v8930, %v8929
  %v8934 = vsel %vm4667, %v8931, 0
  %v8937 = vsel %vm4667, %v8932, 0
  %8939 = vmatprep.subr.bf16.mxu0 0
  %8940 = vmatpush1.bf16.msra.mxu0 %v8899
  %8941 = vmatprep.subr.bf16.mxu0 0
  %8942 = vmatpush1.bf16.msra.mxu0 %v8900
  %8943 = vmatprep.subr.bf16.mxu0 0
  %8944 = vmatpush1.bf16.msra.mxu0 %v8901
  %8945 = vmatprep.subr.bf16.mxu0 0
  %8946 = vmatpush1.bf16.msra.mxu0 %v8902
  %8947 = vmatprep.subr.bf16.mxu0 0
  %8948 = vmatpush1.bf16.msra.mxu0 0
  %8949 = vmatprep.subr.bf16.mxu0 0
  %8950 = vmatpush1.bf16.msra.mxu0 0
  %8951 = vmatprep.subr.bf16.mxu0 0
  %8952 = vmatpush1.bf16.msra.mxu0 0
  %8953 = vmatprep.subr.bf16.mxu0 0
  %8954 = vmatpush1.bf16.msra.mxu0 0
  %8955 = vmatprep.subr.bf16.mxu0 0
  %8956 = vmatpush1.bf16.msra.mxu0 0
  %8957 = vmatprep.subr.bf16.mxu0 0
  %8958 = vmatpush1.bf16.msra.mxu0 0
  %8959 = vmatprep.subr.bf16.mxu0 0
  %8960 = vmatpush1.bf16.msra.mxu0 0
  %8961 = vmatprep.subr.bf16.mxu0 0
  %8962 = vmatpush1.bf16.msra.mxu0 0
  %8963 = vmatprep.subr.bf16.mxu0 0
  %8964 = vmatpush1.bf16.msra.mxu0 0
  %8965 = vmatprep.subr.bf16.mxu0 0
  %8966 = vmatpush1.bf16.msra.mxu0 0
  %8967 = vmatprep.subr.bf16.mxu0 0
  %8968 = vmatpush1.bf16.msra.mxu0 0
  %8969 = vmatprep.subr.bf16.mxu0 0
  %8970 = vmatpush1.bf16.msra.mxu0 0
  %8971 = vmatprep.mubr.bf16.mxu0 0
  %8972 = vmatmul.mubr.bf16.gmra.mrb[0].mxu0 %v8934
  %v8973 = vpop.f32.mrb[0].mxu0
  %v8974 = vadd.f32 %v8906, %v8973
  %v8975 = vpop.f32.mrb[0].mxu0
  %v8976 = vpop.f32.mrb[0].mxu0
  %v8977 = vadd.f32 %v8911, %v8976
  %v8978 = vpop.f32.mrb[0].mxu0
  %8979 = vmatprep.mubr.bf16.mxu0 0
  %8980 = vmatmul.mubr.bf16.gmra.mrb[0].mxu0 %v8937
  %v8981 = vpop.f32.mrb[0].mxu0
  %v8982 = vadd.f32 %v8916, %v8981
  %v8983 = vpop.f32.mrb[0].mxu0
  %v8984 = vpop.f32.mrb[0].mxu0
  %v8985 = vadd.f32 %v8921, %v8984
  %v8986 = vpop.f32.mrb[0].mxu0
  %8987 = vdwg.mxu0
  %v8988 = vmax.f32 %v8974, 0.0
  %v8989 = vmax.f32 %v8977, 0.0
  %v8990 = vmax.f32 %v8982, 0.0
  %v8991 = vmax.f32 %v8985, 0.0
  %8992 = vst [vmem:[%s6 + $0x20] sm:$0xff] %v8988
  %8993 = vst [vmem:[%s6 + $0x28] sm:$0xff] %v8989
  %8994 = vst [vmem:[%s6 + $0x30] sm:$0xff] %v8990
  %8995 = vst [vmem:[%s6 + $0x38] sm:$0xff] %v8991
  // Predicated region
  $region26: #{rnd_forward.1} parent=0 // pred_check
    _
  $region27: #{rnd_forward.1} parent=0 // pred_check_branch
    %8997 = sbr.rel (0) target = $region29
  $region28: #{rnd_forward.1} parent=0 // pred_region
    _
  $region29: #{rnd_forward.1} parent=0 // pred_fallthru
    _
  // Predicated region
  $region30: #{rnd_forward.1} parent=0 // pred_check
    _
  $region31: #{rnd_forward.1} parent=0 // pred_check_branch
    %8999 = sbr.rel (0) target = $region33
  $region32: #{rnd_forward.1} parent=0 // pred_region
    _
  $region33: #{rnd_forward.1} parent=0 // pred_fallthru
    _

</llo_original>
